<compile_context>
chip_gen: v7x
topology: tpu7x:2x2x1
jax: 0.10.0
libtpu: 0.0.40
codegen_flags: <defaults>
</compile_context>

<pallas_src>
import functools
import math

import numpy as np
import jax
import jax.numpy as jnp
from jax import lax
from jax.experimental import pallas as pl
from jax.experimental.pallas import tpu as pltpu

# ------------- small, hardware-friendly config (mirrors ModelArgs) -----------
DIM = 128                  # dim_embed
N_HEADS = 4
HEAD_DIM = DIM // N_HEADS  # 32
N_LAYERS = 2
VOCAB = 256
MAX_SEQ = 16
NUM_EXPERTS = 4
FFN_MULT = 4
HIDDEN = DIM * FFN_MULT    # 512
RMS_EPS = 1e-6             # RMSNorm default eps (module never passes norm_eps)


# ------------------------------ kernel helpers --------------------------------
def _rms(x, w, eps):
    ms = jnp.mean(x * x, axis=-1, keepdims=True)
    return w * (x * lax.rsqrt(ms + eps))


# ------------------------- fused whole-model kernel ---------------------------
def _model_kernel(x_ref, cos_ref, sin_ref, rot_ref, mask_ref,
                  n1w_ref, wqkv_ref, wo_ref,
                  n2w_ref, gatew_ref, gateb_ref,
                  w1_ref, w3_ref, w2_ref,
                  fnw_ref, outw_ref,
                  o_ref, h_scr, *, eps, scale):
    l = pl.program_id(0)

    @pl.when(l == 0)
    def _():
        h_scr[...] = x_ref[...]

    h = h_scr[...]                                       # (T, D) f32 residual
    T = h.shape[0]

    # ----- attention sub-block -----
    xn1 = _rms(h, n1w_ref[0], eps)
    qkv = jnp.dot(xn1.astype(jnp.bfloat16), wqkv_ref[0],
                  preferred_element_type=jnp.float32)    # (T, 3D)
    q = qkv[:, 0:DIM]
    k = qkv[:, DIM:2 * DIM]
    v = qkv[:, 2 * DIM:3 * DIM]

    cosf = cos_ref[...]                                  # (T, D) per-head tiled
    sinf = sin_ref[...]
    R = rot_ref[...]                                     # (D, D) rotate_half mat
    q = q * cosf + jnp.dot(q, R, preferred_element_type=jnp.float32) * sinf
    k = k * cosf + jnp.dot(k, R, preferred_element_type=jnp.float32) * sinf

    lane = lax.broadcasted_iota(jnp.int32, (1, DIM), 1)
    mask = mask_ref[...]                                 # (T, T) additive mask

    ctx = jnp.zeros((T, DIM), jnp.float32)
    for hd in range(N_HEADS):
        lo = hd * HEAD_DIM
        hmask = ((lane >= lo) & (lane < lo + HEAD_DIM)).astype(jnp.float32)
        # per-head scores via lane-masked full-width contraction
        s = lax.dot_general(q * hmask, k, (((1,), (1,)), ((), ())),
                            preferred_element_type=jnp.float32) * scale + mask
        m = jnp.max(s, axis=-1, keepdims=True)
        p = jnp.exp(s - m)
        p = p / jnp.sum(p, axis=-1, keepdims=True)
        ctx = ctx + jnp.dot(p, v * hmask, preferred_element_type=jnp.float32)
    h1 = h + jnp.dot(ctx.astype(jnp.bfloat16), wo_ref[0],
                     preferred_element_type=jnp.float32)

    # ----- MoE sub-block (gating / routing kept in f32) -----
    xn2 = _rms(h1, n2w_ref[0], eps)
    logits = jnp.dot(xn2, gatew_ref[0],
                     preferred_element_type=jnp.float32) + gateb_ref[0]  # (T, E)
    lm = jnp.max(logits, axis=-1, keepdims=True)
    pe = jnp.exp(logits - lm)
    probs = pe / jnp.sum(pe, axis=-1, keepdims=True)

    # top-2 routing (first-occurrence tie-break like torch.topk), renormalized
    ecol = lax.broadcasted_iota(jnp.int32, probs.shape, 1)
    m1 = jnp.max(probs, axis=-1, keepdims=True)
    i1 = jnp.min(jnp.where(probs == m1, ecol, NUM_EXPERTS), axis=-1, keepdims=True)
    pm = jnp.where(ecol == i1, -1.0, probs)
    m2 = jnp.max(pm, axis=-1, keepdims=True)
    i2 = jnp.min(jnp.where(pm == m2, ecol, NUM_EXPERTS), axis=-1, keepdims=True)
    topw = jnp.where((ecol == i1) | (ecol == i2), probs, 0.0)
    topw = topw / jnp.sum(topw, axis=-1, keepdims=True)  # (T, E)

    xn2b = xn2.astype(jnp.bfloat16)
    acc = jnp.zeros((T, DIM), jnp.float32)
    for e in range(NUM_EXPERTS):
        h1e = jnp.dot(xn2b, w1_ref[0, e], preferred_element_type=jnp.float32)
        h3e = jnp.dot(xn2b, w3_ref[0, e], preferred_element_type=jnp.float32)
        g = jnp.maximum(h1e, 0.0)
        g = g * g * h3e                                  # relu(w1 x)^2 * (w3 x)
        oe = jnp.dot(g.astype(jnp.bfloat16), w2_ref[0, e],
                     preferred_element_type=jnp.float32)                   # (T, D)
        we = jnp.sum(jnp.where(ecol == e, topw, 0.0), axis=-1, keepdims=True)
        acc = acc + we * oe

    h_new = h1 + acc
    h_scr[...] = h_new

    # ----- final RMSNorm + output head, on the last layer only -----
    @pl.when(l == pl.num_programs(0) - 1)
    def _():
        xnf = _rms(h_new, fnw_ref[...], eps)
        o_ref[...] = jnp.dot(xnf.astype(jnp.bfloat16), outw_ref[...],
                             preferred_element_type=jnp.float32).astype(o_ref.dtype)


# ------------------------------- JAX glue --------------------------------------
def _rope_consts(B, S):
    """RoPE cos/sin tables tiled to the flattened (B*S, D) layout, plus a
    constant block-diagonal matrix implementing rotate_half as a matmul."""
    inv_freq = 1.0 / (10000.0 ** (np.arange(0, HEAD_DIM, 2, dtype=np.float32)
                                  / HEAD_DIM))
    t = np.arange(S, dtype=np.float32)
    freqs = np.einsum("i,j->ij", t, inv_freq)                 # (S, Dh/2)
    emb = np.concatenate([freqs, freqs], axis=-1)             # (S, Dh)
    cosf = np.tile(np.cos(emb), (B, N_HEADS)).astype(np.float32)   # (B*S, D)
    sinf = np.tile(np.sin(emb), (B, N_HEADS)).astype(np.float32)
    half = HEAD_DIM // 2
    r = np.zeros((HEAD_DIM, HEAD_DIM), np.float32)
    r[np.arange(half) + half, np.arange(half)] = -1.0         # out[:half] = -x[half:]
    r[np.arange(half), np.arange(half) + half] = 1.0          # out[half:] =  x[:half]
    R = np.kron(np.eye(N_HEADS, dtype=np.float32), r)         # (D, D)
    return jnp.asarray(cosf), jnp.asarray(sinf), jnp.asarray(R)


def _attn_mask(B, S):
    """Block-diagonal (same batch) & causal additive mask for flattened rows."""
    T = B * S
    row = np.arange(T)[:, None]
    col = np.arange(T)[None, :]
    allowed = ((row // S) == (col // S)) & (col <= row)
    return jnp.asarray(np.where(allowed, 0.0, -np.inf).astype(np.float32))


def forward(params, tokens):
    B, S = tokens.shape
    T = B * S
    # TODO(synk): embedding gathers stay in plain JAX (could use scalar prefetch)
    h = jnp.take(params["token_embed"], tokens, axis=0)             # (B, S, D)
    h = h + jnp.take(params["pos_embed"], jnp.arange(S), axis=0)[None]
    x = h.reshape(T, DIM).astype(jnp.float32)

    cosf, sinf, rot = _rope_consts(B, S)
    mask = _attn_mask(B, S)

    c2 = lambda l: (0, 0)
    c3 = lambda l: (l, 0, 0)
    c4 = lambda l: (l, 0, 0, 0)
    p = params

    logits = pl.pallas_call(
        functools.partial(_model_kernel, eps=RMS_EPS,
                          scale=1.0 / math.sqrt(HEAD_DIM)),
        grid=(N_LAYERS,),
        out_shape=jax.ShapeDtypeStruct((T, VOCAB), jnp.float32),
        in_specs=[
            pl.BlockSpec((T, DIM), c2),                       # x (flattened)
            pl.BlockSpec((T, DIM), c2),                       # cos
            pl.BlockSpec((T, DIM), c2),                       # sin
            pl.BlockSpec((DIM, DIM), c2),                     # rotate_half matrix
            pl.BlockSpec((T, T), c2),                         # additive attn mask
            pl.BlockSpec((1, 1, DIM), c3),                    # norm1 weight
            pl.BlockSpec((1, DIM, 3 * DIM), c3),              # wqkv
            pl.BlockSpec((1, DIM, DIM), c3),                  # wo
            pl.BlockSpec((1, 1, DIM), c3),                    # norm2 weight
            pl.BlockSpec((1, DIM, NUM_EXPERTS), c3),          # gate weight (f32)
            pl.BlockSpec((1, 1, NUM_EXPERTS), c3),            # gate bias  (f32)
            pl.BlockSpec((1, NUM_EXPERTS, DIM, HIDDEN), c4),  # w1 stack (bf16)
            pl.BlockSpec((1, NUM_EXPERTS, DIM, HIDDEN), c4),  # w3 stack (bf16)
            pl.BlockSpec((1, NUM_EXPERTS, HIDDEN, DIM), c4),  # w2 stack (bf16)
            pl.BlockSpec((1, DIM), c2),                       # final norm weight
            pl.BlockSpec((DIM, VOCAB), c2),                   # output head (bf16)
        ],
        out_specs=pl.BlockSpec((T, VOCAB), c2),
        scratch_shapes=[pltpu.VMEM((T, DIM), jnp.float32)],   # residual carry
        compiler_params=pltpu.CompilerParams(
            dimension_semantics=("arbitrary",)),
    )(x, cosf, sinf, rot, mask,
      p["norm1_w"], p["wqkv"], p["wo"],
      p["norm2_w"], p["gate_w"], p["gate_b"],
      p["w1"], p["w3"], p["w2"],
      p["norm_w"], p["out_w"])
    return logits.reshape(B, S, VOCAB)


# ------------------------------- params ----------------------------------------
def init_params(seed=0):
    key = jax.random.PRNGKey(seed)

    def nxt():
        nonlocal key
        key, sub = jax.random.split(key)
        return sub

    def w(shape, scale=0.02):
        return (scale * jax.random.normal(nxt(), shape)).astype(jnp.float32)

    n1, n2, wqkv, wo, gw, gb, w1s, w3s, w2s = ([] for _ in range(9))
    for _ in range(N_LAYERS):
        wq, wk, wv = w((DIM, DIM)), w((DIM, DIM)), w((DIM, DIM))
        wqkv.append(jnp.concatenate([wq, wk, wv], axis=1))               # (D, 3D)
        wo.append(w((DIM, DIM)))
        n1.append(jnp.ones((1, DIM), jnp.float32))
        n2.append(jnp.ones((1, DIM), jnp.float32))
        gw.append(w((DIM, NUM_EXPERTS)))
        gb.append(w((1, NUM_EXPERTS)))
        w1s.append(jnp.stack([w((DIM, HIDDEN)) for _ in range(NUM_EXPERTS)]))
        w3s.append(jnp.stack([w((DIM, HIDDEN)) for _ in range(NUM_EXPERTS)]))
        w2s.append(jnp.stack([w((HIDDEN, DIM)) for _ in range(NUM_EXPERTS)]))

    params = {
        "token_embed": w((VOCAB, DIM)),
        "pos_embed": w((MAX_SEQ, DIM)),
        # stacked per-layer weights (leading L axis); matmul weights in bf16
        "norm1_w": jnp.stack(n1),                                        # (L,1,D) f32
        "norm2_w": jnp.stack(n2),                                        # (L,1,D) f32
        "wqkv": jnp.stack(wqkv).astype(jnp.bfloat16),                    # (L,D,3D)
        "wo": jnp.stack(wo).astype(jnp.bfloat16),                        # (L,D,D)
        "gate_w": jnp.stack(gw),                                         # (L,D,E) f32
        "gate_b": jnp.stack(gb),                                         # (L,1,E) f32
        "w1": jnp.stack(w1s).astype(jnp.bfloat16),                       # (L,E,D,H)
        "w3": jnp.stack(w3s).astype(jnp.bfloat16),                       # (L,E,D,H)
        "w2": jnp.stack(w2s).astype(jnp.bfloat16),                       # (L,E,H,D)
        "norm_w": jnp.ones((1, DIM), jnp.float32),
        "out_w": w((DIM, VOCAB)).astype(jnp.bfloat16),                   # (D,V)
    }
    return params


# ------------------------------- main -------------------------------------------
if __name__ == "__main__":
    B, S = 2, 8
    params = init_params(0)
    tokens = jax.random.randint(jax.random.PRNGKey(0), (B, S), 0, VOCAB,
                                dtype=jnp.int32)

    fwd = jax.jit(forward)
    logits = fwd(params, tokens)
    jax.block_until_ready(logits)

    assert logits.shape == (B, S, VOCAB)
    assert logits.dtype == jnp.float32
    assert bool(jnp.all(jnp.isfinite(logits)))
    print("KERNEL_OK")
</pallas_src>

<mosaic_0001>
module attributes {stable_mosaic.version = 11 : i64} {
  func.func @_model_kernel(%arg0: i32, %arg1: memref<16x128xf32, #tpu.memory_space<vmem>>, %arg2: memref<16x128xf32, #tpu.memory_space<vmem>>, %arg3: memref<16x128xf32, #tpu.memory_space<vmem>>, %arg4: memref<128x128xf32, #tpu.memory_space<vmem>>, %arg5: memref<16x16xf32, #tpu.memory_space<vmem>>, %arg6: memref<1x1x128xf32, #tpu.memory_space<vmem>>, %arg7: memref<1x128x384xbf16, #tpu.memory_space<vmem>>, %arg8: memref<1x128x128xbf16, #tpu.memory_space<vmem>>, %arg9: memref<1x1x128xf32, #tpu.memory_space<vmem>>, %arg10: memref<1x128x4xf32, #tpu.memory_space<vmem>>, %arg11: memref<1x1x4xf32, #tpu.memory_space<vmem>>, %arg12: memref<1x4x128x512xbf16, #tpu.memory_space<vmem>>, %arg13: memref<1x4x128x512xbf16, #tpu.memory_space<vmem>>, %arg14: memref<1x4x512x128xbf16, #tpu.memory_space<vmem>>, %arg15: memref<1x128xf32, #tpu.memory_space<vmem>>, %arg16: memref<128x256xbf16, #tpu.memory_space<vmem>>, %arg17: memref<16x256xf32, #tpu.memory_space<vmem>>, %arg18: memref<16x128xf32, #tpu.memory_space<vmem>>) attributes {dimension_semantics = [#tpu.dimension_semantics<arbitrary>], iteration_bounds = array<i64: 2>, scalar_prefetch = 0 : i64, scratch_operands = 1 : i64, tpu.core_type = #tpu.core_type<tc>, window_params = [{pipeline_mode = #tpu.pipeline_mode<synchronous>, transform_indices = @transform_0, window_bounds = array<i64: 16, 128>}, {pipeline_mode = #tpu.pipeline_mode<synchronous>, transform_indices = @transform_1, window_bounds = array<i64: 16, 128>}, {pipeline_mode = #tpu.pipeline_mode<synchronous>, transform_indices = @transform_2, window_bounds = array<i64: 16, 128>}, {pipeline_mode = #tpu.pipeline_mode<synchronous>, transform_indices = @transform_3, window_bounds = array<i64: 128, 128>}, {pipeline_mode = #tpu.pipeline_mode<synchronous>, transform_indices = @transform_4, window_bounds = array<i64: 16, 16>}, {transform_indices = @transform_5, window_bounds = array<i64: 1, 1, 128>}, {transform_indices = @transform_6, window_bounds = array<i64: 1, 128, 384>}, {transform_indices = @transform_7, window_bounds = array<i64: 1, 128, 128>}, {transform_indices = @transform_8, window_bounds = array<i64: 1, 1, 128>}, {transform_indices = @transform_9, window_bounds = array<i64: 1, 128, 4>}, {transform_indices = @transform_10, window_bounds = array<i64: 1, 1, 4>}, {transform_indices = @transform_11, window_bounds = array<i64: 1, 4, 128, 512>}, {transform_indices = @transform_12, window_bounds = array<i64: 1, 4, 128, 512>}, {transform_indices = @transform_13, window_bounds = array<i64: 1, 4, 512, 128>}, {pipeline_mode = #tpu.pipeline_mode<synchronous>, transform_indices = @transform_14, window_bounds = array<i64: 1, 128>}, {pipeline_mode = #tpu.pipeline_mode<synchronous>, transform_indices = @transform_15, window_bounds = array<i64: 128, 256>}, {pipeline_mode = #tpu.pipeline_mode<synchronous>, transform_indices = @transform_16, window_bounds = array<i64: 16, 256>}]} {
    %c0_i32 = arith.constant 0 : i32
    %0 = arith.cmpi eq, %arg0, %c0_i32 : i32
    %1 = arith.extui %0 : i1 to i32
    %c0_i32_0 = arith.constant 0 : i32
    %2 = arith.cmpi ne, %1, %c0_i32_0 : i32
    scf.if %2 {
      %c0_148 = arith.constant 0 : index
      %c0_149 = arith.constant 0 : index
      %309 = vector.load %arg1[%c0_148, %c0_149] : memref<16x128xf32, #tpu.memory_space<vmem>>, vector<16x128xf32>
      %c0_150 = arith.constant 0 : index
      %c0_151 = arith.constant 0 : index
      %310 = vector.load %arg18[%c0_150, %c0_151] : memref<16x128xf32, #tpu.memory_space<vmem>>, vector<16x128xf32>
      tpu.vector_store %arg18[%c0_150, %c0_151], %309 {strides = array<i32>} : memref<16x128xf32, #tpu.memory_space<vmem>>, vector<16x128xf32>,
    } else {
    }
    %c0 = arith.constant 0 : index
    %c0_1 = arith.constant 0 : index
    %3 = vector.load %arg18[%c0, %c0_1] : memref<16x128xf32, #tpu.memory_space<vmem>>, vector<16x128xf32>
    %c0_2 = arith.constant 0 : index
    %c0_3 = arith.constant 0 : index
    %c0_4 = arith.constant 0 : index
    %4 = vector.load %arg6[%c0_2, %c0_3, %c0_4] : memref<1x1x128xf32, #tpu.memory_space<vmem>>, vector<1x1x128xf32>
    %5 = vector.shape_cast %4 : vector<1x1x128xf32> to vector<1x128xf32>
    %6 = arith.mulf %3, %3 : vector<16x128xf32>
    %cst = arith.constant dense<0.000000e+00> : vector<16xf32>
    %7 = vector.multi_reduction <add>, %6, %cst [1] : vector<16x128xf32> to vector<16xf32>
    %8 = vector.shape_cast %7 : vector<16xf32> to vector<16x1xf32>
    %cst_5 = arith.constant 1.280000e+02 : f32
    %9 = vector.broadcast %cst_5 : f32 to vector<16x1xf32>
    %10 = arith.divf %8, %9 : vector<16x1xf32>
    %cst_6 = arith.constant 9.99999997E-7 : f32
    %11 = vector.broadcast %cst_6 : f32 to vector<16x1xf32>
    %12 = arith.addf %10, %11 : vector<16x1xf32>
    %13 = math.rsqrt %12 : vector<16x1xf32>
    %14 = vector.broadcast %13 : vector<16x1xf32> to vector<16x128xf32>
    %15 = arith.mulf %3, %14 : vector<16x128xf32>
    %16 = vector.broadcast %5 : vector<1x128xf32> to vector<16x128xf32>
    %17 = arith.mulf %16, %15 : vector<16x128xf32>
    %18 = arith.truncf %17 : vector<16x128xf32> to vector<16x128xbf16>
    %c0_7 = arith.constant 0 : index
    %c0_8 = arith.constant 0 : index
    %c0_9 = arith.constant 0 : index
    %19 = vector.load %arg7[%c0_7, %c0_8, %c0_9] : memref<1x128x384xbf16, #tpu.memory_space<vmem>>, vector<1x128x384xbf16>
    %20 = vector.shape_cast %19 : vector<1x128x384xbf16> to vector<128x384xbf16>
    %cst_10 = arith.constant dense<0.000000e+00> : vector<16x384xf32>
    %21 = tpu.matmul %18, %20, %cst_10 {dimension_numbers = #tpu.dot_dimension_numbers<[1], [0], [0], [1], [0, 0, 1, 1], [], []>} : vector<16x128xbf16>, vector<128x384xbf16>, vector<16x384xf32> -> vector<16x384xf32>
    %22 = vector.extract_strided_slice %21 {offsets = [0, 0], sizes = [16, 128], strides = [1, 1]} : vector<16x384xf32> to vector<16x128xf32>
    %23 = vector.extract_strided_slice %21 {offsets = [0, 128], sizes = [16, 128], strides = [1, 1]} : vector<16x384xf32> to vector<16x128xf32>
    %24 = vector.extract_strided_slice %21 {offsets = [0, 256], sizes = [16, 128], strides = [1, 1]} : vector<16x384xf32> to vector<16x128xf32>
    %c0_11 = arith.constant 0 : index
    %c0_12 = arith.constant 0 : index
    %25 = vector.load %arg2[%c0_11, %c0_12] : memref<16x128xf32, #tpu.memory_space<vmem>>, vector<16x128xf32>
    %c0_13 = arith.constant 0 : index
    %c0_14 = arith.constant 0 : index
    %26 = vector.load %arg3[%c0_13, %c0_14] : memref<16x128xf32, #tpu.memory_space<vmem>>, vector<16x128xf32>
    %c0_15 = arith.constant 0 : index
    %c0_16 = arith.constant 0 : index
    %27 = vector.load %arg4[%c0_15, %c0_16] : memref<128x128xf32, #tpu.memory_space<vmem>>, vector<128x128xf32>
    %28 = arith.mulf %22, %25 : vector<16x128xf32>
    %cst_17 = arith.constant dense<0.000000e+00> : vector<16x128xf32>
    %29 = tpu.matmul %22, %27, %cst_17 {dimension_numbers = #tpu.dot_dimension_numbers<[1], [0], [0], [1], [0, 0, 1, 1], [], []>} : vector<16x128xf32>, vector<128x128xf32>, vector<16x128xf32> -> vector<16x128xf32>
    %30 = arith.mulf %29, %26 : vector<16x128xf32>
    %31 = arith.addf %28, %30 : vector<16x128xf32>
    %32 = arith.mulf %23, %25 : vector<16x128xf32>
    %cst_18 = arith.constant dense<0.000000e+00> : vector<16x128xf32>
    %33 = tpu.matmul %23, %27, %cst_18 {dimension_numbers = #tpu.dot_dimension_numbers<[1], [0], [0], [1], [0, 0, 1, 1], [], []>} : vector<16x128xf32>, vector<128x128xf32>, vector<16x128xf32> -> vector<16x128xf32>
    %34 = arith.mulf %33, %26 : vector<16x128xf32>
    %35 = arith.addf %32, %34 : vector<16x128xf32>
    %36 = tpu.iota {dimensions = array<i32: 1>} : vector<1x128xi32>
    %c0_19 = arith.constant 0 : index
    %c0_20 = arith.constant 0 : index
    %37 = vector.load %arg5[%c0_19, %c0_20] : memref<16x16xf32, #tpu.memory_space<vmem>>, vector<16x16xf32>
    %cst_21 = arith.constant 0.000000e+00 : f32
    %38 = vector.broadcast %cst_21 : f32 to vector<16x128xf32>
    %c0_i32_22 = arith.constant 0 : i32
    %39 = vector.broadcast %c0_i32_22 : i32 to vector<1x128xi32>
    %40 = arith.cmpi sge, %36, %39 : vector<1x128xi32>
    %c32_i32 = arith.constant 32 : i32
    %41 = vector.broadcast %c32_i32 : i32 to vector<1x128xi32>
    %42 = arith.cmpi slt, %36, %41 : vector<1x128xi32>
    %43 = arith.andi %40, %42 : vector<1x128xi1>
    %44 = arith.extui %43 : vector<1x128xi1> to vector<1x128xi32>
    %45 = arith.sitofp %44 : vector<1x128xi32> to vector<1x128xf32>
    %46 = vector.broadcast %45 : vector<1x128xf32> to vector<16x128xf32>
    %47 = arith.mulf %31, %46 : vector<16x128xf32>
    %cst_23 = arith.constant dense<0.000000e+00> : vector<16x16xf32>
    %48 = tpu.matmul %47, %35, %cst_23 {dimension_numbers = #tpu.dot_dimension_numbers<[1], [1], [0], [0], [0, 0, 1, 0], [], []>} : vector<16x128xf32>, vector<16x128xf32>, vector<16x16xf32> -> vector<16x16xf32>
    %cst_24 = arith.constant 0.176776692 : f32
    %49 = vector.broadcast %cst_24 : f32 to vector<16x16xf32>
    %50 = arith.mulf %48, %49 : vector<16x16xf32>
    %51 = arith.addf %50, %37 : vector<16x16xf32>
    %cst_25 = arith.constant dense<0xFF800000> : vector<16xf32>
    %52 = vector.multi_reduction <maximumf>, %51, %cst_25 [1] : vector<16x16xf32> to vector<16xf32>
    %53 = vector.shape_cast %52 : vector<16xf32> to vector<16x1xf32>
    %54 = vector.broadcast %53 : vector<16x1xf32> to vector<16x16xf32>
    %55 = arith.subf %51, %54 : vector<16x16xf32>
    %56 = math.exp %55 : vector<16x16xf32>
    %cst_26 = arith.constant dense<0.000000e+00> : vector<16xf32>
    %57 = vector.multi_reduction <add>, %56, %cst_26 [1] : vector<16x16xf32> to vector<16xf32>
    %58 = vector.shape_cast %57 : vector<16xf32> to vector<16x1xf32>
    %59 = vector.broadcast %58 : vector<16x1xf32> to vector<16x16xf32>
    %60 = arith.divf %56, %59 : vector<16x16xf32>
    %61 = vector.broadcast %45 : vector<1x128xf32> to vector<16x128xf32>
    %62 = arith.mulf %24, %61 : vector<16x128xf32>
    %cst_27 = arith.constant dense<0.000000e+00> : vector<16x128xf32>
    %63 = tpu.matmul %60, %62, %cst_27 {dimension_numbers = #tpu.dot_dimension_numbers<[1], [0], [0], [1], [0, 0, 1, 1], [], []>} : vector<16x16xf32>, vector<16x128xf32>, vector<16x128xf32> -> vector<16x128xf32>
    %64 = arith.addf %38, %63 : vector<16x128xf32>
    %c32_i32_28 = arith.constant 32 : i32
    %65 = vector.broadcast %c32_i32_28 : i32 to vector<1x128xi32>
    %66 = arith.cmpi sge, %36, %65 : vector<1x128xi32>
    %c64_i32 = arith.constant 64 : i32
    %67 = vector.broadcast %c64_i32 : i32 to vector<1x128xi32>
    %68 = arith.cmpi slt, %36, %67 : vector<1x128xi32>
    %69 = arith.andi %66, %68 : vector<1x128xi1>
    %70 = arith.extui %69 : vector<1x128xi1> to vector<1x128xi32>
    %71 = arith.sitofp %70 : vector<1x128xi32> to vector<1x128xf32>
    %72 = vector.broadcast %71 : vector<1x128xf32> to vector<16x128xf32>
    %73 = arith.mulf %31, %72 : vector<16x128xf32>
    %cst_29 = arith.constant dense<0.000000e+00> : vector<16x16xf32>
    %74 = tpu.matmul %73, %35, %cst_29 {dimension_numbers = #tpu.dot_dimension_numbers<[1], [1], [0], [0], [0, 0, 1, 0], [], []>} : vector<16x128xf32>, vector<16x128xf32>, vector<16x16xf32> -> vector<16x16xf32>
    %cst_30 = arith.constant 0.176776692 : f32
    %75 = vector.broadcast %cst_30 : f32 to vector<16x16xf32>
    %76 = arith.mulf %74, %75 : vector<16x16xf32>
    %77 = arith.addf %76, %37 : vector<16x16xf32>
    %cst_31 = arith.constant dense<0xFF800000> : vector<16xf32>
    %78 = vector.multi_reduction <maximumf>, %77, %cst_31 [1] : vector<16x16xf32> to vector<16xf32>
    %79 = vector.shape_cast %78 : vector<16xf32> to vector<16x1xf32>
    %80 = vector.broadcast %79 : vector<16x1xf32> to vector<16x16xf32>
    %81 = arith.subf %77, %80 : vector<16x16xf32>
    %82 = math.exp %81 : vector<16x16xf32>
    %cst_32 = arith.constant dense<0.000000e+00> : vector<16xf32>
    %83 = vector.multi_reduction <add>, %82, %cst_32 [1] : vector<16x16xf32> to vector<16xf32>
    %84 = vector.shape_cast %83 : vector<16xf32> to vector<16x1xf32>
    %85 = vector.broadcast %84 : vector<16x1xf32> to vector<16x16xf32>
    %86 = arith.divf %82, %85 : vector<16x16xf32>
    %87 = vector.broadcast %71 : vector<1x128xf32> to vector<16x128xf32>
    %88 = arith.mulf %24, %87 : vector<16x128xf32>
    %cst_33 = arith.constant dense<0.000000e+00> : vector<16x128xf32>
    %89 = tpu.matmul %86, %88, %cst_33 {dimension_numbers = #tpu.dot_dimension_numbers<[1], [0], [0], [1], [0, 0, 1, 1], [], []>} : vector<16x16xf32>, vector<16x128xf32>, vector<16x128xf32> -> vector<16x128xf32>
    %90 = arith.addf %64, %89 : vector<16x128xf32>
    %c64_i32_34 = arith.constant 64 : i32
    %91 = vector.broadcast %c64_i32_34 : i32 to vector<1x128xi32>
    %92 = arith.cmpi sge, %36, %91 : vector<1x128xi32>
    %c96_i32 = arith.constant 96 : i32
    %93 = vector.broadcast %c96_i32 : i32 to vector<1x128xi32>
    %94 = arith.cmpi slt, %36, %93 : vector<1x128xi32>
    %95 = arith.andi %92, %94 : vector<1x128xi1>
    %96 = arith.extui %95 : vector<1x128xi1> to vector<1x128xi32>
    %97 = arith.sitofp %96 : vector<1x128xi32> to vector<1x128xf32>
    %98 = vector.broadcast %97 : vector<1x128xf32> to vector<16x128xf32>
    %99 = arith.mulf %31, %98 : vector<16x128xf32>
    %cst_35 = arith.constant dense<0.000000e+00> : vector<16x16xf32>
    %100 = tpu.matmul %99, %35, %cst_35 {dimension_numbers = #tpu.dot_dimension_numbers<[1], [1], [0], [0], [0, 0, 1, 0], [], []>} : vector<16x128xf32>, vector<16x128xf32>, vector<16x16xf32> -> vector<16x16xf32>
    %cst_36 = arith.constant 0.176776692 : f32
    %101 = vector.broadcast %cst_36 : f32 to vector<16x16xf32>
    %102 = arith.mulf %100, %101 : vector<16x16xf32>
    %103 = arith.addf %102, %37 : vector<16x16xf32>
    %cst_37 = arith.constant dense<0xFF800000> : vector<16xf32>
    %104 = vector.multi_reduction <maximumf>, %103, %cst_37 [1] : vector<16x16xf32> to vector<16xf32>
    %105 = vector.shape_cast %104 : vector<16xf32> to vector<16x1xf32>
    %106 = vector.broadcast %105 : vector<16x1xf32> to vector<16x16xf32>
    %107 = arith.subf %103, %106 : vector<16x16xf32>
    %108 = math.exp %107 : vector<16x16xf32>
    %cst_38 = arith.constant dense<0.000000e+00> : vector<16xf32>
    %109 = vector.multi_reduction <add>, %108, %cst_38 [1] : vector<16x16xf32> to vector<16xf32>
    %110 = vector.shape_cast %109 : vector<16xf32> to vector<16x1xf32>
    %111 = vector.broadcast %110 : vector<16x1xf32> to vector<16x16xf32>
    %112 = arith.divf %108, %111 : vector<16x16xf32>
    %113 = vector.broadcast %97 : vector<1x128xf32> to vector<16x128xf32>
    %114 = arith.mulf %24, %113 : vector<16x128xf32>
    %cst_39 = arith.constant dense<0.000000e+00> : vector<16x128xf32>
    %115 = tpu.matmul %112, %114, %cst_39 {dimension_numbers = #tpu.dot_dimension_numbers<[1], [0], [0], [1], [0, 0, 1, 1], [], []>} : vector<16x16xf32>, vector<16x128xf32>, vector<16x128xf32> -> vector<16x128xf32>
    %116 = arith.addf %90, %115 : vector<16x128xf32>
    %c96_i32_40 = arith.constant 96 : i32
    %117 = vector.broadcast %c96_i32_40 : i32 to vector<1x128xi32>
    %118 = arith.cmpi sge, %36, %117 : vector<1x128xi32>
    %c128_i32 = arith.constant 128 : i32
    %119 = vector.broadcast %c128_i32 : i32 to vector<1x128xi32>
    %120 = arith.cmpi slt, %36, %119 : vector<1x128xi32>
    %121 = arith.andi %118, %120 : vector<1x128xi1>
    %122 = arith.extui %121 : vector<1x128xi1> to vector<1x128xi32>
    %123 = arith.sitofp %122 : vector<1x128xi32> to vector<1x128xf32>
    %124 = vector.broadcast %123 : vector<1x128xf32> to vector<16x128xf32>
    %125 = arith.mulf %31, %124 : vector<16x128xf32>
    %cst_41 = arith.constant dense<0.000000e+00> : vector<16x16xf32>
    %126 = tpu.matmul %125, %35, %cst_41 {dimension_numbers = #tpu.dot_dimension_numbers<[1], [1], [0], [0], [0, 0, 1, 0], [], []>} : vector<16x128xf32>, vector<16x128xf32>, vector<16x16xf32> -> vector<16x16xf32>
    %cst_42 = arith.constant 0.176776692 : f32
    %127 = vector.broadcast %cst_42 : f32 to vector<16x16xf32>
    %128 = arith.mulf %126, %127 : vector<16x16xf32>
    %129 = arith.addf %128, %37 : vector<16x16xf32>
    %cst_43 = arith.constant dense<0xFF800000> : vector<16xf32>
    %130 = vector.multi_reduction <maximumf>, %129, %cst_43 [1] : vector<16x16xf32> to vector<16xf32>
    %131 = vector.shape_cast %130 : vector<16xf32> to vector<16x1xf32>
    %132 = vector.broadcast %131 : vector<16x1xf32> to vector<16x16xf32>
    %133 = arith.subf %129, %132 : vector<16x16xf32>
    %134 = math.exp %133 : vector<16x16xf32>
    %cst_44 = arith.constant dense<0.000000e+00> : vector<16xf32>
    %135 = vector.multi_reduction <add>, %134, %cst_44 [1] : vector<16x16xf32> to vector<16xf32>
    %136 = vector.shape_cast %135 : vector<16xf32> to vector<16x1xf32>
    %137 = vector.broadcast %136 : vector<16x1xf32> to vector<16x16xf32>
    %138 = arith.divf %134, %137 : vector<16x16xf32>
    %139 = vector.broadcast %123 : vector<1x128xf32> to vector<16x128xf32>
    %140 = arith.mulf %24, %139 : vector<16x128xf32>
    %cst_45 = arith.constant dense<0.000000e+00> : vector<16x128xf32>
    %141 = tpu.matmul %138, %140, %cst_45 {dimension_numbers = #tpu.dot_dimension_numbers<[1], [0], [0], [1], [0, 0, 1, 1], [], []>} : vector<16x16xf32>, vector<16x128xf32>, vector<16x128xf32> -> vector<16x128xf32>
    %142 = arith.addf %116, %141 : vector<16x128xf32>
    %143 = arith.truncf %142 : vector<16x128xf32> to vector<16x128xbf16>
    %c0_46 = arith.constant 0 : index
    %c0_47 = arith.constant 0 : index
    %c0_48 = arith.constant 0 : index
    %144 = vector.load %arg8[%c0_46, %c0_47, %c0_48] : memref<1x128x128xbf16, #tpu.memory_space<vmem>>, vector<1x128x128xbf16>
    %145 = vector.shape_cast %144 : vector<1x128x128xbf16> to vector<128x128xbf16>
    %cst_49 = arith.constant dense<0.000000e+00> : vector<16x128xf32>
    %146 = tpu.matmul %143, %145, %cst_49 {dimension_numbers = #tpu.dot_dimension_numbers<[1], [0], [0], [1], [0, 0, 1, 1], [], []>} : vector<16x128xbf16>, vector<128x128xbf16>, vector<16x128xf32> -> vector<16x128xf32>
    %147 = arith.addf %3, %146 : vector<16x128xf32>
    %c0_50 = arith.constant 0 : index
    %c0_51 = arith.constant 0 : index
    %c0_52 = arith.constant 0 : index
    %148 = vector.load %arg9[%c0_50, %c0_51, %c0_52] : memref<1x1x128xf32, #tpu.memory_space<vmem>>, vector<1x1x128xf32>
    %149 = vector.shape_cast %148 : vector<1x1x128xf32> to vector<1x128xf32>
    %150 = arith.mulf %147, %147 : vector<16x128xf32>
    %cst_53 = arith.constant dense<0.000000e+00> : vector<16xf32>
    %151 = vector.multi_reduction <add>, %150, %cst_53 [1] : vector<16x128xf32> to vector<16xf32>
    %152 = vector.shape_cast %151 : vector<16xf32> to vector<16x1xf32>
    %cst_54 = arith.constant 1.280000e+02 : f32
    %153 = vector.broadcast %cst_54 : f32 to vector<16x1xf32>
    %154 = arith.divf %152, %153 : vector<16x1xf32>
    %cst_55 = arith.constant 9.99999997E-7 : f32
    %155 = vector.broadcast %cst_55 : f32 to vector<16x1xf32>
    %156 = arith.addf %154, %155 : vector<16x1xf32>
    %157 = math.rsqrt %156 : vector<16x1xf32>
    %158 = vector.broadcast %157 : vector<16x1xf32> to vector<16x128xf32>
    %159 = arith.mulf %147, %158 : vector<16x128xf32>
    %160 = vector.broadcast %149 : vector<1x128xf32> to vector<16x128xf32>
    %161 = arith.mulf %160, %159 : vector<16x128xf32>
    %c0_56 = arith.constant 0 : index
    %c0_57 = arith.constant 0 : index
    %c0_58 = arith.constant 0 : index
    %162 = vector.load %arg10[%c0_56, %c0_57, %c0_58] : memref<1x128x4xf32, #tpu.memory_space<vmem>>, vector<1x128x4xf32>
    %163 = vector.shape_cast %162 : vector<1x128x4xf32> to vector<128x4xf32>
    %cst_59 = arith.constant dense<0.000000e+00> : vector<16x4xf32>
    %164 = tpu.matmul %161, %163, %cst_59 {dimension_numbers = #tpu.dot_dimension_numbers<[1], [0], [0], [1], [0, 0, 1, 1], [], []>} : vector<16x128xf32>, vector<128x4xf32>, vector<16x4xf32> -> vector<16x4xf32>
    %c0_60 = arith.constant 0 : index
    %c0_61 = arith.constant 0 : index
    %c0_62 = arith.constant 0 : index
    %165 = vector.load %arg11[%c0_60, %c0_61, %c0_62] : memref<1x1x4xf32, #tpu.memory_space<vmem>>, vector<1x1x4xf32>
    %166 = vector.shape_cast %165 : vector<1x1x4xf32> to vector<1x4xf32>
    %167 = vector.broadcast %166 : vector<1x4xf32> to vector<16x4xf32>
    %168 = arith.addf %164, %167 : vector<16x4xf32>
    %cst_63 = arith.constant dense<0xFF800000> : vector<16xf32>
    %169 = vector.multi_reduction <maximumf>, %168, %cst_63 [1] : vector<16x4xf32> to vector<16xf32>
    %170 = vector.shape_cast %169 : vector<16xf32> to vector<16x1xf32>
    %171 = vector.broadcast %170 : vector<16x1xf32> to vector<16x4xf32>
    %172 = arith.subf %168, %171 : vector<16x4xf32>
    %173 = math.exp %172 : vector<16x4xf32>
    %cst_64 = arith.constant dense<0.000000e+00> : vector<16xf32>
    %174 = vector.multi_reduction <add>, %173, %cst_64 [1] : vector<16x4xf32> to vector<16xf32>
    %175 = vector.shape_cast %174 : vector<16xf32> to vector<16x1xf32>
    %176 = vector.broadcast %175 : vector<16x1xf32> to vector<16x4xf32>
    %177 = arith.divf %173, %176 : vector<16x4xf32>
    %178 = tpu.iota {dimensions = array<i32: 1>} : vector<16x4xi32>
    %cst_65 = arith.constant dense<0xFF800000> : vector<16xf32>
    %179 = vector.multi_reduction <maximumf>, %177, %cst_65 [1] : vector<16x4xf32> to vector<16xf32>
    %180 = vector.shape_cast %179 : vector<16xf32> to vector<16x1xf32>
    %181 = vector.broadcast %180 : vector<16x1xf32> to vector<16x4xf32>
    %182 = arith.cmpf oeq, %177, %181 : vector<16x4xf32>
    %c4_i32 = arith.constant 4 : i32
    %183 = vector.broadcast %c4_i32 : i32 to vector<16x4xi32>
    %184 = arith.select %182, %178, %183 : vector<16x4xi1>, vector<16x4xi32>
    %cst_66 = arith.constant dense<2147483647> : vector<16xi32>
    %185 = vector.multi_reduction <minsi>, %184, %cst_66 [1] : vector<16x4xi32> to vector<16xi32>
    %186 = vector.shape_cast %185 : vector<16xi32> to vector<16x1xi32>
    %187 = vector.broadcast %186 : vector<16x1xi32> to vector<16x4xi32>
    %188 = arith.cmpi eq, %178, %187 : vector<16x4xi32>
    %cst_67 = arith.constant -1.000000e+00 : f32
    %189 = vector.broadcast %cst_67 : f32 to vector<16x4xf32>
    %190 = arith.select %188, %189, %177 : vector<16x4xi1>, vector<16x4xf32>
    %cst_68 = arith.constant dense<0xFF800000> : vector<16xf32>
    %191 = vector.multi_reduction <maximumf>, %190, %cst_68 [1] : vector<16x4xf32> to vector<16xf32>
    %192 = vector.shape_cast %191 : vector<16xf32> to vector<16x1xf32>
    %193 = vector.broadcast %192 : vector<16x1xf32> to vector<16x4xf32>
    %194 = arith.cmpf oeq, %190, %193 : vector<16x4xf32>
    %c4_i32_69 = arith.constant 4 : i32
    %195 = vector.broadcast %c4_i32_69 : i32 to vector<16x4xi32>
    %196 = arith.select %194, %178, %195 : vector<16x4xi1>, vector<16x4xi32>
    %cst_70 = arith.constant dense<2147483647> : vector<16xi32>
    %197 = vector.multi_reduction <minsi>, %196, %cst_70 [1] : vector<16x4xi32> to vector<16xi32>
    %198 = vector.shape_cast %197 : vector<16xi32> to vector<16x1xi32>
    %199 = vector.broadcast %186 : vector<16x1xi32> to vector<16x4xi32>
    %200 = arith.cmpi eq, %178, %199 : vector<16x4xi32>
    %201 = vector.broadcast %198 : vector<16x1xi32> to vector<16x4xi32>
    %202 = arith.cmpi eq, %178, %201 : vector<16x4xi32>
    %203 = arith.ori %200, %202 : vector<16x4xi1>
    %cst_71 = arith.constant 0.000000e+00 : f32
    %204 = vector.broadcast %cst_71 : f32 to vector<16x4xf32>
    %205 = arith.select %203, %177, %204 : vector<16x4xi1>, vector<16x4xf32>
    %cst_72 = arith.constant dense<0.000000e+00> : vector<16xf32>
    %206 = vector.multi_reduction <add>, %205, %cst_72 [1] : vector<16x4xf32> to vector<16xf32>
    %207 = vector.shape_cast %206 : vector<16xf32> to vector<16x1xf32>
    %208 = vector.broadcast %207 : vector<16x1xf32> to vector<16x4xf32>
    %209 = arith.divf %205, %208 : vector<16x4xf32>
    %210 = arith.truncf %161 : vector<16x128xf32> to vector<16x128xbf16>
    %cst_73 = arith.constant 0.000000e+00 : f32
    %211 = vector.broadcast %cst_73 : f32 to vector<16x128xf32>
    %c0_74 = arith.constant 0 : index
    %c0_75 = arith.constant 0 : index
    %c0_76 = arith.constant 0 : index
    %c0_77 = arith.constant 0 : index
    %212 = vector.load %arg12[%c0_74, %c0_75, %c0_76, %c0_77] : memref<1x4x128x512xbf16, #tpu.memory_space<vmem>>, vector<1x1x128x512xbf16>
    %213 = vector.shape_cast %212 : vector<1x1x128x512xbf16> to vector<128x512xbf16>
    %cst_78 = arith.constant dense<0.000000e+00> : vector<16x512xf32>
    %214 = tpu.matmul %210, %213, %cst_78 {dimension_numbers = #tpu.dot_dimension_numbers<[1], [0], [0], [1], [0, 0, 1, 1], [], []>} : vector<16x128xbf16>, vector<128x512xbf16>, vector<16x512xf32> -> vector<16x512xf32>
    %c0_79 = arith.constant 0 : index
    %c0_80 = arith.constant 0 : index
    %c0_81 = arith.constant 0 : index
    %c0_82 = arith.constant 0 : index
    %215 = vector.load %arg13[%c0_79, %c0_80, %c0_81, %c0_82] : memref<1x4x128x512xbf16, #tpu.memory_space<vmem>>, vector<1x1x128x512xbf16>
    %216 = vector.shape_cast %215 : vector<1x1x128x512xbf16> to vector<128x512xbf16>
    %cst_83 = arith.constant dense<0.000000e+00> : vector<16x512xf32>
    %217 = tpu.matmul %210, %216, %cst_83 {dimension_numbers = #tpu.dot_dimension_numbers<[1], [0], [0], [1], [0, 0, 1, 1], [], []>} : vector<16x128xbf16>, vector<128x512xbf16>, vector<16x512xf32> -> vector<16x512xf32>
    %cst_84 = arith.constant 0.000000e+00 : f32
    %218 = vector.broadcast %cst_84 : f32 to vector<16x512xf32>
    %219 = arith.maximumf %214, %218 : vector<16x512xf32>
    %220 = arith.mulf %219, %219 : vector<16x512xf32>
    %221 = arith.mulf %220, %217 : vector<16x512xf32>
    %222 = arith.truncf %221 : vector<16x512xf32> to vector<16x512xbf16>
    %c0_85 = arith.constant 0 : index
    %c0_86 = arith.constant 0 : index
    %c0_87 = arith.constant 0 : index
    %c0_88 = arith.constant 0 : index
    %223 = vector.load %arg14[%c0_85, %c0_86, %c0_87, %c0_88] : memref<1x4x512x128xbf16, #tpu.memory_space<vmem>>, vector<1x1x512x128xbf16>
    %224 = vector.shape_cast %223 : vector<1x1x512x128xbf16> to vector<512x128xbf16>
    %cst_89 = arith.constant dense<0.000000e+00> : vector<16x128xf32>
    %225 = tpu.matmul %222, %224, %cst_89 {dimension_numbers = #tpu.dot_dimension_numbers<[1], [0], [0], [1], [0, 0, 1, 1], [], []>} : vector<16x512xbf16>, vector<512x128xbf16>, vector<16x128xf32> -> vector<16x128xf32>
    %c0_i32_90 = arith.constant 0 : i32
    %226 = vector.broadcast %c0_i32_90 : i32 to vector<16x4xi32>
    %227 = arith.cmpi eq, %178, %226 : vector<16x4xi32>
    %cst_91 = arith.constant 0.000000e+00 : f32
    %228 = vector.broadcast %cst_91 : f32 to vector<16x4xf32>
    %229 = arith.select %227, %209, %228 : vector<16x4xi1>, vector<16x4xf32>
    %cst_92 = arith.constant dense<0.000000e+00> : vector<16xf32>
    %230 = vector.multi_reduction <add>, %229, %cst_92 [1] : vector<16x4xf32> to vector<16xf32>
    %231 = vector.shape_cast %230 : vector<16xf32> to vector<16x1xf32>
    %232 = vector.broadcast %231 : vector<16x1xf32> to vector<16x128xf32>
    %233 = arith.mulf %232, %225 : vector<16x128xf32>
    %234 = arith.addf %211, %233 : vector<16x128xf32>
    %c0_93 = arith.constant 0 : index
    %c1 = arith.constant 1 : index
    %c0_94 = arith.constant 0 : index
    %c0_95 = arith.constant 0 : index
    %235 = vector.load %arg12[%c0_93, %c1, %c0_94, %c0_95] : memref<1x4x128x512xbf16, #tpu.memory_space<vmem>>, vector<1x1x128x512xbf16>
    %236 = vector.shape_cast %235 : vector<1x1x128x512xbf16> to vector<128x512xbf16>
    %cst_96 = arith.constant dense<0.000000e+00> : vector<16x512xf32>
    %237 = tpu.matmul %210, %236, %cst_96 {dimension_numbers = #tpu.dot_dimension_numbers<[1], [0], [0], [1], [0, 0, 1, 1], [], []>} : vector<16x128xbf16>, vector<128x512xbf16>, vector<16x512xf32> -> vector<16x512xf32>
    %c0_97 = arith.constant 0 : index
    %c1_98 = arith.constant 1 : index
    %c0_99 = arith.constant 0 : index
    %c0_100 = arith.constant 0 : index
    %238 = vector.load %arg13[%c0_97, %c1_98, %c0_99, %c0_100] : memref<1x4x128x512xbf16, #tpu.memory_space<vmem>>, vector<1x1x128x512xbf16>
    %239 = vector.shape_cast %238 : vector<1x1x128x512xbf16> to vector<128x512xbf16>
    %cst_101 = arith.constant dense<0.000000e+00> : vector<16x512xf32>
    %240 = tpu.matmul %210, %239, %cst_101 {dimension_numbers = #tpu.dot_dimension_numbers<[1], [0], [0], [1], [0, 0, 1, 1], [], []>} : vector<16x128xbf16>, vector<128x512xbf16>, vector<16x512xf32> -> vector<16x512xf32>
    %cst_102 = arith.constant 0.000000e+00 : f32
    %241 = vector.broadcast %cst_102 : f32 to vector<16x512xf32>
    %242 = arith.maximumf %237, %241 : vector<16x512xf32>
    %243 = arith.mulf %242, %242 : vector<16x512xf32>
    %244 = arith.mulf %243, %240 : vector<16x512xf32>
    %245 = arith.truncf %244 : vector<16x512xf32> to vector<16x512xbf16>
    %c0_103 = arith.constant 0 : index
    %c1_104 = arith.constant 1 : index
    %c0_105 = arith.constant 0 : index
    %c0_106 = arith.constant 0 : index
    %246 = vector.load %arg14[%c0_103, %c1_104, %c0_105, %c0_106] : memref<1x4x512x128xbf16, #tpu.memory_space<vmem>>, vector<1x1x512x128xbf16>
    %247 = vector.shape_cast %246 : vector<1x1x512x128xbf16> to vector<512x128xbf16>
    %cst_107 = arith.constant dense<0.000000e+00> : vector<16x128xf32>
    %248 = tpu.matmul %245, %247, %cst_107 {dimension_numbers = #tpu.dot_dimension_numbers<[1], [0], [0], [1], [0, 0, 1, 1], [], []>} : vector<16x512xbf16>, vector<512x128xbf16>, vector<16x128xf32> -> vector<16x128xf32>
    %c1_i32 = arith.constant 1 : i32
    %249 = vector.broadcast %c1_i32 : i32 to vector<16x4xi32>
    %250 = arith.cmpi eq, %178, %249 : vector<16x4xi32>
    %cst_108 = arith.constant 0.000000e+00 : f32
    %251 = vector.broadcast %cst_108 : f32 to vector<16x4xf32>
    %252 = arith.select %250, %209, %251 : vector<16x4xi1>, vector<16x4xf32>
    %cst_109 = arith.constant dense<0.000000e+00> : vector<16xf32>
    %253 = vector.multi_reduction <add>, %252, %cst_109 [1] : vector<16x4xf32> to vector<16xf32>
    %254 = vector.shape_cast %253 : vector<16xf32> to vector<16x1xf32>
    %255 = vector.broadcast %254 : vector<16x1xf32> to vector<16x128xf32>
    %256 = arith.mulf %255, %248 : vector<16x128xf32>
    %257 = arith.addf %234, %256 : vector<16x128xf32>
    %c0_110 = arith.constant 0 : index
    %c2 = arith.constant 2 : index
    %c0_111 = arith.constant 0 : index
    %c0_112 = arith.constant 0 : index
    %258 = vector.load %arg12[%c0_110, %c2, %c0_111, %c0_112] : memref<1x4x128x512xbf16, #tpu.memory_space<vmem>>, vector<1x1x128x512xbf16>
    %259 = vector.shape_cast %258 : vector<1x1x128x512xbf16> to vector<128x512xbf16>
    %cst_113 = arith.constant dense<0.000000e+00> : vector<16x512xf32>
    %260 = tpu.matmul %210, %259, %cst_113 {dimension_numbers = #tpu.dot_dimension_numbers<[1], [0], [0], [1], [0, 0, 1, 1], [], []>} : vector<16x128xbf16>, vector<128x512xbf16>, vector<16x512xf32> -> vector<16x512xf32>
    %c0_114 = arith.constant 0 : index
    %c2_115 = arith.constant 2 : index
    %c0_116 = arith.constant 0 : index
    %c0_117 = arith.constant 0 : index
    %261 = vector.load %arg13[%c0_114, %c2_115, %c0_116, %c0_117] : memref<1x4x128x512xbf16, #tpu.memory_space<vmem>>, vector<1x1x128x512xbf16>
    %262 = vector.shape_cast %261 : vector<1x1x128x512xbf16> to vector<128x512xbf16>
    %cst_118 = arith.constant dense<0.000000e+00> : vector<16x512xf32>
    %263 = tpu.matmul %210, %262, %cst_118 {dimension_numbers = #tpu.dot_dimension_numbers<[1], [0], [0], [1], [0, 0, 1, 1], [], []>} : vector<16x128xbf16>, vector<128x512xbf16>, vector<16x512xf32> -> vector<16x512xf32>
    %cst_119 = arith.constant 0.000000e+00 : f32
    %264 = vector.broadcast %cst_119 : f32 to vector<16x512xf32>
    %265 = arith.maximumf %260, %264 : vector<16x512xf32>
    %266 = arith.mulf %265, %265 : vector<16x512xf32>
    %267 = arith.mulf %266, %263 : vector<16x512xf32>
    %268 = arith.truncf %267 : vector<16x512xf32> to vector<16x512xbf16>
    %c0_120 = arith.constant 0 : index
    %c2_121 = arith.constant 2 : index
    %c0_122 = arith.constant 0 : index
    %c0_123 = arith.constant 0 : index
    %269 = vector.load %arg14[%c0_120, %c2_121, %c0_122, %c0_123] : memref<1x4x512x128xbf16, #tpu.memory_space<vmem>>, vector<1x1x512x128xbf16>
    %270 = vector.shape_cast %269 : vector<1x1x512x128xbf16> to vector<512x128xbf16>
    %cst_124 = arith.constant dense<0.000000e+00> : vector<16x128xf32>
    %271 = tpu.matmul %268, %270, %cst_124 {dimension_numbers = #tpu.dot_dimension_numbers<[1], [0], [0], [1], [0, 0, 1, 1], [], []>} : vector<16x512xbf16>, vector<512x128xbf16>, vector<16x128xf32> -> vector<16x128xf32>
    %c2_i32 = arith.constant 2 : i32
    %272 = vector.broadcast %c2_i32 : i32 to vector<16x4xi32>
    %273 = arith.cmpi eq, %178, %272 : vector<16x4xi32>
    %cst_125 = arith.constant 0.000000e+00 : f32
    %274 = vector.broadcast %cst_125 : f32 to vector<16x4xf32>
    %275 = arith.select %273, %209, %274 : vector<16x4xi1>, vector<16x4xf32>
    %cst_126 = arith.constant dense<0.000000e+00> : vector<16xf32>
    %276 = vector.multi_reduction <add>, %275, %cst_126 [1] : vector<16x4xf32> to vector<16xf32>
    %277 = vector.shape_cast %276 : vector<16xf32> to vector<16x1xf32>
    %278 = vector.broadcast %277 : vector<16x1xf32> to vector<16x128xf32>
    %279 = arith.mulf %278, %271 : vector<16x128xf32>
    %280 = arith.addf %257, %279 : vector<16x128xf32>
    %c0_127 = arith.constant 0 : index
    %c3 = arith.constant 3 : index
    %c0_128 = arith.constant 0 : index
    %c0_129 = arith.constant 0 : index
    %281 = vector.load %arg12[%c0_127, %c3, %c0_128, %c0_129] : memref<1x4x128x512xbf16, #tpu.memory_space<vmem>>, vector<1x1x128x512xbf16>
    %282 = vector.shape_cast %281 : vector<1x1x128x512xbf16> to vector<128x512xbf16>
    %cst_130 = arith.constant dense<0.000000e+00> : vector<16x512xf32>
    %283 = tpu.matmul %210, %282, %cst_130 {dimension_numbers = #tpu.dot_dimension_numbers<[1], [0], [0], [1], [0, 0, 1, 1], [], []>} : vector<16x128xbf16>, vector<128x512xbf16>, vector<16x512xf32> -> vector<16x512xf32>
    %c0_131 = arith.constant 0 : index
    %c3_132 = arith.constant 3 : index
    %c0_133 = arith.constant 0 : index
    %c0_134 = arith.constant 0 : index
    %284 = vector.load %arg13[%c0_131, %c3_132, %c0_133, %c0_134] : memref<1x4x128x512xbf16, #tpu.memory_space<vmem>>, vector<1x1x128x512xbf16>
    %285 = vector.shape_cast %284 : vector<1x1x128x512xbf16> to vector<128x512xbf16>
    %cst_135 = arith.constant dense<0.000000e+00> : vector<16x512xf32>
    %286 = tpu.matmul %210, %285, %cst_135 {dimension_numbers = #tpu.dot_dimension_numbers<[1], [0], [0], [1], [0, 0, 1, 1], [], []>} : vector<16x128xbf16>, vector<128x512xbf16>, vector<16x512xf32> -> vector<16x512xf32>
    %cst_136 = arith.constant 0.000000e+00 : f32
    %287 = vector.broadcast %cst_136 : f32 to vector<16x512xf32>
    %288 = arith.maximumf %283, %287 : vector<16x512xf32>
    %289 = arith.mulf %288, %288 : vector<16x512xf32>
    %290 = arith.mulf %289, %286 : vector<16x512xf32>
    %291 = arith.truncf %290 : vector<16x512xf32> to vector<16x512xbf16>
    %c0_137 = arith.constant 0 : index
    %c3_138 = arith.constant 3 : index
    %c0_139 = arith.constant 0 : index
    %c0_140 = arith.constant 0 : index
    %292 = vector.load %arg14[%c0_137, %c3_138, %c0_139, %c0_140] : memref<1x4x512x128xbf16, #tpu.memory_space<vmem>>, vector<1x1x512x128xbf16>
    %293 = vector.shape_cast %292 : vector<1x1x512x128xbf16> to vector<512x128xbf16>
    %cst_141 = arith.constant dense<0.000000e+00> : vector<16x128xf32>
    %294 = tpu.matmul %291, %293, %cst_141 {dimension_numbers = #tpu.dot_dimension_numbers<[1], [0], [0], [1], [0, 0, 1, 1], [], []>} : vector<16x512xbf16>, vector<512x128xbf16>, vector<16x128xf32> -> vector<16x128xf32>
    %c3_i32 = arith.constant 3 : i32
    %295 = vector.broadcast %c3_i32 : i32 to vector<16x4xi32>
    %296 = arith.cmpi eq, %178, %295 : vector<16x4xi32>
    %cst_142 = arith.constant 0.000000e+00 : f32
    %297 = vector.broadcast %cst_142 : f32 to vector<16x4xf32>
    %298 = arith.select %296, %209, %297 : vector<16x4xi1>, vector<16x4xf32>
    %cst_143 = arith.constant dense<0.000000e+00> : vector<16xf32>
    %299 = vector.multi_reduction <add>, %298, %cst_143 [1] : vector<16x4xf32> to vector<16xf32>
    %300 = vector.shape_cast %299 : vector<16xf32> to vector<16x1xf32>
    %301 = vector.broadcast %300 : vector<16x1xf32> to vector<16x128xf32>
    %302 = arith.mulf %301, %294 : vector<16x128xf32>
    %303 = arith.addf %280, %302 : vector<16x128xf32>
    %304 = arith.addf %147, %303 : vector<16x128xf32>
    %c0_144 = arith.constant 0 : index
    %c0_145 = arith.constant 0 : index
    %305 = vector.load %arg18[%c0_144, %c0_145] : memref<16x128xf32, #tpu.memory_space<vmem>>, vector<16x128xf32>
    tpu.vector_store %arg18[%c0_144, %c0_145], %304 {strides = array<i32>} : memref<16x128xf32, #tpu.memory_space<vmem>>, vector<16x128xf32>,
    %c1_i32_146 = arith.constant 1 : i32
    %306 = arith.cmpi eq, %arg0, %c1_i32_146 : i32
    %307 = arith.extui %306 : i1 to i32
    %c0_i32_147 = arith.constant 0 : i32
    %308 = arith.cmpi ne, %307, %c0_i32_147 : i32
    scf.if %308 {
      %c0_148 = arith.constant 0 : index
      %c0_149 = arith.constant 0 : index
      %309 = vector.load %arg15[%c0_148, %c0_149] : memref<1x128xf32, #tpu.memory_space<vmem>>, vector<1x128xf32>
      %310 = arith.mulf %304, %304 : vector<16x128xf32>
      %cst_150 = arith.constant dense<0.000000e+00> : vector<16xf32>
      %311 = vector.multi_reduction <add>, %310, %cst_150 [1] : vector<16x128xf32> to vector<16xf32>
      %312 = vector.shape_cast %311 : vector<16xf32> to vector<16x1xf32>
      %cst_151 = arith.constant 1.280000e+02 : f32
      %313 = vector.broadcast %cst_151 : f32 to vector<16x1xf32>
      %314 = arith.divf %312, %313 : vector<16x1xf32>
      %cst_152 = arith.constant 9.99999997E-7 : f32
      %315 = vector.broadcast %cst_152 : f32 to vector<16x1xf32>
      %316 = arith.addf %314, %315 : vector<16x1xf32>
      %317 = math.rsqrt %316 : vector<16x1xf32>
      %318 = vector.broadcast %317 : vector<16x1xf32> to vector<16x128xf32>
      %319 = arith.mulf %304, %318 : vector<16x128xf32>
      %320 = vector.broadcast %309 : vector<1x128xf32> to vector<16x128xf32>
      %321 = arith.mulf %320, %319 : vector<16x128xf32>
      %322 = arith.truncf %321 : vector<16x128xf32> to vector<16x128xbf16>
      %c0_153 = arith.constant 0 : index
      %c0_154 = arith.constant 0 : index
      %323 = vector.load %arg16[%c0_153, %c0_154] : memref<128x256xbf16, #tpu.memory_space<vmem>>, vector<128x256xbf16>
      %cst_155 = arith.constant dense<0.000000e+00> : vector<16x256xf32>
      %324 = tpu.matmul %322, %323, %cst_155 {dimension_numbers = #tpu.dot_dimension_numbers<[1], [0], [0], [1], [0, 0, 1, 1], [], []>} : vector<16x128xbf16>, vector<128x256xbf16>, vector<16x256xf32> -> vector<16x256xf32>
      %c0_156 = arith.constant 0 : index
      %c0_157 = arith.constant 0 : index
      %325 = vector.load %arg17[%c0_156, %c0_157] : memref<16x256xf32, #tpu.memory_space<vmem>>, vector<16x256xf32>
      tpu.vector_store %arg17[%c0_156, %c0_157], %324 {strides = array<i32>} : memref<16x256xf32, #tpu.memory_space<vmem>>, vector<16x256xf32>,
    } else {
    }
    return
  }
  func.func @transform_0(%arg0: i32) -> (i32, i32) {
    %c0_i32 = arith.constant 0 : i32
    %c0_i32_0 = arith.constant 0 : i32
    %c0_i32_1 = arith.constant 0 : i32
    return %c0_i32, %c0_i32_0 : i32, i32
  }
  func.func @transform_1(%arg0: i32) -> (i32, i32) {
    %c0_i32 = arith.constant 0 : i32
    %c0_i32_0 = arith.constant 0 : i32
    %c0_i32_1 = arith.constant 0 : i32
    return %c0_i32, %c0_i32_0 : i32, i32
  }
  func.func @transform_2(%arg0: i32) -> (i32, i32) {
    %c0_i32 = arith.constant 0 : i32
    %c0_i32_0 = arith.constant 0 : i32
    %c0_i32_1 = arith.constant 0 : i32
    return %c0_i32, %c0_i32_0 : i32, i32
  }
  func.func @transform_3(%arg0: i32) -> (i32, i32) {
    %c0_i32 = arith.constant 0 : i32
    %c0_i32_0 = arith.constant 0 : i32
    %c0_i32_1 = arith.constant 0 : i32
    return %c0_i32, %c0_i32_0 : i32, i32
  }
  func.func @transform_4(%arg0: i32) -> (i32, i32) {
    %c0_i32 = arith.constant 0 : i32
    %c0_i32_0 = arith.constant 0 : i32
    %c0_i32_1 = arith.constant 0 : i32
    return %c0_i32, %c0_i32_0 : i32, i32
  }
  func.func @transform_5(%arg0: i32) -> (i32, i32, i32) {
    %c0_i32 = arith.constant 0 : i32
    %c0_i32_0 = arith.constant 0 : i32
    %c0_i32_1 = arith.constant 0 : i32
    return %arg0, %c0_i32, %c0_i32_0 : i32, i32, i32
  }
  func.func @transform_6(%arg0: i32) -> (i32, i32, i32) {
    %c0_i32 = arith.constant 0 : i32
    %c0_i32_0 = arith.constant 0 : i32
    %c0_i32_1 = arith.constant 0 : i32
    return %arg0, %c0_i32, %c0_i32_0 : i32, i32, i32
  }
  func.func @transform_7(%arg0: i32) -> (i32, i32, i32) {
    %c0_i32 = arith.constant 0 : i32
    %c0_i32_0 = arith.constant 0 : i32
    %c0_i32_1 = arith.constant 0 : i32
    return %arg0, %c0_i32, %c0_i32_0 : i32, i32, i32
  }
  func.func @transform_8(%arg0: i32) -> (i32, i32, i32) {
    %c0_i32 = arith.constant 0 : i32
    %c0_i32_0 = arith.constant 0 : i32
    %c0_i32_1 = arith.constant 0 : i32
    return %arg0, %c0_i32, %c0_i32_0 : i32, i32, i32
  }
  func.func @transform_9(%arg0: i32) -> (i32, i32, i32) {
    %c0_i32 = arith.constant 0 : i32
    %c0_i32_0 = arith.constant 0 : i32
    %c0_i32_1 = arith.constant 0 : i32
    return %arg0, %c0_i32, %c0_i32_0 : i32, i32, i32
  }
  func.func @transform_10(%arg0: i32) -> (i32, i32, i32) {
    %c0_i32 = arith.constant 0 : i32
    %c0_i32_0 = arith.constant 0 : i32
    %c0_i32_1 = arith.constant 0 : i32
    return %arg0, %c0_i32, %c0_i32_0 : i32, i32, i32
  }
  func.func @transform_11(%arg0: i32) -> (i32, i32, i32, i32) {
    %c0_i32 = arith.constant 0 : i32
    %c0_i32_0 = arith.constant 0 : i32
    %c0_i32_1 = arith.constant 0 : i32
    %c0_i32_2 = arith.constant 0 : i32
    return %arg0, %c0_i32, %c0_i32_0, %c0_i32_1 : i32, i32, i32, i32
  }
  func.func @transform_12(%arg0: i32) -> (i32, i32, i32, i32) {
    %c0_i32 = arith.constant 0 : i32
    %c0_i32_0 = arith.constant 0 : i32
    %c0_i32_1 = arith.constant 0 : i32
    %c0_i32_2 = arith.constant 0 : i32
    return %arg0, %c0_i32, %c0_i32_0, %c0_i32_1 : i32, i32, i32, i32
  }
  func.func @transform_13(%arg0: i32) -> (i32, i32, i32, i32) {
    %c0_i32 = arith.constant 0 : i32
    %c0_i32_0 = arith.constant 0 : i32
    %c0_i32_1 = arith.constant 0 : i32
    %c0_i32_2 = arith.constant 0 : i32
    return %arg0, %c0_i32, %c0_i32_0, %c0_i32_1 : i32, i32, i32, i32
  }
  func.func @transform_14(%arg0: i32) -> (i32, i32) {
    %c0_i32 = arith.constant 0 : i32
    %c0_i32_0 = arith.constant 0 : i32
    %c0_i32_1 = arith.constant 0 : i32
    return %c0_i32, %c0_i32_0 : i32, i32
  }
  func.func @transform_15(%arg0: i32) -> (i32, i32) {
    %c0_i32 = arith.constant 0 : i32
    %c0_i32_0 = arith.constant 0 : i32
    %c0_i32_1 = arith.constant 0 : i32
    return %c0_i32, %c0_i32_0 : i32, i32
  }
  func.func @transform_16(%arg0: i32) -> (i32, i32) {
    %c0_i32 = arith.constant 0 : i32
    %c0_i32_0 = arith.constant 0 : i32
    %c0_i32_1 = arith.constant 0 : i32
    return %c0_i32, %c0_i32_0 : i32, i32
  }
}

</mosaic_0001>

<llo_original>
// kernel: forward.1
$region0: #{forward.1}
  #allocation0 [shape = 'u32[]', space=smem, size = 0x4, offset = 0x4, fixed_abs, tag = 'smem constant byte address 0x4 - core index']
  #allocation1 [shape = 'u32[144,128]{1,0:T(1,128)}', space=vmem, size = 0x12000, scoped, tag = 'internal scratch']
  #allocation2 [shape = 'f32[16,128]{1,0:T(8,128)}', space=vmem, size = 0x2000, scoped, tag = 'scratch operand']
  %s0 = inlined_call_operand.vmem [shape: f32[16,128], index: 0, kind: input, shape index: {}]
  %s1 = inlined_call_operand.hbm [shape: f32[16,128], index: 1, kind: input, shape index: {}]
  %s2 = inlined_call_operand.hbm [shape: f32[16,128], index: 2, kind: input, shape index: {}]
  %s3 = inlined_call_operand.vmem [shape: f32[128,128], index: 3, kind: input, shape index: {}]
  %s4 = inlined_call_operand.hbm [shape: f32[16,16], index: 4, kind: input, shape index: {}]
  %s5 = inlined_call_operand.vmem [shape: f32[2,1,128], index: 5, kind: input, shape index: {}]
  %s6 = inlined_call_operand.vmem [shape: bf16[2,128,384], index: 6, kind: input, shape index: {}]
  %s7 = inlined_call_operand.vmem [shape: bf16[2,128,128], index: 7, kind: input, shape index: {}]
  %s8 = inlined_call_operand.hbm [shape: f32[2,1,128], index: 8, kind: input, shape index: {}]
  %s9 = inlined_call_operand.vmem [shape: f32[2,128,4], index: 9, kind: input, shape index: {}]
  %s10 = inlined_call_operand.hbm [shape: f32[2,1,4], index: 10, kind: input, shape index: {}]
  %s11 = inlined_call_operand.hbm [shape: bf16[2,4,128,512], index: 11, kind: input, shape index: {}]
  %s12 = inlined_call_operand.hbm [shape: bf16[2,4,128,512], index: 12, kind: input, shape index: {}]
  %s13 = inlined_call_operand.hbm [shape: bf16[2,4,512,128], index: 13, kind: input, shape index: {}]
  %s14 = inlined_call_operand.hbm [shape: f32[1,128], index: 14, kind: input, shape index: {}]
  %s15 = inlined_call_operand.hbm [shape: bf16[128,256], index: 15, kind: input, shape index: {}]
  %s16 = inlined_call_operand.hbm [shape: f32[16,256], index: 16, kind: output, shape index: {}]
  %s17 = sld [smem:[#allocation0]]
  $region145: #{forward.1} parent=0
    _
  %s19 = ssub.s32 1, %s17
  %s20 = scalar_select 0, %s19, %s17
  $region1: #{forward.1} parent=0
    #allocation3 [shape = 'u8[8192]{0}', space=vmem, size = 0x2000, scoped, tag = 'input window, operand 1, single buffered']
    #allocation4 [shape = 's32[2]{0}', space=sflag, size = 0x8, scoped, tag = 'scoped memory for forward.1']
    #allocation5 [shape = 's32[2]{0}', space=sflag, size = 0x8, scoped, tag = 'scoped memory for forward.1']
    #allocation6 [shape = 'u8[8192]{0}', space=vmem, size = 0x2000, scoped, tag = 'input window, operand 2, single buffered']
    #allocation7 [shape = 's32[1]{0}', space=sflag, size = 0x4, scoped, tag = 'scoped memory for forward.1']
    #allocation8 [shape = 'u8[8192]{0}', space=vmem, size = 0x2000, scoped, tag = 'input window, operand 4, single buffered']
    #allocation9 [shape = 'u8[1024]{0}', space=vmem, size = 0x400, scoped, tag = 'input window, operand 8']
    #allocation10 [shape = 's32[2]{0}', space=sflag, size = 0x8, scoped, tag = 'scoped memory for forward.1']
    #allocation11 [shape = 'u8[1024]{0}', space=vmem, size = 0x400, scoped, tag = 'input window, operand 10']
    #allocation12 [shape = 'u8[1048576]{0}', space=vmem, size = 0x100000, scoped, tag = 'input window, operand 11']
    #allocation13 [shape = 's32[2]{0}', space=sflag, size = 0x8, scoped, tag = 'scoped memory for forward.1']
    #allocation14 [shape = 'u8[1048576]{0}', space=vmem, size = 0x100000, scoped, tag = 'input window, operand 12']
    #allocation15 [shape = 'u8[1048576]{0}', space=vmem, size = 0x100000, scoped, tag = 'input window, operand 13']
    #allocation16 [shape = 's32[2]{0}', space=sflag, size = 0x8, scoped, tag = 'scoped memory for forward.1']
    #allocation17 [shape = 'u8[512]{0}', space=vmem, size = 0x400, scoped, tag = 'input window, operand 14, single buffered']
    #allocation18 [shape = 'u8[65536]{0}', space=vmem, size = 0x10000, scoped, tag = 'input window, operand 15, single buffered']
    #allocation19 [shape = 's32[1]{0}', space=sflag, size = 0x4, scoped, tag = 'scoped memory for forward.1']
    #allocation20 [shape = 'u8[16384]{0}', space=vmem, size = 0x4000, scoped, tag = 'output window, operand 0, single buffered']
    %21 = vsyncpa [#allocation4], 0
    %22 = vsyncpa [#allocation7], 0
    %23 = vsyncpa [#allocation10], 0
    %s24 = scalar_lea.sflag [#allocation10], 1
    %25 = vsyncpa %s24, 0
    %26 = vsyncpa [#allocation13], 0
    %s27 = scalar_lea.sflag [#allocation13], 1
    %28 = vsyncpa %s27, 0
    %29 = vsyncpa [#allocation16], 0
    %s30 = scalar_lea.sflag [#allocation16], 1
    %31 = vsyncpa %s30, 0
    %32 = vsyncpa [#allocation19], 0
    %33 = vsyncpa [#allocation5], 0
    loop: start=0, step=1, limit=4
    $region2: #{forward.1} parent=1 // loop_pre_header
      _
    $region3: #{forward.1} parent=1 // loop_header
      %s35 = sphi 0, %s39
      %p36 = scmp.ge.s32.totalorder %s35, 4
      %s43 = sphi 0, %s43
      %s45 = sphi 0, %s43
      %s46 = sphi 0, %s45
      %s60 = sphi 0, %s46
      %s64 = sphi 0, %s64
      %s66 = sphi 0, %s64
      %s67 = sphi 0, %s66
      %s81 = sphi 0, %s67
      %s85 = sphi 0, %s85
      %s87 = sphi 0, %s85
      %s88 = sphi 0, %s87
      %s102 = sphi 0, %s88
      %s106 = sphi 0, %s106
      %s108 = sphi 0, %s106
      %s109 = sphi 0, %s108
      %s123 = sphi 0, %s109
      %s127 = sphi 0, %s127
      %s129 = sphi 0, %s127
      %s130 = sphi 0, %s129
      %s144 = sphi 0, %s130
      %s150 = sphi 0, %s152
      %s153 = sphi 0, %s150
      %s154 = sphi 0, %s153
      %s170 = sphi 0, %s154
      %s176 = sphi 0, %s178
      %s179 = sphi 0, %s176
      %s180 = sphi 0, %s179
      %s196 = sphi 0, %s180
      %s202 = sphi 0, %s204
      %s205 = sphi 0, %s202
      %s206 = sphi 0, %s205
      %s222 = sphi 0, %s206
      %s228 = sphi 0, %s230
      %s231 = sphi 0, %s228
      %s232 = sphi 0, %s231
      %s248 = sphi 0, %s232
      %s254 = sphi 0, %s256
      %s257 = sphi 0, %s254
      %s258 = sphi 0, %s257
      %s274 = sphi 0, %s258
      %s280 = sphi 0, %s282
      %s283 = sphi 0, %s280
      %s284 = sphi 0, %s283
      %s300 = sphi 0, %s284
      %s306 = sphi 0, %s308
      %s309 = sphi 0, %s306
      %s310 = sphi 0, %s309
      %s326 = sphi 0, %s310
      %s332 = sphi 0, %s334
      %s335 = sphi 0, %s332
      %s336 = sphi 0, %s335
      %s352 = sphi 0, %s336
      %s358 = sphi 0, %s360
      %s361 = sphi 0, %s358
      %s362 = sphi 0, %s361
      %s378 = sphi 0, %s362
      %s382 = sphi 0, %s382
      %s384 = sphi 0, %s382
      %s385 = sphi 0, %s384
      %s399 = sphi 0, %s385
      %s403 = sphi 0, %s403
      %s405 = sphi 0, %s403
      %s406 = sphi 0, %s405
      %s420 = sphi 0, %s406
      %s424 = sphi 0, %s424
      %s426 = sphi 0, %s424
      %s427 = sphi 0, %s426
      %s441 = sphi 0, %s427
    $region4: #{forward.1} parent=1 // loop_header_branch
      %38 = sbr.rel (%p36) target = $region8
    $region5: #{forward.1} parent=1 // loop_body
      %s40 = ssub.s32 %s35, 1
      %s41 = ssub.s32 %s35, 2
      %s42 = sadd.s32 %s35, 1
      %s44 = sadd.s32 %s43, 1
      %p47 = scmp.eq.s32.totalorder %s35, 1
      %p48 = scmp.ne.s32.totalorder %s43, %s45
      %p49 = scmp.eq.s32.totalorder %s35, 0
      %p50 = por %p48, %p49
      %p51 = scmp.ne.s32.totalorder %s43, %s45
      %p52 = scmp.eq.s32.totalorder %s40, 1
      %p53 = por %p51, %p52
      %p54 = scmp.ne.s32.totalorder %s45, %s46
      %p55 = scmp.eq.s32.totalorder %s40, 0
      %p56 = por %p54, %p55
      %p57 = scmp.ne.s32.totalorder %s45, %s46
      %p58 = scmp.eq.s32.totalorder %s41, 1
      %p59 = por %p57, %p58
      %p61 = scmp.ne.s32.totalorder %s46, %s60
      %p62 = scmp.eq.s32.totalorder %s41, 0
      %p63 = por %p61, %p62
      %s65 = sadd.s32 %s64, 1
      %p68 = scmp.eq.s32.totalorder %s35, 1
      %p69 = scmp.ne.s32.totalorder %s64, %s66
      %p70 = scmp.eq.s32.totalorder %s35, 0
      %p71 = por %p69, %p70
      %p72 = scmp.ne.s32.totalorder %s64, %s66
      %p73 = scmp.eq.s32.totalorder %s40, 1
      %p74 = por %p72, %p73
      %p75 = scmp.ne.s32.totalorder %s66, %s67
      %p76 = scmp.eq.s32.totalorder %s40, 0
      %p77 = por %p75, %p76
      %p78 = scmp.ne.s32.totalorder %s66, %s67
      %p79 = scmp.eq.s32.totalorder %s41, 1
      %p80 = por %p78, %p79
      %p82 = scmp.ne.s32.totalorder %s67, %s81
      %p83 = scmp.eq.s32.totalorder %s41, 0
      %p84 = por %p82, %p83
      %s86 = sadd.s32 %s85, 1
      %p89 = scmp.eq.s32.totalorder %s35, 1
      %p90 = scmp.ne.s32.totalorder %s85, %s87
      %p91 = scmp.eq.s32.totalorder %s35, 0
      %p92 = por %p90, %p91
      %p93 = scmp.ne.s32.totalorder %s85, %s87
      %p94 = scmp.eq.s32.totalorder %s40, 1
      %p95 = por %p93, %p94
      %p96 = scmp.ne.s32.totalorder %s87, %s88
      %p97 = scmp.eq.s32.totalorder %s40, 0
      %p98 = por %p96, %p97
      %p99 = scmp.ne.s32.totalorder %s87, %s88
      %p100 = scmp.eq.s32.totalorder %s41, 1
      %p101 = por %p99, %p100
      %p103 = scmp.ne.s32.totalorder %s88, %s102
      %p104 = scmp.eq.s32.totalorder %s41, 0
      %p105 = por %p103, %p104
      %s107 = sadd.s32 %s106, 1
      %p110 = scmp.eq.s32.totalorder %s35, 1
      %p111 = scmp.ne.s32.totalorder %s106, %s108
      %p112 = scmp.eq.s32.totalorder %s35, 0
      %p113 = por %p111, %p112
      %p114 = scmp.ne.s32.totalorder %s106, %s108
      %p115 = scmp.eq.s32.totalorder %s40, 1
      %p116 = por %p114, %p115
      %p117 = scmp.ne.s32.totalorder %s108, %s109
      %p118 = scmp.eq.s32.totalorder %s40, 0
      %p119 = por %p117, %p118
      %p120 = scmp.ne.s32.totalorder %s108, %s109
      %p121 = scmp.eq.s32.totalorder %s41, 1
      %p122 = por %p120, %p121
      %p124 = scmp.ne.s32.totalorder %s109, %s123
      %p125 = scmp.eq.s32.totalorder %s41, 0
      %p126 = por %p124, %p125
      %s128 = sadd.s32 %s127, 1
      %p131 = scmp.eq.s32.totalorder %s35, 1
      %p132 = scmp.ne.s32.totalorder %s127, %s129
      %p133 = scmp.eq.s32.totalorder %s35, 0
      %p134 = por %p132, %p133
      %p135 = scmp.ne.s32.totalorder %s127, %s129
      %p136 = scmp.eq.s32.totalorder %s40, 1
      %p137 = por %p135, %p136
      %p138 = scmp.ne.s32.totalorder %s129, %s130
      %p139 = scmp.eq.s32.totalorder %s40, 0
      %p140 = por %p138, %p139
      %p141 = scmp.ne.s32.totalorder %s129, %s130
      %p142 = scmp.eq.s32.totalorder %s41, 1
      %p143 = por %p141, %p142
      %p145 = scmp.ne.s32.totalorder %s130, %s144
      %p146 = scmp.eq.s32.totalorder %s41, 0
      %p147 = por %p145, %p146
      %s148 = ssub.s32 %s35, %s42
      %p149 = scmp.eq.s32.totalorder %s148, 0
      %s151 = sadd.s32 %s150, 1
      %s152 = scalar_select %p149, %s150, %s151
      %p155 = pneg %p149
      %p156 = scmp.eq.s32.totalorder %s35, 1
      %p157 = por %p155, %p156
      %p158 = scmp.ne.s32.totalorder %s150, %s153
      %p159 = scmp.eq.s32.totalorder %s35, 0
      %p160 = por %p158, %p159
      %p161 = scmp.ne.s32.totalorder %s150, %s153
      %p162 = scmp.eq.s32.totalorder %s40, 1
      %p163 = por %p161, %p162
      %p164 = scmp.ne.s32.totalorder %s153, %s154
      %p165 = scmp.eq.s32.totalorder %s40, 0
      %p166 = por %p164, %p165
      %p167 = scmp.ne.s32.totalorder %s153, %s154
      %p168 = scmp.eq.s32.totalorder %s41, 1
      %p169 = por %p167, %p168
      %p171 = scmp.ne.s32.totalorder %s154, %s170
      %p172 = scmp.eq.s32.totalorder %s41, 0
      %p173 = por %p171, %p172
      %s174 = ssub.s32 %s35, %s42
      %p175 = scmp.eq.s32.totalorder %s174, 0
      %s177 = sadd.s32 %s176, 1
      %s178 = scalar_select %p175, %s176, %s177
      %p181 = pneg %p175
      %p182 = scmp.eq.s32.totalorder %s35, 1
      %p183 = por %p181, %p182
      %p184 = scmp.ne.s32.totalorder %s176, %s179
      %p185 = scmp.eq.s32.totalorder %s35, 0
      %p186 = por %p184, %p185
      %p187 = scmp.ne.s32.totalorder %s176, %s179
      %p188 = scmp.eq.s32.totalorder %s40, 1
      %p189 = por %p187, %p188
      %p190 = scmp.ne.s32.totalorder %s179, %s180
      %p191 = scmp.eq.s32.totalorder %s40, 0
      %p192 = por %p190, %p191
      %p193 = scmp.ne.s32.totalorder %s179, %s180
      %p194 = scmp.eq.s32.totalorder %s41, 1
      %p195 = por %p193, %p194
      %p197 = scmp.ne.s32.totalorder %s180, %s196
      %p198 = scmp.eq.s32.totalorder %s41, 0
      %p199 = por %p197, %p198
      %s200 = ssub.s32 %s35, %s42
      %p201 = scmp.eq.s32.totalorder %s200, 0
      %s203 = sadd.s32 %s202, 1
      %s204 = scalar_select %p201, %s202, %s203
      %p207 = pneg %p201
      %p208 = scmp.eq.s32.totalorder %s35, 1
      %p209 = por %p207, %p208
      %p210 = scmp.ne.s32.totalorder %s202, %s205
      %p211 = scmp.eq.s32.totalorder %s35, 0
      %p212 = por %p210, %p211
      %p213 = scmp.ne.s32.totalorder %s202, %s205
      %p214 = scmp.eq.s32.totalorder %s40, 1
      %p215 = por %p213, %p214
      %p216 = scmp.ne.s32.totalorder %s205, %s206
      %p217 = scmp.eq.s32.totalorder %s40, 0
      %p218 = por %p216, %p217
      %p219 = scmp.ne.s32.totalorder %s205, %s206
      %p220 = scmp.eq.s32.totalorder %s41, 1
      %p221 = por %p219, %p220
      %p223 = scmp.ne.s32.totalorder %s206, %s222
      %p224 = scmp.eq.s32.totalorder %s41, 0
      %p225 = por %p223, %p224
      %s226 = ssub.s32 %s35, %s42
      %p227 = scmp.eq.s32.totalorder %s226, 0
      %s229 = sadd.s32 %s228, 1
      %s230 = scalar_select %p227, %s228, %s229
      %p233 = pneg %p227
      %p234 = scmp.eq.s32.totalorder %s35, 1
      %p235 = por %p233, %p234
      %p236 = scmp.ne.s32.totalorder %s228, %s231
      %p237 = scmp.eq.s32.totalorder %s35, 0
      %p238 = por %p236, %p237
      %p239 = scmp.ne.s32.totalorder %s228, %s231
      %p240 = scmp.eq.s32.totalorder %s40, 1
      %p241 = por %p239, %p240
      %p242 = scmp.ne.s32.totalorder %s231, %s232
      %p243 = scmp.eq.s32.totalorder %s40, 0
      %p244 = por %p242, %p243
      %p245 = scmp.ne.s32.totalorder %s231, %s232
      %p246 = scmp.eq.s32.totalorder %s41, 1
      %p247 = por %p245, %p246
      %p249 = scmp.ne.s32.totalorder %s232, %s248
      %p250 = scmp.eq.s32.totalorder %s41, 0
      %p251 = por %p249, %p250
      %s252 = ssub.s32 %s35, %s42
      %p253 = scmp.eq.s32.totalorder %s252, 0
      %s255 = sadd.s32 %s254, 1
      %s256 = scalar_select %p253, %s254, %s255
      %p259 = pneg %p253
      %p260 = scmp.eq.s32.totalorder %s35, 1
      %p261 = por %p259, %p260
      %p262 = scmp.ne.s32.totalorder %s254, %s257
      %p263 = scmp.eq.s32.totalorder %s35, 0
      %p264 = por %p262, %p263
      %p265 = scmp.ne.s32.totalorder %s254, %s257
      %p266 = scmp.eq.s32.totalorder %s40, 1
      %p267 = por %p265, %p266
      %p268 = scmp.ne.s32.totalorder %s257, %s258
      %p269 = scmp.eq.s32.totalorder %s40, 0
      %p270 = por %p268, %p269
      %p271 = scmp.ne.s32.totalorder %s257, %s258
      %p272 = scmp.eq.s32.totalorder %s41, 1
      %p273 = por %p271, %p272
      %p275 = scmp.ne.s32.totalorder %s258, %s274
      %p276 = scmp.eq.s32.totalorder %s41, 0
      %p277 = por %p275, %p276
      %s278 = ssub.s32 %s35, %s42
      %p279 = scmp.eq.s32.totalorder %s278, 0
      %s281 = sadd.s32 %s280, 1
      %s282 = scalar_select %p279, %s280, %s281
      %p285 = pneg %p279
      %p286 = scmp.eq.s32.totalorder %s35, 1
      %p287 = por %p285, %p286
      %p288 = scmp.ne.s32.totalorder %s280, %s283
      %p289 = scmp.eq.s32.totalorder %s35, 0
      %p290 = por %p288, %p289
      %p291 = scmp.ne.s32.totalorder %s280, %s283
      %p292 = scmp.eq.s32.totalorder %s40, 1
      %p293 = por %p291, %p292
      %p294 = scmp.ne.s32.totalorder %s283, %s284
      %p295 = scmp.eq.s32.totalorder %s40, 0
      %p296 = por %p294, %p295
      %p297 = scmp.ne.s32.totalorder %s283, %s284
      %p298 = scmp.eq.s32.totalorder %s41, 1
      %p299 = por %p297, %p298
      %p301 = scmp.ne.s32.totalorder %s284, %s300
      %p302 = scmp.eq.s32.totalorder %s41, 0
      %p303 = por %p301, %p302
      %s304 = ssub.s32 %s35, %s42
      %p305 = scmp.eq.s32.totalorder %s304, 0
      %s307 = sadd.s32 %s306, 1
      %s308 = scalar_select %p305, %s306, %s307
      %p311 = pneg %p305
      %p312 = scmp.eq.s32.totalorder %s35, 1
      %p313 = por %p311, %p312
      %p314 = scmp.ne.s32.totalorder %s306, %s309
      %p315 = scmp.eq.s32.totalorder %s35, 0
      %p316 = por %p314, %p315
      %p317 = scmp.ne.s32.totalorder %s306, %s309
      %p318 = scmp.eq.s32.totalorder %s40, 1
      %p319 = por %p317, %p318
      %p320 = scmp.ne.s32.totalorder %s309, %s310
      %p321 = scmp.eq.s32.totalorder %s40, 0
      %p322 = por %p320, %p321
      %p323 = scmp.ne.s32.totalorder %s309, %s310
      %p324 = scmp.eq.s32.totalorder %s41, 1
      %p325 = por %p323, %p324
      %p327 = scmp.ne.s32.totalorder %s310, %s326
      %p328 = scmp.eq.s32.totalorder %s41, 0
      %p329 = por %p327, %p328
      %s330 = ssub.s32 %s35, %s42
      %p331 = scmp.eq.s32.totalorder %s330, 0
      %s333 = sadd.s32 %s332, 1
      %s334 = scalar_select %p331, %s332, %s333
      %p337 = pneg %p331
      %p338 = scmp.eq.s32.totalorder %s35, 1
      %p339 = por %p337, %p338
      %p340 = scmp.ne.s32.totalorder %s332, %s335
      %p341 = scmp.eq.s32.totalorder %s35, 0
      %p342 = por %p340, %p341
      %p343 = scmp.ne.s32.totalorder %s332, %s335
      %p344 = scmp.eq.s32.totalorder %s40, 1
      %p345 = por %p343, %p344
      %p346 = scmp.ne.s32.totalorder %s335, %s336
      %p347 = scmp.eq.s32.totalorder %s40, 0
      %p348 = por %p346, %p347
      %p349 = scmp.ne.s32.totalorder %s335, %s336
      %p350 = scmp.eq.s32.totalorder %s41, 1
      %p351 = por %p349, %p350
      %p353 = scmp.ne.s32.totalorder %s336, %s352
      %p354 = scmp.eq.s32.totalorder %s41, 0
      %p355 = por %p353, %p354
      %s356 = ssub.s32 %s35, %s42
      %p357 = scmp.eq.s32.totalorder %s356, 0
      %s359 = sadd.s32 %s358, 1
      %s360 = scalar_select %p357, %s358, %s359
      %p363 = pneg %p357
      %p364 = scmp.eq.s32.totalorder %s35, 1
      %p365 = por %p363, %p364
      %p366 = scmp.ne.s32.totalorder %s358, %s361
      %p367 = scmp.eq.s32.totalorder %s35, 0
      %p368 = por %p366, %p367
      %p369 = scmp.ne.s32.totalorder %s358, %s361
      %p370 = scmp.eq.s32.totalorder %s40, 1
      %p371 = por %p369, %p370
      %p372 = scmp.ne.s32.totalorder %s361, %s362
      %p373 = scmp.eq.s32.totalorder %s40, 0
      %p374 = por %p372, %p373
      %p375 = scmp.ne.s32.totalorder %s361, %s362
      %p376 = scmp.eq.s32.totalorder %s41, 1
      %p377 = por %p375, %p376
      %p379 = scmp.ne.s32.totalorder %s362, %s378
      %p380 = scmp.eq.s32.totalorder %s41, 0
      %p381 = por %p379, %p380
      %s383 = sadd.s32 %s382, 1
      %p386 = scmp.eq.s32.totalorder %s35, 1
      %p387 = scmp.ne.s32.totalorder %s382, %s384
      %p388 = scmp.eq.s32.totalorder %s35, 0
      %p389 = por %p387, %p388
      %p390 = scmp.ne.s32.totalorder %s382, %s384
      %p391 = scmp.eq.s32.totalorder %s40, 1
      %p392 = por %p390, %p391
      %p393 = scmp.ne.s32.totalorder %s384, %s385
      %p394 = scmp.eq.s32.totalorder %s40, 0
      %p395 = por %p393, %p394
      %p396 = scmp.ne.s32.totalorder %s384, %s385
      %p397 = scmp.eq.s32.totalorder %s41, 1
      %p398 = por %p396, %p397
      %p400 = scmp.ne.s32.totalorder %s385, %s399
      %p401 = scmp.eq.s32.totalorder %s41, 0
      %p402 = por %p400, %p401
      %s404 = sadd.s32 %s403, 1
      %p407 = scmp.eq.s32.totalorder %s35, 1
      %p408 = scmp.ne.s32.totalorder %s403, %s405
      %p409 = scmp.eq.s32.totalorder %s35, 0
      %p410 = por %p408, %p409
      %p411 = scmp.ne.s32.totalorder %s403, %s405
      %p412 = scmp.eq.s32.totalorder %s40, 1
      %p413 = por %p411, %p412
      %p414 = scmp.ne.s32.totalorder %s405, %s406
      %p415 = scmp.eq.s32.totalorder %s40, 0
      %p416 = por %p414, %p415
      %p417 = scmp.ne.s32.totalorder %s405, %s406
      %p418 = scmp.eq.s32.totalorder %s41, 1
      %p419 = por %p417, %p418
      %p421 = scmp.ne.s32.totalorder %s406, %s420
      %p422 = scmp.eq.s32.totalorder %s41, 0
      %p423 = por %p421, %p422
      %s425 = sadd.s32 %s424, 1
      %p428 = scmp.eq.s32.totalorder %s35, 1
      %p429 = scmp.ne.s32.totalorder %s424, %s426
      %p430 = scmp.eq.s32.totalorder %s35, 0
      %p431 = por %p429, %p430
      %p432 = scmp.ne.s32.totalorder %s424, %s426
      %p433 = scmp.eq.s32.totalorder %s40, 1
      %p434 = por %p432, %p433
      %p435 = scmp.ne.s32.totalorder %s426, %s427
      %p436 = scmp.eq.s32.totalorder %s40, 0
      %p437 = por %p435, %p436
      %p438 = scmp.ne.s32.totalorder %s426, %s427
      %p439 = scmp.eq.s32.totalorder %s41, 1
      %p440 = por %p438, %p439
      %p442 = scmp.ne.s32.totalorder %s427, %s441
      %p443 = scmp.eq.s32.totalorder %s41, 0
      %p444 = por %p442, %p443
      %p445 = scmp.le.s32.totalorder 1, %s35
      %p446 = scmp.lt.s32.totalorder %s35, 3
      %p447 = pnand %p445, %p446
      %p448 = pneg %p447
      // Predicated region
      $region9: #{forward.1} parent=5 // pred_check
        _
      $region10: #{forward.1} parent=5 // pred_check_branch
        %450 = sbr.rel (%p447) target = $region12
      $region11: #{forward.1} parent=5 // pred_region
        %s451 = ssub.s32 %s35, 1
        // Predicated region
        $region13: #{forward.1} parent=11 // pred_check
          %p452 = pneg %p56
        $region14: #{forward.1} parent=11 // pred_check_branch
          %454 = sbr.rel (%p452) target = $region16
        $region15: #{forward.1} parent=11 // pred_region
          _
        $region16: #{forward.1} parent=11 // pred_fallthru
          _
        // Predicated region
        $region17: #{forward.1} parent=11 // pred_check
          %p455 = pneg %p77
        $region18: #{forward.1} parent=11 // pred_check_branch
          %457 = sbr.rel (%p455) target = $region20
        $region19: #{forward.1} parent=11 // pred_region
          %s459 = ssub.s32 256, 256
          %460 = vsyncadd [#allocation4], %s459
          %s461 = sshll.u32 [#allocation3], 4
          %s462 = int_to_ptr.vmem [resolvable:$true] %s461
          %467 = dma.hbm_to_vmem [thread:$0]  %s1, 256, %s462, [#allocation4], 128, 128, 8
        $region20: #{forward.1} parent=11 // pred_fallthru
          _
        // Predicated region
        $region21: #{forward.1} parent=11 // pred_check
          %p468 = pneg %p98
        $region22: #{forward.1} parent=11 // pred_check_branch
          %470 = sbr.rel (%p468) target = $region24
        $region23: #{forward.1} parent=11 // pred_region
          %s472 = ssub.s32 256, 256
          %473 = vsyncadd [#allocation7], %s472
          %s474 = sshll.u32 [#allocation6], 4
          %s475 = int_to_ptr.vmem [resolvable:$true] %s474
          %480 = dma.hbm_to_vmem [thread:$0]  %s2, 256, %s475, [#allocation7], 128, 128, 8
        $region24: #{forward.1} parent=11 // pred_fallthru
          _
        // Predicated region
        $region25: #{forward.1} parent=11 // pred_check
          %p481 = pneg %p119
        $region26: #{forward.1} parent=11 // pred_check_branch
          %483 = sbr.rel (%p481) target = $region28
        $region27: #{forward.1} parent=11 // pred_region
          _
        $region28: #{forward.1} parent=11 // pred_fallthru
          _
        // Predicated region
        $region29: #{forward.1} parent=11 // pred_check
          %p484 = pneg %p140
        $region30: #{forward.1} parent=11 // pred_check_branch
          %486 = sbr.rel (%p484) target = $region32
        $region31: #{forward.1} parent=11 // pred_region
          %s488 = ssub.s32 256, 256
          %489 = vsyncadd [#allocation7], %s488
          %s490 = sshll.u32 [#allocation8], 4
          %s491 = int_to_ptr.vmem [resolvable:$true] %s490
          %496 = dma.hbm_to_vmem [thread:$0]  %s4, 256, %s491, [#allocation7], 128, 128, 8
        $region32: #{forward.1} parent=11 // pred_fallthru
          _
        // Predicated region
        $region33: #{forward.1} parent=11 // pred_check
          %p497 = pneg %p395
        $region34: #{forward.1} parent=11 // pred_check_branch
          %499 = sbr.rel (%p497) target = $region36
        $region35: #{forward.1} parent=11 // pred_region
          %s501 = ssub.s32 16, 16
          %502 = vsyncadd [#allocation16], %s501
          %s504 = sshll.u32 [#allocation17], 4
          %s505 = int_to_ptr.vmem [resolvable:$true] %s504
          %507 = dma.hbm_to_vmem [thread:$0]  %s14, 16, %s505, [#allocation16]
        $region36: #{forward.1} parent=11 // pred_fallthru
          _
        // Predicated region
        $region37: #{forward.1} parent=11 // pred_check
          %p508 = pneg %p416
        $region38: #{forward.1} parent=11 // pred_check_branch
          %510 = sbr.rel (%p508) target = $region40
        $region39: #{forward.1} parent=11 // pred_region
          %s512 = ssub.s32 2048, 2048
          %513 = vsyncadd [#allocation19], %s512
          %s514 = sshll.u32 [#allocation18], 4
          %s515 = int_to_ptr.vmem [resolvable:$true] %s514
          %520 = dma.hbm_to_vmem [thread:$0]  %s15, 2048, %s515, [#allocation19], 128, 128, 8
        $region40: #{forward.1} parent=11 // pred_fallthru
          _
      $region12: #{forward.1} parent=5 // pred_fallthru
        _
      %p521 = scmp.lt.s32.totalorder %s35, 2
      // Predicated region
      $region41: #{forward.1} parent=5 // pred_check
        %p522 = pneg %p521
      $region42: #{forward.1} parent=5 // pred_check_branch
        %524 = sbr.rel (%p522) target = $region44
      $region43: #{forward.1} parent=5 // pred_region
        // Predicated region
        $region45: #{forward.1} parent=43 // pred_check
          %p525 = pneg %p160
        $region46: #{forward.1} parent=43 // pred_check_branch
          %527 = sbr.rel (%p525) target = $region48
        $region47: #{forward.1} parent=43 // pred_region
          %p528 = scmp.lt.s32.totalorder %s35, 1
          %s529 = scalar_select %p528, %s35, 1
          %s530 = scalar_lea.vmem %s5, %s529
        $region48: #{forward.1} parent=43 // pred_fallthru
          _
        // Predicated region
        $region49: #{forward.1} parent=43 // pred_check
          %p531 = pneg %p186
        $region50: #{forward.1} parent=43 // pred_check_branch
          %533 = sbr.rel (%p531) target = $region52
        $region51: #{forward.1} parent=43 // pred_region
          %p534 = scmp.lt.s32.totalorder %s35, 1
          %s535 = scalar_select %p534, %s35, 1
          %s536 = smul.addr %s535, 48
          %s537 = smul.addr %s536, 4
          %s538 = scalar_lea.vmem %s6, %s537
        $region52: #{forward.1} parent=43 // pred_fallthru
          _
        // Predicated region
        $region53: #{forward.1} parent=43 // pred_check
          %p539 = pneg %p212
        $region54: #{forward.1} parent=43 // pred_check_branch
          %541 = sbr.rel (%p539) target = $region56
        $region55: #{forward.1} parent=43 // pred_region
          %p542 = scmp.lt.s32.totalorder %s35, 1
          %s543 = scalar_select %p542, %s35, 1
          %s544 = smul.addr %s543, 16
          %s545 = smul.addr %s544, 4
          %s546 = scalar_lea.vmem %s7, %s545
        $region56: #{forward.1} parent=43 // pred_fallthru
          _
        // Predicated region
        $region57: #{forward.1} parent=43 // pred_check
          %p547 = pneg %p238
        $region58: #{forward.1} parent=43 // pred_check_branch
          %549 = sbr.rel (%p547) target = $region60
        $region59: #{forward.1} parent=43 // pred_region
          %s550 = sand.u32 %s35, 1
          %s551 = scalar_lea.sflag [#allocation10], %s550
          %s552 = sand.u32 %s228, 1
          %s553 = scalar_lea.vmem [#allocation9], %s552
          %s555 = ssub.s32 16, 16
          %556 = vsyncadd %s551, %s555
          %s557 = smul.addr %s35, 16
          %s558 = scalar_lea.hbm %s8, %s557
          %s560 = sshll.u32 %s553, 4
          %s561 = int_to_ptr.vmem [resolvable:$true] %s560
          %563 = dma.hbm_to_vmem [thread:$0]  %s558, 16, %s561, %s551
        $region60: #{forward.1} parent=43 // pred_fallthru
          _
        // Predicated region
        $region61: #{forward.1} parent=43 // pred_check
          %p564 = pneg %p264
        $region62: #{forward.1} parent=43 // pred_check_branch
          %566 = sbr.rel (%p564) target = $region64
        $region63: #{forward.1} parent=43 // pred_region
          %p567 = scmp.lt.s32.totalorder %s35, 1
          %s568 = scalar_select %p567, %s35, 1
          %s569 = smul.addr %s568, 16
          %s570 = smul.addr %s569, 8
          %s571 = scalar_lea.vmem %s9, %s570
        $region64: #{forward.1} parent=43 // pred_fallthru
          _
        // Predicated region
        $region65: #{forward.1} parent=43 // pred_check
          %p572 = pneg %p290
        $region66: #{forward.1} parent=43 // pred_check_branch
          %574 = sbr.rel (%p572) target = $region68
        $region67: #{forward.1} parent=43 // pred_region
          %s575 = sand.u32 %s35, 1
          %s576 = scalar_lea.sflag [#allocation10], %s575
          %s577 = sand.u32 %s280, 1
          %s578 = scalar_lea.vmem [#allocation11], %s577
          %s580 = ssub.s32 16, 16
          %581 = vsyncadd %s576, %s580
          %s582 = smul.addr %s35, 16
          %s583 = scalar_lea.hbm %s10, %s582
          %s585 = sshll.u32 %s578, 4
          %s586 = int_to_ptr.vmem [resolvable:$true] %s585
          %588 = dma.hbm_to_vmem [thread:$0]  %s583, 16, %s586, %s576
        $region68: #{forward.1} parent=43 // pred_fallthru
          _
        // Predicated region
        $region69: #{forward.1} parent=43 // pred_check
          %p589 = pneg %p316
        $region70: #{forward.1} parent=43 // pred_check_branch
          %591 = sbr.rel (%p589) target = $region72
        $region71: #{forward.1} parent=43 // pred_region
          %s592 = sand.u32 %s35, 1
          %s593 = scalar_lea.sflag [#allocation13], %s592
          %s594 = sand.u32 %s306, 1
          %s595 = smul.addr %s594, 1024
          %s596 = scalar_lea.vmem [#allocation12], %s595
          %s598 = ssub.s32 16384, 16384
          %599 = vsyncadd %s593, %s598
          %s600 = smul.addr %s35, 256
          %s601 = smul.addr %s600, 64
          %s602 = scalar_lea.hbm %s11, %s601
          %s603 = sshll.u32 %s596, 4
          %s604 = int_to_ptr.vmem [resolvable:$true] %s603
          %609 = dma.hbm_to_vmem [thread:$0]  %s602, 16384, %s604, %s593, 256, 256, 16
        $region72: #{forward.1} parent=43 // pred_fallthru
          _
        // Predicated region
        $region73: #{forward.1} parent=43 // pred_check
          %p610 = pneg %p342
        $region74: #{forward.1} parent=43 // pred_check_branch
          %612 = sbr.rel (%p610) target = $region76
        $region75: #{forward.1} parent=43 // pred_region
          %s613 = sand.u32 %s35, 1
          %s614 = scalar_lea.sflag [#allocation13], %s613
          %s615 = sand.u32 %s332, 1
          %s616 = smul.addr %s615, 1024
          %s617 = scalar_lea.vmem [#allocation14], %s616
          %s619 = ssub.s32 16384, 16384
          %620 = vsyncadd %s614, %s619
          %s621 = smul.addr %s35, 256
          %s622 = smul.addr %s621, 64
          %s623 = scalar_lea.hbm %s12, %s622
          %s624 = sshll.u32 %s617, 4
          %s625 = int_to_ptr.vmem [resolvable:$true] %s624
          %630 = dma.hbm_to_vmem [thread:$0]  %s623, 16384, %s625, %s614, 256, 256, 16
        $region76: #{forward.1} parent=43 // pred_fallthru
          _
        // Predicated region
        $region77: #{forward.1} parent=43 // pred_check
          %p631 = pneg %p368
        $region78: #{forward.1} parent=43 // pred_check_branch
          %633 = sbr.rel (%p631) target = $region80
        $region79: #{forward.1} parent=43 // pred_region
          %s634 = sand.u32 %s35, 1
          %s635 = scalar_lea.sflag [#allocation16], %s634
          %s636 = sand.u32 %s358, 1
          %s637 = smul.addr %s636, 1024
          %s638 = scalar_lea.vmem [#allocation15], %s637
          %s640 = ssub.s32 16384, 16384
          %641 = vsyncadd %s635, %s640
          %s642 = smul.addr %s35, 256
          %s643 = smul.addr %s642, 64
          %s644 = scalar_lea.hbm %s13, %s643
          %s645 = sshll.u32 %s638, 4
          %s646 = int_to_ptr.vmem [resolvable:$true] %s645
          %651 = dma.hbm_to_vmem [thread:$0]  %s644, 16384, %s646, %s635, 64, 64, 4
        $region80: #{forward.1} parent=43 // pred_fallthru
          _
      $region44: #{forward.1} parent=5 // pred_fallthru
        _
      %p652 = scmp.le.s32.totalorder 1, %s35
      %p653 = scmp.lt.s32.totalorder %s35, 3
      %p654 = pnand %p652, %p653
      %p655 = pneg %p654
      // Predicated region
      $region81: #{forward.1} parent=5 // pred_check
        _
      $region82: #{forward.1} parent=5 // pred_check_branch
        %657 = sbr.rel (%p654) target = $region84
      $region83: #{forward.1} parent=5 // pred_region
        %s658 = ssub.s32 %s35, 1
        // Predicated region
        $region85: #{forward.1} parent=83 // pred_check
          %p659 = pneg %p77
        $region86: #{forward.1} parent=83 // pred_check_branch
          %661 = sbr.rel (%p659) target = $region88
        $region87: #{forward.1} parent=83 // pred_region
          %662 = dma.done [#allocation4], 256
        $region88: #{forward.1} parent=83 // pred_fallthru
          _
        // Predicated region
        $region89: #{forward.1} parent=83 // pred_check
          %p663 = pneg %p98
        $region90: #{forward.1} parent=83 // pred_check_branch
          %665 = sbr.rel (%p663) target = $region92
        $region91: #{forward.1} parent=83 // pred_region
          %666 = dma.done [#allocation7], 256
        $region92: #{forward.1} parent=83 // pred_fallthru
          _
        // Predicated region
        $region93: #{forward.1} parent=83 // pred_check
          %p667 = pneg %p140
        $region94: #{forward.1} parent=83 // pred_check_branch
          %669 = sbr.rel (%p667) target = $region96
        $region95: #{forward.1} parent=83 // pred_region
          %670 = dma.done [#allocation7], 256
        $region96: #{forward.1} parent=83 // pred_fallthru
          _
        %s671 = sand.u32 %s40, 1
        %s672 = scalar_lea.sflag [#allocation10], %s671
        %s673 = sand.u32 %s231, 1
        %s674 = scalar_lea.vmem [#allocation9], %s673
        // Predicated region
        $region97: #{forward.1} parent=83 // pred_check
          %p675 = pneg %p244
        $region98: #{forward.1} parent=83 // pred_check_branch
          %677 = sbr.rel (%p675) target = $region100
        $region99: #{forward.1} parent=83 // pred_region
          %678 = dma.done %s672, 16
        $region100: #{forward.1} parent=83 // pred_fallthru
          _
        %s679 = sand.u32 %s40, 1
        %s680 = scalar_lea.sflag [#allocation10], %s679
        %s681 = sand.u32 %s283, 1
        %s682 = scalar_lea.vmem [#allocation11], %s681
        // Predicated region
        $region101: #{forward.1} parent=83 // pred_check
          %p683 = pneg %p296
        $region102: #{forward.1} parent=83 // pred_check_branch
          %685 = sbr.rel (%p683) target = $region104
        $region103: #{forward.1} parent=83 // pred_region
          %686 = dma.done %s680, 16
        $region104: #{forward.1} parent=83 // pred_fallthru
          _
        %s687 = sand.u32 %s40, 1
        %s688 = scalar_lea.sflag [#allocation13], %s687
        %s689 = sand.u32 %s309, 1
        %s690 = smul.addr %s689, 1024
        %s691 = scalar_lea.vmem [#allocation12], %s690
        // Predicated region
        $region105: #{forward.1} parent=83 // pred_check
          %p692 = pneg %p322
        $region106: #{forward.1} parent=83 // pred_check_branch
          %694 = sbr.rel (%p692) target = $region108
        $region107: #{forward.1} parent=83 // pred_region
          %695 = dma.done %s688, 16384
        $region108: #{forward.1} parent=83 // pred_fallthru
          _
        %s696 = sand.u32 %s40, 1
        %s697 = scalar_lea.sflag [#allocation13], %s696
        %s698 = sand.u32 %s335, 1
        %s699 = smul.addr %s698, 1024
        %s700 = scalar_lea.vmem [#allocation14], %s699
        // Predicated region
        $region109: #{forward.1} parent=83 // pred_check
          %p701 = pneg %p348
        $region110: #{forward.1} parent=83 // pred_check_branch
          %703 = sbr.rel (%p701) target = $region112
        $region111: #{forward.1} parent=83 // pred_region
          %704 = dma.done %s697, 16384
        $region112: #{forward.1} parent=83 // pred_fallthru
          _
        %s705 = sand.u32 %s40, 1
        %s706 = scalar_lea.sflag [#allocation16], %s705
        %s707 = sand.u32 %s361, 1
        %s708 = smul.addr %s707, 1024
        %s709 = scalar_lea.vmem [#allocation15], %s708
        // Predicated region
        $region113: #{forward.1} parent=83 // pred_check
          %p710 = pneg %p374
        $region114: #{forward.1} parent=83 // pred_check_branch
          %712 = sbr.rel (%p710) target = $region116
        $region115: #{forward.1} parent=83 // pred_region
          %713 = dma.done %s706, 16384
        $region116: #{forward.1} parent=83 // pred_fallthru
          _
        // Predicated region
        $region117: #{forward.1} parent=83 // pred_check
          %p714 = pneg %p395
        $region118: #{forward.1} parent=83 // pred_check_branch
          %716 = sbr.rel (%p714) target = $region120
        $region119: #{forward.1} parent=83 // pred_region
          %717 = dma.done [#allocation16], 16
        $region120: #{forward.1} parent=83 // pred_fallthru
          _
        // Predicated region
        $region121: #{forward.1} parent=83 // pred_check
          %p718 = pneg %p416
        $region122: #{forward.1} parent=83 // pred_check_branch
          %720 = sbr.rel (%p718) target = $region124
        $region123: #{forward.1} parent=83 // pred_region
          %721 = dma.done [#allocation19], 2048
        $region124: #{forward.1} parent=83 // pred_fallthru
          _
        %p722 = pneg %p56
        %p723 = pneg %p53
        %p724 = pneg %p77
        %p725 = pneg %p74
        %p726 = pneg %p98
        %p727 = pneg %p95
        %p728 = pneg %p119
        %p729 = pneg %p116
        %p730 = pneg %p140
        %p731 = pneg %p137
        %p732 = scmp.lt.s32.totalorder %s40, 1
        %s733 = scalar_select %p732, %s40, 1
        %s734 = scalar_lea.vmem %s5, %s733
        %p735 = pneg %p166
        %p736 = pneg %p163
        %p737 = scmp.lt.s32.totalorder %s40, 1
        %s738 = scalar_select %p737, %s40, 1
        %s739 = smul.addr %s738, 48
        %s740 = smul.addr %s739, 4
        %s741 = scalar_lea.vmem %s6, %s740
        %p742 = pneg %p192
        %p743 = pneg %p189
        %p744 = scmp.lt.s32.totalorder %s40, 1
        %s745 = scalar_select %p744, %s40, 1
        %s746 = smul.addr %s745, 16
        %s747 = smul.addr %s746, 4
        %s748 = scalar_lea.vmem %s7, %s747
        %p749 = pneg %p218
        %p750 = pneg %p215
        %s751 = sand.u32 %s40, 1
        %s752 = scalar_lea.sflag [#allocation10], %s751
        %s753 = sand.u32 %s231, 1
        %s754 = scalar_lea.vmem [#allocation9], %s753
        %p755 = pneg %p244
        %p756 = pneg %p241
        %p757 = scmp.lt.s32.totalorder %s40, 1
        %s758 = scalar_select %p757, %s40, 1
        %s759 = smul.addr %s758, 16
        %s760 = smul.addr %s759, 8
        %s761 = scalar_lea.vmem %s9, %s760
        %p762 = pneg %p270
        %p763 = pneg %p267
        %s764 = sand.u32 %s40, 1
        %s765 = scalar_lea.sflag [#allocation10], %s764
        %s766 = sand.u32 %s283, 1
        %s767 = scalar_lea.vmem [#allocation11], %s766
        %p768 = pneg %p296
        %p769 = pneg %p293
        %s770 = sand.u32 %s40, 1
        %s771 = scalar_lea.sflag [#allocation13], %s770
        %s772 = sand.u32 %s309, 1
        %s773 = smul.addr %s772, 1024
        %s774 = scalar_lea.vmem [#allocation12], %s773
        %p775 = pneg %p322
        %p776 = pneg %p319
        %s777 = sand.u32 %s40, 1
        %s778 = scalar_lea.sflag [#allocation13], %s777
        %s779 = sand.u32 %s335, 1
        %s780 = smul.addr %s779, 1024
        %s781 = scalar_lea.vmem [#allocation14], %s780
        %p782 = pneg %p348
        %p783 = pneg %p345
        %s784 = sand.u32 %s40, 1
        %s785 = scalar_lea.sflag [#allocation16], %s784
        %s786 = sand.u32 %s361, 1
        %s787 = smul.addr %s786, 1024
        %s788 = scalar_lea.vmem [#allocation15], %s787
        %p789 = pneg %p374
        %p790 = pneg %p371
        %p791 = pneg %p395
        %p792 = pneg %p392
        %p793 = pneg %p416
        %p794 = pneg %p413
        %p795 = pneg %p437
        %p796 = pneg %p434
        %p797 = scmp.lt.s32.totalorder %s40, 1
        %s798 = scalar_select %p797, %s40, 1
        %s799 = scalar_lea.vmem %s5, %s798
        %p800 = scmp.lt.s32.totalorder %s40, 1
        %s801 = scalar_select %p800, %s40, 1
        %s802 = smul.addr %s801, 48
        %s803 = smul.addr %s802, 4
        %s804 = scalar_lea.vmem %s6, %s803
        %p805 = scmp.lt.s32.totalorder %s40, 1
        %s806 = scalar_select %p805, %s40, 1
        %s807 = smul.addr %s806, 16
        %s808 = smul.addr %s807, 4
        %s809 = scalar_lea.vmem %s7, %s808
        %p810 = scmp.lt.s32.totalorder %s40, 1
        %s811 = scalar_select %p810, %s40, 1
        %s812 = smul.addr %s811, 16
        %s813 = smul.addr %s812, 8
        %s814 = scalar_lea.vmem %s9, %s813
        %p816 = scmp.eq.s32.totalorder %s40, 0
        // Predicated region
        $region125: #{forward.1} parent=83 // pred_check
          %p817 = pneg %p816
        $region126: #{forward.1} parent=83 // pred_check_branch
          %819 = sbr.rel (%p817) target = $region128
        $region127: #{forward.1} parent=83 // pred_region
          %v820 = vld [vmem:[%s0] sm:$0xff]
          %v821 = vld [vmem:[%s0 + $0x8] sm:$0xff]
          %822 = vst [vmem:[#allocation2] sm:$0xff] %v820
          %823 = vst [vmem:[#allocation2 + $0x8] sm:$0xff] %v821
        $region128: #{forward.1} parent=83 // pred_fallthru
          _
        %v824 = vld [vmem:[#allocation2] sm:$0xff]
        %v825 = vld [vmem:[#allocation2 + $0x8] sm:$0xff]
        %v826 = vld [vmem:[%s799] sm:$0x1]
        %v827 = vmul.f32 %v824, %v824
        %v828 = vmul.f32 %v825, %v825
        %829 = vadd.xlane.f32.xlu0 %v827
        %v830 = vpop.xlane.xlu0 %829
        %831 = vadd.xlane.f32.xlu0 %v828
        %v832 = vpop.xlane.xlu0 %831
        %v833 = vrcp.pop 128.0
        %v834 = vmul.f32 %v830, %v833
        %v835 = vmul.f32 %v832, %v833
        %v836 = vadd.f32 %v834, 1e-06
        %v837 = vadd.f32 %v835, 1e-06
        %v838 = vrsqrt.pop %v836
        %v839 = vrsqrt.pop %v837
        %v840 = vmul.f32 %v824, %v838
        %v841 = vmul.f32 %v825, %v839
        %v843 = vlaneseq
        %v844 = vshrl.u32 %v843, 7
        %v845 = vsub.s32 0, %v844
        %v846 = vrot.slane %v826, %v845
        %v848 = vmul.f32 %v846, %v840
        %v849 = vmul.f32 %v846, %v841
        %v850 = vpack.c.bf16 %v849, %v848
        %v851 = vld [vmem:[%s804] sm:$0xff]
        %v852 = vld [vmem:[%s804 + $0x8] sm:$0xf]
        %v853 = vld [vmem:[%s804 + $0xc] sm:$0xff]
        %v854 = vld [vmem:[%s804 + $0x14] sm:$0xf]
        %v855 = vld [vmem:[%s804 + $0x18] sm:$0xff]
        %v856 = vld [vmem:[%s804 + $0x20] sm:$0xf]
        %v857 = vld [vmem:[%s804 + $0x24] sm:$0xff]
        %v858 = vld [vmem:[%s804 + $0x2c] sm:$0xf]
        %v859 = vld [vmem:[%s804 + $0x30] sm:$0xff]
        %v860 = vld [vmem:[%s804 + $0x38] sm:$0xf]
        %v861 = vld [vmem:[%s804 + $0x3c] sm:$0xff]
        %v862 = vld [vmem:[%s804 + $0x44] sm:$0xf]
        %v863 = vld [vmem:[%s804 + $0x48] sm:$0xff]
        %v864 = vld [vmem:[%s804 + $0x50] sm:$0xf]
        %v865 = vld [vmem:[%s804 + $0x54] sm:$0xff]
        %v866 = vld [vmem:[%s804 + $0x5c] sm:$0xf]
        %v867 = vld [vmem:[%s804 + $0x60] sm:$0xff]
        %v868 = vld [vmem:[%s804 + $0x68] sm:$0xf]
        %v869 = vld [vmem:[%s804 + $0x6c] sm:$0xff]
        %v870 = vld [vmem:[%s804 + $0x74] sm:$0xf]
        %v871 = vld [vmem:[%s804 + $0x78] sm:$0xff]
        %v872 = vld [vmem:[%s804 + $0x80] sm:$0xf]
        %v873 = vld [vmem:[%s804 + $0x84] sm:$0xff]
        %v874 = vld [vmem:[%s804 + $0x8c] sm:$0xf]
        %v875 = vld [vmem:[%s804 + $0x90] sm:$0xff]
        %v876 = vld [vmem:[%s804 + $0x98] sm:$0xf]
        %v877 = vld [vmem:[%s804 + $0x9c] sm:$0xff]
        %v878 = vld [vmem:[%s804 + $0xa4] sm:$0xf]
        %v879 = vld [vmem:[%s804 + $0xa8] sm:$0xff]
        %v880 = vld [vmem:[%s804 + $0xb0] sm:$0xf]
        %v881 = vld [vmem:[%s804 + $0xb4] sm:$0xff]
        %v882 = vld [vmem:[%s804 + $0xbc] sm:$0xf]
        %v915 = vunpack.c.l.b16 %v851
        %v916 = vunpack.c.h.b16 %v851
        %v917 = vunpack.c.l.b16 %v852
        %v918 = vunpack.c.l.b16 %v853
        %v919 = vunpack.c.h.b16 %v853
        %v920 = vunpack.c.l.b16 %v854
        %v921 = vunpack.c.l.b16 %v855
        %v922 = vunpack.c.h.b16 %v855
        %v923 = vunpack.c.l.b16 %v856
        %v924 = vunpack.c.l.b16 %v857
        %v925 = vunpack.c.h.b16 %v857
        %v926 = vunpack.c.l.b16 %v858
        %v927 = vunpack.c.l.b16 %v859
        %v928 = vunpack.c.h.b16 %v859
        %v929 = vunpack.c.l.b16 %v860
        %v930 = vunpack.c.l.b16 %v861
        %v931 = vunpack.c.h.b16 %v861
        %v932 = vunpack.c.l.b16 %v862
        %v933 = vunpack.c.l.b16 %v863
        %v934 = vunpack.c.h.b16 %v863
        %v935 = vunpack.c.l.b16 %v864
        %v936 = vunpack.c.l.b16 %v865
        %v937 = vunpack.c.h.b16 %v865
        %v938 = vunpack.c.l.b16 %v866
        %v939 = vunpack.c.l.b16 %v867
        %v940 = vunpack.c.h.b16 %v867
        %v941 = vunpack.c.l.b16 %v868
        %v942 = vunpack.c.l.b16 %v869
        %v943 = vunpack.c.h.b16 %v869
        %v944 = vunpack.c.l.b16 %v870
        %v945 = vunpack.c.l.b16 %v871
        %v946 = vunpack.c.h.b16 %v871
        %v947 = vunpack.c.l.b16 %v872
        %v948 = vunpack.c.l.b16 %v873
        %v949 = vunpack.c.h.b16 %v873
        %v950 = vunpack.c.l.b16 %v874
        %v951 = vunpack.c.l.b16 %v875
        %v952 = vunpack.c.h.b16 %v875
        %v953 = vunpack.c.l.b16 %v876
        %v954 = vunpack.c.l.b16 %v877
        %v955 = vunpack.c.h.b16 %v877
        %v956 = vunpack.c.l.b16 %v878
        %v957 = vunpack.c.l.b16 %v879
        %v958 = vunpack.c.h.b16 %v879
        %v959 = vunpack.c.l.b16 %v880
        %v960 = vunpack.c.l.b16 %v881
        %v961 = vunpack.c.h.b16 %v881
        %v962 = vunpack.c.l.b16 %v882
        %v963 = vpack.c.b16 %v918, %v915
        %v964 = vpack.c.b16 %v919, %v916
        %v965 = vpack.c.b16 %v920, %v917
        %v966 = vpack.c.b16 %v924, %v921
        %v967 = vpack.c.b16 %v925, %v922
        %v968 = vpack.c.b16 %v926, %v923
        %v969 = vpack.c.b16 %v930, %v927
        %v970 = vpack.c.b16 %v931, %v928
        %v971 = vpack.c.b16 %v932, %v929
        %v972 = vpack.c.b16 %v936, %v933
        %v973 = vpack.c.b16 %v937, %v934
        %v974 = vpack.c.b16 %v938, %v935
        %v975 = vpack.c.b16 %v942, %v939
        %v976 = vpack.c.b16 %v943, %v940
        %v977 = vpack.c.b16 %v944, %v941
        %v978 = vpack.c.b16 %v948, %v945
        %v979 = vpack.c.b16 %v949, %v946
        %v980 = vpack.c.b16 %v950, %v947
        %v981 = vpack.c.b16 %v954, %v951
        %v982 = vpack.c.b16 %v955, %v952
        %v983 = vpack.c.b16 %v956, %v953
        %v984 = vpack.c.b16 %v960, %v957
        %v985 = vpack.c.b16 %v961, %v958
        %v986 = vpack.c.b16 %v962, %v959
        %1011 = vmatprep.subr.bf16.mxu0 %v964
        %1012 = vmatpush1.bf16.msra.mxu0 %v963
        %1013 = vmatprep.subr.bf16.mxu0 %v967
        %1014 = vmatpush1.bf16.msra.mxu0 %v966
        %1015 = vmatprep.subr.bf16.mxu0 %v970
        %1016 = vmatpush1.bf16.msra.mxu0 %v969
        %1017 = vmatprep.subr.bf16.mxu0 %v973
        %1018 = vmatpush1.bf16.msra.mxu0 %v972
        %1019 = vmatprep.subr.bf16.mxu0 %v976
        %1020 = vmatpush1.bf16.msra.mxu0 %v975
        %1021 = vmatprep.subr.bf16.mxu0 %v979
        %1022 = vmatpush1.bf16.msra.mxu0 %v978
        %1023 = vmatprep.subr.bf16.mxu0 %v982
        %1024 = vmatpush1.bf16.msra.mxu0 %v981
        %1025 = vmatprep.subr.bf16.mxu0 %v985
        %1026 = vmatpush1.bf16.msra.mxu0 %v984
        %1027 = vmatprep.subr.bf16.mxu0 0
        %1028 = vmatpush1.bf16.msra.mxu0 0
        %1029 = vmatprep.subr.bf16.mxu0 0
        %1030 = vmatpush1.bf16.msra.mxu0 0
        %1031 = vmatprep.subr.bf16.mxu0 0
        %1032 = vmatpush1.bf16.msra.mxu0 0
        %1033 = vmatprep.subr.bf16.mxu0 0
        %1034 = vmatpush1.bf16.msra.mxu0 0
        %1035 = vmatprep.subr.bf16.mxu0 0
        %1036 = vmatpush1.bf16.msra.mxu0 0
        %1037 = vmatprep.subr.bf16.mxu0 0
        %1038 = vmatpush1.bf16.msra.mxu0 0
        %1039 = vmatprep.subr.bf16.mxu0 0
        %1040 = vmatpush1.bf16.msra.mxu0 0
        %1041 = vmatprep.subr.bf16.mxu0 0
        %1042 = vmatpush1.bf16.msra.mxu0 0
        %1043 = vmatprep.mubr.bf16.mxu0 0
        %1044 = vmatmul.mubr.bf16.gmra.mrb[0].mxu0 %v850
        %v1045 = vpop.f32.mrb[0].mxu0
        %v1046 = vadd.f32 0.0, %v1045
        %v1047 = vpop.f32.mrb[0].mxu0
        %v1048 = vadd.f32 0.0, %v1047
        %v1049 = vpop.f32.mrb[0].mxu0
        %v1050 = vadd.f32 0.0, %v1049
        %v1051 = vpop.f32.mrb[0].mxu0
        %v1052 = vadd.f32 0.0, %v1051
        %1053 = vdwg.mxu0
        %1054 = vmatprep.subr.bf16.mxu0 0
        %1055 = vmatpush1.bf16.msra.mxu0 %v965
        %1056 = vmatprep.subr.bf16.mxu0 0
        %1057 = vmatpush1.bf16.msra.mxu0 %v968
        %1058 = vmatprep.subr.bf16.mxu0 0
        %1059 = vmatpush1.bf16.msra.mxu0 %v971
        %1060 = vmatprep.subr.bf16.mxu0 0
        %1061 = vmatpush1.bf16.msra.mxu0 %v974
        %1062 = vmatprep.subr.bf16.mxu0 0
        %1063 = vmatpush1.bf16.msra.mxu0 %v977
        %1064 = vmatprep.subr.bf16.mxu0 0
        %1065 = vmatpush1.bf16.msra.mxu0 %v980
        %1066 = vmatprep.subr.bf16.mxu0 0
        %1067 = vmatpush1.bf16.msra.mxu0 %v983
        %1068 = vmatprep.subr.bf16.mxu0 0
        %1069 = vmatpush1.bf16.msra.mxu0 %v986
        %1070 = vmatprep.subr.bf16.mxu0 0
        %1071 = vmatpush1.bf16.msra.mxu0 0
        %1072 = vmatprep.subr.bf16.mxu0 0
        %1073 = vmatpush1.bf16.msra.mxu0 0
        %1074 = vmatprep.subr.bf16.mxu0 0
        %1075 = vmatpush1.bf16.msra.mxu0 0
        %1076 = vmatprep.subr.bf16.mxu0 0
        %1077 = vmatpush1.bf16.msra.mxu0 0
        %1078 = vmatprep.subr.bf16.mxu0 0
        %1079 = vmatpush1.bf16.msra.mxu0 0
        %1080 = vmatprep.subr.bf16.mxu0 0
        %1081 = vmatpush1.bf16.msra.mxu0 0
        %1082 = vmatprep.subr.bf16.mxu0 0
        %1083 = vmatpush1.bf16.msra.mxu0 0
        %1084 = vmatprep.subr.bf16.mxu0 0
        %1085 = vmatpush1.bf16.msra.mxu0 0
        %1086 = vmatprep.mubr.bf16.mxu0 0
        %1087 = vmatmul.mubr.bf16.gmra.mrb[0].mxu0 %v850
        %v1088 = vpop.f32.mrb[0].mxu0
        %v1089 = vadd.f32 0.0, %v1088
        %v1090 = vpop.f32.mrb[0].mxu0
        %v1091 = vpop.f32.mrb[0].mxu0
        %v1092 = vadd.f32 0.0, %v1091
        %v1093 = vpop.f32.mrb[0].mxu0
        %1094 = vdwg.mxu0
        %v1095 = vld [vmem:[#allocation3] sm:$0xff]
        %v1096 = vld [vmem:[#allocation3 + $0x8] sm:$0xff]
        %v1097 = vld [vmem:[#allocation6] sm:$0xff]
        %v1098 = vld [vmem:[#allocation6 + $0x8] sm:$0xff]
        %v1099 = vld [vmem:[%s3] sm:$0xff]
        %v1100 = vld [vmem:[%s3 + $0x8] sm:$0xff]
        %v1101 = vld [vmem:[%s3 + $0x10] sm:$0xff]
        %v1102 = vld [vmem:[%s3 + $0x18] sm:$0xff]
        %v1103 = vld [vmem:[%s3 + $0x20] sm:$0xff]
        %v1104 = vld [vmem:[%s3 + $0x28] sm:$0xff]
        %v1105 = vld [vmem:[%s3 + $0x30] sm:$0xff]
        %v1106 = vld [vmem:[%s3 + $0x38] sm:$0xff]
        %v1107 = vld [vmem:[%s3 + $0x40] sm:$0xff]
        %v1108 = vld [vmem:[%s3 + $0x48] sm:$0xff]
        %v1109 = vld [vmem:[%s3 + $0x50] sm:$0xff]
        %v1110 = vld [vmem:[%s3 + $0x58] sm:$0xff]
        %v1111 = vld [vmem:[%s3 + $0x60] sm:$0xff]
        %v1112 = vld [vmem:[%s3 + $0x68] sm:$0xff]
        %v1113 = vld [vmem:[%s3 + $0x70] sm:$0xff]
        %v1114 = vld [vmem:[%s3 + $0x78] sm:$0xff]
        %v1115 = vmul.f32 %v1046, %v1095
        %v1116 = vmul.f32 %v1050, %v1096
        %1117 = vmatprep.subr.mxu0 0.0
        %1118 = vmatpush1.msra.mxu0 %v1099
        %1119 = vmatprep.subr.mxu0 0.0
        %1120 = vmatpush1.msra.mxu0 %v1100
        %1121 = vmatprep.subr.mxu0 0.0
        %1122 = vmatpush1.msra.mxu0 %v1101
        %1123 = vmatprep.subr.mxu0 0.0
        %1124 = vmatpush1.msra.mxu0 %v1102
        %1125 = vmatprep.subr.mxu0 0.0
        %1126 = vmatpush1.msra.mxu0 %v1103
        %1127 = vmatprep.subr.mxu0 0.0
        %1128 = vmatpush1.msra.mxu0 %v1104
        %1129 = vmatprep.subr.mxu0 0.0
        %1130 = vmatpush1.msra.mxu0 %v1105
        %1131 = vmatprep.subr.mxu0 0.0
        %1132 = vmatpush1.msra.mxu0 %v1106
        %1133 = vmatprep.subr.mxu0 0.0
        %1134 = vmatpush1.msra.mxu0 %v1107
        %1135 = vmatprep.subr.mxu0 0.0
        %1136 = vmatpush1.msra.mxu0 %v1108
        %1137 = vmatprep.subr.mxu0 0.0
        %1138 = vmatpush1.msra.mxu0 %v1109
        %1139 = vmatprep.subr.mxu0 0.0
        %1140 = vmatpush1.msra.mxu0 %v1110
        %1141 = vmatprep.subr.mxu0 0.0
        %1142 = vmatpush1.msra.mxu0 %v1111
        %1143 = vmatprep.subr.mxu0 0.0
        %1144 = vmatpush1.msra.mxu0 %v1112
        %1145 = vmatprep.subr.mxu0 0.0
        %1146 = vmatpush1.msra.mxu0 %v1113
        %1147 = vmatprep.subr.mxu0 0.0
        %1148 = vmatpush1.msra.mxu0 %v1114
        %1149 = vmatprep.subr.mxu0 0.0
        %1150 = vmatpush1.msra.mxu0 0.0
        %1151 = vmatprep.subr.mxu0 0.0
        %1152 = vmatpush1.msra.mxu0 0.0
        %1153 = vmatprep.subr.mxu0 0.0
        %1154 = vmatpush1.msra.mxu0 0.0
        %1155 = vmatprep.subr.mxu0 0.0
        %1156 = vmatpush1.msra.mxu0 0.0
        %1157 = vmatprep.subr.mxu0 0.0
        %1158 = vmatpush1.msra.mxu0 0.0
        %1159 = vmatprep.subr.mxu0 0.0
        %1160 = vmatpush1.msra.mxu0 0.0
        %1161 = vmatprep.subr.mxu0 0.0
        %1162 = vmatpush1.msra.mxu0 0.0
        %1163 = vmatprep.subr.mxu0 0.0
        %1164 = vmatpush1.msra.mxu0 0.0
        %1165 = vmatprep.subr.mxu0 0.0
        %1166 = vmatpush1.msra.mxu0 0.0
        %1167 = vmatprep.subr.mxu0 0.0
        %1168 = vmatpush1.msra.mxu0 0.0
        %1169 = vmatprep.subr.mxu0 0.0
        %1170 = vmatpush1.msra.mxu0 0.0
        %1171 = vmatprep.subr.mxu0 0.0
        %1172 = vmatpush1.msra.mxu0 0.0
        %1173 = vmatprep.subr.mxu0 0.0
        %1174 = vmatpush1.msra.mxu0 0.0
        %1175 = vmatprep.subr.mxu0 0.0
        %1176 = vmatpush1.msra.mxu0 0.0
        %1177 = vmatprep.subr.mxu0 0.0
        %1178 = vmatpush1.msra.mxu0 0.0
        %1179 = vmatprep.subr.mxu0 0.0
        %1180 = vmatpush1.msra.mxu0 0.0
        %1181 = vmatprep.mubr.f32.mxu0 0.0
        %1182 = vmatmul.mubr.f32.gmra.mrb[0].mxu0 %v1046
        %v1183 = vpop.f32.mrb[0].mxu0
        %v1184 = vadd.f32 0.0, %v1183
        %v1185 = vpop.f32.mrb[0].mxu0
        %1186 = vmatprep.mubr.f32.mxu0 0.0
        %1187 = vmatmul.mubr.f32.gmra.mrb[0].mxu0 %v1050
        %v1188 = vpop.f32.mrb[0].mxu0
        %v1189 = vadd.f32 0.0, %v1188
        %v1190 = vpop.f32.mrb[0].mxu0
        %1191 = vdwg.mxu0
        %v1192 = vmul.f32 %v1184, %v1097
        %v1193 = vmul.f32 %v1189, %v1098
        %v1194 = vadd.f32 %v1115, %v1192
        %v1195 = vadd.f32 %v1116, %v1193
        %v1196 = vmul.f32 %v1048, %v1095
        %v1197 = vmul.f32 %v1052, %v1096
        %1198 = vmatprep.subr.mxu0 0.0
        %1199 = vmatpush1.msra.mxu0 %v1099
        %1200 = vmatprep.subr.mxu0 0.0
        %1201 = vmatpush1.msra.mxu0 %v1100
        %1202 = vmatprep.subr.mxu0 0.0
        %1203 = vmatpush1.msra.mxu0 %v1101
        %1204 = vmatprep.subr.mxu0 0.0
        %1205 = vmatpush1.msra.mxu0 %v1102
        %1206 = vmatprep.subr.mxu0 0.0
        %1207 = vmatpush1.msra.mxu0 %v1103
        %1208 = vmatprep.subr.mxu0 0.0
        %1209 = vmatpush1.msra.mxu0 %v1104
        %1210 = vmatprep.subr.mxu0 0.0
        %1211 = vmatpush1.msra.mxu0 %v1105
        %1212 = vmatprep.subr.mxu0 0.0
        %1213 = vmatpush1.msra.mxu0 %v1106
        %1214 = vmatprep.subr.mxu0 0.0
        %1215 = vmatpush1.msra.mxu0 %v1107
        %1216 = vmatprep.subr.mxu0 0.0
        %1217 = vmatpush1.msra.mxu0 %v1108
        %1218 = vmatprep.subr.mxu0 0.0
        %1219 = vmatpush1.msra.mxu0 %v1109
        %1220 = vmatprep.subr.mxu0 0.0
        %1221 = vmatpush1.msra.mxu0 %v1110
        %1222 = vmatprep.subr.mxu0 0.0
        %1223 = vmatpush1.msra.mxu0 %v1111
        %1224 = vmatprep.subr.mxu0 0.0
        %1225 = vmatpush1.msra.mxu0 %v1112
        %1226 = vmatprep.subr.mxu0 0.0
        %1227 = vmatpush1.msra.mxu0 %v1113
        %1228 = vmatprep.subr.mxu0 0.0
        %1229 = vmatpush1.msra.mxu0 %v1114
        %1230 = vmatprep.subr.mxu0 0.0
        %1231 = vmatpush1.msra.mxu0 0.0
        %1232 = vmatprep.subr.mxu0 0.0
        %1233 = vmatpush1.msra.mxu0 0.0
        %1234 = vmatprep.subr.mxu0 0.0
        %1235 = vmatpush1.msra.mxu0 0.0
        %1236 = vmatprep.subr.mxu0 0.0
        %1237 = vmatpush1.msra.mxu0 0.0
        %1238 = vmatprep.subr.mxu0 0.0
        %1239 = vmatpush1.msra.mxu0 0.0
        %1240 = vmatprep.subr.mxu0 0.0
        %1241 = vmatpush1.msra.mxu0 0.0
        %1242 = vmatprep.subr.mxu0 0.0
        %1243 = vmatpush1.msra.mxu0 0.0
        %1244 = vmatprep.subr.mxu0 0.0
        %1245 = vmatpush1.msra.mxu0 0.0
        %1246 = vmatprep.subr.mxu0 0.0
        %1247 = vmatpush1.msra.mxu0 0.0
        %1248 = vmatprep.subr.mxu0 0.0
        %1249 = vmatpush1.msra.mxu0 0.0
        %1250 = vmatprep.subr.mxu0 0.0
        %1251 = vmatpush1.msra.mxu0 0.0
        %1252 = vmatprep.subr.mxu0 0.0
        %1253 = vmatpush1.msra.mxu0 0.0
        %1254 = vmatprep.subr.mxu0 0.0
        %1255 = vmatpush1.msra.mxu0 0.0
        %1256 = vmatprep.subr.mxu0 0.0
        %1257 = vmatpush1.msra.mxu0 0.0
        %1258 = vmatprep.subr.mxu0 0.0
        %1259 = vmatpush1.msra.mxu0 0.0
        %1260 = vmatprep.subr.mxu0 0.0
        %1261 = vmatpush1.msra.mxu0 0.0
        %1262 = vmatprep.mubr.f32.mxu0 0.0
        %1263 = vmatmul.mubr.f32.gmra.mrb[0].mxu0 %v1048
        %v1264 = vpop.f32.mrb[0].mxu0
        %v1265 = vadd.f32 0.0, %v1264
        %v1266 = vpop.f32.mrb[0].mxu0
        %1267 = vmatprep.mubr.f32.mxu0 0.0
        %1268 = vmatmul.mubr.f32.gmra.mrb[0].mxu0 %v1052
        %v1269 = vpop.f32.mrb[0].mxu0
        %v1270 = vadd.f32 0.0, %v1269
        %v1271 = vpop.f32.mrb[0].mxu0
        %1272 = vdwg.mxu0
        %v1273 = vmul.f32 %v1265, %v1097
        %v1274 = vmul.f32 %v1270, %v1098
        %v1275 = vadd.f32 %v1196, %v1273
        %v1276 = vadd.f32 %v1197, %v1274
        %v1277 = vlaneseq
        %v1278 = vand.u32 %v1277, 127
        %v1279 = vld [vmem:[#allocation8] sm:$0xff]
        %v1280 = vld [vmem:[#allocation8 + $0x8] sm:$0xff]
        %vm1281 = vcmp.ge.s32.totalorder %v1278, 0
        %vm1282 = vcmp.lt.s32.totalorder %v1278, 32
        %vm1283 = vmand %vm1281, %vm1282
        %v1284 = vsel %vm1283, 1, 0
        %v1285 = vcvt.s32.f32 %v1284
        %v1286 = vmul.f32 %v1194, %v1285
        %v1287 = vmul.f32 %v1195, %v1285
        %1288 = vmatprep.subr.mxu0 0.0
        %1289 = vmatpush1.xpose.msra.mxu0 %v1275
        %1290 = vmatprep.subr.mxu0 0.0
        %1291 = vmatpush1.xpose.msra.mxu0 %v1276
        %1292 = vmatprep.subr.mxu0 0.0
        %1293 = vmatpush1.xpose.msra.mxu0 0.0
        %1294 = vmatprep.subr.mxu0 0.0
        %1295 = vmatpush1.xpose.msra.mxu0 0.0
        %1296 = vmatprep.subr.mxu0 0.0
        %1297 = vmatpush1.xpose.msra.mxu0 0.0
        %1298 = vmatprep.subr.mxu0 0.0
        %1299 = vmatpush1.xpose.msra.mxu0 0.0
        %1300 = vmatprep.subr.mxu0 0.0
        %1301 = vmatpush1.xpose.msra.mxu0 0.0
        %1302 = vmatprep.subr.mxu0 0.0
        %1303 = vmatpush1.xpose.msra.mxu0 0.0
        %1304 = vmatprep.subr.mxu0 0.0
        %1305 = vmatpush1.xpose.msra.mxu0 0.0
        %1306 = vmatprep.subr.mxu0 0.0
        %1307 = vmatpush1.xpose.msra.mxu0 0.0
        %1308 = vmatprep.subr.mxu0 0.0
        %1309 = vmatpush1.xpose.msra.mxu0 0.0
        %1310 = vmatprep.subr.mxu0 0.0
        %1311 = vmatpush1.xpose.msra.mxu0 0.0
        %1312 = vmatprep.subr.mxu0 0.0
        %1313 = vmatpush1.xpose.msra.mxu0 0.0
        %1314 = vmatprep.subr.mxu0 0.0
        %1315 = vmatpush1.xpose.msra.mxu0 0.0
        %1316 = vmatprep.subr.mxu0 0.0
        %1317 = vmatpush1.xpose.msra.mxu0 0.0
        %1318 = vmatprep.subr.mxu0 0.0
        %1319 = vmatpush1.xpose.msra.mxu0 0.0
        %1320 = vmatprep.subr.mxu0 0.0
        %1321 = vmatpush1.xpose.msra.mxu0 0.0
        %1322 = vmatprep.subr.mxu0 0.0
        %1323 = vmatpush1.xpose.msra.mxu0 0.0
        %1324 = vmatprep.subr.mxu0 0.0
        %1325 = vmatpush1.xpose.msra.mxu0 0.0
        %1326 = vmatprep.subr.mxu0 0.0
        %1327 = vmatpush1.xpose.msra.mxu0 0.0
        %1328 = vmatprep.subr.mxu0 0.0
        %1329 = vmatpush1.xpose.msra.mxu0 0.0
        %1330 = vmatprep.subr.mxu0 0.0
        %1331 = vmatpush1.xpose.msra.mxu0 0.0
        %1332 = vmatprep.subr.mxu0 0.0
        %1333 = vmatpush1.xpose.msra.mxu0 0.0
        %1334 = vmatprep.subr.mxu0 0.0
        %1335 = vmatpush1.xpose.msra.mxu0 0.0
        %1336 = vmatprep.subr.mxu0 0.0
        %1337 = vmatpush1.xpose.msra.mxu0 0.0
        %1338 = vmatprep.subr.mxu0 0.0
        %1339 = vmatpush1.xpose.msra.mxu0 0.0
        %1340 = vmatprep.subr.mxu0 0.0
        %1341 = vmatpush1.xpose.msra.mxu0 0.0
        %1342 = vmatprep.subr.mxu0 0.0
        %1343 = vmatpush1.xpose.msra.mxu0 0.0
        %1344 = vmatprep.subr.mxu0 0.0
        %1345 = vmatpush1.xpose.msra.mxu0 0.0
        %1346 = vmatprep.subr.mxu0 0.0
        %1347 = vmatpush1.xpose.msra.mxu0 0.0
        %1348 = vmatprep.subr.mxu0 0.0
        %1349 = vmatpush1.xpose.msra.mxu0 0.0
        %1350 = vmatprep.subr.mxu0 0.0
        %1351 = vmatpush1.xpose.msra.mxu0 0.0
        %1352 = vmatprep.mubr.f32.mxu0 0.0
        %1353 = vmatmul.mubr.f32.gmra.mrb[0].mxu0 %v1286
        %v1354 = vpop.f32.mrb[0].mxu0
        %v1355 = vadd.f32 0.0, %v1354
        %v1356 = vpop.f32.mrb[0].mxu0
        %1357 = vmatprep.mubr.f32.mxu0 0.0
        %1358 = vmatmul.mubr.f32.gmra.mrb[0].mxu0 %v1287
        %v1359 = vpop.f32.mrb[0].mxu0
        %v1360 = vadd.f32 0.0, %v1359
        %v1361 = vpop.f32.mrb[0].mxu0
        %1362 = vdwg.mxu0
        %v1363 = vmul.f32 %v1355, 0.17677669
        %v1364 = vmul.f32 %v1360, 0.17677669
        %v1365 = vadd.f32 %v1363, %v1279
        %v1366 = vadd.f32 %v1364, %v1280
        %vm1367 = vcmask 130048
        %v1368 = vsel %vm1367, %v1365, -inf
        %1369 = vmax.xlane.f32.xlu0 %v1368
        %v1370 = vpop.xlane.xlu0 %1369
        %v1371 = vsel %vm1367, %v1366, -inf
        %1372 = vmax.xlane.f32.xlu0 %v1371
        %v1373 = vpop.xlane.xlu0 %1372
        %v1374 = vsub.f32 %v1365, %v1370
        %v1375 = vsub.f32 %v1366, %v1373
        %v1376 = vmul.f32 %v1374, 1.442695
        %v1377 = vpow.pop %v1376
        %v1378 = vmul.f32 %v1375, 1.442695
        %v1379 = vpow.pop %v1378
        %v1380 = vsel %vm1367, %v1377, 0.0
        %1381 = vadd.xlane.f32.xlu0 %v1380
        %v1382 = vpop.xlane.xlu0 %1381
        %v1383 = vsel %vm1367, %v1379, 0.0
        %1384 = vadd.xlane.f32.xlu0 %v1383
        %v1385 = vpop.xlane.xlu0 %1384
        %v1386 = vrcp.pop %v1382
        %v1387 = vmul.f32 %v1377, %v1386
        %v1388 = vrcp.pop %v1385
        %v1389 = vmul.f32 %v1379, %v1388
        %v1390 = vmul.f32 %v1089, %v1285
        %v1391 = vmul.f32 %v1092, %v1285
        %vm1392 = vcmp.ge.s32.totalorder %v1278, 32
        %vm1393 = vcmp.lt.s32.totalorder %v1278, 64
        %vm1394 = vmand %vm1392, %vm1393
        %v1395 = vsel %vm1394, 1, 0
        %v1396 = vcvt.s32.f32 %v1395
        %v1397 = vmul.f32 %v1194, %v1396
        %v1398 = vmul.f32 %v1195, %v1396
        %1399 = vmatprep.subr.mxu0 0.0
        %1400 = vmatpush1.xpose.msra.mxu0 %v1275
        %1401 = vmatprep.subr.mxu0 0.0
        %1402 = vmatpush1.xpose.msra.mxu0 %v1276
        %1403 = vmatprep.subr.mxu0 0.0
        %1404 = vmatpush1.xpose.msra.mxu0 0.0
        %1405 = vmatprep.subr.mxu0 0.0
        %1406 = vmatpush1.xpose.msra.mxu0 0.0
        %1407 = vmatprep.subr.mxu0 0.0
        %1408 = vmatpush1.xpose.msra.mxu0 0.0
        %1409 = vmatprep.subr.mxu0 0.0
        %1410 = vmatpush1.xpose.msra.mxu0 0.0
        %1411 = vmatprep.subr.mxu0 0.0
        %1412 = vmatpush1.xpose.msra.mxu0 0.0
        %1413 = vmatprep.subr.mxu0 0.0
        %1414 = vmatpush1.xpose.msra.mxu0 0.0
        %1415 = vmatprep.subr.mxu0 0.0
        %1416 = vmatpush1.xpose.msra.mxu0 0.0
        %1417 = vmatprep.subr.mxu0 0.0
        %1418 = vmatpush1.xpose.msra.mxu0 0.0
        %1419 = vmatprep.subr.mxu0 0.0
        %1420 = vmatpush1.xpose.msra.mxu0 0.0
        %1421 = vmatprep.subr.mxu0 0.0
        %1422 = vmatpush1.xpose.msra.mxu0 0.0
        %1423 = vmatprep.subr.mxu0 0.0
        %1424 = vmatpush1.xpose.msra.mxu0 0.0
        %1425 = vmatprep.subr.mxu0 0.0
        %1426 = vmatpush1.xpose.msra.mxu0 0.0
        %1427 = vmatprep.subr.mxu0 0.0
        %1428 = vmatpush1.xpose.msra.mxu0 0.0
        %1429 = vmatprep.subr.mxu0 0.0
        %1430 = vmatpush1.xpose.msra.mxu0 0.0
        %1431 = vmatprep.subr.mxu0 0.0
        %1432 = vmatpush1.xpose.msra.mxu0 0.0
        %1433 = vmatprep.subr.mxu0 0.0
        %1434 = vmatpush1.xpose.msra.mxu0 0.0
        %1435 = vmatprep.subr.mxu0 0.0
        %1436 = vmatpush1.xpose.msra.mxu0 0.0
        %1437 = vmatprep.subr.mxu0 0.0
        %1438 = vmatpush1.xpose.msra.mxu0 0.0
        %1439 = vmatprep.subr.mxu0 0.0
        %1440 = vmatpush1.xpose.msra.mxu0 0.0
        %1441 = vmatprep.subr.mxu0 0.0
        %1442 = vmatpush1.xpose.msra.mxu0 0.0
        %1443 = vmatprep.subr.mxu0 0.0
        %1444 = vmatpush1.xpose.msra.mxu0 0.0
        %1445 = vmatprep.subr.mxu0 0.0
        %1446 = vmatpush1.xpose.msra.mxu0 0.0
        %1447 = vmatprep.subr.mxu0 0.0
        %1448 = vmatpush1.xpose.msra.mxu0 0.0
        %1449 = vmatprep.subr.mxu0 0.0
        %1450 = vmatpush1.xpose.msra.mxu0 0.0
        %1451 = vmatprep.subr.mxu0 0.0
        %1452 = vmatpush1.xpose.msra.mxu0 0.0
        %1453 = vmatprep.subr.mxu0 0.0
        %1454 = vmatpush1.xpose.msra.mxu0 0.0
        %1455 = vmatprep.subr.mxu0 0.0
        %1456 = vmatpush1.xpose.msra.mxu0 0.0
        %1457 = vmatprep.subr.mxu0 0.0
        %1458 = vmatpush1.xpose.msra.mxu0 0.0
        %1459 = vmatprep.subr.mxu0 0.0
        %1460 = vmatpush1.xpose.msra.mxu0 0.0
        %1461 = vmatprep.subr.mxu0 0.0
        %1462 = vmatpush1.xpose.msra.mxu0 0.0
        %1463 = vmatprep.mubr.f32.mxu0 0.0
        %1464 = vmatmul.mubr.f32.gmra.mrb[0].mxu0 %v1397
        %v1465 = vpop.f32.mrb[0].mxu0
        %v1466 = vadd.f32 0.0, %v1465
        %v1467 = vpop.f32.mrb[0].mxu0
        %1468 = vmatprep.mubr.f32.mxu0 0.0
        %1469 = vmatmul.mubr.f32.gmra.mrb[0].mxu0 %v1398
        %v1470 = vpop.f32.mrb[0].mxu0
        %v1471 = vadd.f32 0.0, %v1470
        %v1472 = vpop.f32.mrb[0].mxu0
        %1473 = vdwg.mxu0
        %v1474 = vmul.f32 %v1466, 0.17677669
        %v1475 = vmul.f32 %v1471, 0.17677669
        %v1476 = vadd.f32 %v1474, %v1279
        %v1477 = vadd.f32 %v1475, %v1280
        %v1478 = vsel %vm1367, %v1476, -inf
        %1479 = vmax.xlane.f32.xlu0 %v1478
        %v1480 = vpop.xlane.xlu0 %1479
        %v1481 = vsel %vm1367, %v1477, -inf
        %1482 = vmax.xlane.f32.xlu0 %v1481
        %v1483 = vpop.xlane.xlu0 %1482
        %v1484 = vsub.f32 %v1476, %v1480
        %v1485 = vsub.f32 %v1477, %v1483
        %v1486 = vmul.f32 %v1484, 1.442695
        %v1487 = vpow.pop %v1486
        %v1488 = vmul.f32 %v1485, 1.442695
        %v1489 = vpow.pop %v1488
        %v1490 = vsel %vm1367, %v1487, 0.0
        %1491 = vadd.xlane.f32.xlu0 %v1490
        %v1492 = vpop.xlane.xlu0 %1491
        %v1493 = vsel %vm1367, %v1489, 0.0
        %1494 = vadd.xlane.f32.xlu0 %v1493
        %v1495 = vpop.xlane.xlu0 %1494
        %v1496 = vrcp.pop %v1492
        %v1497 = vmul.f32 %v1487, %v1496
        %v1498 = vrcp.pop %v1495
        %v1499 = vmul.f32 %v1489, %v1498
        %v1500 = vmul.f32 %v1089, %v1396
        %v1501 = vmul.f32 %v1092, %v1396
        %v1503 = vsel %vm1367, %v1497, 0
        %v1506 = vsel %vm1367, %v1499, 0
        %1508 = vmatprep.subr.mxu0 0.0
        %1509 = vmatpush1.msra.mxu0 %v1500
        %1510 = vmatprep.subr.mxu0 0.0
        %1511 = vmatpush1.msra.mxu0 %v1501
        %1512 = vmatprep.subr.mxu0 0.0
        %1513 = vmatpush1.msra.mxu0 0.0
        %1514 = vmatprep.subr.mxu0 0.0
        %1515 = vmatpush1.msra.mxu0 0.0
        %1516 = vmatprep.subr.mxu0 0.0
        %1517 = vmatpush1.msra.mxu0 0.0
        %1518 = vmatprep.subr.mxu0 0.0
        %1519 = vmatpush1.msra.mxu0 0.0
        %1520 = vmatprep.subr.mxu0 0.0
        %1521 = vmatpush1.msra.mxu0 0.0
        %1522 = vmatprep.subr.mxu0 0.0
        %1523 = vmatpush1.msra.mxu0 0.0
        %1524 = vmatprep.subr.mxu0 0.0
        %1525 = vmatpush1.msra.mxu0 0.0
        %1526 = vmatprep.subr.mxu0 0.0
        %1527 = vmatpush1.msra.mxu0 0.0
        %1528 = vmatprep.subr.mxu0 0.0
        %1529 = vmatpush1.msra.mxu0 0.0
        %1530 = vmatprep.subr.mxu0 0.0
        %1531 = vmatpush1.msra.mxu0 0.0
        %1532 = vmatprep.subr.mxu0 0.0
        %1533 = vmatpush1.msra.mxu0 0.0
        %1534 = vmatprep.subr.mxu0 0.0
        %1535 = vmatpush1.msra.mxu0 0.0
        %1536 = vmatprep.subr.mxu0 0.0
        %1537 = vmatpush1.msra.mxu0 0.0
        %1538 = vmatprep.subr.mxu0 0.0
        %1539 = vmatpush1.msra.mxu0 0.0
        %1540 = vmatprep.subr.mxu0 0.0
        %1541 = vmatpush1.msra.mxu0 0.0
        %1542 = vmatprep.subr.mxu0 0.0
        %1543 = vmatpush1.msra.mxu0 0.0
        %1544 = vmatprep.subr.mxu0 0.0
        %1545 = vmatpush1.msra.mxu0 0.0
        %1546 = vmatprep.subr.mxu0 0.0
        %1547 = vmatpush1.msra.mxu0 0.0
        %1548 = vmatprep.subr.mxu0 0.0
        %1549 = vmatpush1.msra.mxu0 0.0
        %1550 = vmatprep.subr.mxu0 0.0
        %1551 = vmatpush1.msra.mxu0 0.0
        %1552 = vmatprep.subr.mxu0 0.0
        %1553 = vmatpush1.msra.mxu0 0.0
        %1554 = vmatprep.subr.mxu0 0.0
        %1555 = vmatpush1.msra.mxu0 0.0
        %1556 = vmatprep.subr.mxu0 0.0
        %1557 = vmatpush1.msra.mxu0 0.0
        %1558 = vmatprep.subr.mxu0 0.0
        %1559 = vmatpush1.msra.mxu0 0.0
        %1560 = vmatprep.subr.mxu0 0.0
        %1561 = vmatpush1.msra.mxu0 0.0
        %1562 = vmatprep.subr.mxu0 0.0
        %1563 = vmatpush1.msra.mxu0 0.0
        %1564 = vmatprep.subr.mxu0 0.0
        %1565 = vmatpush1.msra.mxu0 0.0
        %1566 = vmatprep.subr.mxu0 0.0
        %1567 = vmatpush1.msra.mxu0 0.0
        %1568 = vmatprep.subr.mxu0 0.0
        %1569 = vmatpush1.msra.mxu0 0.0
        %1570 = vmatprep.subr.mxu0 0.0
        %1571 = vmatpush1.msra.mxu0 0.0
        %1572 = vmatprep.mubr.f32.mxu0 0.0
        %1573 = vmatmul.mubr.f32.gmra.mrb[0].mxu0 %v1503
        %v1574 = vpop.f32.mrb[0].mxu0
        %v1575 = vadd.f32 0.0, %v1574
        %v1576 = vpop.f32.mrb[0].mxu0
        %1577 = vmatprep.mubr.f32.mxu0 0.0
        %1578 = vmatmul.mubr.f32.gmra.mrb[0].mxu0 %v1506
        %v1579 = vpop.f32.mrb[0].mxu0
        %v1580 = vadd.f32 0.0, %v1579
        %v1581 = vpop.f32.mrb[0].mxu0
        %1582 = vdwg.mxu0
        %v1584 = vsel %vm1367, %v1387, 0
        %v1587 = vsel %vm1367, %v1389, 0
        %1589 = vmatprep.subr.mxu0 0.0
        %1590 = vmatpush1.msra.mxu0 %v1390
        %1591 = vmatprep.subr.mxu0 0.0
        %1592 = vmatpush1.msra.mxu0 %v1391
        %1593 = vmatprep.subr.mxu0 0.0
        %1594 = vmatpush1.msra.mxu0 0.0
        %1595 = vmatprep.subr.mxu0 0.0
        %1596 = vmatpush1.msra.mxu0 0.0
        %1597 = vmatprep.subr.mxu0 0.0
        %1598 = vmatpush1.msra.mxu0 0.0
        %1599 = vmatprep.subr.mxu0 0.0
        %1600 = vmatpush1.msra.mxu0 0.0
        %1601 = vmatprep.subr.mxu0 0.0
        %1602 = vmatpush1.msra.mxu0 0.0
        %1603 = vmatprep.subr.mxu0 0.0
        %1604 = vmatpush1.msra.mxu0 0.0
        %1605 = vmatprep.subr.mxu0 0.0
        %1606 = vmatpush1.msra.mxu0 0.0
        %1607 = vmatprep.subr.mxu0 0.0
        %1608 = vmatpush1.msra.mxu0 0.0
        %1609 = vmatprep.subr.mxu0 0.0
        %1610 = vmatpush1.msra.mxu0 0.0
        %1611 = vmatprep.subr.mxu0 0.0
        %1612 = vmatpush1.msra.mxu0 0.0
        %1613 = vmatprep.subr.mxu0 0.0
        %1614 = vmatpush1.msra.mxu0 0.0
        %1615 = vmatprep.subr.mxu0 0.0
        %1616 = vmatpush1.msra.mxu0 0.0
        %1617 = vmatprep.subr.mxu0 0.0
        %1618 = vmatpush1.msra.mxu0 0.0
        %1619 = vmatprep.subr.mxu0 0.0
        %1620 = vmatpush1.msra.mxu0 0.0
        %1621 = vmatprep.subr.mxu0 0.0
        %1622 = vmatpush1.msra.mxu0 0.0
        %1623 = vmatprep.subr.mxu0 0.0
        %1624 = vmatpush1.msra.mxu0 0.0
        %1625 = vmatprep.subr.mxu0 0.0
        %1626 = vmatpush1.msra.mxu0 0.0
        %1627 = vmatprep.subr.mxu0 0.0
        %1628 = vmatpush1.msra.mxu0 0.0
        %1629 = vmatprep.subr.mxu0 0.0
        %1630 = vmatpush1.msra.mxu0 0.0
        %1631 = vmatprep.subr.mxu0 0.0
        %1632 = vmatpush1.msra.mxu0 0.0
        %1633 = vmatprep.subr.mxu0 0.0
        %1634 = vmatpush1.msra.mxu0 0.0
        %1635 = vmatprep.subr.mxu0 0.0
        %1636 = vmatpush1.msra.mxu0 0.0
        %1637 = vmatprep.subr.mxu0 0.0
        %1638 = vmatpush1.msra.mxu0 0.0
        %1639 = vmatprep.subr.mxu0 0.0
        %1640 = vmatpush1.msra.mxu0 0.0
        %1641 = vmatprep.subr.mxu0 0.0
        %1642 = vmatpush1.msra.mxu0 0.0
        %1643 = vmatprep.subr.mxu0 0.0
        %1644 = vmatpush1.msra.mxu0 0.0
        %1645 = vmatprep.subr.mxu0 0.0
        %1646 = vmatpush1.msra.mxu0 0.0
        %1647 = vmatprep.subr.mxu0 0.0
        %1648 = vmatpush1.msra.mxu0 0.0
        %1649 = vmatprep.subr.mxu0 0.0
        %1650 = vmatpush1.msra.mxu0 0.0
        %1651 = vmatprep.subr.mxu0 0.0
        %1652 = vmatpush1.msra.mxu0 0.0
        %1653 = vmatprep.mubr.f32.mxu0 0.0
        %1654 = vmatmul.mubr.f32.gmra.mrb[0].mxu0 %v1584
        %v1655 = vpop.f32.mrb[0].mxu0
        %v1656 = vadd.f32 %v1575, %v1655
        %v1657 = vpop.f32.mrb[0].mxu0
        %1658 = vmatprep.mubr.f32.mxu0 0.0
        %1659 = vmatmul.mubr.f32.gmra.mrb[0].mxu0 %v1587
        %v1660 = vpop.f32.mrb[0].mxu0
        %v1661 = vadd.f32 %v1580, %v1660
        %v1662 = vpop.f32.mrb[0].mxu0
        %1663 = vdwg.mxu0
        %vm1664 = vcmp.ge.s32.totalorder %v1278, 64
        %vm1665 = vcmp.lt.s32.totalorder %v1278, 96
        %vm1666 = vmand %vm1664, %vm1665
        %v1667 = vsel %vm1666, 1, 0
        %v1668 = vcvt.s32.f32 %v1667
        %v1669 = vmul.f32 %v1194, %v1668
        %v1670 = vmul.f32 %v1195, %v1668
        %1671 = vmatprep.subr.mxu0 0.0
        %1672 = vmatpush1.xpose.msra.mxu0 %v1275
        %1673 = vmatprep.subr.mxu0 0.0
        %1674 = vmatpush1.xpose.msra.mxu0 %v1276
        %1675 = vmatprep.subr.mxu0 0.0
        %1676 = vmatpush1.xpose.msra.mxu0 0.0
        %1677 = vmatprep.subr.mxu0 0.0
        %1678 = vmatpush1.xpose.msra.mxu0 0.0
        %1679 = vmatprep.subr.mxu0 0.0
        %1680 = vmatpush1.xpose.msra.mxu0 0.0
        %1681 = vmatprep.subr.mxu0 0.0
        %1682 = vmatpush1.xpose.msra.mxu0 0.0
        %1683 = vmatprep.subr.mxu0 0.0
        %1684 = vmatpush1.xpose.msra.mxu0 0.0
        %1685 = vmatprep.subr.mxu0 0.0
        %1686 = vmatpush1.xpose.msra.mxu0 0.0
        %1687 = vmatprep.subr.mxu0 0.0
        %1688 = vmatpush1.xpose.msra.mxu0 0.0
        %1689 = vmatprep.subr.mxu0 0.0
        %1690 = vmatpush1.xpose.msra.mxu0 0.0
        %1691 = vmatprep.subr.mxu0 0.0
        %1692 = vmatpush1.xpose.msra.mxu0 0.0
        %1693 = vmatprep.subr.mxu0 0.0
        %1694 = vmatpush1.xpose.msra.mxu0 0.0
        %1695 = vmatprep.subr.mxu0 0.0
        %1696 = vmatpush1.xpose.msra.mxu0 0.0
        %1697 = vmatprep.subr.mxu0 0.0
        %1698 = vmatpush1.xpose.msra.mxu0 0.0
        %1699 = vmatprep.subr.mxu0 0.0
        %1700 = vmatpush1.xpose.msra.mxu0 0.0
        %1701 = vmatprep.subr.mxu0 0.0
        %1702 = vmatpush1.xpose.msra.mxu0 0.0
        %1703 = vmatprep.subr.mxu0 0.0
        %1704 = vmatpush1.xpose.msra.mxu0 0.0
        %1705 = vmatprep.subr.mxu0 0.0
        %1706 = vmatpush1.xpose.msra.mxu0 0.0
        %1707 = vmatprep.subr.mxu0 0.0
        %1708 = vmatpush1.xpose.msra.mxu0 0.0
        %1709 = vmatprep.subr.mxu0 0.0
        %1710 = vmatpush1.xpose.msra.mxu0 0.0
        %1711 = vmatprep.subr.mxu0 0.0
        %1712 = vmatpush1.xpose.msra.mxu0 0.0
        %1713 = vmatprep.subr.mxu0 0.0
        %1714 = vmatpush1.xpose.msra.mxu0 0.0
        %1715 = vmatprep.subr.mxu0 0.0
        %1716 = vmatpush1.xpose.msra.mxu0 0.0
        %1717 = vmatprep.subr.mxu0 0.0
        %1718 = vmatpush1.xpose.msra.mxu0 0.0
        %1719 = vmatprep.subr.mxu0 0.0
        %1720 = vmatpush1.xpose.msra.mxu0 0.0
        %1721 = vmatprep.subr.mxu0 0.0
        %1722 = vmatpush1.xpose.msra.mxu0 0.0
        %1723 = vmatprep.subr.mxu0 0.0
        %1724 = vmatpush1.xpose.msra.mxu0 0.0
        %1725 = vmatprep.subr.mxu0 0.0
        %1726 = vmatpush1.xpose.msra.mxu0 0.0
        %1727 = vmatprep.subr.mxu0 0.0
        %1728 = vmatpush1.xpose.msra.mxu0 0.0
        %1729 = vmatprep.subr.mxu0 0.0
        %1730 = vmatpush1.xpose.msra.mxu0 0.0
        %1731 = vmatprep.subr.mxu0 0.0
        %1732 = vmatpush1.xpose.msra.mxu0 0.0
        %1733 = vmatprep.subr.mxu0 0.0
        %1734 = vmatpush1.xpose.msra.mxu0 0.0
        %1735 = vmatprep.mubr.f32.mxu0 0.0
        %1736 = vmatmul.mubr.f32.gmra.mrb[0].mxu0 %v1669
        %v1737 = vpop.f32.mrb[0].mxu0
        %v1738 = vadd.f32 0.0, %v1737
        %v1739 = vpop.f32.mrb[0].mxu0
        %1740 = vmatprep.mubr.f32.mxu0 0.0
        %1741 = vmatmul.mubr.f32.gmra.mrb[0].mxu0 %v1670
        %v1742 = vpop.f32.mrb[0].mxu0
        %v1743 = vadd.f32 0.0, %v1742
        %v1744 = vpop.f32.mrb[0].mxu0
        %1745 = vdwg.mxu0
        %v1746 = vmul.f32 %v1738, 0.17677669
        %v1747 = vmul.f32 %v1743, 0.17677669
        %v1748 = vadd.f32 %v1746, %v1279
        %v1749 = vadd.f32 %v1747, %v1280
        %v1750 = vsel %vm1367, %v1748, -inf
        %1751 = vmax.xlane.f32.xlu0 %v1750
        %v1752 = vpop.xlane.xlu0 %1751
        %v1753 = vsel %vm1367, %v1749, -inf
        %1754 = vmax.xlane.f32.xlu0 %v1753
        %v1755 = vpop.xlane.xlu0 %1754
        %v1756 = vsub.f32 %v1748, %v1752
        %v1757 = vsub.f32 %v1749, %v1755
        %v1758 = vmul.f32 %v1756, 1.442695
        %v1759 = vpow.pop %v1758
        %v1760 = vmul.f32 %v1757, 1.442695
        %v1761 = vpow.pop %v1760
        %v1762 = vsel %vm1367, %v1759, 0.0
        %1763 = vadd.xlane.f32.xlu0 %v1762
        %v1764 = vpop.xlane.xlu0 %1763
        %v1765 = vsel %vm1367, %v1761, 0.0
        %1766 = vadd.xlane.f32.xlu0 %v1765
        %v1767 = vpop.xlane.xlu0 %1766
        %v1768 = vrcp.pop %v1764
        %v1769 = vmul.f32 %v1759, %v1768
        %v1770 = vrcp.pop %v1767
        %v1771 = vmul.f32 %v1761, %v1770
        %v1772 = vmul.f32 %v1089, %v1668
        %v1773 = vmul.f32 %v1092, %v1668
        %v1775 = vsel %vm1367, %v1769, 0
        %v1778 = vsel %vm1367, %v1771, 0
        %1780 = vmatprep.subr.mxu0 0.0
        %1781 = vmatpush1.msra.mxu0 %v1772
        %1782 = vmatprep.subr.mxu0 0.0
        %1783 = vmatpush1.msra.mxu0 %v1773
        %1784 = vmatprep.subr.mxu0 0.0
        %1785 = vmatpush1.msra.mxu0 0.0
        %1786 = vmatprep.subr.mxu0 0.0
        %1787 = vmatpush1.msra.mxu0 0.0
        %1788 = vmatprep.subr.mxu0 0.0
        %1789 = vmatpush1.msra.mxu0 0.0
        %1790 = vmatprep.subr.mxu0 0.0
        %1791 = vmatpush1.msra.mxu0 0.0
        %1792 = vmatprep.subr.mxu0 0.0
        %1793 = vmatpush1.msra.mxu0 0.0
        %1794 = vmatprep.subr.mxu0 0.0
        %1795 = vmatpush1.msra.mxu0 0.0
        %1796 = vmatprep.subr.mxu0 0.0
        %1797 = vmatpush1.msra.mxu0 0.0
        %1798 = vmatprep.subr.mxu0 0.0
        %1799 = vmatpush1.msra.mxu0 0.0
        %1800 = vmatprep.subr.mxu0 0.0
        %1801 = vmatpush1.msra.mxu0 0.0
        %1802 = vmatprep.subr.mxu0 0.0
        %1803 = vmatpush1.msra.mxu0 0.0
        %1804 = vmatprep.subr.mxu0 0.0
        %1805 = vmatpush1.msra.mxu0 0.0
        %1806 = vmatprep.subr.mxu0 0.0
        %1807 = vmatpush1.msra.mxu0 0.0
        %1808 = vmatprep.subr.mxu0 0.0
        %1809 = vmatpush1.msra.mxu0 0.0
        %1810 = vmatprep.subr.mxu0 0.0
        %1811 = vmatpush1.msra.mxu0 0.0
        %1812 = vmatprep.subr.mxu0 0.0
        %1813 = vmatpush1.msra.mxu0 0.0
        %1814 = vmatprep.subr.mxu0 0.0
        %1815 = vmatpush1.msra.mxu0 0.0
        %1816 = vmatprep.subr.mxu0 0.0
        %1817 = vmatpush1.msra.mxu0 0.0
        %1818 = vmatprep.subr.mxu0 0.0
        %1819 = vmatpush1.msra.mxu0 0.0
        %1820 = vmatprep.subr.mxu0 0.0
        %1821 = vmatpush1.msra.mxu0 0.0
        %1822 = vmatprep.subr.mxu0 0.0
        %1823 = vmatpush1.msra.mxu0 0.0
        %1824 = vmatprep.subr.mxu0 0.0
        %1825 = vmatpush1.msra.mxu0 0.0
        %1826 = vmatprep.subr.mxu0 0.0
        %1827 = vmatpush1.msra.mxu0 0.0
        %1828 = vmatprep.subr.mxu0 0.0
        %1829 = vmatpush1.msra.mxu0 0.0
        %1830 = vmatprep.subr.mxu0 0.0
        %1831 = vmatpush1.msra.mxu0 0.0
        %1832 = vmatprep.subr.mxu0 0.0
        %1833 = vmatpush1.msra.mxu0 0.0
        %1834 = vmatprep.subr.mxu0 0.0
        %1835 = vmatpush1.msra.mxu0 0.0
        %1836 = vmatprep.subr.mxu0 0.0
        %1837 = vmatpush1.msra.mxu0 0.0
        %1838 = vmatprep.subr.mxu0 0.0
        %1839 = vmatpush1.msra.mxu0 0.0
        %1840 = vmatprep.subr.mxu0 0.0
        %1841 = vmatpush1.msra.mxu0 0.0
        %1842 = vmatprep.subr.mxu0 0.0
        %1843 = vmatpush1.msra.mxu0 0.0
        %1844 = vmatprep.mubr.f32.mxu0 0.0
        %1845 = vmatmul.mubr.f32.gmra.mrb[0].mxu0 %v1775
        %v1846 = vpop.f32.mrb[0].mxu0
        %v1847 = vadd.f32 0.0, %v1846
        %v1848 = vpop.f32.mrb[0].mxu0
        %1849 = vmatprep.mubr.f32.mxu0 0.0
        %1850 = vmatmul.mubr.f32.gmra.mrb[0].mxu0 %v1778
        %v1851 = vpop.f32.mrb[0].mxu0
        %v1852 = vadd.f32 0.0, %v1851
        %v1853 = vpop.f32.mrb[0].mxu0
        %1854 = vdwg.mxu0
        %v1855 = vadd.f32 %v1656, %v1847
        %v1856 = vadd.f32 %v1661, %v1852
        %vm1857 = vcmp.ge.s32.totalorder %v1278, 96
        %vm1858 = vcmp.lt.s32.totalorder %v1278, 128
        %vm1859 = vmand %vm1857, %vm1858
        %v1860 = vsel %vm1859, 1, 0
        %v1861 = vcvt.s32.f32 %v1860
        %v1862 = vmul.f32 %v1194, %v1861
        %v1863 = vmul.f32 %v1195, %v1861
        %1864 = vmatprep.subr.mxu0 0.0
        %1865 = vmatpush1.xpose.msra.mxu0 %v1275
        %1866 = vmatprep.subr.mxu0 0.0
        %1867 = vmatpush1.xpose.msra.mxu0 %v1276
        %1868 = vmatprep.subr.mxu0 0.0
        %1869 = vmatpush1.xpose.msra.mxu0 0.0
        %1870 = vmatprep.subr.mxu0 0.0
        %1871 = vmatpush1.xpose.msra.mxu0 0.0
        %1872 = vmatprep.subr.mxu0 0.0
        %1873 = vmatpush1.xpose.msra.mxu0 0.0
        %1874 = vmatprep.subr.mxu0 0.0
        %1875 = vmatpush1.xpose.msra.mxu0 0.0
        %1876 = vmatprep.subr.mxu0 0.0
        %1877 = vmatpush1.xpose.msra.mxu0 0.0
        %1878 = vmatprep.subr.mxu0 0.0
        %1879 = vmatpush1.xpose.msra.mxu0 0.0
        %1880 = vmatprep.subr.mxu0 0.0
        %1881 = vmatpush1.xpose.msra.mxu0 0.0
        %1882 = vmatprep.subr.mxu0 0.0
        %1883 = vmatpush1.xpose.msra.mxu0 0.0
        %1884 = vmatprep.subr.mxu0 0.0
        %1885 = vmatpush1.xpose.msra.mxu0 0.0
        %1886 = vmatprep.subr.mxu0 0.0
        %1887 = vmatpush1.xpose.msra.mxu0 0.0
        %1888 = vmatprep.subr.mxu0 0.0
        %1889 = vmatpush1.xpose.msra.mxu0 0.0
        %1890 = vmatprep.subr.mxu0 0.0
        %1891 = vmatpush1.xpose.msra.mxu0 0.0
        %1892 = vmatprep.subr.mxu0 0.0
        %1893 = vmatpush1.xpose.msra.mxu0 0.0
        %1894 = vmatprep.subr.mxu0 0.0
        %1895 = vmatpush1.xpose.msra.mxu0 0.0
        %1896 = vmatprep.subr.mxu0 0.0
        %1897 = vmatpush1.xpose.msra.mxu0 0.0
        %1898 = vmatprep.subr.mxu0 0.0
        %1899 = vmatpush1.xpose.msra.mxu0 0.0
        %1900 = vmatprep.subr.mxu0 0.0
        %1901 = vmatpush1.xpose.msra.mxu0 0.0
        %1902 = vmatprep.subr.mxu0 0.0
        %1903 = vmatpush1.xpose.msra.mxu0 0.0
        %1904 = vmatprep.subr.mxu0 0.0
        %1905 = vmatpush1.xpose.msra.mxu0 0.0
        %1906 = vmatprep.subr.mxu0 0.0
        %1907 = vmatpush1.xpose.msra.mxu0 0.0
        %1908 = vmatprep.subr.mxu0 0.0
        %1909 = vmatpush1.xpose.msra.mxu0 0.0
        %1910 = vmatprep.subr.mxu0 0.0
        %1911 = vmatpush1.xpose.msra.mxu0 0.0
        %1912 = vmatprep.subr.mxu0 0.0
        %1913 = vmatpush1.xpose.msra.mxu0 0.0
        %1914 = vmatprep.subr.mxu0 0.0
        %1915 = vmatpush1.xpose.msra.mxu0 0.0
        %1916 = vmatprep.subr.mxu0 0.0
        %1917 = vmatpush1.xpose.msra.mxu0 0.0
        %1918 = vmatprep.subr.mxu0 0.0
        %1919 = vmatpush1.xpose.msra.mxu0 0.0
        %1920 = vmatprep.subr.mxu0 0.0
        %1921 = vmatpush1.xpose.msra.mxu0 0.0
        %1922 = vmatprep.subr.mxu0 0.0
        %1923 = vmatpush1.xpose.msra.mxu0 0.0
        %1924 = vmatprep.subr.mxu0 0.0
        %1925 = vmatpush1.xpose.msra.mxu0 0.0
        %1926 = vmatprep.subr.mxu0 0.0
        %1927 = vmatpush1.xpose.msra.mxu0 0.0
        %1928 = vmatprep.mubr.f32.mxu0 0.0
        %1929 = vmatmul.mubr.f32.gmra.mrb[0].mxu0 %v1862
        %v1930 = vpop.f32.mrb[0].mxu0
        %v1931 = vadd.f32 0.0, %v1930
        %v1932 = vpop.f32.mrb[0].mxu0
        %1933 = vmatprep.mubr.f32.mxu0 0.0
        %1934 = vmatmul.mubr.f32.gmra.mrb[0].mxu0 %v1863
        %v1935 = vpop.f32.mrb[0].mxu0
        %v1936 = vadd.f32 0.0, %v1935
        %v1937 = vpop.f32.mrb[0].mxu0
        %1938 = vdwg.mxu0
        %v1939 = vmul.f32 %v1931, 0.17677669
        %v1940 = vmul.f32 %v1936, 0.17677669
        %v1941 = vadd.f32 %v1939, %v1279
        %v1942 = vadd.f32 %v1940, %v1280
        %v1943 = vsel %vm1367, %v1941, -inf
        %1944 = vmax.xlane.f32.xlu0 %v1943
        %v1945 = vpop.xlane.xlu0 %1944
        %v1946 = vsel %vm1367, %v1942, -inf
        %1947 = vmax.xlane.f32.xlu0 %v1946
        %v1948 = vpop.xlane.xlu0 %1947
        %v1949 = vsub.f32 %v1941, %v1945
        %v1950 = vsub.f32 %v1942, %v1948
        %v1951 = vmul.f32 %v1949, 1.442695
        %v1952 = vpow.pop %v1951
        %v1953 = vmul.f32 %v1950, 1.442695
        %v1954 = vpow.pop %v1953
        %v1955 = vsel %vm1367, %v1952, 0.0
        %1956 = vadd.xlane.f32.xlu0 %v1955
        %v1957 = vpop.xlane.xlu0 %1956
        %v1958 = vsel %vm1367, %v1954, 0.0
        %1959 = vadd.xlane.f32.xlu0 %v1958
        %v1960 = vpop.xlane.xlu0 %1959
        %v1961 = vrcp.pop %v1957
        %v1962 = vmul.f32 %v1952, %v1961
        %v1963 = vrcp.pop %v1960
        %v1964 = vmul.f32 %v1954, %v1963
        %v1965 = vmul.f32 %v1089, %v1861
        %v1966 = vmul.f32 %v1092, %v1861
        %v1968 = vsel %vm1367, %v1962, 0
        %v1971 = vsel %vm1367, %v1964, 0
        %1973 = vmatprep.subr.mxu0 0.0
        %1974 = vmatpush1.msra.mxu0 %v1965
        %1975 = vmatprep.subr.mxu0 0.0
        %1976 = vmatpush1.msra.mxu0 %v1966
        %1977 = vmatprep.subr.mxu0 0.0
        %1978 = vmatpush1.msra.mxu0 0.0
        %1979 = vmatprep.subr.mxu0 0.0
        %1980 = vmatpush1.msra.mxu0 0.0
        %1981 = vmatprep.subr.mxu0 0.0
        %1982 = vmatpush1.msra.mxu0 0.0
        %1983 = vmatprep.subr.mxu0 0.0
        %1984 = vmatpush1.msra.mxu0 0.0
        %1985 = vmatprep.subr.mxu0 0.0
        %1986 = vmatpush1.msra.mxu0 0.0
        %1987 = vmatprep.subr.mxu0 0.0
        %1988 = vmatpush1.msra.mxu0 0.0
        %1989 = vmatprep.subr.mxu0 0.0
        %1990 = vmatpush1.msra.mxu0 0.0
        %1991 = vmatprep.subr.mxu0 0.0
        %1992 = vmatpush1.msra.mxu0 0.0
        %1993 = vmatprep.subr.mxu0 0.0
        %1994 = vmatpush1.msra.mxu0 0.0
        %1995 = vmatprep.subr.mxu0 0.0
        %1996 = vmatpush1.msra.mxu0 0.0
        %1997 = vmatprep.subr.mxu0 0.0
        %1998 = vmatpush1.msra.mxu0 0.0
        %1999 = vmatprep.subr.mxu0 0.0
        %2000 = vmatpush1.msra.mxu0 0.0
        %2001 = vmatprep.subr.mxu0 0.0
        %2002 = vmatpush1.msra.mxu0 0.0
        %2003 = vmatprep.subr.mxu0 0.0
        %2004 = vmatpush1.msra.mxu0 0.0
        %2005 = vmatprep.subr.mxu0 0.0
        %2006 = vmatpush1.msra.mxu0 0.0
        %2007 = vmatprep.subr.mxu0 0.0
        %2008 = vmatpush1.msra.mxu0 0.0
        %2009 = vmatprep.subr.mxu0 0.0
        %2010 = vmatpush1.msra.mxu0 0.0
        %2011 = vmatprep.subr.mxu0 0.0
        %2012 = vmatpush1.msra.mxu0 0.0
        %2013 = vmatprep.subr.mxu0 0.0
        %2014 = vmatpush1.msra.mxu0 0.0
        %2015 = vmatprep.subr.mxu0 0.0
        %2016 = vmatpush1.msra.mxu0 0.0
        %2017 = vmatprep.subr.mxu0 0.0
        %2018 = vmatpush1.msra.mxu0 0.0
        %2019 = vmatprep.subr.mxu0 0.0
        %2020 = vmatpush1.msra.mxu0 0.0
        %2021 = vmatprep.subr.mxu0 0.0
        %2022 = vmatpush1.msra.mxu0 0.0
        %2023 = vmatprep.subr.mxu0 0.0
        %2024 = vmatpush1.msra.mxu0 0.0
        %2025 = vmatprep.subr.mxu0 0.0
        %2026 = vmatpush1.msra.mxu0 0.0
        %2027 = vmatprep.subr.mxu0 0.0
        %2028 = vmatpush1.msra.mxu0 0.0
        %2029 = vmatprep.subr.mxu0 0.0
        %2030 = vmatpush1.msra.mxu0 0.0
        %2031 = vmatprep.subr.mxu0 0.0
        %2032 = vmatpush1.msra.mxu0 0.0
        %2033 = vmatprep.subr.mxu0 0.0
        %2034 = vmatpush1.msra.mxu0 0.0
        %2035 = vmatprep.subr.mxu0 0.0
        %2036 = vmatpush1.msra.mxu0 0.0
        %2037 = vmatprep.mubr.f32.mxu0 0.0
        %2038 = vmatmul.mubr.f32.gmra.mrb[0].mxu0 %v1968
        %v2039 = vpop.f32.mrb[0].mxu0
        %v2040 = vadd.f32 0.0, %v2039
        %v2041 = vpop.f32.mrb[0].mxu0
        %2042 = vmatprep.mubr.f32.mxu0 0.0
        %2043 = vmatmul.mubr.f32.gmra.mrb[0].mxu0 %v1971
        %v2044 = vpop.f32.mrb[0].mxu0
        %v2045 = vadd.f32 0.0, %v2044
        %v2046 = vpop.f32.mrb[0].mxu0
        %2047 = vdwg.mxu0
        %v2048 = vadd.f32 %v1855, %v2040
        %v2049 = vadd.f32 %v1856, %v2045
        %v2050 = vpack.c.bf16 %v2049, %v2048
        %v2051 = vld [vmem:[%s809] sm:$0xf]
        %v2052 = vld [vmem:[%s809 + $0x4] sm:$0xf]
        %v2053 = vld [vmem:[%s809 + $0x8] sm:$0xf]
        %v2054 = vld [vmem:[%s809 + $0xc] sm:$0xf]
        %v2055 = vld [vmem:[%s809 + $0x10] sm:$0xf]
        %v2056 = vld [vmem:[%s809 + $0x14] sm:$0xf]
        %v2057 = vld [vmem:[%s809 + $0x18] sm:$0xf]
        %v2058 = vld [vmem:[%s809 + $0x1c] sm:$0xf]
        %v2059 = vld [vmem:[%s809 + $0x20] sm:$0xf]
        %v2060 = vld [vmem:[%s809 + $0x24] sm:$0xf]
        %v2061 = vld [vmem:[%s809 + $0x28] sm:$0xf]
        %v2062 = vld [vmem:[%s809 + $0x2c] sm:$0xf]
        %v2063 = vld [vmem:[%s809 + $0x30] sm:$0xf]
        %v2064 = vld [vmem:[%s809 + $0x34] sm:$0xf]
        %v2065 = vld [vmem:[%s809 + $0x38] sm:$0xf]
        %v2066 = vld [vmem:[%s809 + $0x3c] sm:$0xf]
        %v2083 = vunpack.c.l.b16 %v2051
        %v2084 = vunpack.c.l.b16 %v2052
        %v2085 = vunpack.c.l.b16 %v2053
        %v2086 = vunpack.c.l.b16 %v2054
        %v2087 = vunpack.c.l.b16 %v2055
        %v2088 = vunpack.c.l.b16 %v2056
        %v2089 = vunpack.c.l.b16 %v2057
        %v2090 = vunpack.c.l.b16 %v2058
        %v2091 = vunpack.c.l.b16 %v2059
        %v2092 = vunpack.c.l.b16 %v2060
        %v2093 = vunpack.c.l.b16 %v2061
        %v2094 = vunpack.c.l.b16 %v2062
        %v2095 = vunpack.c.l.b16 %v2063
        %v2096 = vunpack.c.l.b16 %v2064
        %v2097 = vunpack.c.l.b16 %v2065
        %v2098 = vunpack.c.l.b16 %v2066
        %v2099 = vpack.c.b16 %v2084, %v2083
        %v2100 = vpack.c.b16 %v2086, %v2085
        %v2101 = vpack.c.b16 %v2088, %v2087
        %v2102 = vpack.c.b16 %v2090, %v2089
        %v2103 = vpack.c.b16 %v2092, %v2091
        %v2104 = vpack.c.b16 %v2094, %v2093
        %v2105 = vpack.c.b16 %v2096, %v2095
        %v2106 = vpack.c.b16 %v2098, %v2097
        %2115 = vmatprep.subr.bf16.mxu0 0
        %2116 = vmatpush1.bf16.msra.mxu0 %v2099
        %2117 = vmatprep.subr.bf16.mxu0 0
        %2118 = vmatpush1.bf16.msra.mxu0 %v2100
        %2119 = vmatprep.subr.bf16.mxu0 0
        %2120 = vmatpush1.bf16.msra.mxu0 %v2101
        %2121 = vmatprep.subr.bf16.mxu0 0
        %2122 = vmatpush1.bf16.msra.mxu0 %v2102
        %2123 = vmatprep.subr.bf16.mxu0 0
        %2124 = vmatpush1.bf16.msra.mxu0 %v2103
        %2125 = vmatprep.subr.bf16.mxu0 0
        %2126 = vmatpush1.bf16.msra.mxu0 %v2104
        %2127 = vmatprep.subr.bf16.mxu0 0
        %2128 = vmatpush1.bf16.msra.mxu0 %v2105
        %2129 = vmatprep.subr.bf16.mxu0 0
        %2130 = vmatpush1.bf16.msra.mxu0 %v2106
        %2131 = vmatprep.subr.bf16.mxu0 0
        %2132 = vmatpush1.bf16.msra.mxu0 0
        %2133 = vmatprep.subr.bf16.mxu0 0
        %2134 = vmatpush1.bf16.msra.mxu0 0
        %2135 = vmatprep.subr.bf16.mxu0 0
        %2136 = vmatpush1.bf16.msra.mxu0 0
        %2137 = vmatprep.subr.bf16.mxu0 0
        %2138 = vmatpush1.bf16.msra.mxu0 0
        %2139 = vmatprep.subr.bf16.mxu0 0
        %2140 = vmatpush1.bf16.msra.mxu0 0
        %2141 = vmatprep.subr.bf16.mxu0 0
        %2142 = vmatpush1.bf16.msra.mxu0 0
        %2143 = vmatprep.subr.bf16.mxu0 0
        %2144 = vmatpush1.bf16.msra.mxu0 0
        %2145 = vmatprep.subr.bf16.mxu0 0
        %2146 = vmatpush1.bf16.msra.mxu0 0
        %2147 = vmatprep.mubr.bf16.mxu0 0
        %2148 = vmatmul.mubr.bf16.gmra.mrb[0].mxu0 %v2050
        %v2149 = vpop.f32.mrb[0].mxu0
        %v2150 = vadd.f32 0.0, %v2149
        %v2151 = vpop.f32.mrb[0].mxu0
        %v2152 = vpop.f32.mrb[0].mxu0
        %v2153 = vadd.f32 0.0, %v2152
        %v2154 = vpop.f32.mrb[0].mxu0
        %2155 = vdwg.mxu0
        %v2156 = vadd.f32 %v824, %v2150
        %v2157 = vadd.f32 %v825, %v2153
        %v2158 = vld [vmem:[%s674] sm:$0x1]
        %v2159 = vmul.f32 %v2156, %v2156
        %v2160 = vmul.f32 %v2157, %v2157
        %2161 = vadd.xlane.f32.xlu0 %v2159
        %v2162 = vpop.xlane.xlu0 %2161
        %2163 = vadd.xlane.f32.xlu0 %v2160
        %v2164 = vpop.xlane.xlu0 %2163
        %v2165 = vmul.f32 %v2162, %v833
        %v2166 = vmul.f32 %v2164, %v833
        %v2167 = vadd.f32 %v2165, 1e-06
        %v2168 = vadd.f32 %v2166, 1e-06
        %v2169 = vrsqrt.pop %v2167
        %v2170 = vrsqrt.pop %v2168
        %v2171 = vmul.f32 %v2156, %v2169
        %v2172 = vmul.f32 %v2157, %v2170
        %v2174 = vlaneseq
        %v2175 = vshrl.u32 %v2174, 7
        %v2176 = vsub.s32 0, %v2175
        %v2177 = vrot.slane %v2158, %v2176
        %v2179 = vmul.f32 %v2177, %v2171
        %v2180 = vmul.f32 %v2177, %v2172
        %v2181 = vld [vmem:[%s814] sm:$0xff]
        %v2182 = vld [vmem:[%s814 + $0x8] sm:$0xff]
        %v2183 = vld [vmem:[%s814 + $0x10] sm:$0xff]
        %v2184 = vld [vmem:[%s814 + $0x18] sm:$0xff]
        %v2185 = vld [vmem:[%s814 + $0x20] sm:$0xff]
        %v2186 = vld [vmem:[%s814 + $0x28] sm:$0xff]
        %v2187 = vld [vmem:[%s814 + $0x30] sm:$0xff]
        %v2188 = vld [vmem:[%s814 + $0x38] sm:$0xff]
        %v2189 = vld [vmem:[%s814 + $0x40] sm:$0xff]
        %v2190 = vld [vmem:[%s814 + $0x48] sm:$0xff]
        %v2191 = vld [vmem:[%s814 + $0x50] sm:$0xff]
        %v2192 = vld [vmem:[%s814 + $0x58] sm:$0xff]
        %v2193 = vld [vmem:[%s814 + $0x60] sm:$0xff]
        %v2194 = vld [vmem:[%s814 + $0x68] sm:$0xff]
        %v2195 = vld [vmem:[%s814 + $0x70] sm:$0xff]
        %v2196 = vld [vmem:[%s814 + $0x78] sm:$0xff]
        %v2197 = vld [vmem:[%s682] sm:$0x1]
        %v2199 = vlaneseq
        %v2200 = vshrl.u32 %v2199, 7
        %v2201 = vsub.s32 0, %v2200
        %v2202 = vrot.slane %v2197, %v2201
        %2204 = vmatprep.subr.mxu0 0.0
        %2205 = vmatpush1.msra.mxu0 %v2181
        %2206 = vmatprep.subr.mxu0 0.0
        %2207 = vmatpush1.msra.mxu0 %v2182
        %2208 = vmatprep.subr.mxu0 0.0
        %2209 = vmatpush1.msra.mxu0 %v2183
        %2210 = vmatprep.subr.mxu0 0.0
        %2211 = vmatpush1.msra.mxu0 %v2184
        %2212 = vmatprep.subr.mxu0 0.0
        %2213 = vmatpush1.msra.mxu0 %v2185
        %2214 = vmatprep.subr.mxu0 0.0
        %2215 = vmatpush1.msra.mxu0 %v2186
        %2216 = vmatprep.subr.mxu0 0.0
        %2217 = vmatpush1.msra.mxu0 %v2187
        %2218 = vmatprep.subr.mxu0 0.0
        %2219 = vmatpush1.msra.mxu0 %v2188
        %2220 = vmatprep.subr.mxu0 0.0
        %2221 = vmatpush1.msra.mxu0 %v2189
        %2222 = vmatprep.subr.mxu0 0.0
        %2223 = vmatpush1.msra.mxu0 %v2190
        %2224 = vmatprep.subr.mxu0 0.0
        %2225 = vmatpush1.msra.mxu0 %v2191
        %2226 = vmatprep.subr.mxu0 0.0
        %2227 = vmatpush1.msra.mxu0 %v2192
        %2228 = vmatprep.subr.mxu0 0.0
        %2229 = vmatpush1.msra.mxu0 %v2193
        %2230 = vmatprep.subr.mxu0 0.0
        %2231 = vmatpush1.msra.mxu0 %v2194
        %2232 = vmatprep.subr.mxu0 0.0
        %2233 = vmatpush1.msra.mxu0 %v2195
        %2234 = vmatprep.subr.mxu0 0.0
        %2235 = vmatpush1.msra.mxu0 %v2196
        %2236 = vmatprep.subr.mxu0 0.0
        %2237 = vmatpush1.msra.mxu0 0.0
        %2238 = vmatprep.subr.mxu0 0.0
        %2239 = vmatpush1.msra.mxu0 0.0
        %2240 = vmatprep.subr.mxu0 0.0
        %2241 = vmatpush1.msra.mxu0 0.0
        %2242 = vmatprep.subr.mxu0 0.0
        %2243 = vmatpush1.msra.mxu0 0.0
        %2244 = vmatprep.subr.mxu0 0.0
        %2245 = vmatpush1.msra.mxu0 0.0
        %2246 = vmatprep.subr.mxu0 0.0
        %2247 = vmatpush1.msra.mxu0 0.0
        %2248 = vmatprep.subr.mxu0 0.0
        %2249 = vmatpush1.msra.mxu0 0.0
        %2250 = vmatprep.subr.mxu0 0.0
        %2251 = vmatpush1.msra.mxu0 0.0
        %2252 = vmatprep.subr.mxu0 0.0
        %2253 = vmatpush1.msra.mxu0 0.0
        %2254 = vmatprep.subr.mxu0 0.0
        %2255 = vmatpush1.msra.mxu0 0.0
        %2256 = vmatprep.subr.mxu0 0.0
        %2257 = vmatpush1.msra.mxu0 0.0
        %2258 = vmatprep.subr.mxu0 0.0
        %2259 = vmatpush1.msra.mxu0 0.0
        %2260 = vmatprep.subr.mxu0 0.0
        %2261 = vmatpush1.msra.mxu0 0.0
        %2262 = vmatprep.subr.mxu0 0.0
        %2263 = vmatpush1.msra.mxu0 0.0
        %2264 = vmatprep.subr.mxu0 0.0
        %2265 = vmatpush1.msra.mxu0 0.0
        %2266 = vmatprep.subr.mxu0 0.0
        %2267 = vmatpush1.msra.mxu0 0.0
        %2268 = vmatprep.mubr.f32.mxu0 0.0
        %2269 = vmatmul.mubr.f32.gmra.mrb[0].mxu0 %v2179
        %v2270 = vpop.f32.mrb[0].mxu0
        %v2271 = vadd.f32 %v2202, %v2270
        %v2272 = vpop.f32.mrb[0].mxu0
        %2273 = vmatprep.mubr.f32.mxu0 0.0
        %2274 = vmatmul.mubr.f32.gmra.mrb[0].mxu0 %v2180
        %v2275 = vpop.f32.mrb[0].mxu0
        %v2276 = vadd.f32 %v2202, %v2275
        %v2277 = vpop.f32.mrb[0].mxu0
        %2278 = vdwg.mxu0
        %vm2279 = vcmask 31744
        %v2280 = vsel %vm2279, %v2271, -inf
        %2281 = vmax.xlane.f32.xlu0 %v2280
        %v2282 = vpop.xlane.xlu0 %2281
        %v2283 = vsel %vm2279, %v2276, -inf
        %2284 = vmax.xlane.f32.xlu0 %v2283
        %v2285 = vpop.xlane.xlu0 %2284
        %v2286 = vsub.f32 %v2271, %v2282
        %v2287 = vsub.f32 %v2276, %v2285
        %v2288 = vmul.f32 %v2286, 1.442695
        %v2289 = vpow.pop %v2288
        %v2290 = vmul.f32 %v2287, 1.442695
        %v2291 = vpow.pop %v2290
        %v2292 = vsel %vm2279, %v2289, 0.0
        %2293 = vadd.xlane.f32.xlu0 %v2292
        %v2294 = vpop.xlane.xlu0 %2293
        %v2295 = vsel %vm2279, %v2291, 0.0
        %2296 = vadd.xlane.f32.xlu0 %v2295
        %v2297 = vpop.xlane.xlu0 %2296
        %v2298 = vrcp.pop %v2294
        %v2299 = vmul.f32 %v2289, %v2298
        %v2300 = vrcp.pop %v2297
        %v2301 = vmul.f32 %v2291, %v2300
        %v2302 = vsel %vm2279, %v2299, -inf
        %2303 = vmax.xlane.f32.xlu0 %v2302
        %v2304 = vpop.xlane.xlu0 %2303
        %v2305 = vsel %vm2279, %v2301, -inf
        %2306 = vmax.xlane.f32.xlu0 %v2305
        %v2307 = vpop.xlane.xlu0 %2306
        %vm2308 = vcmp.eq.f32.partialorder %v2299, %v2304
        %vm2309 = vcmp.eq.f32.partialorder %v2301, %v2307
        %v2310 = vsel %vm2308, %v1278, 4
        %v2311 = vsel %vm2309, %v1278, 4
        %v2312 = vsel %vm2279, %v2310, 2147483647
        %v2313 = vand.u32 %v2312, 65535
        %v2314 = vshra.s32 %v2312, 16
        %v2315 = vcvt.s32.f32 %v2313
        %v2316 = vcvt.s32.f32 %v2314
        %2317 = vmin.xlane.f32.xlu0 %v2316
        %v2318 = vpop.xlane.xlu0 %2317
        %vm2319 = vcmp.eq.f32.partialorder %v2316, %v2318
        %v2320 = vsel %vm2319, %v2315, inf
        %2321 = vmin.xlane.f32.xlu0 %v2320
        %v2322 = vpop.xlane.xlu0 %2321
        %v2323 = vcvt.f32.s32 %v2322
        %v2324 = vcvt.f32.s32 %v2318
        %v2325 = vshll.u32 %v2324, 16
        %v2326 = vadd.s32 %v2325, %v2323
        %v2327 = vsel %vm2279, %v2311, 2147483647
        %v2328 = vand.u32 %v2327, 65535
        %v2329 = vshra.s32 %v2327, 16
        %v2330 = vcvt.s32.f32 %v2328
        %v2331 = vcvt.s32.f32 %v2329
        %2332 = vmin.xlane.f32.xlu0 %v2331
        %v2333 = vpop.xlane.xlu0 %2332
        %vm2334 = vcmp.eq.f32.partialorder %v2331, %v2333
        %v2335 = vsel %vm2334, %v2330, inf
        %2336 = vmin.xlane.f32.xlu0 %v2335
        %v2337 = vpop.xlane.xlu0 %2336
        %v2338 = vcvt.f32.s32 %v2337
        %v2339 = vcvt.f32.s32 %v2333
        %v2340 = vshll.u32 %v2339, 16
        %v2341 = vadd.s32 %v2340, %v2338
        %vm2342 = vcmp.eq.s32.totalorder %v1278, %v2326
        %vm2343 = vcmp.eq.s32.totalorder %v1278, %v2341
        %v2344 = vsel %vm2342, -1.0, %v2299
        %v2345 = vsel %vm2343, -1.0, %v2301
        %v2346 = vsel %vm2279, %v2344, -inf
        %2347 = vmax.xlane.f32.xlu0 %v2346
        %v2348 = vpop.xlane.xlu0 %2347
        %v2349 = vsel %vm2279, %v2345, -inf
        %2350 = vmax.xlane.f32.xlu0 %v2349
        %v2351 = vpop.xlane.xlu0 %2350
        %vm2352 = vcmp.eq.f32.partialorder %v2344, %v2348
        %vm2353 = vcmp.eq.f32.partialorder %v2345, %v2351
        %v2354 = vsel %vm2352, %v1278, 4
        %v2355 = vsel %vm2353, %v1278, 4
        %v2356 = vsel %vm2279, %v2354, 2147483647
        %v2357 = vand.u32 %v2356, 65535
        %v2358 = vshra.s32 %v2356, 16
        %v2359 = vcvt.s32.f32 %v2357
        %v2360 = vcvt.s32.f32 %v2358
        %2361 = vmin.xlane.f32.xlu0 %v2360
        %v2362 = vpop.xlane.xlu0 %2361
        %vm2363 = vcmp.eq.f32.partialorder %v2360, %v2362
        %v2364 = vsel %vm2363, %v2359, inf
        %2365 = vmin.xlane.f32.xlu0 %v2364
        %v2366 = vpop.xlane.xlu0 %2365
        %v2367 = vcvt.f32.s32 %v2366
        %v2368 = vcvt.f32.s32 %v2362
        %v2369 = vshll.u32 %v2368, 16
        %v2370 = vadd.s32 %v2369, %v2367
        %v2371 = vsel %vm2279, %v2355, 2147483647
        %v2372 = vand.u32 %v2371, 65535
        %v2373 = vshra.s32 %v2371, 16
        %v2374 = vcvt.s32.f32 %v2372
        %v2375 = vcvt.s32.f32 %v2373
        %2376 = vmin.xlane.f32.xlu0 %v2375
        %v2377 = vpop.xlane.xlu0 %2376
        %vm2378 = vcmp.eq.f32.partialorder %v2375, %v2377
        %v2379 = vsel %vm2378, %v2374, inf
        %2380 = vmin.xlane.f32.xlu0 %v2379
        %v2381 = vpop.xlane.xlu0 %2380
        %v2382 = vcvt.f32.s32 %v2381
        %v2383 = vcvt.f32.s32 %v2377
        %v2384 = vshll.u32 %v2383, 16
        %v2385 = vadd.s32 %v2384, %v2382
        %vm2386 = vcmp.eq.s32.totalorder %v1278, %v2370
        %vm2387 = vcmp.eq.s32.totalorder %v1278, %v2385
        %vm2388 = vmor %vm2342, %vm2386
        %vm2389 = vmor %vm2343, %vm2387
        %v2390 = vsel %vm2388, %v2299, 0.0
        %v2391 = vsel %vm2389, %v2301, 0.0
        %v2392 = vsel %vm2279, %v2390, 0.0
        %2393 = vadd.xlane.f32.xlu0 %v2392
        %v2394 = vpop.xlane.xlu0 %2393
        %v2395 = vsel %vm2279, %v2391, 0.0
        %2396 = vadd.xlane.f32.xlu0 %v2395
        %v2397 = vpop.xlane.xlu0 %2396
        %v2398 = vrcp.pop %v2394
        %v2399 = vmul.f32 %v2390, %v2398
        %v2400 = vrcp.pop %v2397
        %v2401 = vmul.f32 %v2391, %v2400
        %v2402 = vpack.c.bf16 %v2180, %v2179
        %v2403 = vld [vmem:[%s691] sm:$0xff]
        %v2404 = vld [vmem:[%s691 + $0x8] sm:$0xff]
        %v2405 = vld [vmem:[%s691 + $0x10] sm:$0xff]
        %v2406 = vld [vmem:[%s691 + $0x18] sm:$0xff]
        %v2407 = vld [vmem:[%s691 + $0x20] sm:$0xff]
        %v2408 = vld [vmem:[%s691 + $0x28] sm:$0xff]
        %v2409 = vld [vmem:[%s691 + $0x30] sm:$0xff]
        %v2410 = vld [vmem:[%s691 + $0x38] sm:$0xff]
        %v2411 = vld [vmem:[%s691 + $0x40] sm:$0xff]
        %v2412 = vld [vmem:[%s691 + $0x48] sm:$0xff]
        %v2413 = vld [vmem:[%s691 + $0x50] sm:$0xff]
        %v2414 = vld [vmem:[%s691 + $0x58] sm:$0xff]
        %v2415 = vld [vmem:[%s691 + $0x60] sm:$0xff]
        %v2416 = vld [vmem:[%s691 + $0x68] sm:$0xff]
        %v2417 = vld [vmem:[%s691 + $0x70] sm:$0xff]
        %v2418 = vld [vmem:[%s691 + $0x78] sm:$0xff]
        %v2419 = vld [vmem:[%s691 + $0x80] sm:$0xff]
        %v2420 = vld [vmem:[%s691 + $0x88] sm:$0xff]
        %v2421 = vld [vmem:[%s691 + $0x90] sm:$0xff]
        %v2422 = vld [vmem:[%s691 + $0x98] sm:$0xff]
        %v2423 = vld [vmem:[%s691 + $0xa0] sm:$0xff]
        %v2424 = vld [vmem:[%s691 + $0xa8] sm:$0xff]
        %v2425 = vld [vmem:[%s691 + $0xb0] sm:$0xff]
        %v2426 = vld [vmem:[%s691 + $0xb8] sm:$0xff]
        %v2427 = vld [vmem:[%s691 + $0xc0] sm:$0xff]
        %v2428 = vld [vmem:[%s691 + $0xc8] sm:$0xff]
        %v2429 = vld [vmem:[%s691 + $0xd0] sm:$0xff]
        %v2430 = vld [vmem:[%s691 + $0xd8] sm:$0xff]
        %v2431 = vld [vmem:[%s691 + $0xe0] sm:$0xff]
        %v2432 = vld [vmem:[%s691 + $0xe8] sm:$0xff]
        %v2433 = vld [vmem:[%s691 + $0xf0] sm:$0xff]
        %v2434 = vld [vmem:[%s691 + $0xf8] sm:$0xff]
        %v2467 = vunpack.c.l.b16 %v2403
        %v2468 = vunpack.c.h.b16 %v2403
        %v2469 = vunpack.c.l.b16 %v2404
        %v2470 = vunpack.c.h.b16 %v2404
        %v2471 = vunpack.c.l.b16 %v2405
        %v2472 = vunpack.c.h.b16 %v2405
        %v2473 = vunpack.c.l.b16 %v2406
        %v2474 = vunpack.c.h.b16 %v2406
        %v2475 = vunpack.c.l.b16 %v2407
        %v2476 = vunpack.c.h.b16 %v2407
        %v2477 = vunpack.c.l.b16 %v2408
        %v2478 = vunpack.c.h.b16 %v2408
        %v2479 = vunpack.c.l.b16 %v2409
        %v2480 = vunpack.c.h.b16 %v2409
        %v2481 = vunpack.c.l.b16 %v2410
        %v2482 = vunpack.c.h.b16 %v2410
        %v2483 = vunpack.c.l.b16 %v2411
        %v2484 = vunpack.c.h.b16 %v2411
        %v2485 = vunpack.c.l.b16 %v2412
        %v2486 = vunpack.c.h.b16 %v2412
        %v2487 = vunpack.c.l.b16 %v2413
        %v2488 = vunpack.c.h.b16 %v2413
        %v2489 = vunpack.c.l.b16 %v2414
        %v2490 = vunpack.c.h.b16 %v2414
        %v2491 = vunpack.c.l.b16 %v2415
        %v2492 = vunpack.c.h.b16 %v2415
        %v2493 = vunpack.c.l.b16 %v2416
        %v2494 = vunpack.c.h.b16 %v2416
        %v2495 = vunpack.c.l.b16 %v2417
        %v2496 = vunpack.c.h.b16 %v2417
        %v2497 = vunpack.c.l.b16 %v2418
        %v2498 = vunpack.c.h.b16 %v2418
        %v2499 = vunpack.c.l.b16 %v2419
        %v2500 = vunpack.c.h.b16 %v2419
        %v2501 = vunpack.c.l.b16 %v2420
        %v2502 = vunpack.c.h.b16 %v2420
        %v2503 = vunpack.c.l.b16 %v2421
        %v2504 = vunpack.c.h.b16 %v2421
        %v2505 = vunpack.c.l.b16 %v2422
        %v2506 = vunpack.c.h.b16 %v2422
        %v2507 = vunpack.c.l.b16 %v2423
        %v2508 = vunpack.c.h.b16 %v2423
        %v2509 = vunpack.c.l.b16 %v2424
        %v2510 = vunpack.c.h.b16 %v2424
        %v2511 = vunpack.c.l.b16 %v2425
        %v2512 = vunpack.c.h.b16 %v2425
        %v2513 = vunpack.c.l.b16 %v2426
        %v2514 = vunpack.c.h.b16 %v2426
        %v2515 = vunpack.c.l.b16 %v2427
        %v2516 = vunpack.c.h.b16 %v2427
        %v2517 = vunpack.c.l.b16 %v2428
        %v2518 = vunpack.c.h.b16 %v2428
        %v2519 = vunpack.c.l.b16 %v2429
        %v2520 = vunpack.c.h.b16 %v2429
        %v2521 = vunpack.c.l.b16 %v2430
        %v2522 = vunpack.c.h.b16 %v2430
        %v2523 = vunpack.c.l.b16 %v2431
        %v2524 = vunpack.c.h.b16 %v2431
        %v2525 = vunpack.c.l.b16 %v2432
        %v2526 = vunpack.c.h.b16 %v2432
        %v2527 = vunpack.c.l.b16 %v2433
        %v2528 = vunpack.c.h.b16 %v2433
        %v2529 = vunpack.c.l.b16 %v2434
        %v2530 = vunpack.c.h.b16 %v2434
        %v2531 = vpack.c.b16 %v2471, %v2467
        %v2532 = vpack.c.b16 %v2472, %v2468
        %v2533 = vpack.c.b16 %v2473, %v2469
        %v2534 = vpack.c.b16 %v2474, %v2470
        %v2535 = vpack.c.b16 %v2479, %v2475
        %v2536 = vpack.c.b16 %v2480, %v2476
        %v2537 = vpack.c.b16 %v2481, %v2477
        %v2538 = vpack.c.b16 %v2482, %v2478
        %v2539 = vpack.c.b16 %v2487, %v2483
        %v2540 = vpack.c.b16 %v2488, %v2484
        %v2541 = vpack.c.b16 %v2489, %v2485
        %v2542 = vpack.c.b16 %v2490, %v2486
        %v2543 = vpack.c.b16 %v2495, %v2491
        %v2544 = vpack.c.b16 %v2496, %v2492
        %v2545 = vpack.c.b16 %v2497, %v2493
        %v2546 = vpack.c.b16 %v2498, %v2494
        %v2547 = vpack.c.b16 %v2503, %v2499
        %v2548 = vpack.c.b16 %v2504, %v2500
        %v2549 = vpack.c.b16 %v2505, %v2501
        %v2550 = vpack.c.b16 %v2506, %v2502
        %v2551 = vpack.c.b16 %v2511, %v2507
        %v2552 = vpack.c.b16 %v2512, %v2508
        %v2553 = vpack.c.b16 %v2513, %v2509
        %v2554 = vpack.c.b16 %v2514, %v2510
        %v2555 = vpack.c.b16 %v2519, %v2515
        %v2556 = vpack.c.b16 %v2520, %v2516
        %v2557 = vpack.c.b16 %v2521, %v2517
        %v2558 = vpack.c.b16 %v2522, %v2518
        %v2559 = vpack.c.b16 %v2527, %v2523
        %v2560 = vpack.c.b16 %v2528, %v2524
        %v2561 = vpack.c.b16 %v2529, %v2525
        %v2562 = vpack.c.b16 %v2530, %v2526
        %2595 = vmatprep.subr.bf16.mxu0 %v2532
        %2596 = vmatpush1.bf16.msra.mxu0 %v2531
        %2597 = vmatprep.subr.bf16.mxu0 %v2536
        %2598 = vmatpush1.bf16.msra.mxu0 %v2535
        %2599 = vmatprep.subr.bf16.mxu0 %v2540
        %2600 = vmatpush1.bf16.msra.mxu0 %v2539
        %2601 = vmatprep.subr.bf16.mxu0 %v2544
        %2602 = vmatpush1.bf16.msra.mxu0 %v2543
        %2603 = vmatprep.subr.bf16.mxu0 %v2548
        %2604 = vmatpush1.bf16.msra.mxu0 %v2547
        %2605 = vmatprep.subr.bf16.mxu0 %v2552
        %2606 = vmatpush1.bf16.msra.mxu0 %v2551
        %2607 = vmatprep.subr.bf16.mxu0 %v2556
        %2608 = vmatpush1.bf16.msra.mxu0 %v2555
        %2609 = vmatprep.subr.bf16.mxu0 %v2560
        %2610 = vmatpush1.bf16.msra.mxu0 %v2559
        %2611 = vmatprep.subr.bf16.mxu0 0
        %2612 = vmatpush1.bf16.msra.mxu0 0
        %2613 = vmatprep.subr.bf16.mxu0 0
        %2614 = vmatpush1.bf16.msra.mxu0 0
        %2615 = vmatprep.subr.bf16.mxu0 0
        %2616 = vmatpush1.bf16.msra.mxu0 0
        %2617 = vmatprep.subr.bf16.mxu0 0
        %2618 = vmatpush1.bf16.msra.mxu0 0
        %2619 = vmatprep.subr.bf16.mxu0 0
        %2620 = vmatpush1.bf16.msra.mxu0 0
        %2621 = vmatprep.subr.bf16.mxu0 0
        %2622 = vmatpush1.bf16.msra.mxu0 0
        %2623 = vmatprep.subr.bf16.mxu0 0
        %2624 = vmatpush1.bf16.msra.mxu0 0
        %2625 = vmatprep.subr.bf16.mxu0 0
        %2626 = vmatpush1.bf16.msra.mxu0 0
        %2627 = vmatprep.mubr.bf16.mxu0 0
        %2628 = vmatmul.mubr.bf16.gmra.mrb[0].mxu0 %v2402
        %v2629 = vpop.f32.mrb[0].mxu0
        %v2630 = vadd.f32 0.0, %v2629
        %v2631 = vpop.f32.mrb[0].mxu0
        %v2632 = vadd.f32 0.0, %v2631
        %v2633 = vpop.f32.mrb[0].mxu0
        %v2634 = vadd.f32 0.0, %v2633
        %v2635 = vpop.f32.mrb[0].mxu0
        %v2636 = vadd.f32 0.0, %v2635
        %2637 = vdwg.mxu0
        %2638 = vmatprep.subr.bf16.mxu0 %v2534
        %2639 = vmatpush1.bf16.msra.mxu0 %v2533
        %2640 = vmatprep.subr.bf16.mxu0 %v2538
        %2641 = vmatpush1.bf16.msra.mxu0 %v2537
        %2642 = vmatprep.subr.bf16.mxu0 %v2542
        %2643 = vmatpush1.bf16.msra.mxu0 %v2541
        %2644 = vmatprep.subr.bf16.mxu0 %v2546
        %2645 = vmatpush1.bf16.msra.mxu0 %v2545
        %2646 = vmatprep.subr.bf16.mxu0 %v2550
        %2647 = vmatpush1.bf16.msra.mxu0 %v2549
        %2648 = vmatprep.subr.bf16.mxu0 %v2554
        %2649 = vmatpush1.bf16.msra.mxu0 %v2553
        %2650 = vmatprep.subr.bf16.mxu0 %v2558
        %2651 = vmatpush1.bf16.msra.mxu0 %v2557
        %2652 = vmatprep.subr.bf16.mxu0 %v2562
        %2653 = vmatpush1.bf16.msra.mxu0 %v2561
        %2654 = vmatprep.subr.bf16.mxu0 0
        %2655 = vmatpush1.bf16.msra.mxu0 0
        %2656 = vmatprep.subr.bf16.mxu0 0
        %2657 = vmatpush1.bf16.msra.mxu0 0
        %2658 = vmatprep.subr.bf16.mxu0 0
        %2659 = vmatpush1.bf16.msra.mxu0 0
        %2660 = vmatprep.subr.bf16.mxu0 0
        %2661 = vmatpush1.bf16.msra.mxu0 0
        %2662 = vmatprep.subr.bf16.mxu0 0
        %2663 = vmatpush1.bf16.msra.mxu0 0
        %2664 = vmatprep.subr.bf16.mxu0 0
        %2665 = vmatpush1.bf16.msra.mxu0 0
        %2666 = vmatprep.subr.bf16.mxu0 0
        %2667 = vmatpush1.bf16.msra.mxu0 0
        %2668 = vmatprep.subr.bf16.mxu0 0
        %2669 = vmatpush1.bf16.msra.mxu0 0
        %2670 = vmatprep.mubr.bf16.mxu0 0
        %2671 = vmatmul.mubr.bf16.gmra.mrb[0].mxu0 %v2402
        %v2672 = vpop.f32.mrb[0].mxu0
        %v2673 = vadd.f32 0.0, %v2672
        %v2674 = vpop.f32.mrb[0].mxu0
        %v2675 = vadd.f32 0.0, %v2674
        %v2676 = vpop.f32.mrb[0].mxu0
        %v2677 = vadd.f32 0.0, %v2676
        %v2678 = vpop.f32.mrb[0].mxu0
        %v2679 = vadd.f32 0.0, %v2678
        %2680 = vdwg.mxu0
        %v2681 = vld [vmem:[%s700] sm:$0xff]
        %v2682 = vld [vmem:[%s700 + $0x8] sm:$0xff]
        %v2683 = vld [vmem:[%s700 + $0x10] sm:$0xff]
        %v2684 = vld [vmem:[%s700 + $0x18] sm:$0xff]
        %v2685 = vld [vmem:[%s700 + $0x20] sm:$0xff]
        %v2686 = vld [vmem:[%s700 + $0x28] sm:$0xff]
        %v2687 = vld [vmem:[%s700 + $0x30] sm:$0xff]
        %v2688 = vld [vmem:[%s700 + $0x38] sm:$0xff]
        %v2689 = vld [vmem:[%s700 + $0x40] sm:$0xff]
        %v2690 = vld [vmem:[%s700 + $0x48] sm:$0xff]
        %v2691 = vld [vmem:[%s700 + $0x50] sm:$0xff]
        %v2692 = vld [vmem:[%s700 + $0x58] sm:$0xff]
        %v2693 = vld [vmem:[%s700 + $0x60] sm:$0xff]
        %v2694 = vld [vmem:[%s700 + $0x68] sm:$0xff]
        %v2695 = vld [vmem:[%s700 + $0x70] sm:$0xff]
        %v2696 = vld [vmem:[%s700 + $0x78] sm:$0xff]
        %v2697 = vld [vmem:[%s700 + $0x80] sm:$0xff]
        %v2698 = vld [vmem:[%s700 + $0x88] sm:$0xff]
        %v2699 = vld [vmem:[%s700 + $0x90] sm:$0xff]
        %v2700 = vld [vmem:[%s700 + $0x98] sm:$0xff]
        %v2701 = vld [vmem:[%s700 + $0xa0] sm:$0xff]
        %v2702 = vld [vmem:[%s700 + $0xa8] sm:$0xff]
        %v2703 = vld [vmem:[%s700 + $0xb0] sm:$0xff]
        %v2704 = vld [vmem:[%s700 + $0xb8] sm:$0xff]
        %v2705 = vld [vmem:[%s700 + $0xc0] sm:$0xff]
        %v2706 = vld [vmem:[%s700 + $0xc8] sm:$0xff]
        %v2707 = vld [vmem:[%s700 + $0xd0] sm:$0xff]
        %v2708 = vld [vmem:[%s700 + $0xd8] sm:$0xff]
        %v2709 = vld [vmem:[%s700 + $0xe0] sm:$0xff]
        %v2710 = vld [vmem:[%s700 + $0xe8] sm:$0xff]
        %v2711 = vld [vmem:[%s700 + $0xf0] sm:$0xff]
        %v2712 = vld [vmem:[%s700 + $0xf8] sm:$0xff]
        %v2745 = vunpack.c.l.b16 %v2681
        %v2746 = vunpack.c.h.b16 %v2681
        %v2747 = vunpack.c.l.b16 %v2682
        %v2748 = vunpack.c.h.b16 %v2682
        %v2749 = vunpack.c.l.b16 %v2683
        %v2750 = vunpack.c.h.b16 %v2683
        %v2751 = vunpack.c.l.b16 %v2684
        %v2752 = vunpack.c.h.b16 %v2684
        %v2753 = vunpack.c.l.b16 %v2685
        %v2754 = vunpack.c.h.b16 %v2685
        %v2755 = vunpack.c.l.b16 %v2686
        %v2756 = vunpack.c.h.b16 %v2686
        %v2757 = vunpack.c.l.b16 %v2687
        %v2758 = vunpack.c.h.b16 %v2687
        %v2759 = vunpack.c.l.b16 %v2688
        %v2760 = vunpack.c.h.b16 %v2688
        %v2761 = vunpack.c.l.b16 %v2689
        %v2762 = vunpack.c.h.b16 %v2689
        %v2763 = vunpack.c.l.b16 %v2690
        %v2764 = vunpack.c.h.b16 %v2690
        %v2765 = vunpack.c.l.b16 %v2691
        %v2766 = vunpack.c.h.b16 %v2691
        %v2767 = vunpack.c.l.b16 %v2692
        %v2768 = vunpack.c.h.b16 %v2692
        %v2769 = vunpack.c.l.b16 %v2693
        %v2770 = vunpack.c.h.b16 %v2693
        %v2771 = vunpack.c.l.b16 %v2694
        %v2772 = vunpack.c.h.b16 %v2694
        %v2773 = vunpack.c.l.b16 %v2695
        %v2774 = vunpack.c.h.b16 %v2695
        %v2775 = vunpack.c.l.b16 %v2696
        %v2776 = vunpack.c.h.b16 %v2696
        %v2777 = vunpack.c.l.b16 %v2697
        %v2778 = vunpack.c.h.b16 %v2697
        %v2779 = vunpack.c.l.b16 %v2698
        %v2780 = vunpack.c.h.b16 %v2698
        %v2781 = vunpack.c.l.b16 %v2699
        %v2782 = vunpack.c.h.b16 %v2699
        %v2783 = vunpack.c.l.b16 %v2700
        %v2784 = vunpack.c.h.b16 %v2700
        %v2785 = vunpack.c.l.b16 %v2701
        %v2786 = vunpack.c.h.b16 %v2701
        %v2787 = vunpack.c.l.b16 %v2702
        %v2788 = vunpack.c.h.b16 %v2702
        %v2789 = vunpack.c.l.b16 %v2703
        %v2790 = vunpack.c.h.b16 %v2703
        %v2791 = vunpack.c.l.b16 %v2704
        %v2792 = vunpack.c.h.b16 %v2704
        %v2793 = vunpack.c.l.b16 %v2705
        %v2794 = vunpack.c.h.b16 %v2705
        %v2795 = vunpack.c.l.b16 %v2706
        %v2796 = vunpack.c.h.b16 %v2706
        %v2797 = vunpack.c.l.b16 %v2707
        %v2798 = vunpack.c.h.b16 %v2707
        %v2799 = vunpack.c.l.b16 %v2708
        %v2800 = vunpack.c.h.b16 %v2708
        %v2801 = vunpack.c.l.b16 %v2709
        %v2802 = vunpack.c.h.b16 %v2709
        %v2803 = vunpack.c.l.b16 %v2710
        %v2804 = vunpack.c.h.b16 %v2710
        %v2805 = vunpack.c.l.b16 %v2711
        %v2806 = vunpack.c.h.b16 %v2711
        %v2807 = vunpack.c.l.b16 %v2712
        %v2808 = vunpack.c.h.b16 %v2712
        %v2809 = vpack.c.b16 %v2749, %v2745
        %v2810 = vpack.c.b16 %v2750, %v2746
        %v2811 = vpack.c.b16 %v2751, %v2747
        %v2812 = vpack.c.b16 %v2752, %v2748
        %v2813 = vpack.c.b16 %v2757, %v2753
        %v2814 = vpack.c.b16 %v2758, %v2754
        %v2815 = vpack.c.b16 %v2759, %v2755
        %v2816 = vpack.c.b16 %v2760, %v2756
        %v2817 = vpack.c.b16 %v2765, %v2761
        %v2818 = vpack.c.b16 %v2766, %v2762
        %v2819 = vpack.c.b16 %v2767, %v2763
        %v2820 = vpack.c.b16 %v2768, %v2764
        %v2821 = vpack.c.b16 %v2773, %v2769
        %v2822 = vpack.c.b16 %v2774, %v2770
        %v2823 = vpack.c.b16 %v2775, %v2771
        %v2824 = vpack.c.b16 %v2776, %v2772
        %v2825 = vpack.c.b16 %v2781, %v2777
        %v2826 = vpack.c.b16 %v2782, %v2778
        %v2827 = vpack.c.b16 %v2783, %v2779
        %v2828 = vpack.c.b16 %v2784, %v2780
        %v2829 = vpack.c.b16 %v2789, %v2785
        %v2830 = vpack.c.b16 %v2790, %v2786
        %v2831 = vpack.c.b16 %v2791, %v2787
        %v2832 = vpack.c.b16 %v2792, %v2788
        %v2833 = vpack.c.b16 %v2797, %v2793
        %v2834 = vpack.c.b16 %v2798, %v2794
        %v2835 = vpack.c.b16 %v2799, %v2795
        %v2836 = vpack.c.b16 %v2800, %v2796
        %v2837 = vpack.c.b16 %v2805, %v2801
        %v2838 = vpack.c.b16 %v2806, %v2802
        %v2839 = vpack.c.b16 %v2807, %v2803
        %v2840 = vpack.c.b16 %v2808, %v2804
        %2873 = vmatprep.subr.bf16.mxu0 %v2810
        %2874 = vmatpush1.bf16.msra.mxu0 %v2809
        %2875 = vmatprep.subr.bf16.mxu0 %v2814
        %2876 = vmatpush1.bf16.msra.mxu0 %v2813
        %2877 = vmatprep.subr.bf16.mxu0 %v2818
        %2878 = vmatpush1.bf16.msra.mxu0 %v2817
        %2879 = vmatprep.subr.bf16.mxu0 %v2822
        %2880 = vmatpush1.bf16.msra.mxu0 %v2821
        %2881 = vmatprep.subr.bf16.mxu0 %v2826
        %2882 = vmatpush1.bf16.msra.mxu0 %v2825
        %2883 = vmatprep.subr.bf16.mxu0 %v2830
        %2884 = vmatpush1.bf16.msra.mxu0 %v2829
        %2885 = vmatprep.subr.bf16.mxu0 %v2834
        %2886 = vmatpush1.bf16.msra.mxu0 %v2833
        %2887 = vmatprep.subr.bf16.mxu0 %v2838
        %2888 = vmatpush1.bf16.msra.mxu0 %v2837
        %2889 = vmatprep.subr.bf16.mxu0 0
        %2890 = vmatpush1.bf16.msra.mxu0 0
        %2891 = vmatprep.subr.bf16.mxu0 0
        %2892 = vmatpush1.bf16.msra.mxu0 0
        %2893 = vmatprep.subr.bf16.mxu0 0
        %2894 = vmatpush1.bf16.msra.mxu0 0
        %2895 = vmatprep.subr.bf16.mxu0 0
        %2896 = vmatpush1.bf16.msra.mxu0 0
        %2897 = vmatprep.subr.bf16.mxu0 0
        %2898 = vmatpush1.bf16.msra.mxu0 0
        %2899 = vmatprep.subr.bf16.mxu0 0
        %2900 = vmatpush1.bf16.msra.mxu0 0
        %2901 = vmatprep.subr.bf16.mxu0 0
        %2902 = vmatpush1.bf16.msra.mxu0 0
        %2903 = vmatprep.subr.bf16.mxu0 0
        %2904 = vmatpush1.bf16.msra.mxu0 0
        %2905 = vmatprep.mubr.bf16.mxu0 0
        %2906 = vmatmul.mubr.bf16.gmra.mrb[0].mxu0 %v2402
        %v2907 = vpop.f32.mrb[0].mxu0
        %v2908 = vadd.f32 0.0, %v2907
        %v2909 = vpop.f32.mrb[0].mxu0
        %v2910 = vadd.f32 0.0, %v2909
        %v2911 = vpop.f32.mrb[0].mxu0
        %v2912 = vadd.f32 0.0, %v2911
        %v2913 = vpop.f32.mrb[0].mxu0
        %v2914 = vadd.f32 0.0, %v2913
        %2915 = vdwg.mxu0
        %2916 = vmatprep.subr.bf16.mxu0 %v2812
        %2917 = vmatpush1.bf16.msra.mxu0 %v2811
        %2918 = vmatprep.subr.bf16.mxu0 %v2816
        %2919 = vmatpush1.bf16.msra.mxu0 %v2815
        %2920 = vmatprep.subr.bf16.mxu0 %v2820
        %2921 = vmatpush1.bf16.msra.mxu0 %v2819
        %2922 = vmatprep.subr.bf16.mxu0 %v2824
        %2923 = vmatpush1.bf16.msra.mxu0 %v2823
        %2924 = vmatprep.subr.bf16.mxu0 %v2828
        %2925 = vmatpush1.bf16.msra.mxu0 %v2827
        %2926 = vmatprep.subr.bf16.mxu0 %v2832
        %2927 = vmatpush1.bf16.msra.mxu0 %v2831
        %2928 = vmatprep.subr.bf16.mxu0 %v2836
        %2929 = vmatpush1.bf16.msra.mxu0 %v2835
        %2930 = vmatprep.subr.bf16.mxu0 %v2840
        %2931 = vmatpush1.bf16.msra.mxu0 %v2839
        %2932 = vmatprep.subr.bf16.mxu0 0
        %2933 = vmatpush1.bf16.msra.mxu0 0
        %2934 = vmatprep.subr.bf16.mxu0 0
        %2935 = vmatpush1.bf16.msra.mxu0 0
        %2936 = vmatprep.subr.bf16.mxu0 0
        %2937 = vmatpush1.bf16.msra.mxu0 0
        %2938 = vmatprep.subr.bf16.mxu0 0
        %2939 = vmatpush1.bf16.msra.mxu0 0
        %2940 = vmatprep.subr.bf16.mxu0 0
        %2941 = vmatpush1.bf16.msra.mxu0 0
        %2942 = vmatprep.subr.bf16.mxu0 0
        %2943 = vmatpush1.bf16.msra.mxu0 0
        %2944 = vmatprep.subr.bf16.mxu0 0
        %2945 = vmatpush1.bf16.msra.mxu0 0
        %2946 = vmatprep.subr.bf16.mxu0 0
        %2947 = vmatpush1.bf16.msra.mxu0 0
        %2948 = vmatprep.mubr.bf16.mxu0 0
        %2949 = vmatmul.mubr.bf16.gmra.mrb[0].mxu0 %v2402
        %v2950 = vpop.f32.mrb[0].mxu0
        %v2951 = vadd.f32 0.0, %v2950
        %v2952 = vpop.f32.mrb[0].mxu0
        %v2953 = vadd.f32 0.0, %v2952
        %v2954 = vpop.f32.mrb[0].mxu0
        %v2955 = vadd.f32 0.0, %v2954
        %v2956 = vpop.f32.mrb[0].mxu0
        %v2957 = vadd.f32 0.0, %v2956
        %2958 = vdwg.mxu0
        %v2959 = vmax.f32 %v2630, 0.0
        %v2960 = vmax.f32 %v2632, 0.0
        %v2961 = vmax.f32 %v2673, 0.0
        %v2962 = vmax.f32 %v2675, 0.0
        %v2963 = vmax.f32 %v2634, 0.0
        %v2964 = vmax.f32 %v2636, 0.0
        %v2965 = vmax.f32 %v2677, 0.0
        %v2966 = vmax.f32 %v2679, 0.0
        %v2967 = vmul.f32 %v2959, %v2959
        %v2968 = vmul.f32 %v2960, %v2960
        %v2969 = vmul.f32 %v2961, %v2961
        %v2970 = vmul.f32 %v2962, %v2962
        %v2971 = vmul.f32 %v2963, %v2963
        %v2972 = vmul.f32 %v2964, %v2964
        %v2973 = vmul.f32 %v2965, %v2965
        %v2974 = vmul.f32 %v2966, %v2966
        %v2975 = vmul.f32 %v2967, %v2908
        %v2976 = vmul.f32 %v2968, %v2910
        %v2977 = vmul.f32 %v2969, %v2951
        %v2978 = vmul.f32 %v2970, %v2953
        %v2979 = vmul.f32 %v2971, %v2912
        %v2980 = vmul.f32 %v2972, %v2914
        %v2981 = vmul.f32 %v2973, %v2955
        %v2982 = vmul.f32 %v2974, %v2957
        %v2983 = vpack.c.bf16 %v2979, %v2975
        %v2984 = vpack.c.bf16 %v2980, %v2976
        %v2985 = vpack.c.bf16 %v2981, %v2977
        %v2986 = vpack.c.bf16 %v2982, %v2978
        %v2987 = vld [vmem:[%s709] sm:$0xf]
        %v2988 = vld [vmem:[%s709 + $0x4] sm:$0xf]
        %v2989 = vld [vmem:[%s709 + $0x8] sm:$0xf]
        %v2990 = vld [vmem:[%s709 + $0xc] sm:$0xf]
        %v2991 = vld [vmem:[%s709 + $0x10] sm:$0xf]
        %v2992 = vld [vmem:[%s709 + $0x14] sm:$0xf]
        %v2993 = vld [vmem:[%s709 + $0x18] sm:$0xf]
        %v2994 = vld [vmem:[%s709 + $0x1c] sm:$0xf]
        %v2995 = vld [vmem:[%s709 + $0x20] sm:$0xf]
        %v2996 = vld [vmem:[%s709 + $0x24] sm:$0xf]
        %v2997 = vld [vmem:[%s709 + $0x28] sm:$0xf]
        %v2998 = vld [vmem:[%s709 + $0x2c] sm:$0xf]
        %v2999 = vld [vmem:[%s709 + $0x30] sm:$0xf]
        %v3000 = vld [vmem:[%s709 + $0x34] sm:$0xf]
        %v3001 = vld [vmem:[%s709 + $0x38] sm:$0xf]
        %v3002 = vld [vmem:[%s709 + $0x3c] sm:$0xf]
        %v3003 = vld [vmem:[%s709 + $0x40] sm:$0xf]
        %v3004 = vld [vmem:[%s709 + $0x44] sm:$0xf]
        %v3005 = vld [vmem:[%s709 + $0x48] sm:$0xf]
        %v3006 = vld [vmem:[%s709 + $0x4c] sm:$0xf]
        %v3007 = vld [vmem:[%s709 + $0x50] sm:$0xf]
        %v3008 = vld [vmem:[%s709 + $0x54] sm:$0xf]
        %v3009 = vld [vmem:[%s709 + $0x58] sm:$0xf]
        %v3010 = vld [vmem:[%s709 + $0x5c] sm:$0xf]
        %v3011 = vld [vmem:[%s709 + $0x60] sm:$0xf]
        %v3012 = vld [vmem:[%s709 + $0x64] sm:$0xf]
        %v3013 = vld [vmem:[%s709 + $0x68] sm:$0xf]
        %v3014 = vld [vmem:[%s709 + $0x6c] sm:$0xf]
        %v3015 = vld [vmem:[%s709 + $0x70] sm:$0xf]
        %v3016 = vld [vmem:[%s709 + $0x74] sm:$0xf]
        %v3017 = vld [vmem:[%s709 + $0x78] sm:$0xf]
        %v3018 = vld [vmem:[%s709 + $0x7c] sm:$0xf]
        %v3019 = vld [vmem:[%s709 + $0x80] sm:$0xf]
        %v3020 = vld [vmem:[%s709 + $0x84] sm:$0xf]
        %v3021 = vld [vmem:[%s709 + $0x88] sm:$0xf]
        %v3022 = vld [vmem:[%s709 + $0x8c] sm:$0xf]
        %v3023 = vld [vmem:[%s709 + $0x90] sm:$0xf]
        %v3024 = vld [vmem:[%s709 + $0x94] sm:$0xf]
        %v3025 = vld [vmem:[%s709 + $0x98] sm:$0xf]
        %v3026 = vld [vmem:[%s709 + $0x9c] sm:$0xf]
        %v3027 = vld [vmem:[%s709 + $0xa0] sm:$0xf]
        %v3028 = vld [vmem:[%s709 + $0xa4] sm:$0xf]
        %v3029 = vld [vmem:[%s709 + $0xa8] sm:$0xf]
        %v3030 = vld [vmem:[%s709 + $0xac] sm:$0xf]
        %v3031 = vld [vmem:[%s709 + $0xb0] sm:$0xf]
        %v3032 = vld [vmem:[%s709 + $0xb4] sm:$0xf]
        %v3033 = vld [vmem:[%s709 + $0xb8] sm:$0xf]
        %v3034 = vld [vmem:[%s709 + $0xbc] sm:$0xf]
        %v3035 = vld [vmem:[%s709 + $0xc0] sm:$0xf]
        %v3036 = vld [vmem:[%s709 + $0xc4] sm:$0xf]
        %v3037 = vld [vmem:[%s709 + $0xc8] sm:$0xf]
        %v3038 = vld [vmem:[%s709 + $0xcc] sm:$0xf]
        %v3039 = vld [vmem:[%s709 + $0xd0] sm:$0xf]
        %v3040 = vld [vmem:[%s709 + $0xd4] sm:$0xf]
        %v3041 = vld [vmem:[%s709 + $0xd8] sm:$0xf]
        %v3042 = vld [vmem:[%s709 + $0xdc] sm:$0xf]
        %v3043 = vld [vmem:[%s709 + $0xe0] sm:$0xf]
        %v3044 = vld [vmem:[%s709 + $0xe4] sm:$0xf]
        %v3045 = vld [vmem:[%s709 + $0xe8] sm:$0xf]
        %v3046 = vld [vmem:[%s709 + $0xec] sm:$0xf]
        %v3047 = vld [vmem:[%s709 + $0xf0] sm:$0xf]
        %v3048 = vld [vmem:[%s709 + $0xf4] sm:$0xf]
        %v3049 = vld [vmem:[%s709 + $0xf8] sm:$0xf]
        %v3050 = vld [vmem:[%s709 + $0xfc] sm:$0xf]
        %v3115 = vunpack.c.l.b16 %v2987
        %v3116 = vunpack.c.l.b16 %v2988
        %v3117 = vunpack.c.l.b16 %v2989
        %v3118 = vunpack.c.l.b16 %v2990
        %v3119 = vunpack.c.l.b16 %v2991
        %v3120 = vunpack.c.l.b16 %v2992
        %v3121 = vunpack.c.l.b16 %v2993
        %v3122 = vunpack.c.l.b16 %v2994
        %v3123 = vunpack.c.l.b16 %v2995
        %v3124 = vunpack.c.l.b16 %v2996
        %v3125 = vunpack.c.l.b16 %v2997
        %v3126 = vunpack.c.l.b16 %v2998
        %v3127 = vunpack.c.l.b16 %v2999
        %v3128 = vunpack.c.l.b16 %v3000
        %v3129 = vunpack.c.l.b16 %v3001
        %v3130 = vunpack.c.l.b16 %v3002
        %v3131 = vunpack.c.l.b16 %v3003
        %v3132 = vunpack.c.l.b16 %v3004
        %v3133 = vunpack.c.l.b16 %v3005
        %v3134 = vunpack.c.l.b16 %v3006
        %v3135 = vunpack.c.l.b16 %v3007
        %v3136 = vunpack.c.l.b16 %v3008
        %v3137 = vunpack.c.l.b16 %v3009
        %v3138 = vunpack.c.l.b16 %v3010
        %v3139 = vunpack.c.l.b16 %v3011
        %v3140 = vunpack.c.l.b16 %v3012
        %v3141 = vunpack.c.l.b16 %v3013
        %v3142 = vunpack.c.l.b16 %v3014
        %v3143 = vunpack.c.l.b16 %v3015
        %v3144 = vunpack.c.l.b16 %v3016
        %v3145 = vunpack.c.l.b16 %v3017
        %v3146 = vunpack.c.l.b16 %v3018
        %v3147 = vunpack.c.l.b16 %v3019
        %v3148 = vunpack.c.l.b16 %v3020
        %v3149 = vunpack.c.l.b16 %v3021
        %v3150 = vunpack.c.l.b16 %v3022
        %v3151 = vunpack.c.l.b16 %v3023
        %v3152 = vunpack.c.l.b16 %v3024
        %v3153 = vunpack.c.l.b16 %v3025
        %v3154 = vunpack.c.l.b16 %v3026
        %v3155 = vunpack.c.l.b16 %v3027
        %v3156 = vunpack.c.l.b16 %v3028
        %v3157 = vunpack.c.l.b16 %v3029
        %v3158 = vunpack.c.l.b16 %v3030
        %v3159 = vunpack.c.l.b16 %v3031
        %v3160 = vunpack.c.l.b16 %v3032
        %v3161 = vunpack.c.l.b16 %v3033
        %v3162 = vunpack.c.l.b16 %v3034
        %v3163 = vunpack.c.l.b16 %v3035
        %v3164 = vunpack.c.l.b16 %v3036
        %v3165 = vunpack.c.l.b16 %v3037
        %v3166 = vunpack.c.l.b16 %v3038
        %v3167 = vunpack.c.l.b16 %v3039
        %v3168 = vunpack.c.l.b16 %v3040
        %v3169 = vunpack.c.l.b16 %v3041
        %v3170 = vunpack.c.l.b16 %v3042
        %v3171 = vunpack.c.l.b16 %v3043
        %v3172 = vunpack.c.l.b16 %v3044
        %v3173 = vunpack.c.l.b16 %v3045
        %v3174 = vunpack.c.l.b16 %v3046
        %v3175 = vunpack.c.l.b16 %v3047
        %v3176 = vunpack.c.l.b16 %v3048
        %v3177 = vunpack.c.l.b16 %v3049
        %v3178 = vunpack.c.l.b16 %v3050
        %v3179 = vpack.c.b16 %v3116, %v3115
        %v3180 = vpack.c.b16 %v3118, %v3117
        %v3181 = vpack.c.b16 %v3120, %v3119
        %v3182 = vpack.c.b16 %v3122, %v3121
        %v3183 = vpack.c.b16 %v3124, %v3123
        %v3184 = vpack.c.b16 %v3126, %v3125
        %v3185 = vpack.c.b16 %v3128, %v3127
        %v3186 = vpack.c.b16 %v3130, %v3129
        %v3187 = vpack.c.b16 %v3132, %v3131
        %v3188 = vpack.c.b16 %v3134, %v3133
        %v3189 = vpack.c.b16 %v3136, %v3135
        %v3190 = vpack.c.b16 %v3138, %v3137
        %v3191 = vpack.c.b16 %v3140, %v3139
        %v3192 = vpack.c.b16 %v3142, %v3141
        %v3193 = vpack.c.b16 %v3144, %v3143
        %v3194 = vpack.c.b16 %v3146, %v3145
        %v3195 = vpack.c.b16 %v3148, %v3147
        %v3196 = vpack.c.b16 %v3150, %v3149
        %v3197 = vpack.c.b16 %v3152, %v3151
        %v3198 = vpack.c.b16 %v3154, %v3153
        %v3199 = vpack.c.b16 %v3156, %v3155
        %v3200 = vpack.c.b16 %v3158, %v3157
        %v3201 = vpack.c.b16 %v3160, %v3159
        %v3202 = vpack.c.b16 %v3162, %v3161
        %v3203 = vpack.c.b16 %v3164, %v3163
        %v3204 = vpack.c.b16 %v3166, %v3165
        %v3205 = vpack.c.b16 %v3168, %v3167
        %v3206 = vpack.c.b16 %v3170, %v3169
        %v3207 = vpack.c.b16 %v3172, %v3171
        %v3208 = vpack.c.b16 %v3174, %v3173
        %v3209 = vpack.c.b16 %v3176, %v3175
        %v3210 = vpack.c.b16 %v3178, %v3177
        %3243 = vmatprep.subr.bf16.mxu0 0
        %3244 = vmatpush1.bf16.msra.mxu0 %v3179
        %3245 = vmatprep.subr.bf16.mxu0 0
        %3246 = vmatpush1.bf16.msra.mxu0 %v3180
        %3247 = vmatprep.subr.bf16.mxu0 0
        %3248 = vmatpush1.bf16.msra.mxu0 %v3181
        %3249 = vmatprep.subr.bf16.mxu0 0
        %3250 = vmatpush1.bf16.msra.mxu0 %v3182
        %3251 = vmatprep.subr.bf16.mxu0 0
        %3252 = vmatpush1.bf16.msra.mxu0 %v3183
        %3253 = vmatprep.subr.bf16.mxu0 0
        %3254 = vmatpush1.bf16.msra.mxu0 %v3184
        %3255 = vmatprep.subr.bf16.mxu0 0
        %3256 = vmatpush1.bf16.msra.mxu0 %v3185
        %3257 = vmatprep.subr.bf16.mxu0 0
        %3258 = vmatpush1.bf16.msra.mxu0 %v3186
        %3259 = vmatprep.subr.bf16.mxu0 0
        %3260 = vmatpush1.bf16.msra.mxu0 %v3187
        %3261 = vmatprep.subr.bf16.mxu0 0
        %3262 = vmatpush1.bf16.msra.mxu0 %v3188
        %3263 = vmatprep.subr.bf16.mxu0 0
        %3264 = vmatpush1.bf16.msra.mxu0 %v3189
        %3265 = vmatprep.subr.bf16.mxu0 0
        %3266 = vmatpush1.bf16.msra.mxu0 %v3190
        %3267 = vmatprep.subr.bf16.mxu0 0
        %3268 = vmatpush1.bf16.msra.mxu0 %v3191
        %3269 = vmatprep.subr.bf16.mxu0 0
        %3270 = vmatpush1.bf16.msra.mxu0 %v3192
        %3271 = vmatprep.subr.bf16.mxu0 0
        %3272 = vmatpush1.bf16.msra.mxu0 %v3193
        %3273 = vmatprep.subr.bf16.mxu0 0
        %3274 = vmatpush1.bf16.msra.mxu0 %v3194
        %3275 = vmatprep.mubr.bf16.mxu0 %v2984
        %3276 = vmatmul.mubr.bf16.gmra.mrb[0].mxu0 %v2983
        %v3277 = vpop.f32.mrb[0].mxu0
        %v3278 = vadd.f32 0.0, %v3277
        %v3279 = vpop.f32.mrb[0].mxu0
        %v3280 = vpop.f32.mrb[0].mxu0
        %v3281 = vadd.f32 0.0, %v3280
        %v3282 = vpop.f32.mrb[0].mxu0
        %3283 = vdwg.mxu0
        %3284 = vmatprep.subr.bf16.mxu0 0
        %3285 = vmatpush1.bf16.msra.mxu0 %v3195
        %3286 = vmatprep.subr.bf16.mxu0 0
        %3287 = vmatpush1.bf16.msra.mxu0 %v3196
        %3288 = vmatprep.subr.bf16.mxu0 0
        %3289 = vmatpush1.bf16.msra.mxu0 %v3197
        %3290 = vmatprep.subr.bf16.mxu0 0
        %3291 = vmatpush1.bf16.msra.mxu0 %v3198
        %3292 = vmatprep.subr.bf16.mxu0 0
        %3293 = vmatpush1.bf16.msra.mxu0 %v3199
        %3294 = vmatprep.subr.bf16.mxu0 0
        %3295 = vmatpush1.bf16.msra.mxu0 %v3200
        %3296 = vmatprep.subr.bf16.mxu0 0
        %3297 = vmatpush1.bf16.msra.mxu0 %v3201
        %3298 = vmatprep.subr.bf16.mxu0 0
        %3299 = vmatpush1.bf16.msra.mxu0 %v3202
        %3300 = vmatprep.subr.bf16.mxu0 0
        %3301 = vmatpush1.bf16.msra.mxu0 %v3203
        %3302 = vmatprep.subr.bf16.mxu0 0
        %3303 = vmatpush1.bf16.msra.mxu0 %v3204
        %3304 = vmatprep.subr.bf16.mxu0 0
        %3305 = vmatpush1.bf16.msra.mxu0 %v3205
        %3306 = vmatprep.subr.bf16.mxu0 0
        %3307 = vmatpush1.bf16.msra.mxu0 %v3206
        %3308 = vmatprep.subr.bf16.mxu0 0
        %3309 = vmatpush1.bf16.msra.mxu0 %v3207
        %3310 = vmatprep.subr.bf16.mxu0 0
        %3311 = vmatpush1.bf16.msra.mxu0 %v3208
        %3312 = vmatprep.subr.bf16.mxu0 0
        %3313 = vmatpush1.bf16.msra.mxu0 %v3209
        %3314 = vmatprep.subr.bf16.mxu0 0
        %3315 = vmatpush1.bf16.msra.mxu0 %v3210
        %3316 = vmatprep.mubr.bf16.mxu0 %v2986
        %3317 = vmatmul.mubr.bf16.gmra.mrb[0].mxu0 %v2985
        %v3318 = vpop.f32.mrb[0].mxu0
        %v3319 = vadd.f32 %v3278, %v3318
        %v3320 = vpop.f32.mrb[0].mxu0
        %v3321 = vpop.f32.mrb[0].mxu0
        %v3322 = vadd.f32 %v3281, %v3321
        %v3323 = vpop.f32.mrb[0].mxu0
        %3324 = vdwg.mxu0
        %vm3325 = vcmp.eq.s32.totalorder %v1278, 0
        %v3326 = vsel %vm3325, %v2399, 0.0
        %v3327 = vsel %vm3325, %v2401, 0.0
        %v3328 = vsel %vm2279, %v3326, 0.0
        %3329 = vadd.xlane.f32.xlu0 %v3328
        %v3330 = vpop.xlane.xlu0 %3329
        %v3331 = vsel %vm2279, %v3327, 0.0
        %3332 = vadd.xlane.f32.xlu0 %v3331
        %v3333 = vpop.xlane.xlu0 %3332
        %v3334 = vmul.f32 %v3330, %v3319
        %v3335 = vmul.f32 %v3333, %v3322
        %v3336 = vadd.f32 %v3334, 0.0
        %v3337 = vadd.f32 %v3335, 0.0
        %s3338 = scalar_lea.vmem %s691, 256 [#allocation12]
        %v3339 = vld [vmem:[%s3338] sm:$0xff]
        %v3340 = vld [vmem:[%s3338 + $0x8] sm:$0xff]
        %v3341 = vld [vmem:[%s3338 + $0x10] sm:$0xff]
        %v3342 = vld [vmem:[%s3338 + $0x18] sm:$0xff]
        %v3343 = vld [vmem:[%s3338 + $0x20] sm:$0xff]
        %v3344 = vld [vmem:[%s3338 + $0x28] sm:$0xff]
        %v3345 = vld [vmem:[%s3338 + $0x30] sm:$0xff]
        %v3346 = vld [vmem:[%s3338 + $0x38] sm:$0xff]
        %v3347 = vld [vmem:[%s3338 + $0x40] sm:$0xff]
        %v3348 = vld [vmem:[%s3338 + $0x48] sm:$0xff]
        %v3349 = vld [vmem:[%s3338 + $0x50] sm:$0xff]
        %v3350 = vld [vmem:[%s3338 + $0x58] sm:$0xff]
        %v3351 = vld [vmem:[%s3338 + $0x60] sm:$0xff]
        %v3352 = vld [vmem:[%s3338 + $0x68] sm:$0xff]
        %v3353 = vld [vmem:[%s3338 + $0x70] sm:$0xff]
        %v3354 = vld [vmem:[%s3338 + $0x78] sm:$0xff]
        %v3355 = vld [vmem:[%s3338 + $0x80] sm:$0xff]
        %v3356 = vld [vmem:[%s3338 + $0x88] sm:$0xff]
        %v3357 = vld [vmem:[%s3338 + $0x90] sm:$0xff]
        %v3358 = vld [vmem:[%s3338 + $0x98] sm:$0xff]
        %v3359 = vld [vmem:[%s3338 + $0xa0] sm:$0xff]
        %v3360 = vld [vmem:[%s3338 + $0xa8] sm:$0xff]
        %v3361 = vld [vmem:[%s3338 + $0xb0] sm:$0xff]
        %v3362 = vld [vmem:[%s3338 + $0xb8] sm:$0xff]
        %v3363 = vld [vmem:[%s3338 + $0xc0] sm:$0xff]
        %v3364 = vld [vmem:[%s3338 + $0xc8] sm:$0xff]
        %v3365 = vld [vmem:[%s3338 + $0xd0] sm:$0xff]
        %v3366 = vld [vmem:[%s3338 + $0xd8] sm:$0xff]
        %v3367 = vld [vmem:[%s3338 + $0xe0] sm:$0xff]
        %v3368 = vld [vmem:[%s3338 + $0xe8] sm:$0xff]
        %v3369 = vld [vmem:[%s3338 + $0xf0] sm:$0xff]
        %v3370 = vld [vmem:[%s3338 + $0xf8] sm:$0xff]
        %v3403 = vunpack.c.l.b16 %v3339
        %v3404 = vunpack.c.h.b16 %v3339
        %v3405 = vunpack.c.l.b16 %v3340
        %v3406 = vunpack.c.h.b16 %v3340
        %v3407 = vunpack.c.l.b16 %v3341
        %v3408 = vunpack.c.h.b16 %v3341
        %v3409 = vunpack.c.l.b16 %v3342
        %v3410 = vunpack.c.h.b16 %v3342
        %v3411 = vunpack.c.l.b16 %v3343
        %v3412 = vunpack.c.h.b16 %v3343
        %v3413 = vunpack.c.l.b16 %v3344
        %v3414 = vunpack.c.h.b16 %v3344
        %v3415 = vunpack.c.l.b16 %v3345
        %v3416 = vunpack.c.h.b16 %v3345
        %v3417 = vunpack.c.l.b16 %v3346
        %v3418 = vunpack.c.h.b16 %v3346
        %v3419 = vunpack.c.l.b16 %v3347
        %v3420 = vunpack.c.h.b16 %v3347
        %v3421 = vunpack.c.l.b16 %v3348
        %v3422 = vunpack.c.h.b16 %v3348
        %v3423 = vunpack.c.l.b16 %v3349
        %v3424 = vunpack.c.h.b16 %v3349
        %v3425 = vunpack.c.l.b16 %v3350
        %v3426 = vunpack.c.h.b16 %v3350
        %v3427 = vunpack.c.l.b16 %v3351
        %v3428 = vunpack.c.h.b16 %v3351
        %v3429 = vunpack.c.l.b16 %v3352
        %v3430 = vunpack.c.h.b16 %v3352
        %v3431 = vunpack.c.l.b16 %v3353
        %v3432 = vunpack.c.h.b16 %v3353
        %v3433 = vunpack.c.l.b16 %v3354
        %v3434 = vunpack.c.h.b16 %v3354
        %v3435 = vunpack.c.l.b16 %v3355
        %v3436 = vunpack.c.h.b16 %v3355
        %v3437 = vunpack.c.l.b16 %v3356
        %v3438 = vunpack.c.h.b16 %v3356
        %v3439 = vunpack.c.l.b16 %v3357
        %v3440 = vunpack.c.h.b16 %v3357
        %v3441 = vunpack.c.l.b16 %v3358
        %v3442 = vunpack.c.h.b16 %v3358
        %v3443 = vunpack.c.l.b16 %v3359
        %v3444 = vunpack.c.h.b16 %v3359
        %v3445 = vunpack.c.l.b16 %v3360
        %v3446 = vunpack.c.h.b16 %v3360
        %v3447 = vunpack.c.l.b16 %v3361
        %v3448 = vunpack.c.h.b16 %v3361
        %v3449 = vunpack.c.l.b16 %v3362
        %v3450 = vunpack.c.h.b16 %v3362
        %v3451 = vunpack.c.l.b16 %v3363
        %v3452 = vunpack.c.h.b16 %v3363
        %v3453 = vunpack.c.l.b16 %v3364
        %v3454 = vunpack.c.h.b16 %v3364
        %v3455 = vunpack.c.l.b16 %v3365
        %v3456 = vunpack.c.h.b16 %v3365
        %v3457 = vunpack.c.l.b16 %v3366
        %v3458 = vunpack.c.h.b16 %v3366
        %v3459 = vunpack.c.l.b16 %v3367
        %v3460 = vunpack.c.h.b16 %v3367
        %v3461 = vunpack.c.l.b16 %v3368
        %v3462 = vunpack.c.h.b16 %v3368
        %v3463 = vunpack.c.l.b16 %v3369
        %v3464 = vunpack.c.h.b16 %v3369
        %v3465 = vunpack.c.l.b16 %v3370
        %v3466 = vunpack.c.h.b16 %v3370
        %v3467 = vpack.c.b16 %v3407, %v3403
        %v3468 = vpack.c.b16 %v3408, %v3404
        %v3469 = vpack.c.b16 %v3409, %v3405
        %v3470 = vpack.c.b16 %v3410, %v3406
        %v3471 = vpack.c.b16 %v3415, %v3411
        %v3472 = vpack.c.b16 %v3416, %v3412
        %v3473 = vpack.c.b16 %v3417, %v3413
        %v3474 = vpack.c.b16 %v3418, %v3414
        %v3475 = vpack.c.b16 %v3423, %v3419
        %v3476 = vpack.c.b16 %v3424, %v3420
        %v3477 = vpack.c.b16 %v3425, %v3421
        %v3478 = vpack.c.b16 %v3426, %v3422
        %v3479 = vpack.c.b16 %v3431, %v3427
        %v3480 = vpack.c.b16 %v3432, %v3428
        %v3481 = vpack.c.b16 %v3433, %v3429
        %v3482 = vpack.c.b16 %v3434, %v3430
        %v3483 = vpack.c.b16 %v3439, %v3435
        %v3484 = vpack.c.b16 %v3440, %v3436
        %v3485 = vpack.c.b16 %v3441, %v3437
        %v3486 = vpack.c.b16 %v3442, %v3438
        %v3487 = vpack.c.b16 %v3447, %v3443
        %v3488 = vpack.c.b16 %v3448, %v3444
        %v3489 = vpack.c.b16 %v3449, %v3445
        %v3490 = vpack.c.b16 %v3450, %v3446
        %v3491 = vpack.c.b16 %v3455, %v3451
        %v3492 = vpack.c.b16 %v3456, %v3452
        %v3493 = vpack.c.b16 %v3457, %v3453
        %v3494 = vpack.c.b16 %v3458, %v3454
        %v3495 = vpack.c.b16 %v3463, %v3459
        %v3496 = vpack.c.b16 %v3464, %v3460
        %v3497 = vpack.c.b16 %v3465, %v3461
        %v3498 = vpack.c.b16 %v3466, %v3462
        %3531 = vmatprep.subr.bf16.mxu0 %v3468
        %3532 = vmatpush1.bf16.msra.mxu0 %v3467
        %3533 = vmatprep.subr.bf16.mxu0 %v3472
        %3534 = vmatpush1.bf16.msra.mxu0 %v3471
        %3535 = vmatprep.subr.bf16.mxu0 %v3476
        %3536 = vmatpush1.bf16.msra.mxu0 %v3475
        %3537 = vmatprep.subr.bf16.mxu0 %v3480
        %3538 = vmatpush1.bf16.msra.mxu0 %v3479
        %3539 = vmatprep.subr.bf16.mxu0 %v3484
        %3540 = vmatpush1.bf16.msra.mxu0 %v3483
        %3541 = vmatprep.subr.bf16.mxu0 %v3488
        %3542 = vmatpush1.bf16.msra.mxu0 %v3487
        %3543 = vmatprep.subr.bf16.mxu0 %v3492
        %3544 = vmatpush1.bf16.msra.mxu0 %v3491
        %3545 = vmatprep.subr.bf16.mxu0 %v3496
        %3546 = vmatpush1.bf16.msra.mxu0 %v3495
        %3547 = vmatprep.subr.bf16.mxu0 0
        %3548 = vmatpush1.bf16.msra.mxu0 0
        %3549 = vmatprep.subr.bf16.mxu0 0
        %3550 = vmatpush1.bf16.msra.mxu0 0
        %3551 = vmatprep.subr.bf16.mxu0 0
        %3552 = vmatpush1.bf16.msra.mxu0 0
        %3553 = vmatprep.subr.bf16.mxu0 0
        %3554 = vmatpush1.bf16.msra.mxu0 0
        %3555 = vmatprep.subr.bf16.mxu0 0
        %3556 = vmatpush1.bf16.msra.mxu0 0
        %3557 = vmatprep.subr.bf16.mxu0 0
        %3558 = vmatpush1.bf16.msra.mxu0 0
        %3559 = vmatprep.subr.bf16.mxu0 0
        %3560 = vmatpush1.bf16.msra.mxu0 0
        %3561 = vmatprep.subr.bf16.mxu0 0
        %3562 = vmatpush1.bf16.msra.mxu0 0
        %3563 = vmatprep.mubr.bf16.mxu0 0
        %3564 = vmatmul.mubr.bf16.gmra.mrb[0].mxu0 %v2402
        %v3565 = vpop.f32.mrb[0].mxu0
        %v3566 = vadd.f32 0.0, %v3565
        %v3567 = vpop.f32.mrb[0].mxu0
        %v3568 = vadd.f32 0.0, %v3567
        %v3569 = vpop.f32.mrb[0].mxu0
        %v3570 = vadd.f32 0.0, %v3569
        %v3571 = vpop.f32.mrb[0].mxu0
        %v3572 = vadd.f32 0.0, %v3571
        %3573 = vdwg.mxu0
        %3574 = vmatprep.subr.bf16.mxu0 %v3470
        %3575 = vmatpush1.bf16.msra.mxu0 %v3469
        %3576 = vmatprep.subr.bf16.mxu0 %v3474
        %3577 = vmatpush1.bf16.msra.mxu0 %v3473
        %3578 = vmatprep.subr.bf16.mxu0 %v3478
        %3579 = vmatpush1.bf16.msra.mxu0 %v3477
        %3580 = vmatprep.subr.bf16.mxu0 %v3482
        %3581 = vmatpush1.bf16.msra.mxu0 %v3481
        %3582 = vmatprep.subr.bf16.mxu0 %v3486
        %3583 = vmatpush1.bf16.msra.mxu0 %v3485
        %3584 = vmatprep.subr.bf16.mxu0 %v3490
        %3585 = vmatpush1.bf16.msra.mxu0 %v3489
        %3586 = vmatprep.subr.bf16.mxu0 %v3494
        %3587 = vmatpush1.bf16.msra.mxu0 %v3493
        %3588 = vmatprep.subr.bf16.mxu0 %v3498
        %3589 = vmatpush1.bf16.msra.mxu0 %v3497
        %3590 = vmatprep.subr.bf16.mxu0 0
        %3591 = vmatpush1.bf16.msra.mxu0 0
        %3592 = vmatprep.subr.bf16.mxu0 0
        %3593 = vmatpush1.bf16.msra.mxu0 0
        %3594 = vmatprep.subr.bf16.mxu0 0
        %3595 = vmatpush1.bf16.msra.mxu0 0
        %3596 = vmatprep.subr.bf16.mxu0 0
        %3597 = vmatpush1.bf16.msra.mxu0 0
        %3598 = vmatprep.subr.bf16.mxu0 0
        %3599 = vmatpush1.bf16.msra.mxu0 0
        %3600 = vmatprep.subr.bf16.mxu0 0
        %3601 = vmatpush1.bf16.msra.mxu0 0
        %3602 = vmatprep.subr.bf16.mxu0 0
        %3603 = vmatpush1.bf16.msra.mxu0 0
        %3604 = vmatprep.subr.bf16.mxu0 0
        %3605 = vmatpush1.bf16.msra.mxu0 0
        %3606 = vmatprep.mubr.bf16.mxu0 0
        %3607 = vmatmul.mubr.bf16.gmra.mrb[0].mxu0 %v2402
        %v3608 = vpop.f32.mrb[0].mxu0
        %v3609 = vadd.f32 0.0, %v3608
        %v3610 = vpop.f32.mrb[0].mxu0
        %v3611 = vadd.f32 0.0, %v3610
        %v3612 = vpop.f32.mrb[0].mxu0
        %v3613 = vadd.f32 0.0, %v3612
        %v3614 = vpop.f32.mrb[0].mxu0
        %v3615 = vadd.f32 0.0, %v3614
        %3616 = vdwg.mxu0
        %s3617 = scalar_lea.vmem %s700, 256 [#allocation14]
        %v3618 = vld [vmem:[%s3617] sm:$0xff]
        %v3619 = vld [vmem:[%s3617 + $0x8] sm:$0xff]
        %v3620 = vld [vmem:[%s3617 + $0x10] sm:$0xff]
        %v3621 = vld [vmem:[%s3617 + $0x18] sm:$0xff]
        %v3622 = vld [vmem:[%s3617 + $0x20] sm:$0xff]
        %v3623 = vld [vmem:[%s3617 + $0x28] sm:$0xff]
        %v3624 = vld [vmem:[%s3617 + $0x30] sm:$0xff]
        %v3625 = vld [vmem:[%s3617 + $0x38] sm:$0xff]
        %v3626 = vld [vmem:[%s3617 + $0x40] sm:$0xff]
        %v3627 = vld [vmem:[%s3617 + $0x48] sm:$0xff]
        %v3628 = vld [vmem:[%s3617 + $0x50] sm:$0xff]
        %v3629 = vld [vmem:[%s3617 + $0x58] sm:$0xff]
        %v3630 = vld [vmem:[%s3617 + $0x60] sm:$0xff]
        %v3631 = vld [vmem:[%s3617 + $0x68] sm:$0xff]
        %v3632 = vld [vmem:[%s3617 + $0x70] sm:$0xff]
        %v3633 = vld [vmem:[%s3617 + $0x78] sm:$0xff]
        %v3634 = vld [vmem:[%s3617 + $0x80] sm:$0xff]
        %v3635 = vld [vmem:[%s3617 + $0x88] sm:$0xff]
        %v3636 = vld [vmem:[%s3617 + $0x90] sm:$0xff]
        %v3637 = vld [vmem:[%s3617 + $0x98] sm:$0xff]
        %v3638 = vld [vmem:[%s3617 + $0xa0] sm:$0xff]
        %v3639 = vld [vmem:[%s3617 + $0xa8] sm:$0xff]
        %v3640 = vld [vmem:[%s3617 + $0xb0] sm:$0xff]
        %v3641 = vld [vmem:[%s3617 + $0xb8] sm:$0xff]
        %v3642 = vld [vmem:[%s3617 + $0xc0] sm:$0xff]
        %v3643 = vld [vmem:[%s3617 + $0xc8] sm:$0xff]
        %v3644 = vld [vmem:[%s3617 + $0xd0] sm:$0xff]
        %v3645 = vld [vmem:[%s3617 + $0xd8] sm:$0xff]
        %v3646 = vld [vmem:[%s3617 + $0xe0] sm:$0xff]
        %v3647 = vld [vmem:[%s3617 + $0xe8] sm:$0xff]
        %v3648 = vld [vmem:[%s3617 + $0xf0] sm:$0xff]
        %v3649 = vld [vmem:[%s3617 + $0xf8] sm:$0xff]
        %v3682 = vunpack.c.l.b16 %v3618
        %v3683 = vunpack.c.h.b16 %v3618
        %v3684 = vunpack.c.l.b16 %v3619
        %v3685 = vunpack.c.h.b16 %v3619
        %v3686 = vunpack.c.l.b16 %v3620
        %v3687 = vunpack.c.h.b16 %v3620
        %v3688 = vunpack.c.l.b16 %v3621
        %v3689 = vunpack.c.h.b16 %v3621
        %v3690 = vunpack.c.l.b16 %v3622
        %v3691 = vunpack.c.h.b16 %v3622
        %v3692 = vunpack.c.l.b16 %v3623
        %v3693 = vunpack.c.h.b16 %v3623
        %v3694 = vunpack.c.l.b16 %v3624
        %v3695 = vunpack.c.h.b16 %v3624
        %v3696 = vunpack.c.l.b16 %v3625
        %v3697 = vunpack.c.h.b16 %v3625
        %v3698 = vunpack.c.l.b16 %v3626
        %v3699 = vunpack.c.h.b16 %v3626
        %v3700 = vunpack.c.l.b16 %v3627
        %v3701 = vunpack.c.h.b16 %v3627
        %v3702 = vunpack.c.l.b16 %v3628
        %v3703 = vunpack.c.h.b16 %v3628
        %v3704 = vunpack.c.l.b16 %v3629
        %v3705 = vunpack.c.h.b16 %v3629
        %v3706 = vunpack.c.l.b16 %v3630
        %v3707 = vunpack.c.h.b16 %v3630
        %v3708 = vunpack.c.l.b16 %v3631
        %v3709 = vunpack.c.h.b16 %v3631
        %v3710 = vunpack.c.l.b16 %v3632
        %v3711 = vunpack.c.h.b16 %v3632
        %v3712 = vunpack.c.l.b16 %v3633
        %v3713 = vunpack.c.h.b16 %v3633
        %v3714 = vunpack.c.l.b16 %v3634
        %v3715 = vunpack.c.h.b16 %v3634
        %v3716 = vunpack.c.l.b16 %v3635
        %v3717 = vunpack.c.h.b16 %v3635
        %v3718 = vunpack.c.l.b16 %v3636
        %v3719 = vunpack.c.h.b16 %v3636
        %v3720 = vunpack.c.l.b16 %v3637
        %v3721 = vunpack.c.h.b16 %v3637
        %v3722 = vunpack.c.l.b16 %v3638
        %v3723 = vunpack.c.h.b16 %v3638
        %v3724 = vunpack.c.l.b16 %v3639
        %v3725 = vunpack.c.h.b16 %v3639
        %v3726 = vunpack.c.l.b16 %v3640
        %v3727 = vunpack.c.h.b16 %v3640
        %v3728 = vunpack.c.l.b16 %v3641
        %v3729 = vunpack.c.h.b16 %v3641
        %v3730 = vunpack.c.l.b16 %v3642
        %v3731 = vunpack.c.h.b16 %v3642
        %v3732 = vunpack.c.l.b16 %v3643
        %v3733 = vunpack.c.h.b16 %v3643
        %v3734 = vunpack.c.l.b16 %v3644
        %v3735 = vunpack.c.h.b16 %v3644
        %v3736 = vunpack.c.l.b16 %v3645
        %v3737 = vunpack.c.h.b16 %v3645
        %v3738 = vunpack.c.l.b16 %v3646
        %v3739 = vunpack.c.h.b16 %v3646
        %v3740 = vunpack.c.l.b16 %v3647
        %v3741 = vunpack.c.h.b16 %v3647
        %v3742 = vunpack.c.l.b16 %v3648
        %v3743 = vunpack.c.h.b16 %v3648
        %v3744 = vunpack.c.l.b16 %v3649
        %v3745 = vunpack.c.h.b16 %v3649
        %v3746 = vpack.c.b16 %v3686, %v3682
        %v3747 = vpack.c.b16 %v3687, %v3683
        %v3748 = vpack.c.b16 %v3688, %v3684
        %v3749 = vpack.c.b16 %v3689, %v3685
        %v3750 = vpack.c.b16 %v3694, %v3690
        %v3751 = vpack.c.b16 %v3695, %v3691
        %v3752 = vpack.c.b16 %v3696, %v3692
        %v3753 = vpack.c.b16 %v3697, %v3693
        %v3754 = vpack.c.b16 %v3702, %v3698
        %v3755 = vpack.c.b16 %v3703, %v3699
        %v3756 = vpack.c.b16 %v3704, %v3700
        %v3757 = vpack.c.b16 %v3705, %v3701
        %v3758 = vpack.c.b16 %v3710, %v3706
        %v3759 = vpack.c.b16 %v3711, %v3707
        %v3760 = vpack.c.b16 %v3712, %v3708
        %v3761 = vpack.c.b16 %v3713, %v3709
        %v3762 = vpack.c.b16 %v3718, %v3714
        %v3763 = vpack.c.b16 %v3719, %v3715
        %v3764 = vpack.c.b16 %v3720, %v3716
        %v3765 = vpack.c.b16 %v3721, %v3717
        %v3766 = vpack.c.b16 %v3726, %v3722
        %v3767 = vpack.c.b16 %v3727, %v3723
        %v3768 = vpack.c.b16 %v3728, %v3724
        %v3769 = vpack.c.b16 %v3729, %v3725
        %v3770 = vpack.c.b16 %v3734, %v3730
        %v3771 = vpack.c.b16 %v3735, %v3731
        %v3772 = vpack.c.b16 %v3736, %v3732
        %v3773 = vpack.c.b16 %v3737, %v3733
        %v3774 = vpack.c.b16 %v3742, %v3738
        %v3775 = vpack.c.b16 %v3743, %v3739
        %v3776 = vpack.c.b16 %v3744, %v3740
        %v3777 = vpack.c.b16 %v3745, %v3741
        %3810 = vmatprep.subr.bf16.mxu0 %v3747
        %3811 = vmatpush1.bf16.msra.mxu0 %v3746
        %3812 = vmatprep.subr.bf16.mxu0 %v3751
        %3813 = vmatpush1.bf16.msra.mxu0 %v3750
        %3814 = vmatprep.subr.bf16.mxu0 %v3755
        %3815 = vmatpush1.bf16.msra.mxu0 %v3754
        %3816 = vmatprep.subr.bf16.mxu0 %v3759
        %3817 = vmatpush1.bf16.msra.mxu0 %v3758
        %3818 = vmatprep.subr.bf16.mxu0 %v3763
        %3819 = vmatpush1.bf16.msra.mxu0 %v3762
        %3820 = vmatprep.subr.bf16.mxu0 %v3767
        %3821 = vmatpush1.bf16.msra.mxu0 %v3766
        %3822 = vmatprep.subr.bf16.mxu0 %v3771
        %3823 = vmatpush1.bf16.msra.mxu0 %v3770
        %3824 = vmatprep.subr.bf16.mxu0 %v3775
        %3825 = vmatpush1.bf16.msra.mxu0 %v3774
        %3826 = vmatprep.subr.bf16.mxu0 0
        %3827 = vmatpush1.bf16.msra.mxu0 0
        %3828 = vmatprep.subr.bf16.mxu0 0
        %3829 = vmatpush1.bf16.msra.mxu0 0
        %3830 = vmatprep.subr.bf16.mxu0 0
        %3831 = vmatpush1.bf16.msra.mxu0 0
        %3832 = vmatprep.subr.bf16.mxu0 0
        %3833 = vmatpush1.bf16.msra.mxu0 0
        %3834 = vmatprep.subr.bf16.mxu0 0
        %3835 = vmatpush1.bf16.msra.mxu0 0
        %3836 = vmatprep.subr.bf16.mxu0 0
        %3837 = vmatpush1.bf16.msra.mxu0 0
        %3838 = vmatprep.subr.bf16.mxu0 0
        %3839 = vmatpush1.bf16.msra.mxu0 0
        %3840 = vmatprep.subr.bf16.mxu0 0
        %3841 = vmatpush1.bf16.msra.mxu0 0
        %3842 = vmatprep.mubr.bf16.mxu0 0
        %3843 = vmatmul.mubr.bf16.gmra.mrb[0].mxu0 %v2402
        %v3844 = vpop.f32.mrb[0].mxu0
        %v3845 = vadd.f32 0.0, %v3844
        %v3846 = vpop.f32.mrb[0].mxu0
        %v3847 = vadd.f32 0.0, %v3846
        %v3848 = vpop.f32.mrb[0].mxu0
        %v3849 = vadd.f32 0.0, %v3848
        %v3850 = vpop.f32.mrb[0].mxu0
        %v3851 = vadd.f32 0.0, %v3850
        %3852 = vdwg.mxu0
        %3853 = vmatprep.subr.bf16.mxu0 %v3749
        %3854 = vmatpush1.bf16.msra.mxu0 %v3748
        %3855 = vmatprep.subr.bf16.mxu0 %v3753
        %3856 = vmatpush1.bf16.msra.mxu0 %v3752
        %3857 = vmatprep.subr.bf16.mxu0 %v3757
        %3858 = vmatpush1.bf16.msra.mxu0 %v3756
        %3859 = vmatprep.subr.bf16.mxu0 %v3761
        %3860 = vmatpush1.bf16.msra.mxu0 %v3760
        %3861 = vmatprep.subr.bf16.mxu0 %v3765
        %3862 = vmatpush1.bf16.msra.mxu0 %v3764
        %3863 = vmatprep.subr.bf16.mxu0 %v3769
        %3864 = vmatpush1.bf16.msra.mxu0 %v3768
        %3865 = vmatprep.subr.bf16.mxu0 %v3773
        %3866 = vmatpush1.bf16.msra.mxu0 %v3772
        %3867 = vmatprep.subr.bf16.mxu0 %v3777
        %3868 = vmatpush1.bf16.msra.mxu0 %v3776
        %3869 = vmatprep.subr.bf16.mxu0 0
        %3870 = vmatpush1.bf16.msra.mxu0 0
        %3871 = vmatprep.subr.bf16.mxu0 0
        %3872 = vmatpush1.bf16.msra.mxu0 0
        %3873 = vmatprep.subr.bf16.mxu0 0
        %3874 = vmatpush1.bf16.msra.mxu0 0
        %3875 = vmatprep.subr.bf16.mxu0 0
        %3876 = vmatpush1.bf16.msra.mxu0 0
        %3877 = vmatprep.subr.bf16.mxu0 0
        %3878 = vmatpush1.bf16.msra.mxu0 0
        %3879 = vmatprep.subr.bf16.mxu0 0
        %3880 = vmatpush1.bf16.msra.mxu0 0
        %3881 = vmatprep.subr.bf16.mxu0 0
        %3882 = vmatpush1.bf16.msra.mxu0 0
        %3883 = vmatprep.subr.bf16.mxu0 0
        %3884 = vmatpush1.bf16.msra.mxu0 0
        %3885 = vmatprep.mubr.bf16.mxu0 0
        %3886 = vmatmul.mubr.bf16.gmra.mrb[0].mxu0 %v2402
        %v3887 = vpop.f32.mrb[0].mxu0
        %v3888 = vadd.f32 0.0, %v3887
        %v3889 = vpop.f32.mrb[0].mxu0
        %v3890 = vadd.f32 0.0, %v3889
        %v3891 = vpop.f32.mrb[0].mxu0
        %v3892 = vadd.f32 0.0, %v3891
        %v3893 = vpop.f32.mrb[0].mxu0
        %v3894 = vadd.f32 0.0, %v3893
        %3895 = vdwg.mxu0
        %v3896 = vmax.f32 %v3566, 0.0
        %v3897 = vmax.f32 %v3568, 0.0
        %v3898 = vmax.f32 %v3609, 0.0
        %v3899 = vmax.f32 %v3611, 0.0
        %v3900 = vmax.f32 %v3570, 0.0
        %v3901 = vmax.f32 %v3572, 0.0
        %v3902 = vmax.f32 %v3613, 0.0
        %v3903 = vmax.f32 %v3615, 0.0
        %v3904 = vmul.f32 %v3896, %v3896
        %v3905 = vmul.f32 %v3897, %v3897
        %v3906 = vmul.f32 %v3898, %v3898
        %v3907 = vmul.f32 %v3899, %v3899
        %v3908 = vmul.f32 %v3900, %v3900
        %v3909 = vmul.f32 %v3901, %v3901
        %v3910 = vmul.f32 %v3902, %v3902
        %v3911 = vmul.f32 %v3903, %v3903
        %v3912 = vmul.f32 %v3904, %v3845
        %v3913 = vmul.f32 %v3905, %v3847
        %v3914 = vmul.f32 %v3906, %v3888
        %v3915 = vmul.f32 %v3907, %v3890
        %v3916 = vmul.f32 %v3908, %v3849
        %v3917 = vmul.f32 %v3909, %v3851
        %v3918 = vmul.f32 %v3910, %v3892
        %v3919 = vmul.f32 %v3911, %v3894
        %v3920 = vpack.c.bf16 %v3916, %v3912
        %v3921 = vpack.c.bf16 %v3917, %v3913
        %v3922 = vpack.c.bf16 %v3918, %v3914
        %v3923 = vpack.c.bf16 %v3919, %v3915
        %s3924 = scalar_lea.vmem %s709, 256 [#allocation15]
        %v3925 = vld [vmem:[%s3924] sm:$0xf]
        %v3926 = vld [vmem:[%s3924 + $0x4] sm:$0xf]
        %v3927 = vld [vmem:[%s3924 + $0x8] sm:$0xf]
        %v3928 = vld [vmem:[%s3924 + $0xc] sm:$0xf]
        %v3929 = vld [vmem:[%s3924 + $0x10] sm:$0xf]
        %v3930 = vld [vmem:[%s3924 + $0x14] sm:$0xf]
        %v3931 = vld [vmem:[%s3924 + $0x18] sm:$0xf]
        %v3932 = vld [vmem:[%s3924 + $0x1c] sm:$0xf]
        %v3933 = vld [vmem:[%s3924 + $0x20] sm:$0xf]
        %v3934 = vld [vmem:[%s3924 + $0x24] sm:$0xf]
        %v3935 = vld [vmem:[%s3924 + $0x28] sm:$0xf]
        %v3936 = vld [vmem:[%s3924 + $0x2c] sm:$0xf]
        %v3937 = vld [vmem:[%s3924 + $0x30] sm:$0xf]
        %v3938 = vld [vmem:[%s3924 + $0x34] sm:$0xf]
        %v3939 = vld [vmem:[%s3924 + $0x38] sm:$0xf]
        %v3940 = vld [vmem:[%s3924 + $0x3c] sm:$0xf]
        %v3941 = vld [vmem:[%s3924 + $0x40] sm:$0xf]
        %v3942 = vld [vmem:[%s3924 + $0x44] sm:$0xf]
        %v3943 = vld [vmem:[%s3924 + $0x48] sm:$0xf]
        %v3944 = vld [vmem:[%s3924 + $0x4c] sm:$0xf]
        %v3945 = vld [vmem:[%s3924 + $0x50] sm:$0xf]
        %v3946 = vld [vmem:[%s3924 + $0x54] sm:$0xf]
        %v3947 = vld [vmem:[%s3924 + $0x58] sm:$0xf]
        %v3948 = vld [vmem:[%s3924 + $0x5c] sm:$0xf]
        %v3949 = vld [vmem:[%s3924 + $0x60] sm:$0xf]
        %v3950 = vld [vmem:[%s3924 + $0x64] sm:$0xf]
        %v3951 = vld [vmem:[%s3924 + $0x68] sm:$0xf]
        %v3952 = vld [vmem:[%s3924 + $0x6c] sm:$0xf]
        %v3953 = vld [vmem:[%s3924 + $0x70] sm:$0xf]
        %v3954 = vld [vmem:[%s3924 + $0x74] sm:$0xf]
        %v3955 = vld [vmem:[%s3924 + $0x78] sm:$0xf]
        %v3956 = vld [vmem:[%s3924 + $0x7c] sm:$0xf]
        %v3957 = vld [vmem:[%s3924 + $0x80] sm:$0xf]
        %v3958 = vld [vmem:[%s3924 + $0x84] sm:$0xf]
        %v3959 = vld [vmem:[%s3924 + $0x88] sm:$0xf]
        %v3960 = vld [vmem:[%s3924 + $0x8c] sm:$0xf]
        %v3961 = vld [vmem:[%s3924 + $0x90] sm:$0xf]
        %v3962 = vld [vmem:[%s3924 + $0x94] sm:$0xf]
        %v3963 = vld [vmem:[%s3924 + $0x98] sm:$0xf]
        %v3964 = vld [vmem:[%s3924 + $0x9c] sm:$0xf]
        %v3965 = vld [vmem:[%s3924 + $0xa0] sm:$0xf]
        %v3966 = vld [vmem:[%s3924 + $0xa4] sm:$0xf]
        %v3967 = vld [vmem:[%s3924 + $0xa8] sm:$0xf]
        %v3968 = vld [vmem:[%s3924 + $0xac] sm:$0xf]
        %v3969 = vld [vmem:[%s3924 + $0xb0] sm:$0xf]
        %v3970 = vld [vmem:[%s3924 + $0xb4] sm:$0xf]
        %v3971 = vld [vmem:[%s3924 + $0xb8] sm:$0xf]
        %v3972 = vld [vmem:[%s3924 + $0xbc] sm:$0xf]
        %v3973 = vld [vmem:[%s3924 + $0xc0] sm:$0xf]
        %v3974 = vld [vmem:[%s3924 + $0xc4] sm:$0xf]
        %v3975 = vld [vmem:[%s3924 + $0xc8] sm:$0xf]
        %v3976 = vld [vmem:[%s3924 + $0xcc] sm:$0xf]
        %v3977 = vld [vmem:[%s3924 + $0xd0] sm:$0xf]
        %v3978 = vld [vmem:[%s3924 + $0xd4] sm:$0xf]
        %v3979 = vld [vmem:[%s3924 + $0xd8] sm:$0xf]
        %v3980 = vld [vmem:[%s3924 + $0xdc] sm:$0xf]
        %v3981 = vld [vmem:[%s3924 + $0xe0] sm:$0xf]
        %v3982 = vld [vmem:[%s3924 + $0xe4] sm:$0xf]
        %v3983 = vld [vmem:[%s3924 + $0xe8] sm:$0xf]
        %v3984 = vld [vmem:[%s3924 + $0xec] sm:$0xf]
        %v3985 = vld [vmem:[%s3924 + $0xf0] sm:$0xf]
        %v3986 = vld [vmem:[%s3924 + $0xf4] sm:$0xf]
        %v3987 = vld [vmem:[%s3924 + $0xf8] sm:$0xf]
        %v3988 = vld [vmem:[%s3924 + $0xfc] sm:$0xf]
        %v4053 = vunpack.c.l.b16 %v3925
        %v4054 = vunpack.c.l.b16 %v3926
        %v4055 = vunpack.c.l.b16 %v3927
        %v4056 = vunpack.c.l.b16 %v3928
        %v4057 = vunpack.c.l.b16 %v3929
        %v4058 = vunpack.c.l.b16 %v3930
        %v4059 = vunpack.c.l.b16 %v3931
        %v4060 = vunpack.c.l.b16 %v3932
        %v4061 = vunpack.c.l.b16 %v3933
        %v4062 = vunpack.c.l.b16 %v3934
        %v4063 = vunpack.c.l.b16 %v3935
        %v4064 = vunpack.c.l.b16 %v3936
        %v4065 = vunpack.c.l.b16 %v3937
        %v4066 = vunpack.c.l.b16 %v3938
        %v4067 = vunpack.c.l.b16 %v3939
        %v4068 = vunpack.c.l.b16 %v3940
        %v4069 = vunpack.c.l.b16 %v3941
        %v4070 = vunpack.c.l.b16 %v3942
        %v4071 = vunpack.c.l.b16 %v3943
        %v4072 = vunpack.c.l.b16 %v3944
        %v4073 = vunpack.c.l.b16 %v3945
        %v4074 = vunpack.c.l.b16 %v3946
        %v4075 = vunpack.c.l.b16 %v3947
        %v4076 = vunpack.c.l.b16 %v3948
        %v4077 = vunpack.c.l.b16 %v3949
        %v4078 = vunpack.c.l.b16 %v3950
        %v4079 = vunpack.c.l.b16 %v3951
        %v4080 = vunpack.c.l.b16 %v3952
        %v4081 = vunpack.c.l.b16 %v3953
        %v4082 = vunpack.c.l.b16 %v3954
        %v4083 = vunpack.c.l.b16 %v3955
        %v4084 = vunpack.c.l.b16 %v3956
        %v4085 = vunpack.c.l.b16 %v3957
        %v4086 = vunpack.c.l.b16 %v3958
        %v4087 = vunpack.c.l.b16 %v3959
        %v4088 = vunpack.c.l.b16 %v3960
        %v4089 = vunpack.c.l.b16 %v3961
        %v4090 = vunpack.c.l.b16 %v3962
        %v4091 = vunpack.c.l.b16 %v3963
        %v4092 = vunpack.c.l.b16 %v3964
        %v4093 = vunpack.c.l.b16 %v3965
        %v4094 = vunpack.c.l.b16 %v3966
        %v4095 = vunpack.c.l.b16 %v3967
        %v4096 = vunpack.c.l.b16 %v3968
        %v4097 = vunpack.c.l.b16 %v3969
        %v4098 = vunpack.c.l.b16 %v3970
        %v4099 = vunpack.c.l.b16 %v3971
        %v4100 = vunpack.c.l.b16 %v3972
        %v4101 = vunpack.c.l.b16 %v3973
        %v4102 = vunpack.c.l.b16 %v3974
        %v4103 = vunpack.c.l.b16 %v3975
        %v4104 = vunpack.c.l.b16 %v3976
        %v4105 = vunpack.c.l.b16 %v3977
        %v4106 = vunpack.c.l.b16 %v3978
        %v4107 = vunpack.c.l.b16 %v3979
        %v4108 = vunpack.c.l.b16 %v3980
        %v4109 = vunpack.c.l.b16 %v3981
        %v4110 = vunpack.c.l.b16 %v3982
        %v4111 = vunpack.c.l.b16 %v3983
        %v4112 = vunpack.c.l.b16 %v3984
        %v4113 = vunpack.c.l.b16 %v3985
        %v4114 = vunpack.c.l.b16 %v3986
        %v4115 = vunpack.c.l.b16 %v3987
        %v4116 = vunpack.c.l.b16 %v3988
        %v4117 = vpack.c.b16 %v4054, %v4053
        %v4118 = vpack.c.b16 %v4056, %v4055
        %v4119 = vpack.c.b16 %v4058, %v4057
        %v4120 = vpack.c.b16 %v4060, %v4059
        %v4121 = vpack.c.b16 %v4062, %v4061
        %v4122 = vpack.c.b16 %v4064, %v4063
        %v4123 = vpack.c.b16 %v4066, %v4065
        %v4124 = vpack.c.b16 %v4068, %v4067
        %v4125 = vpack.c.b16 %v4070, %v4069
        %v4126 = vpack.c.b16 %v4072, %v4071
        %v4127 = vpack.c.b16 %v4074, %v4073
        %v4128 = vpack.c.b16 %v4076, %v4075
        %v4129 = vpack.c.b16 %v4078, %v4077
        %v4130 = vpack.c.b16 %v4080, %v4079
        %v4131 = vpack.c.b16 %v4082, %v4081
        %v4132 = vpack.c.b16 %v4084, %v4083
        %v4133 = vpack.c.b16 %v4086, %v4085
        %v4134 = vpack.c.b16 %v4088, %v4087
        %v4135 = vpack.c.b16 %v4090, %v4089
        %v4136 = vpack.c.b16 %v4092, %v4091
        %v4137 = vpack.c.b16 %v4094, %v4093
        %v4138 = vpack.c.b16 %v4096, %v4095
        %v4139 = vpack.c.b16 %v4098, %v4097
        %v4140 = vpack.c.b16 %v4100, %v4099
        %v4141 = vpack.c.b16 %v4102, %v4101
        %v4142 = vpack.c.b16 %v4104, %v4103
        %v4143 = vpack.c.b16 %v4106, %v4105
        %v4144 = vpack.c.b16 %v4108, %v4107
        %v4145 = vpack.c.b16 %v4110, %v4109
        %v4146 = vpack.c.b16 %v4112, %v4111
        %v4147 = vpack.c.b16 %v4114, %v4113
        %v4148 = vpack.c.b16 %v4116, %v4115
        %4181 = vmatprep.subr.bf16.mxu0 0
        %4182 = vmatpush1.bf16.msra.mxu0 %v4117
        %4183 = vmatprep.subr.bf16.mxu0 0
        %4184 = vmatpush1.bf16.msra.mxu0 %v4118
        %4185 = vmatprep.subr.bf16.mxu0 0
        %4186 = vmatpush1.bf16.msra.mxu0 %v4119
        %4187 = vmatprep.subr.bf16.mxu0 0
        %4188 = vmatpush1.bf16.msra.mxu0 %v4120
        %4189 = vmatprep.subr.bf16.mxu0 0
        %4190 = vmatpush1.bf16.msra.mxu0 %v4121
        %4191 = vmatprep.subr.bf16.mxu0 0
        %4192 = vmatpush1.bf16.msra.mxu0 %v4122
        %4193 = vmatprep.subr.bf16.mxu0 0
        %4194 = vmatpush1.bf16.msra.mxu0 %v4123
        %4195 = vmatprep.subr.bf16.mxu0 0
        %4196 = vmatpush1.bf16.msra.mxu0 %v4124
        %4197 = vmatprep.subr.bf16.mxu0 0
        %4198 = vmatpush1.bf16.msra.mxu0 %v4125
        %4199 = vmatprep.subr.bf16.mxu0 0
        %4200 = vmatpush1.bf16.msra.mxu0 %v4126
        %4201 = vmatprep.subr.bf16.mxu0 0
        %4202 = vmatpush1.bf16.msra.mxu0 %v4127
        %4203 = vmatprep.subr.bf16.mxu0 0
        %4204 = vmatpush1.bf16.msra.mxu0 %v4128
        %4205 = vmatprep.subr.bf16.mxu0 0
        %4206 = vmatpush1.bf16.msra.mxu0 %v4129
        %4207 = vmatprep.subr.bf16.mxu0 0
        %4208 = vmatpush1.bf16.msra.mxu0 %v4130
        %4209 = vmatprep.subr.bf16.mxu0 0
        %4210 = vmatpush1.bf16.msra.mxu0 %v4131
        %4211 = vmatprep.subr.bf16.mxu0 0
        %4212 = vmatpush1.bf16.msra.mxu0 %v4132
        %4213 = vmatprep.mubr.bf16.mxu0 %v3921
        %4214 = vmatmul.mubr.bf16.gmra.mrb[0].mxu0 %v3920
        %v4215 = vpop.f32.mrb[0].mxu0
        %v4216 = vadd.f32 0.0, %v4215
        %v4217 = vpop.f32.mrb[0].mxu0
        %v4218 = vpop.f32.mrb[0].mxu0
        %v4219 = vadd.f32 0.0, %v4218
        %v4220 = vpop.f32.mrb[0].mxu0
        %4221 = vdwg.mxu0
        %4222 = vmatprep.subr.bf16.mxu0 0
        %4223 = vmatpush1.bf16.msra.mxu0 %v4133
        %4224 = vmatprep.subr.bf16.mxu0 0
        %4225 = vmatpush1.bf16.msra.mxu0 %v4134
        %4226 = vmatprep.subr.bf16.mxu0 0
        %4227 = vmatpush1.bf16.msra.mxu0 %v4135
        %4228 = vmatprep.subr.bf16.mxu0 0
        %4229 = vmatpush1.bf16.msra.mxu0 %v4136
        %4230 = vmatprep.subr.bf16.mxu0 0
        %4231 = vmatpush1.bf16.msra.mxu0 %v4137
        %4232 = vmatprep.subr.bf16.mxu0 0
        %4233 = vmatpush1.bf16.msra.mxu0 %v4138
        %4234 = vmatprep.subr.bf16.mxu0 0
        %4235 = vmatpush1.bf16.msra.mxu0 %v4139
        %4236 = vmatprep.subr.bf16.mxu0 0
        %4237 = vmatpush1.bf16.msra.mxu0 %v4140
        %4238 = vmatprep.subr.bf16.mxu0 0
        %4239 = vmatpush1.bf16.msra.mxu0 %v4141
        %4240 = vmatprep.subr.bf16.mxu0 0
        %4241 = vmatpush1.bf16.msra.mxu0 %v4142
        %4242 = vmatprep.subr.bf16.mxu0 0
        %4243 = vmatpush1.bf16.msra.mxu0 %v4143
        %4244 = vmatprep.subr.bf16.mxu0 0
        %4245 = vmatpush1.bf16.msra.mxu0 %v4144
        %4246 = vmatprep.subr.bf16.mxu0 0
        %4247 = vmatpush1.bf16.msra.mxu0 %v4145
        %4248 = vmatprep.subr.bf16.mxu0 0
        %4249 = vmatpush1.bf16.msra.mxu0 %v4146
        %4250 = vmatprep.subr.bf16.mxu0 0
        %4251 = vmatpush1.bf16.msra.mxu0 %v4147
        %4252 = vmatprep.subr.bf16.mxu0 0
        %4253 = vmatpush1.bf16.msra.mxu0 %v4148
        %4254 = vmatprep.mubr.bf16.mxu0 %v3923
        %4255 = vmatmul.mubr.bf16.gmra.mrb[0].mxu0 %v3922
        %v4256 = vpop.f32.mrb[0].mxu0
        %v4257 = vadd.f32 %v4216, %v4256
        %v4258 = vpop.f32.mrb[0].mxu0
        %v4259 = vpop.f32.mrb[0].mxu0
        %v4260 = vadd.f32 %v4219, %v4259
        %v4261 = vpop.f32.mrb[0].mxu0
        %4262 = vdwg.mxu0
        %vm4263 = vcmp.eq.s32.totalorder %v1278, 1
        %v4264 = vsel %vm4263, %v2399, 0.0
        %v4265 = vsel %vm4263, %v2401, 0.0
        %v4266 = vsel %vm2279, %v4264, 0.0
        %4267 = vadd.xlane.f32.xlu0 %v4266
        %v4268 = vpop.xlane.xlu0 %4267
        %v4269 = vsel %vm2279, %v4265, 0.0
        %4270 = vadd.xlane.f32.xlu0 %v4269
        %v4271 = vpop.xlane.xlu0 %4270
        %v4272 = vmul.f32 %v4268, %v4257
        %v4273 = vmul.f32 %v4271, %v4260
        %v4274 = vadd.f32 %v3336, %v4272
        %v4275 = vadd.f32 %v3337, %v4273
        %s4276 = scalar_lea.vmem %s691, 512 [#allocation12]
        %v4277 = vld [vmem:[%s4276] sm:$0xff]
        %v4278 = vld [vmem:[%s4276 + $0x8] sm:$0xff]
        %v4279 = vld [vmem:[%s4276 + $0x10] sm:$0xff]
        %v4280 = vld [vmem:[%s4276 + $0x18] sm:$0xff]
        %v4281 = vld [vmem:[%s4276 + $0x20] sm:$0xff]
        %v4282 = vld [vmem:[%s4276 + $0x28] sm:$0xff]
        %v4283 = vld [vmem:[%s4276 + $0x30] sm:$0xff]
        %v4284 = vld [vmem:[%s4276 + $0x38] sm:$0xff]
        %v4285 = vld [vmem:[%s4276 + $0x40] sm:$0xff]
        %v4286 = vld [vmem:[%s4276 + $0x48] sm:$0xff]
        %v4287 = vld [vmem:[%s4276 + $0x50] sm:$0xff]
        %v4288 = vld [vmem:[%s4276 + $0x58] sm:$0xff]
        %v4289 = vld [vmem:[%s4276 + $0x60] sm:$0xff]
        %v4290 = vld [vmem:[%s4276 + $0x68] sm:$0xff]
        %v4291 = vld [vmem:[%s4276 + $0x70] sm:$0xff]
        %v4292 = vld [vmem:[%s4276 + $0x78] sm:$0xff]
        %v4293 = vld [vmem:[%s4276 + $0x80] sm:$0xff]
        %v4294 = vld [vmem:[%s4276 + $0x88] sm:$0xff]
        %v4295 = vld [vmem:[%s4276 + $0x90] sm:$0xff]
        %v4296 = vld [vmem:[%s4276 + $0x98] sm:$0xff]
        %v4297 = vld [vmem:[%s4276 + $0xa0] sm:$0xff]
        %v4298 = vld [vmem:[%s4276 + $0xa8] sm:$0xff]
        %v4299 = vld [vmem:[%s4276 + $0xb0] sm:$0xff]
        %v4300 = vld [vmem:[%s4276 + $0xb8] sm:$0xff]
        %v4301 = vld [vmem:[%s4276 + $0xc0] sm:$0xff]
        %v4302 = vld [vmem:[%s4276 + $0xc8] sm:$0xff]
        %v4303 = vld [vmem:[%s4276 + $0xd0] sm:$0xff]
        %v4304 = vld [vmem:[%s4276 + $0xd8] sm:$0xff]
        %v4305 = vld [vmem:[%s4276 + $0xe0] sm:$0xff]
        %v4306 = vld [vmem:[%s4276 + $0xe8] sm:$0xff]
        %v4307 = vld [vmem:[%s4276 + $0xf0] sm:$0xff]
        %v4308 = vld [vmem:[%s4276 + $0xf8] sm:$0xff]
        %v4341 = vunpack.c.l.b16 %v4277
        %v4342 = vunpack.c.h.b16 %v4277
        %v4343 = vunpack.c.l.b16 %v4278
        %v4344 = vunpack.c.h.b16 %v4278
        %v4345 = vunpack.c.l.b16 %v4279
        %v4346 = vunpack.c.h.b16 %v4279
        %v4347 = vunpack.c.l.b16 %v4280
        %v4348 = vunpack.c.h.b16 %v4280
        %v4349 = vunpack.c.l.b16 %v4281
        %v4350 = vunpack.c.h.b16 %v4281
        %v4351 = vunpack.c.l.b16 %v4282
        %v4352 = vunpack.c.h.b16 %v4282
        %v4353 = vunpack.c.l.b16 %v4283
        %v4354 = vunpack.c.h.b16 %v4283
        %v4355 = vunpack.c.l.b16 %v4284
        %v4356 = vunpack.c.h.b16 %v4284
        %v4357 = vunpack.c.l.b16 %v4285
        %v4358 = vunpack.c.h.b16 %v4285
        %v4359 = vunpack.c.l.b16 %v4286
        %v4360 = vunpack.c.h.b16 %v4286
        %v4361 = vunpack.c.l.b16 %v4287
        %v4362 = vunpack.c.h.b16 %v4287
        %v4363 = vunpack.c.l.b16 %v4288
        %v4364 = vunpack.c.h.b16 %v4288
        %v4365 = vunpack.c.l.b16 %v4289
        %v4366 = vunpack.c.h.b16 %v4289
        %v4367 = vunpack.c.l.b16 %v4290
        %v4368 = vunpack.c.h.b16 %v4290
        %v4369 = vunpack.c.l.b16 %v4291
        %v4370 = vunpack.c.h.b16 %v4291
        %v4371 = vunpack.c.l.b16 %v4292
        %v4372 = vunpack.c.h.b16 %v4292
        %v4373 = vunpack.c.l.b16 %v4293
        %v4374 = vunpack.c.h.b16 %v4293
        %v4375 = vunpack.c.l.b16 %v4294
        %v4376 = vunpack.c.h.b16 %v4294
        %v4377 = vunpack.c.l.b16 %v4295
        %v4378 = vunpack.c.h.b16 %v4295
        %v4379 = vunpack.c.l.b16 %v4296
        %v4380 = vunpack.c.h.b16 %v4296
        %v4381 = vunpack.c.l.b16 %v4297
        %v4382 = vunpack.c.h.b16 %v4297
        %v4383 = vunpack.c.l.b16 %v4298
        %v4384 = vunpack.c.h.b16 %v4298
        %v4385 = vunpack.c.l.b16 %v4299
        %v4386 = vunpack.c.h.b16 %v4299
        %v4387 = vunpack.c.l.b16 %v4300
        %v4388 = vunpack.c.h.b16 %v4300
        %v4389 = vunpack.c.l.b16 %v4301
        %v4390 = vunpack.c.h.b16 %v4301
        %v4391 = vunpack.c.l.b16 %v4302
        %v4392 = vunpack.c.h.b16 %v4302
        %v4393 = vunpack.c.l.b16 %v4303
        %v4394 = vunpack.c.h.b16 %v4303
        %v4395 = vunpack.c.l.b16 %v4304
        %v4396 = vunpack.c.h.b16 %v4304
        %v4397 = vunpack.c.l.b16 %v4305
        %v4398 = vunpack.c.h.b16 %v4305
        %v4399 = vunpack.c.l.b16 %v4306
        %v4400 = vunpack.c.h.b16 %v4306
        %v4401 = vunpack.c.l.b16 %v4307
        %v4402 = vunpack.c.h.b16 %v4307
        %v4403 = vunpack.c.l.b16 %v4308
        %v4404 = vunpack.c.h.b16 %v4308
        %v4405 = vpack.c.b16 %v4345, %v4341
        %v4406 = vpack.c.b16 %v4346, %v4342
        %v4407 = vpack.c.b16 %v4347, %v4343
        %v4408 = vpack.c.b16 %v4348, %v4344
        %v4409 = vpack.c.b16 %v4353, %v4349
        %v4410 = vpack.c.b16 %v4354, %v4350
        %v4411 = vpack.c.b16 %v4355, %v4351
        %v4412 = vpack.c.b16 %v4356, %v4352
        %v4413 = vpack.c.b16 %v4361, %v4357
        %v4414 = vpack.c.b16 %v4362, %v4358
        %v4415 = vpack.c.b16 %v4363, %v4359
        %v4416 = vpack.c.b16 %v4364, %v4360
        %v4417 = vpack.c.b16 %v4369, %v4365
        %v4418 = vpack.c.b16 %v4370, %v4366
        %v4419 = vpack.c.b16 %v4371, %v4367
        %v4420 = vpack.c.b16 %v4372, %v4368
        %v4421 = vpack.c.b16 %v4377, %v4373
        %v4422 = vpack.c.b16 %v4378, %v4374
        %v4423 = vpack.c.b16 %v4379, %v4375
        %v4424 = vpack.c.b16 %v4380, %v4376
        %v4425 = vpack.c.b16 %v4385, %v4381
        %v4426 = vpack.c.b16 %v4386, %v4382
        %v4427 = vpack.c.b16 %v4387, %v4383
        %v4428 = vpack.c.b16 %v4388, %v4384
        %v4429 = vpack.c.b16 %v4393, %v4389
        %v4430 = vpack.c.b16 %v4394, %v4390
        %v4431 = vpack.c.b16 %v4395, %v4391
        %v4432 = vpack.c.b16 %v4396, %v4392
        %v4433 = vpack.c.b16 %v4401, %v4397
        %v4434 = vpack.c.b16 %v4402, %v4398
        %v4435 = vpack.c.b16 %v4403, %v4399
        %v4436 = vpack.c.b16 %v4404, %v4400
        %4469 = vmatprep.subr.bf16.mxu0 %v4406
        %4470 = vmatpush1.bf16.msra.mxu0 %v4405
        %4471 = vmatprep.subr.bf16.mxu0 %v4410
        %4472 = vmatpush1.bf16.msra.mxu0 %v4409
        %4473 = vmatprep.subr.bf16.mxu0 %v4414
        %4474 = vmatpush1.bf16.msra.mxu0 %v4413
        %4475 = vmatprep.subr.bf16.mxu0 %v4418
        %4476 = vmatpush1.bf16.msra.mxu0 %v4417
        %4477 = vmatprep.subr.bf16.mxu0 %v4422
        %4478 = vmatpush1.bf16.msra.mxu0 %v4421
        %4479 = vmatprep.subr.bf16.mxu0 %v4426
        %4480 = vmatpush1.bf16.msra.mxu0 %v4425
        %4481 = vmatprep.subr.bf16.mxu0 %v4430
        %4482 = vmatpush1.bf16.msra.mxu0 %v4429
        %4483 = vmatprep.subr.bf16.mxu0 %v4434
        %4484 = vmatpush1.bf16.msra.mxu0 %v4433
        %4485 = vmatprep.subr.bf16.mxu0 0
        %4486 = vmatpush1.bf16.msra.mxu0 0
        %4487 = vmatprep.subr.bf16.mxu0 0
        %4488 = vmatpush1.bf16.msra.mxu0 0
        %4489 = vmatprep.subr.bf16.mxu0 0
        %4490 = vmatpush1.bf16.msra.mxu0 0
        %4491 = vmatprep.subr.bf16.mxu0 0
        %4492 = vmatpush1.bf16.msra.mxu0 0
        %4493 = vmatprep.subr.bf16.mxu0 0
        %4494 = vmatpush1.bf16.msra.mxu0 0
        %4495 = vmatprep.subr.bf16.mxu0 0
        %4496 = vmatpush1.bf16.msra.mxu0 0
        %4497 = vmatprep.subr.bf16.mxu0 0
        %4498 = vmatpush1.bf16.msra.mxu0 0
        %4499 = vmatprep.subr.bf16.mxu0 0
        %4500 = vmatpush1.bf16.msra.mxu0 0
        %4501 = vmatprep.mubr.bf16.mxu0 0
        %4502 = vmatmul.mubr.bf16.gmra.mrb[0].mxu0 %v2402
        %v4503 = vpop.f32.mrb[0].mxu0
        %v4504 = vadd.f32 0.0, %v4503
        %v4505 = vpop.f32.mrb[0].mxu0
        %v4506 = vadd.f32 0.0, %v4505
        %v4507 = vpop.f32.mrb[0].mxu0
        %v4508 = vadd.f32 0.0, %v4507
        %v4509 = vpop.f32.mrb[0].mxu0
        %v4510 = vadd.f32 0.0, %v4509
        %4511 = vdwg.mxu0
        %4512 = vmatprep.subr.bf16.mxu0 %v4408
        %4513 = vmatpush1.bf16.msra.mxu0 %v4407
        %4514 = vmatprep.subr.bf16.mxu0 %v4412
        %4515 = vmatpush1.bf16.msra.mxu0 %v4411
        %4516 = vmatprep.subr.bf16.mxu0 %v4416
        %4517 = vmatpush1.bf16.msra.mxu0 %v4415
        %4518 = vmatprep.subr.bf16.mxu0 %v4420
        %4519 = vmatpush1.bf16.msra.mxu0 %v4419
        %4520 = vmatprep.subr.bf16.mxu0 %v4424
        %4521 = vmatpush1.bf16.msra.mxu0 %v4423
        %4522 = vmatprep.subr.bf16.mxu0 %v4428
        %4523 = vmatpush1.bf16.msra.mxu0 %v4427
        %4524 = vmatprep.subr.bf16.mxu0 %v4432
        %4525 = vmatpush1.bf16.msra.mxu0 %v4431
        %4526 = vmatprep.subr.bf16.mxu0 %v4436
        %4527 = vmatpush1.bf16.msra.mxu0 %v4435
        %4528 = vmatprep.subr.bf16.mxu0 0
        %4529 = vmatpush1.bf16.msra.mxu0 0
        %4530 = vmatprep.subr.bf16.mxu0 0
        %4531 = vmatpush1.bf16.msra.mxu0 0
        %4532 = vmatprep.subr.bf16.mxu0 0
        %4533 = vmatpush1.bf16.msra.mxu0 0
        %4534 = vmatprep.subr.bf16.mxu0 0
        %4535 = vmatpush1.bf16.msra.mxu0 0
        %4536 = vmatprep.subr.bf16.mxu0 0
        %4537 = vmatpush1.bf16.msra.mxu0 0
        %4538 = vmatprep.subr.bf16.mxu0 0
        %4539 = vmatpush1.bf16.msra.mxu0 0
        %4540 = vmatprep.subr.bf16.mxu0 0
        %4541 = vmatpush1.bf16.msra.mxu0 0
        %4542 = vmatprep.subr.bf16.mxu0 0
        %4543 = vmatpush1.bf16.msra.mxu0 0
        %4544 = vmatprep.mubr.bf16.mxu0 0
        %4545 = vmatmul.mubr.bf16.gmra.mrb[0].mxu0 %v2402
        %v4546 = vpop.f32.mrb[0].mxu0
        %v4547 = vadd.f32 0.0, %v4546
        %v4548 = vpop.f32.mrb[0].mxu0
        %v4549 = vadd.f32 0.0, %v4548
        %v4550 = vpop.f32.mrb[0].mxu0
        %v4551 = vadd.f32 0.0, %v4550
        %v4552 = vpop.f32.mrb[0].mxu0
        %v4553 = vadd.f32 0.0, %v4552
        %4554 = vdwg.mxu0
        %s4555 = scalar_lea.vmem %s700, 512 [#allocation14]
        %v4556 = vld [vmem:[%s4555] sm:$0xff]
        %v4557 = vld [vmem:[%s4555 + $0x8] sm:$0xff]
        %v4558 = vld [vmem:[%s4555 + $0x10] sm:$0xff]
        %v4559 = vld [vmem:[%s4555 + $0x18] sm:$0xff]
        %v4560 = vld [vmem:[%s4555 + $0x20] sm:$0xff]
        %v4561 = vld [vmem:[%s4555 + $0x28] sm:$0xff]
        %v4562 = vld [vmem:[%s4555 + $0x30] sm:$0xff]
        %v4563 = vld [vmem:[%s4555 + $0x38] sm:$0xff]
        %v4564 = vld [vmem:[%s4555 + $0x40] sm:$0xff]
        %v4565 = vld [vmem:[%s4555 + $0x48] sm:$0xff]
        %v4566 = vld [vmem:[%s4555 + $0x50] sm:$0xff]
        %v4567 = vld [vmem:[%s4555 + $0x58] sm:$0xff]
        %v4568 = vld [vmem:[%s4555 + $0x60] sm:$0xff]
        %v4569 = vld [vmem:[%s4555 + $0x68] sm:$0xff]
        %v4570 = vld [vmem:[%s4555 + $0x70] sm:$0xff]
        %v4571 = vld [vmem:[%s4555 + $0x78] sm:$0xff]
        %v4572 = vld [vmem:[%s4555 + $0x80] sm:$0xff]
        %v4573 = vld [vmem:[%s4555 + $0x88] sm:$0xff]
        %v4574 = vld [vmem:[%s4555 + $0x90] sm:$0xff]
        %v4575 = vld [vmem:[%s4555 + $0x98] sm:$0xff]
        %v4576 = vld [vmem:[%s4555 + $0xa0] sm:$0xff]
        %v4577 = vld [vmem:[%s4555 + $0xa8] sm:$0xff]
        %v4578 = vld [vmem:[%s4555 + $0xb0] sm:$0xff]
        %v4579 = vld [vmem:[%s4555 + $0xb8] sm:$0xff]
        %v4580 = vld [vmem:[%s4555 + $0xc0] sm:$0xff]
        %v4581 = vld [vmem:[%s4555 + $0xc8] sm:$0xff]
        %v4582 = vld [vmem:[%s4555 + $0xd0] sm:$0xff]
        %v4583 = vld [vmem:[%s4555 + $0xd8] sm:$0xff]
        %v4584 = vld [vmem:[%s4555 + $0xe0] sm:$0xff]
        %v4585 = vld [vmem:[%s4555 + $0xe8] sm:$0xff]
        %v4586 = vld [vmem:[%s4555 + $0xf0] sm:$0xff]
        %v4587 = vld [vmem:[%s4555 + $0xf8] sm:$0xff]
        %v4620 = vunpack.c.l.b16 %v4556
        %v4621 = vunpack.c.h.b16 %v4556
        %v4622 = vunpack.c.l.b16 %v4557
        %v4623 = vunpack.c.h.b16 %v4557
        %v4624 = vunpack.c.l.b16 %v4558
        %v4625 = vunpack.c.h.b16 %v4558
        %v4626 = vunpack.c.l.b16 %v4559
        %v4627 = vunpack.c.h.b16 %v4559
        %v4628 = vunpack.c.l.b16 %v4560
        %v4629 = vunpack.c.h.b16 %v4560
        %v4630 = vunpack.c.l.b16 %v4561
        %v4631 = vunpack.c.h.b16 %v4561
        %v4632 = vunpack.c.l.b16 %v4562
        %v4633 = vunpack.c.h.b16 %v4562
        %v4634 = vunpack.c.l.b16 %v4563
        %v4635 = vunpack.c.h.b16 %v4563
        %v4636 = vunpack.c.l.b16 %v4564
        %v4637 = vunpack.c.h.b16 %v4564
        %v4638 = vunpack.c.l.b16 %v4565
        %v4639 = vunpack.c.h.b16 %v4565
        %v4640 = vunpack.c.l.b16 %v4566
        %v4641 = vunpack.c.h.b16 %v4566
        %v4642 = vunpack.c.l.b16 %v4567
        %v4643 = vunpack.c.h.b16 %v4567
        %v4644 = vunpack.c.l.b16 %v4568
        %v4645 = vunpack.c.h.b16 %v4568
        %v4646 = vunpack.c.l.b16 %v4569
        %v4647 = vunpack.c.h.b16 %v4569
        %v4648 = vunpack.c.l.b16 %v4570
        %v4649 = vunpack.c.h.b16 %v4570
        %v4650 = vunpack.c.l.b16 %v4571
        %v4651 = vunpack.c.h.b16 %v4571
        %v4652 = vunpack.c.l.b16 %v4572
        %v4653 = vunpack.c.h.b16 %v4572
        %v4654 = vunpack.c.l.b16 %v4573
        %v4655 = vunpack.c.h.b16 %v4573
        %v4656 = vunpack.c.l.b16 %v4574
        %v4657 = vunpack.c.h.b16 %v4574
        %v4658 = vunpack.c.l.b16 %v4575
        %v4659 = vunpack.c.h.b16 %v4575
        %v4660 = vunpack.c.l.b16 %v4576
        %v4661 = vunpack.c.h.b16 %v4576
        %v4662 = vunpack.c.l.b16 %v4577
        %v4663 = vunpack.c.h.b16 %v4577
        %v4664 = vunpack.c.l.b16 %v4578
        %v4665 = vunpack.c.h.b16 %v4578
        %v4666 = vunpack.c.l.b16 %v4579
        %v4667 = vunpack.c.h.b16 %v4579
        %v4668 = vunpack.c.l.b16 %v4580
        %v4669 = vunpack.c.h.b16 %v4580
        %v4670 = vunpack.c.l.b16 %v4581
        %v4671 = vunpack.c.h.b16 %v4581
        %v4672 = vunpack.c.l.b16 %v4582
        %v4673 = vunpack.c.h.b16 %v4582
        %v4674 = vunpack.c.l.b16 %v4583
        %v4675 = vunpack.c.h.b16 %v4583
        %v4676 = vunpack.c.l.b16 %v4584
        %v4677 = vunpack.c.h.b16 %v4584
        %v4678 = vunpack.c.l.b16 %v4585
        %v4679 = vunpack.c.h.b16 %v4585
        %v4680 = vunpack.c.l.b16 %v4586
        %v4681 = vunpack.c.h.b16 %v4586
        %v4682 = vunpack.c.l.b16 %v4587
        %v4683 = vunpack.c.h.b16 %v4587
        %v4684 = vpack.c.b16 %v4624, %v4620
        %v4685 = vpack.c.b16 %v4625, %v4621
        %v4686 = vpack.c.b16 %v4626, %v4622
        %v4687 = vpack.c.b16 %v4627, %v4623
        %v4688 = vpack.c.b16 %v4632, %v4628
        %v4689 = vpack.c.b16 %v4633, %v4629
        %v4690 = vpack.c.b16 %v4634, %v4630
        %v4691 = vpack.c.b16 %v4635, %v4631
        %v4692 = vpack.c.b16 %v4640, %v4636
        %v4693 = vpack.c.b16 %v4641, %v4637
        %v4694 = vpack.c.b16 %v4642, %v4638
        %v4695 = vpack.c.b16 %v4643, %v4639
        %v4696 = vpack.c.b16 %v4648, %v4644
        %v4697 = vpack.c.b16 %v4649, %v4645
        %v4698 = vpack.c.b16 %v4650, %v4646
        %v4699 = vpack.c.b16 %v4651, %v4647
        %v4700 = vpack.c.b16 %v4656, %v4652
        %v4701 = vpack.c.b16 %v4657, %v4653
        %v4702 = vpack.c.b16 %v4658, %v4654
        %v4703 = vpack.c.b16 %v4659, %v4655
        %v4704 = vpack.c.b16 %v4664, %v4660
        %v4705 = vpack.c.b16 %v4665, %v4661
        %v4706 = vpack.c.b16 %v4666, %v4662
        %v4707 = vpack.c.b16 %v4667, %v4663
        %v4708 = vpack.c.b16 %v4672, %v4668
        %v4709 = vpack.c.b16 %v4673, %v4669
        %v4710 = vpack.c.b16 %v4674, %v4670
        %v4711 = vpack.c.b16 %v4675, %v4671
        %v4712 = vpack.c.b16 %v4680, %v4676
        %v4713 = vpack.c.b16 %v4681, %v4677
        %v4714 = vpack.c.b16 %v4682, %v4678
        %v4715 = vpack.c.b16 %v4683, %v4679
        %4748 = vmatprep.subr.bf16.mxu0 %v4685
        %4749 = vmatpush1.bf16.msra.mxu0 %v4684
        %4750 = vmatprep.subr.bf16.mxu0 %v4689
        %4751 = vmatpush1.bf16.msra.mxu0 %v4688
        %4752 = vmatprep.subr.bf16.mxu0 %v4693
        %4753 = vmatpush1.bf16.msra.mxu0 %v4692
        %4754 = vmatprep.subr.bf16.mxu0 %v4697
        %4755 = vmatpush1.bf16.msra.mxu0 %v4696
        %4756 = vmatprep.subr.bf16.mxu0 %v4701
        %4757 = vmatpush1.bf16.msra.mxu0 %v4700
        %4758 = vmatprep.subr.bf16.mxu0 %v4705
        %4759 = vmatpush1.bf16.msra.mxu0 %v4704
        %4760 = vmatprep.subr.bf16.mxu0 %v4709
        %4761 = vmatpush1.bf16.msra.mxu0 %v4708
        %4762 = vmatprep.subr.bf16.mxu0 %v4713
        %4763 = vmatpush1.bf16.msra.mxu0 %v4712
        %4764 = vmatprep.subr.bf16.mxu0 0
        %4765 = vmatpush1.bf16.msra.mxu0 0
        %4766 = vmatprep.subr.bf16.mxu0 0
        %4767 = vmatpush1.bf16.msra.mxu0 0
        %4768 = vmatprep.subr.bf16.mxu0 0
        %4769 = vmatpush1.bf16.msra.mxu0 0
        %4770 = vmatprep.subr.bf16.mxu0 0
        %4771 = vmatpush1.bf16.msra.mxu0 0
        %4772 = vmatprep.subr.bf16.mxu0 0
        %4773 = vmatpush1.bf16.msra.mxu0 0
        %4774 = vmatprep.subr.bf16.mxu0 0
        %4775 = vmatpush1.bf16.msra.mxu0 0
        %4776 = vmatprep.subr.bf16.mxu0 0
        %4777 = vmatpush1.bf16.msra.mxu0 0
        %4778 = vmatprep.subr.bf16.mxu0 0
        %4779 = vmatpush1.bf16.msra.mxu0 0
        %4780 = vmatprep.mubr.bf16.mxu0 0
        %4781 = vmatmul.mubr.bf16.gmra.mrb[0].mxu0 %v2402
        %v4782 = vpop.f32.mrb[0].mxu0
        %v4783 = vadd.f32 0.0, %v4782
        %v4784 = vpop.f32.mrb[0].mxu0
        %v4785 = vadd.f32 0.0, %v4784
        %v4786 = vpop.f32.mrb[0].mxu0
        %v4787 = vadd.f32 0.0, %v4786
        %v4788 = vpop.f32.mrb[0].mxu0
        %v4789 = vadd.f32 0.0, %v4788
        %4790 = vdwg.mxu0
        %4791 = vmatprep.subr.bf16.mxu0 %v4687
        %4792 = vmatpush1.bf16.msra.mxu0 %v4686
        %4793 = vmatprep.subr.bf16.mxu0 %v4691
        %4794 = vmatpush1.bf16.msra.mxu0 %v4690
        %4795 = vmatprep.subr.bf16.mxu0 %v4695
        %4796 = vmatpush1.bf16.msra.mxu0 %v4694
        %4797 = vmatprep.subr.bf16.mxu0 %v4699
        %4798 = vmatpush1.bf16.msra.mxu0 %v4698
        %4799 = vmatprep.subr.bf16.mxu0 %v4703
        %4800 = vmatpush1.bf16.msra.mxu0 %v4702
        %4801 = vmatprep.subr.bf16.mxu0 %v4707
        %4802 = vmatpush1.bf16.msra.mxu0 %v4706
        %4803 = vmatprep.subr.bf16.mxu0 %v4711
        %4804 = vmatpush1.bf16.msra.mxu0 %v4710
        %4805 = vmatprep.subr.bf16.mxu0 %v4715
        %4806 = vmatpush1.bf16.msra.mxu0 %v4714
        %4807 = vmatprep.subr.bf16.mxu0 0
        %4808 = vmatpush1.bf16.msra.mxu0 0
        %4809 = vmatprep.subr.bf16.mxu0 0
        %4810 = vmatpush1.bf16.msra.mxu0 0
        %4811 = vmatprep.subr.bf16.mxu0 0
        %4812 = vmatpush1.bf16.msra.mxu0 0
        %4813 = vmatprep.subr.bf16.mxu0 0
        %4814 = vmatpush1.bf16.msra.mxu0 0
        %4815 = vmatprep.subr.bf16.mxu0 0
        %4816 = vmatpush1.bf16.msra.mxu0 0
        %4817 = vmatprep.subr.bf16.mxu0 0
        %4818 = vmatpush1.bf16.msra.mxu0 0
        %4819 = vmatprep.subr.bf16.mxu0 0
        %4820 = vmatpush1.bf16.msra.mxu0 0
        %4821 = vmatprep.subr.bf16.mxu0 0
        %4822 = vmatpush1.bf16.msra.mxu0 0
        %4823 = vmatprep.mubr.bf16.mxu0 0
        %4824 = vmatmul.mubr.bf16.gmra.mrb[0].mxu0 %v2402
        %v4825 = vpop.f32.mrb[0].mxu0
        %v4826 = vadd.f32 0.0, %v4825
        %v4827 = vpop.f32.mrb[0].mxu0
        %v4828 = vadd.f32 0.0, %v4827
        %v4829 = vpop.f32.mrb[0].mxu0
        %v4830 = vadd.f32 0.0, %v4829
        %v4831 = vpop.f32.mrb[0].mxu0
        %v4832 = vadd.f32 0.0, %v4831
        %4833 = vdwg.mxu0
        %v4834 = vmax.f32 %v4504, 0.0
        %v4835 = vmax.f32 %v4506, 0.0
        %v4836 = vmax.f32 %v4547, 0.0
        %v4837 = vmax.f32 %v4549, 0.0
        %v4838 = vmax.f32 %v4508, 0.0
        %v4839 = vmax.f32 %v4510, 0.0
        %v4840 = vmax.f32 %v4551, 0.0
        %v4841 = vmax.f32 %v4553, 0.0
        %v4842 = vmul.f32 %v4834, %v4834
        %v4843 = vmul.f32 %v4835, %v4835
        %v4844 = vmul.f32 %v4836, %v4836
        %v4845 = vmul.f32 %v4837, %v4837
        %v4846 = vmul.f32 %v4838, %v4838
        %v4847 = vmul.f32 %v4839, %v4839
        %v4848 = vmul.f32 %v4840, %v4840
        %v4849 = vmul.f32 %v4841, %v4841
        %v4850 = vmul.f32 %v4842, %v4783
        %v4851 = vmul.f32 %v4843, %v4785
        %v4852 = vmul.f32 %v4844, %v4826
        %v4853 = vmul.f32 %v4845, %v4828
        %v4854 = vmul.f32 %v4846, %v4787
        %v4855 = vmul.f32 %v4847, %v4789
        %v4856 = vmul.f32 %v4848, %v4830
        %v4857 = vmul.f32 %v4849, %v4832
        %v4858 = vpack.c.bf16 %v4854, %v4850
        %v4859 = vpack.c.bf16 %v4855, %v4851
        %v4860 = vpack.c.bf16 %v4856, %v4852
        %v4861 = vpack.c.bf16 %v4857, %v4853
        %s4862 = scalar_lea.vmem %s709, 512 [#allocation15]
        %v4863 = vld [vmem:[%s4862] sm:$0xf]
        %v4864 = vld [vmem:[%s4862 + $0x4] sm:$0xf]
        %v4865 = vld [vmem:[%s4862 + $0x8] sm:$0xf]
        %v4866 = vld [vmem:[%s4862 + $0xc] sm:$0xf]
        %v4867 = vld [vmem:[%s4862 + $0x10] sm:$0xf]
        %v4868 = vld [vmem:[%s4862 + $0x14] sm:$0xf]
        %v4869 = vld [vmem:[%s4862 + $0x18] sm:$0xf]
        %v4870 = vld [vmem:[%s4862 + $0x1c] sm:$0xf]
        %v4871 = vld [vmem:[%s4862 + $0x20] sm:$0xf]
        %v4872 = vld [vmem:[%s4862 + $0x24] sm:$0xf]
        %v4873 = vld [vmem:[%s4862 + $0x28] sm:$0xf]
        %v4874 = vld [vmem:[%s4862 + $0x2c] sm:$0xf]
        %v4875 = vld [vmem:[%s4862 + $0x30] sm:$0xf]
        %v4876 = vld [vmem:[%s4862 + $0x34] sm:$0xf]
        %v4877 = vld [vmem:[%s4862 + $0x38] sm:$0xf]
        %v4878 = vld [vmem:[%s4862 + $0x3c] sm:$0xf]
        %v4879 = vld [vmem:[%s4862 + $0x40] sm:$0xf]
        %v4880 = vld [vmem:[%s4862 + $0x44] sm:$0xf]
        %v4881 = vld [vmem:[%s4862 + $0x48] sm:$0xf]
        %v4882 = vld [vmem:[%s4862 + $0x4c] sm:$0xf]
        %v4883 = vld [vmem:[%s4862 + $0x50] sm:$0xf]
        %v4884 = vld [vmem:[%s4862 + $0x54] sm:$0xf]
        %v4885 = vld [vmem:[%s4862 + $0x58] sm:$0xf]
        %v4886 = vld [vmem:[%s4862 + $0x5c] sm:$0xf]
        %v4887 = vld [vmem:[%s4862 + $0x60] sm:$0xf]
        %v4888 = vld [vmem:[%s4862 + $0x64] sm:$0xf]
        %v4889 = vld [vmem:[%s4862 + $0x68] sm:$0xf]
        %v4890 = vld [vmem:[%s4862 + $0x6c] sm:$0xf]
        %v4891 = vld [vmem:[%s4862 + $0x70] sm:$0xf]
        %v4892 = vld [vmem:[%s4862 + $0x74] sm:$0xf]
        %v4893 = vld [vmem:[%s4862 + $0x78] sm:$0xf]
        %v4894 = vld [vmem:[%s4862 + $0x7c] sm:$0xf]
        %v4895 = vld [vmem:[%s4862 + $0x80] sm:$0xf]
        %v4896 = vld [vmem:[%s4862 + $0x84] sm:$0xf]
        %v4897 = vld [vmem:[%s4862 + $0x88] sm:$0xf]
        %v4898 = vld [vmem:[%s4862 + $0x8c] sm:$0xf]
        %v4899 = vld [vmem:[%s4862 + $0x90] sm:$0xf]
        %v4900 = vld [vmem:[%s4862 + $0x94] sm:$0xf]
        %v4901 = vld [vmem:[%s4862 + $0x98] sm:$0xf]
        %v4902 = vld [vmem:[%s4862 + $0x9c] sm:$0xf]
        %v4903 = vld [vmem:[%s4862 + $0xa0] sm:$0xf]
        %v4904 = vld [vmem:[%s4862 + $0xa4] sm:$0xf]
        %v4905 = vld [vmem:[%s4862 + $0xa8] sm:$0xf]
        %v4906 = vld [vmem:[%s4862 + $0xac] sm:$0xf]
        %v4907 = vld [vmem:[%s4862 + $0xb0] sm:$0xf]
        %v4908 = vld [vmem:[%s4862 + $0xb4] sm:$0xf]
        %v4909 = vld [vmem:[%s4862 + $0xb8] sm:$0xf]
        %v4910 = vld [vmem:[%s4862 + $0xbc] sm:$0xf]
        %v4911 = vld [vmem:[%s4862 + $0xc0] sm:$0xf]
        %v4912 = vld [vmem:[%s4862 + $0xc4] sm:$0xf]
        %v4913 = vld [vmem:[%s4862 + $0xc8] sm:$0xf]
        %v4914 = vld [vmem:[%s4862 + $0xcc] sm:$0xf]
        %v4915 = vld [vmem:[%s4862 + $0xd0] sm:$0xf]
        %v4916 = vld [vmem:[%s4862 + $0xd4] sm:$0xf]
        %v4917 = vld [vmem:[%s4862 + $0xd8] sm:$0xf]
        %v4918 = vld [vmem:[%s4862 + $0xdc] sm:$0xf]
        %v4919 = vld [vmem:[%s4862 + $0xe0] sm:$0xf]
        %v4920 = vld [vmem:[%s4862 + $0xe4] sm:$0xf]
        %v4921 = vld [vmem:[%s4862 + $0xe8] sm:$0xf]
        %v4922 = vld [vmem:[%s4862 + $0xec] sm:$0xf]
        %v4923 = vld [vmem:[%s4862 + $0xf0] sm:$0xf]
        %v4924 = vld [vmem:[%s4862 + $0xf4] sm:$0xf]
        %v4925 = vld [vmem:[%s4862 + $0xf8] sm:$0xf]
        %v4926 = vld [vmem:[%s4862 + $0xfc] sm:$0xf]
        %v4991 = vunpack.c.l.b16 %v4863
        %v4992 = vunpack.c.l.b16 %v4864
        %v4993 = vunpack.c.l.b16 %v4865
        %v4994 = vunpack.c.l.b16 %v4866
        %v4995 = vunpack.c.l.b16 %v4867
        %v4996 = vunpack.c.l.b16 %v4868
        %v4997 = vunpack.c.l.b16 %v4869
        %v4998 = vunpack.c.l.b16 %v4870
        %v4999 = vunpack.c.l.b16 %v4871
        %v5000 = vunpack.c.l.b16 %v4872
        %v5001 = vunpack.c.l.b16 %v4873
        %v5002 = vunpack.c.l.b16 %v4874
        %v5003 = vunpack.c.l.b16 %v4875
        %v5004 = vunpack.c.l.b16 %v4876
        %v5005 = vunpack.c.l.b16 %v4877
        %v5006 = vunpack.c.l.b16 %v4878
        %v5007 = vunpack.c.l.b16 %v4879
        %v5008 = vunpack.c.l.b16 %v4880
        %v5009 = vunpack.c.l.b16 %v4881
        %v5010 = vunpack.c.l.b16 %v4882
        %v5011 = vunpack.c.l.b16 %v4883
        %v5012 = vunpack.c.l.b16 %v4884
        %v5013 = vunpack.c.l.b16 %v4885
        %v5014 = vunpack.c.l.b16 %v4886
        %v5015 = vunpack.c.l.b16 %v4887
        %v5016 = vunpack.c.l.b16 %v4888
        %v5017 = vunpack.c.l.b16 %v4889
        %v5018 = vunpack.c.l.b16 %v4890
        %v5019 = vunpack.c.l.b16 %v4891
        %v5020 = vunpack.c.l.b16 %v4892
        %v5021 = vunpack.c.l.b16 %v4893
        %v5022 = vunpack.c.l.b16 %v4894
        %v5023 = vunpack.c.l.b16 %v4895
        %v5024 = vunpack.c.l.b16 %v4896
        %v5025 = vunpack.c.l.b16 %v4897
        %v5026 = vunpack.c.l.b16 %v4898
        %v5027 = vunpack.c.l.b16 %v4899
        %v5028 = vunpack.c.l.b16 %v4900
        %v5029 = vunpack.c.l.b16 %v4901
        %v5030 = vunpack.c.l.b16 %v4902
        %v5031 = vunpack.c.l.b16 %v4903
        %v5032 = vunpack.c.l.b16 %v4904
        %v5033 = vunpack.c.l.b16 %v4905
        %v5034 = vunpack.c.l.b16 %v4906
        %v5035 = vunpack.c.l.b16 %v4907
        %v5036 = vunpack.c.l.b16 %v4908
        %v5037 = vunpack.c.l.b16 %v4909
        %v5038 = vunpack.c.l.b16 %v4910
        %v5039 = vunpack.c.l.b16 %v4911
        %v5040 = vunpack.c.l.b16 %v4912
        %v5041 = vunpack.c.l.b16 %v4913
        %v5042 = vunpack.c.l.b16 %v4914
        %v5043 = vunpack.c.l.b16 %v4915
        %v5044 = vunpack.c.l.b16 %v4916
        %v5045 = vunpack.c.l.b16 %v4917
        %v5046 = vunpack.c.l.b16 %v4918
        %v5047 = vunpack.c.l.b16 %v4919
        %v5048 = vunpack.c.l.b16 %v4920
        %v5049 = vunpack.c.l.b16 %v4921
        %v5050 = vunpack.c.l.b16 %v4922
        %v5051 = vunpack.c.l.b16 %v4923
        %v5052 = vunpack.c.l.b16 %v4924
        %v5053 = vunpack.c.l.b16 %v4925
        %v5054 = vunpack.c.l.b16 %v4926
        %v5055 = vpack.c.b16 %v4992, %v4991
        %v5056 = vpack.c.b16 %v4994, %v4993
        %v5057 = vpack.c.b16 %v4996, %v4995
        %v5058 = vpack.c.b16 %v4998, %v4997
        %v5059 = vpack.c.b16 %v5000, %v4999
        %v5060 = vpack.c.b16 %v5002, %v5001
        %v5061 = vpack.c.b16 %v5004, %v5003
        %v5062 = vpack.c.b16 %v5006, %v5005
        %v5063 = vpack.c.b16 %v5008, %v5007
        %v5064 = vpack.c.b16 %v5010, %v5009
        %v5065 = vpack.c.b16 %v5012, %v5011
        %v5066 = vpack.c.b16 %v5014, %v5013
        %v5067 = vpack.c.b16 %v5016, %v5015
        %v5068 = vpack.c.b16 %v5018, %v5017
        %v5069 = vpack.c.b16 %v5020, %v5019
        %v5070 = vpack.c.b16 %v5022, %v5021
        %v5071 = vpack.c.b16 %v5024, %v5023
        %v5072 = vpack.c.b16 %v5026, %v5025
        %v5073 = vpack.c.b16 %v5028, %v5027
        %v5074 = vpack.c.b16 %v5030, %v5029
        %v5075 = vpack.c.b16 %v5032, %v5031
        %v5076 = vpack.c.b16 %v5034, %v5033
        %v5077 = vpack.c.b16 %v5036, %v5035
        %v5078 = vpack.c.b16 %v5038, %v5037
        %v5079 = vpack.c.b16 %v5040, %v5039
        %v5080 = vpack.c.b16 %v5042, %v5041
        %v5081 = vpack.c.b16 %v5044, %v5043
        %v5082 = vpack.c.b16 %v5046, %v5045
        %v5083 = vpack.c.b16 %v5048, %v5047
        %v5084 = vpack.c.b16 %v5050, %v5049
        %v5085 = vpack.c.b16 %v5052, %v5051
        %v5086 = vpack.c.b16 %v5054, %v5053
        %5119 = vmatprep.subr.bf16.mxu0 0
        %5120 = vmatpush1.bf16.msra.mxu0 %v5055
        %5121 = vmatprep.subr.bf16.mxu0 0
        %5122 = vmatpush1.bf16.msra.mxu0 %v5056
        %5123 = vmatprep.subr.bf16.mxu0 0
        %5124 = vmatpush1.bf16.msra.mxu0 %v5057
        %5125 = vmatprep.subr.bf16.mxu0 0
        %5126 = vmatpush1.bf16.msra.mxu0 %v5058
        %5127 = vmatprep.subr.bf16.mxu0 0
        %5128 = vmatpush1.bf16.msra.mxu0 %v5059
        %5129 = vmatprep.subr.bf16.mxu0 0
        %5130 = vmatpush1.bf16.msra.mxu0 %v5060
        %5131 = vmatprep.subr.bf16.mxu0 0
        %5132 = vmatpush1.bf16.msra.mxu0 %v5061
        %5133 = vmatprep.subr.bf16.mxu0 0
        %5134 = vmatpush1.bf16.msra.mxu0 %v5062
        %5135 = vmatprep.subr.bf16.mxu0 0
        %5136 = vmatpush1.bf16.msra.mxu0 %v5063
        %5137 = vmatprep.subr.bf16.mxu0 0
        %5138 = vmatpush1.bf16.msra.mxu0 %v5064
        %5139 = vmatprep.subr.bf16.mxu0 0
        %5140 = vmatpush1.bf16.msra.mxu0 %v5065
        %5141 = vmatprep.subr.bf16.mxu0 0
        %5142 = vmatpush1.bf16.msra.mxu0 %v5066
        %5143 = vmatprep.subr.bf16.mxu0 0
        %5144 = vmatpush1.bf16.msra.mxu0 %v5067
        %5145 = vmatprep.subr.bf16.mxu0 0
        %5146 = vmatpush1.bf16.msra.mxu0 %v5068
        %5147 = vmatprep.subr.bf16.mxu0 0
        %5148 = vmatpush1.bf16.msra.mxu0 %v5069
        %5149 = vmatprep.subr.bf16.mxu0 0
        %5150 = vmatpush1.bf16.msra.mxu0 %v5070
        %5151 = vmatprep.mubr.bf16.mxu0 %v4859
        %5152 = vmatmul.mubr.bf16.gmra.mrb[0].mxu0 %v4858
        %v5153 = vpop.f32.mrb[0].mxu0
        %v5154 = vadd.f32 0.0, %v5153
        %v5155 = vpop.f32.mrb[0].mxu0
        %v5156 = vpop.f32.mrb[0].mxu0
        %v5157 = vadd.f32 0.0, %v5156
        %v5158 = vpop.f32.mrb[0].mxu0
        %5159 = vdwg.mxu0
        %5160 = vmatprep.subr.bf16.mxu0 0
        %5161 = vmatpush1.bf16.msra.mxu0 %v5071
        %5162 = vmatprep.subr.bf16.mxu0 0
        %5163 = vmatpush1.bf16.msra.mxu0 %v5072
        %5164 = vmatprep.subr.bf16.mxu0 0
        %5165 = vmatpush1.bf16.msra.mxu0 %v5073
        %5166 = vmatprep.subr.bf16.mxu0 0
        %5167 = vmatpush1.bf16.msra.mxu0 %v5074
        %5168 = vmatprep.subr.bf16.mxu0 0
        %5169 = vmatpush1.bf16.msra.mxu0 %v5075
        %5170 = vmatprep.subr.bf16.mxu0 0
        %5171 = vmatpush1.bf16.msra.mxu0 %v5076
        %5172 = vmatprep.subr.bf16.mxu0 0
        %5173 = vmatpush1.bf16.msra.mxu0 %v5077
        %5174 = vmatprep.subr.bf16.mxu0 0
        %5175 = vmatpush1.bf16.msra.mxu0 %v5078
        %5176 = vmatprep.subr.bf16.mxu0 0
        %5177 = vmatpush1.bf16.msra.mxu0 %v5079
        %5178 = vmatprep.subr.bf16.mxu0 0
        %5179 = vmatpush1.bf16.msra.mxu0 %v5080
        %5180 = vmatprep.subr.bf16.mxu0 0
        %5181 = vmatpush1.bf16.msra.mxu0 %v5081
        %5182 = vmatprep.subr.bf16.mxu0 0
        %5183 = vmatpush1.bf16.msra.mxu0 %v5082
        %5184 = vmatprep.subr.bf16.mxu0 0
        %5185 = vmatpush1.bf16.msra.mxu0 %v5083
        %5186 = vmatprep.subr.bf16.mxu0 0
        %5187 = vmatpush1.bf16.msra.mxu0 %v5084
        %5188 = vmatprep.subr.bf16.mxu0 0
        %5189 = vmatpush1.bf16.msra.mxu0 %v5085
        %5190 = vmatprep.subr.bf16.mxu0 0
        %5191 = vmatpush1.bf16.msra.mxu0 %v5086
        %5192 = vmatprep.mubr.bf16.mxu0 %v4861
        %5193 = vmatmul.mubr.bf16.gmra.mrb[0].mxu0 %v4860
        %v5194 = vpop.f32.mrb[0].mxu0
        %v5195 = vadd.f32 %v5154, %v5194
        %v5196 = vpop.f32.mrb[0].mxu0
        %v5197 = vpop.f32.mrb[0].mxu0
        %v5198 = vadd.f32 %v5157, %v5197
        %v5199 = vpop.f32.mrb[0].mxu0
        %5200 = vdwg.mxu0
        %vm5201 = vcmp.eq.s32.totalorder %v1278, 2
        %v5202 = vsel %vm5201, %v2399, 0.0
        %v5203 = vsel %vm5201, %v2401, 0.0
        %v5204 = vsel %vm2279, %v5202, 0.0
        %5205 = vadd.xlane.f32.xlu0 %v5204
        %v5206 = vpop.xlane.xlu0 %5205
        %v5207 = vsel %vm2279, %v5203, 0.0
        %5208 = vadd.xlane.f32.xlu0 %v5207
        %v5209 = vpop.xlane.xlu0 %5208
        %v5210 = vmul.f32 %v5206, %v5195
        %v5211 = vmul.f32 %v5209, %v5198
        %v5212 = vadd.f32 %v4274, %v5210
        %v5213 = vadd.f32 %v4275, %v5211
        %s5214 = scalar_lea.vmem %s691, 768 [#allocation12]
        %v5215 = vld [vmem:[%s5214] sm:$0xff]
        %v5216 = vld [vmem:[%s5214 + $0x8] sm:$0xff]
        %v5217 = vld [vmem:[%s5214 + $0x10] sm:$0xff]
        %v5218 = vld [vmem:[%s5214 + $0x18] sm:$0xff]
        %v5219 = vld [vmem:[%s5214 + $0x20] sm:$0xff]
        %v5220 = vld [vmem:[%s5214 + $0x28] sm:$0xff]
        %v5221 = vld [vmem:[%s5214 + $0x30] sm:$0xff]
        %v5222 = vld [vmem:[%s5214 + $0x38] sm:$0xff]
        %v5223 = vld [vmem:[%s5214 + $0x40] sm:$0xff]
        %v5224 = vld [vmem:[%s5214 + $0x48] sm:$0xff]
        %v5225 = vld [vmem:[%s5214 + $0x50] sm:$0xff]
        %v5226 = vld [vmem:[%s5214 + $0x58] sm:$0xff]
        %v5227 = vld [vmem:[%s5214 + $0x60] sm:$0xff]
        %v5228 = vld [vmem:[%s5214 + $0x68] sm:$0xff]
        %v5229 = vld [vmem:[%s5214 + $0x70] sm:$0xff]
        %v5230 = vld [vmem:[%s5214 + $0x78] sm:$0xff]
        %v5231 = vld [vmem:[%s5214 + $0x80] sm:$0xff]
        %v5232 = vld [vmem:[%s5214 + $0x88] sm:$0xff]
        %v5233 = vld [vmem:[%s5214 + $0x90] sm:$0xff]
        %v5234 = vld [vmem:[%s5214 + $0x98] sm:$0xff]
        %v5235 = vld [vmem:[%s5214 + $0xa0] sm:$0xff]
        %v5236 = vld [vmem:[%s5214 + $0xa8] sm:$0xff]
        %v5237 = vld [vmem:[%s5214 + $0xb0] sm:$0xff]
        %v5238 = vld [vmem:[%s5214 + $0xb8] sm:$0xff]
        %v5239 = vld [vmem:[%s5214 + $0xc0] sm:$0xff]
        %v5240 = vld [vmem:[%s5214 + $0xc8] sm:$0xff]
        %v5241 = vld [vmem:[%s5214 + $0xd0] sm:$0xff]
        %v5242 = vld [vmem:[%s5214 + $0xd8] sm:$0xff]
        %v5243 = vld [vmem:[%s5214 + $0xe0] sm:$0xff]
        %v5244 = vld [vmem:[%s5214 + $0xe8] sm:$0xff]
        %v5245 = vld [vmem:[%s5214 + $0xf0] sm:$0xff]
        %v5246 = vld [vmem:[%s5214 + $0xf8] sm:$0xff]
        %v5279 = vunpack.c.l.b16 %v5215
        %v5280 = vunpack.c.h.b16 %v5215
        %v5281 = vunpack.c.l.b16 %v5216
        %v5282 = vunpack.c.h.b16 %v5216
        %v5283 = vunpack.c.l.b16 %v5217
        %v5284 = vunpack.c.h.b16 %v5217
        %v5285 = vunpack.c.l.b16 %v5218
        %v5286 = vunpack.c.h.b16 %v5218
        %v5287 = vunpack.c.l.b16 %v5219
        %v5288 = vunpack.c.h.b16 %v5219
        %v5289 = vunpack.c.l.b16 %v5220
        %v5290 = vunpack.c.h.b16 %v5220
        %v5291 = vunpack.c.l.b16 %v5221
        %v5292 = vunpack.c.h.b16 %v5221
        %v5293 = vunpack.c.l.b16 %v5222
        %v5294 = vunpack.c.h.b16 %v5222
        %v5295 = vunpack.c.l.b16 %v5223
        %v5296 = vunpack.c.h.b16 %v5223
        %v5297 = vunpack.c.l.b16 %v5224
        %v5298 = vunpack.c.h.b16 %v5224
        %v5299 = vunpack.c.l.b16 %v5225
        %v5300 = vunpack.c.h.b16 %v5225
        %v5301 = vunpack.c.l.b16 %v5226
        %v5302 = vunpack.c.h.b16 %v5226
        %v5303 = vunpack.c.l.b16 %v5227
        %v5304 = vunpack.c.h.b16 %v5227
        %v5305 = vunpack.c.l.b16 %v5228
        %v5306 = vunpack.c.h.b16 %v5228
        %v5307 = vunpack.c.l.b16 %v5229
        %v5308 = vunpack.c.h.b16 %v5229
        %v5309 = vunpack.c.l.b16 %v5230
        %v5310 = vunpack.c.h.b16 %v5230
        %v5311 = vunpack.c.l.b16 %v5231
        %v5312 = vunpack.c.h.b16 %v5231
        %v5313 = vunpack.c.l.b16 %v5232
        %v5314 = vunpack.c.h.b16 %v5232
        %v5315 = vunpack.c.l.b16 %v5233
        %v5316 = vunpack.c.h.b16 %v5233
        %v5317 = vunpack.c.l.b16 %v5234
        %v5318 = vunpack.c.h.b16 %v5234
        %v5319 = vunpack.c.l.b16 %v5235
        %v5320 = vunpack.c.h.b16 %v5235
        %v5321 = vunpack.c.l.b16 %v5236
        %v5322 = vunpack.c.h.b16 %v5236
        %v5323 = vunpack.c.l.b16 %v5237
        %v5324 = vunpack.c.h.b16 %v5237
        %v5325 = vunpack.c.l.b16 %v5238
        %v5326 = vunpack.c.h.b16 %v5238
        %v5327 = vunpack.c.l.b16 %v5239
        %v5328 = vunpack.c.h.b16 %v5239
        %v5329 = vunpack.c.l.b16 %v5240
        %v5330 = vunpack.c.h.b16 %v5240
        %v5331 = vunpack.c.l.b16 %v5241
        %v5332 = vunpack.c.h.b16 %v5241
        %v5333 = vunpack.c.l.b16 %v5242
        %v5334 = vunpack.c.h.b16 %v5242
        %v5335 = vunpack.c.l.b16 %v5243
        %v5336 = vunpack.c.h.b16 %v5243
        %v5337 = vunpack.c.l.b16 %v5244
        %v5338 = vunpack.c.h.b16 %v5244
        %v5339 = vunpack.c.l.b16 %v5245
        %v5340 = vunpack.c.h.b16 %v5245
        %v5341 = vunpack.c.l.b16 %v5246
        %v5342 = vunpack.c.h.b16 %v5246
        %v5343 = vpack.c.b16 %v5283, %v5279
        %v5344 = vpack.c.b16 %v5284, %v5280
        %v5345 = vpack.c.b16 %v5285, %v5281
        %v5346 = vpack.c.b16 %v5286, %v5282
        %v5347 = vpack.c.b16 %v5291, %v5287
        %v5348 = vpack.c.b16 %v5292, %v5288
        %v5349 = vpack.c.b16 %v5293, %v5289
        %v5350 = vpack.c.b16 %v5294, %v5290
        %v5351 = vpack.c.b16 %v5299, %v5295
        %v5352 = vpack.c.b16 %v5300, %v5296
        %v5353 = vpack.c.b16 %v5301, %v5297
        %v5354 = vpack.c.b16 %v5302, %v5298
        %v5355 = vpack.c.b16 %v5307, %v5303
        %v5356 = vpack.c.b16 %v5308, %v5304
        %v5357 = vpack.c.b16 %v5309, %v5305
        %v5358 = vpack.c.b16 %v5310, %v5306
        %v5359 = vpack.c.b16 %v5315, %v5311
        %v5360 = vpack.c.b16 %v5316, %v5312
        %v5361 = vpack.c.b16 %v5317, %v5313
        %v5362 = vpack.c.b16 %v5318, %v5314
        %v5363 = vpack.c.b16 %v5323, %v5319
        %v5364 = vpack.c.b16 %v5324, %v5320
        %v5365 = vpack.c.b16 %v5325, %v5321
        %v5366 = vpack.c.b16 %v5326, %v5322
        %v5367 = vpack.c.b16 %v5331, %v5327
        %v5368 = vpack.c.b16 %v5332, %v5328
        %v5369 = vpack.c.b16 %v5333, %v5329
        %v5370 = vpack.c.b16 %v5334, %v5330
        %v5371 = vpack.c.b16 %v5339, %v5335
        %v5372 = vpack.c.b16 %v5340, %v5336
        %v5373 = vpack.c.b16 %v5341, %v5337
        %v5374 = vpack.c.b16 %v5342, %v5338
        %5407 = vmatprep.subr.bf16.mxu0 %v5344
        %5408 = vmatpush1.bf16.msra.mxu0 %v5343
        %5409 = vmatprep.subr.bf16.mxu0 %v5348
        %5410 = vmatpush1.bf16.msra.mxu0 %v5347
        %5411 = vmatprep.subr.bf16.mxu0 %v5352
        %5412 = vmatpush1.bf16.msra.mxu0 %v5351
        %5413 = vmatprep.subr.bf16.mxu0 %v5356
        %5414 = vmatpush1.bf16.msra.mxu0 %v5355
        %5415 = vmatprep.subr.bf16.mxu0 %v5360
        %5416 = vmatpush1.bf16.msra.mxu0 %v5359
        %5417 = vmatprep.subr.bf16.mxu0 %v5364
        %5418 = vmatpush1.bf16.msra.mxu0 %v5363
        %5419 = vmatprep.subr.bf16.mxu0 %v5368
        %5420 = vmatpush1.bf16.msra.mxu0 %v5367
        %5421 = vmatprep.subr.bf16.mxu0 %v5372
        %5422 = vmatpush1.bf16.msra.mxu0 %v5371
        %5423 = vmatprep.subr.bf16.mxu0 0
        %5424 = vmatpush1.bf16.msra.mxu0 0
        %5425 = vmatprep.subr.bf16.mxu0 0
        %5426 = vmatpush1.bf16.msra.mxu0 0
        %5427 = vmatprep.subr.bf16.mxu0 0
        %5428 = vmatpush1.bf16.msra.mxu0 0
        %5429 = vmatprep.subr.bf16.mxu0 0
        %5430 = vmatpush1.bf16.msra.mxu0 0
        %5431 = vmatprep.subr.bf16.mxu0 0
        %5432 = vmatpush1.bf16.msra.mxu0 0
        %5433 = vmatprep.subr.bf16.mxu0 0
        %5434 = vmatpush1.bf16.msra.mxu0 0
        %5435 = vmatprep.subr.bf16.mxu0 0
        %5436 = vmatpush1.bf16.msra.mxu0 0
        %5437 = vmatprep.subr.bf16.mxu0 0
        %5438 = vmatpush1.bf16.msra.mxu0 0
        %5439 = vmatprep.mubr.bf16.mxu0 0
        %5440 = vmatmul.mubr.bf16.gmra.mrb[0].mxu0 %v2402
        %v5441 = vpop.f32.mrb[0].mxu0
        %v5442 = vadd.f32 0.0, %v5441
        %v5443 = vpop.f32.mrb[0].mxu0
        %v5444 = vadd.f32 0.0, %v5443
        %v5445 = vpop.f32.mrb[0].mxu0
        %v5446 = vadd.f32 0.0, %v5445
        %v5447 = vpop.f32.mrb[0].mxu0
        %v5448 = vadd.f32 0.0, %v5447
        %5449 = vdwg.mxu0
        %5450 = vmatprep.subr.bf16.mxu0 %v5346
        %5451 = vmatpush1.bf16.msra.mxu0 %v5345
        %5452 = vmatprep.subr.bf16.mxu0 %v5350
        %5453 = vmatpush1.bf16.msra.mxu0 %v5349
        %5454 = vmatprep.subr.bf16.mxu0 %v5354
        %5455 = vmatpush1.bf16.msra.mxu0 %v5353
        %5456 = vmatprep.subr.bf16.mxu0 %v5358
        %5457 = vmatpush1.bf16.msra.mxu0 %v5357
        %5458 = vmatprep.subr.bf16.mxu0 %v5362
        %5459 = vmatpush1.bf16.msra.mxu0 %v5361
        %5460 = vmatprep.subr.bf16.mxu0 %v5366
        %5461 = vmatpush1.bf16.msra.mxu0 %v5365
        %5462 = vmatprep.subr.bf16.mxu0 %v5370
        %5463 = vmatpush1.bf16.msra.mxu0 %v5369
        %5464 = vmatprep.subr.bf16.mxu0 %v5374
        %5465 = vmatpush1.bf16.msra.mxu0 %v5373
        %5466 = vmatprep.subr.bf16.mxu0 0
        %5467 = vmatpush1.bf16.msra.mxu0 0
        %5468 = vmatprep.subr.bf16.mxu0 0
        %5469 = vmatpush1.bf16.msra.mxu0 0
        %5470 = vmatprep.subr.bf16.mxu0 0
        %5471 = vmatpush1.bf16.msra.mxu0 0
        %5472 = vmatprep.subr.bf16.mxu0 0
        %5473 = vmatpush1.bf16.msra.mxu0 0
        %5474 = vmatprep.subr.bf16.mxu0 0
        %5475 = vmatpush1.bf16.msra.mxu0 0
        %5476 = vmatprep.subr.bf16.mxu0 0
        %5477 = vmatpush1.bf16.msra.mxu0 0
        %5478 = vmatprep.subr.bf16.mxu0 0
        %5479 = vmatpush1.bf16.msra.mxu0 0
        %5480 = vmatprep.subr.bf16.mxu0 0
        %5481 = vmatpush1.bf16.msra.mxu0 0
        %5482 = vmatprep.mubr.bf16.mxu0 0
        %5483 = vmatmul.mubr.bf16.gmra.mrb[0].mxu0 %v2402
        %v5484 = vpop.f32.mrb[0].mxu0
        %v5485 = vadd.f32 0.0, %v5484
        %v5486 = vpop.f32.mrb[0].mxu0
        %v5487 = vadd.f32 0.0, %v5486
        %v5488 = vpop.f32.mrb[0].mxu0
        %v5489 = vadd.f32 0.0, %v5488
        %v5490 = vpop.f32.mrb[0].mxu0
        %v5491 = vadd.f32 0.0, %v5490
        %5492 = vdwg.mxu0
        %s5493 = scalar_lea.vmem %s700, 768 [#allocation14]
        %v5494 = vld [vmem:[%s5493] sm:$0xff]
        %v5495 = vld [vmem:[%s5493 + $0x8] sm:$0xff]
        %v5496 = vld [vmem:[%s5493 + $0x10] sm:$0xff]
        %v5497 = vld [vmem:[%s5493 + $0x18] sm:$0xff]
        %v5498 = vld [vmem:[%s5493 + $0x20] sm:$0xff]
        %v5499 = vld [vmem:[%s5493 + $0x28] sm:$0xff]
        %v5500 = vld [vmem:[%s5493 + $0x30] sm:$0xff]
        %v5501 = vld [vmem:[%s5493 + $0x38] sm:$0xff]
        %v5502 = vld [vmem:[%s5493 + $0x40] sm:$0xff]
        %v5503 = vld [vmem:[%s5493 + $0x48] sm:$0xff]
        %v5504 = vld [vmem:[%s5493 + $0x50] sm:$0xff]
        %v5505 = vld [vmem:[%s5493 + $0x58] sm:$0xff]
        %v5506 = vld [vmem:[%s5493 + $0x60] sm:$0xff]
        %v5507 = vld [vmem:[%s5493 + $0x68] sm:$0xff]
        %v5508 = vld [vmem:[%s5493 + $0x70] sm:$0xff]
        %v5509 = vld [vmem:[%s5493 + $0x78] sm:$0xff]
        %v5510 = vld [vmem:[%s5493 + $0x80] sm:$0xff]
        %v5511 = vld [vmem:[%s5493 + $0x88] sm:$0xff]
        %v5512 = vld [vmem:[%s5493 + $0x90] sm:$0xff]
        %v5513 = vld [vmem:[%s5493 + $0x98] sm:$0xff]
        %v5514 = vld [vmem:[%s5493 + $0xa0] sm:$0xff]
        %v5515 = vld [vmem:[%s5493 + $0xa8] sm:$0xff]
        %v5516 = vld [vmem:[%s5493 + $0xb0] sm:$0xff]
        %v5517 = vld [vmem:[%s5493 + $0xb8] sm:$0xff]
        %v5518 = vld [vmem:[%s5493 + $0xc0] sm:$0xff]
        %v5519 = vld [vmem:[%s5493 + $0xc8] sm:$0xff]
        %v5520 = vld [vmem:[%s5493 + $0xd0] sm:$0xff]
        %v5521 = vld [vmem:[%s5493 + $0xd8] sm:$0xff]
        %v5522 = vld [vmem:[%s5493 + $0xe0] sm:$0xff]
        %v5523 = vld [vmem:[%s5493 + $0xe8] sm:$0xff]
        %v5524 = vld [vmem:[%s5493 + $0xf0] sm:$0xff]
        %v5525 = vld [vmem:[%s5493 + $0xf8] sm:$0xff]
        %v5558 = vunpack.c.l.b16 %v5494
        %v5559 = vunpack.c.h.b16 %v5494
        %v5560 = vunpack.c.l.b16 %v5495
        %v5561 = vunpack.c.h.b16 %v5495
        %v5562 = vunpack.c.l.b16 %v5496
        %v5563 = vunpack.c.h.b16 %v5496
        %v5564 = vunpack.c.l.b16 %v5497
        %v5565 = vunpack.c.h.b16 %v5497
        %v5566 = vunpack.c.l.b16 %v5498
        %v5567 = vunpack.c.h.b16 %v5498
        %v5568 = vunpack.c.l.b16 %v5499
        %v5569 = vunpack.c.h.b16 %v5499
        %v5570 = vunpack.c.l.b16 %v5500
        %v5571 = vunpack.c.h.b16 %v5500
        %v5572 = vunpack.c.l.b16 %v5501
        %v5573 = vunpack.c.h.b16 %v5501
        %v5574 = vunpack.c.l.b16 %v5502
        %v5575 = vunpack.c.h.b16 %v5502
        %v5576 = vunpack.c.l.b16 %v5503
        %v5577 = vunpack.c.h.b16 %v5503
        %v5578 = vunpack.c.l.b16 %v5504
        %v5579 = vunpack.c.h.b16 %v5504
        %v5580 = vunpack.c.l.b16 %v5505
        %v5581 = vunpack.c.h.b16 %v5505
        %v5582 = vunpack.c.l.b16 %v5506
        %v5583 = vunpack.c.h.b16 %v5506
        %v5584 = vunpack.c.l.b16 %v5507
        %v5585 = vunpack.c.h.b16 %v5507
        %v5586 = vunpack.c.l.b16 %v5508
        %v5587 = vunpack.c.h.b16 %v5508
        %v5588 = vunpack.c.l.b16 %v5509
        %v5589 = vunpack.c.h.b16 %v5509
        %v5590 = vunpack.c.l.b16 %v5510
        %v5591 = vunpack.c.h.b16 %v5510
        %v5592 = vunpack.c.l.b16 %v5511
        %v5593 = vunpack.c.h.b16 %v5511
        %v5594 = vunpack.c.l.b16 %v5512
        %v5595 = vunpack.c.h.b16 %v5512
        %v5596 = vunpack.c.l.b16 %v5513
        %v5597 = vunpack.c.h.b16 %v5513
        %v5598 = vunpack.c.l.b16 %v5514
        %v5599 = vunpack.c.h.b16 %v5514
        %v5600 = vunpack.c.l.b16 %v5515
        %v5601 = vunpack.c.h.b16 %v5515
        %v5602 = vunpack.c.l.b16 %v5516
        %v5603 = vunpack.c.h.b16 %v5516
        %v5604 = vunpack.c.l.b16 %v5517
        %v5605 = vunpack.c.h.b16 %v5517
        %v5606 = vunpack.c.l.b16 %v5518
        %v5607 = vunpack.c.h.b16 %v5518
        %v5608 = vunpack.c.l.b16 %v5519
        %v5609 = vunpack.c.h.b16 %v5519
        %v5610 = vunpack.c.l.b16 %v5520
        %v5611 = vunpack.c.h.b16 %v5520
        %v5612 = vunpack.c.l.b16 %v5521
        %v5613 = vunpack.c.h.b16 %v5521
        %v5614 = vunpack.c.l.b16 %v5522
        %v5615 = vunpack.c.h.b16 %v5522
        %v5616 = vunpack.c.l.b16 %v5523
        %v5617 = vunpack.c.h.b16 %v5523
        %v5618 = vunpack.c.l.b16 %v5524
        %v5619 = vunpack.c.h.b16 %v5524
        %v5620 = vunpack.c.l.b16 %v5525
        %v5621 = vunpack.c.h.b16 %v5525
        %v5622 = vpack.c.b16 %v5562, %v5558
        %v5623 = vpack.c.b16 %v5563, %v5559
        %v5624 = vpack.c.b16 %v5564, %v5560
        %v5625 = vpack.c.b16 %v5565, %v5561
        %v5626 = vpack.c.b16 %v5570, %v5566
        %v5627 = vpack.c.b16 %v5571, %v5567
        %v5628 = vpack.c.b16 %v5572, %v5568
        %v5629 = vpack.c.b16 %v5573, %v5569
        %v5630 = vpack.c.b16 %v5578, %v5574
        %v5631 = vpack.c.b16 %v5579, %v5575
        %v5632 = vpack.c.b16 %v5580, %v5576
        %v5633 = vpack.c.b16 %v5581, %v5577
        %v5634 = vpack.c.b16 %v5586, %v5582
        %v5635 = vpack.c.b16 %v5587, %v5583
        %v5636 = vpack.c.b16 %v5588, %v5584
        %v5637 = vpack.c.b16 %v5589, %v5585
        %v5638 = vpack.c.b16 %v5594, %v5590
        %v5639 = vpack.c.b16 %v5595, %v5591
        %v5640 = vpack.c.b16 %v5596, %v5592
        %v5641 = vpack.c.b16 %v5597, %v5593
        %v5642 = vpack.c.b16 %v5602, %v5598
        %v5643 = vpack.c.b16 %v5603, %v5599
        %v5644 = vpack.c.b16 %v5604, %v5600
        %v5645 = vpack.c.b16 %v5605, %v5601
        %v5646 = vpack.c.b16 %v5610, %v5606
        %v5647 = vpack.c.b16 %v5611, %v5607
        %v5648 = vpack.c.b16 %v5612, %v5608
        %v5649 = vpack.c.b16 %v5613, %v5609
        %v5650 = vpack.c.b16 %v5618, %v5614
        %v5651 = vpack.c.b16 %v5619, %v5615
        %v5652 = vpack.c.b16 %v5620, %v5616
        %v5653 = vpack.c.b16 %v5621, %v5617
        %5686 = vmatprep.subr.bf16.mxu0 %v5623
        %5687 = vmatpush1.bf16.msra.mxu0 %v5622
        %5688 = vmatprep.subr.bf16.mxu0 %v5627
        %5689 = vmatpush1.bf16.msra.mxu0 %v5626
        %5690 = vmatprep.subr.bf16.mxu0 %v5631
        %5691 = vmatpush1.bf16.msra.mxu0 %v5630
        %5692 = vmatprep.subr.bf16.mxu0 %v5635
        %5693 = vmatpush1.bf16.msra.mxu0 %v5634
        %5694 = vmatprep.subr.bf16.mxu0 %v5639
        %5695 = vmatpush1.bf16.msra.mxu0 %v5638
        %5696 = vmatprep.subr.bf16.mxu0 %v5643
        %5697 = vmatpush1.bf16.msra.mxu0 %v5642
        %5698 = vmatprep.subr.bf16.mxu0 %v5647
        %5699 = vmatpush1.bf16.msra.mxu0 %v5646
        %5700 = vmatprep.subr.bf16.mxu0 %v5651
        %5701 = vmatpush1.bf16.msra.mxu0 %v5650
        %5702 = vmatprep.subr.bf16.mxu0 0
        %5703 = vmatpush1.bf16.msra.mxu0 0
        %5704 = vmatprep.subr.bf16.mxu0 0
        %5705 = vmatpush1.bf16.msra.mxu0 0
        %5706 = vmatprep.subr.bf16.mxu0 0
        %5707 = vmatpush1.bf16.msra.mxu0 0
        %5708 = vmatprep.subr.bf16.mxu0 0
        %5709 = vmatpush1.bf16.msra.mxu0 0
        %5710 = vmatprep.subr.bf16.mxu0 0
        %5711 = vmatpush1.bf16.msra.mxu0 0
        %5712 = vmatprep.subr.bf16.mxu0 0
        %5713 = vmatpush1.bf16.msra.mxu0 0
        %5714 = vmatprep.subr.bf16.mxu0 0
        %5715 = vmatpush1.bf16.msra.mxu0 0
        %5716 = vmatprep.subr.bf16.mxu0 0
        %5717 = vmatpush1.bf16.msra.mxu0 0
        %5718 = vmatprep.mubr.bf16.mxu0 0
        %5719 = vmatmul.mubr.bf16.gmra.mrb[0].mxu0 %v2402
        %v5720 = vpop.f32.mrb[0].mxu0
        %v5721 = vadd.f32 0.0, %v5720
        %v5722 = vpop.f32.mrb[0].mxu0
        %v5723 = vadd.f32 0.0, %v5722
        %v5724 = vpop.f32.mrb[0].mxu0
        %v5725 = vadd.f32 0.0, %v5724
        %v5726 = vpop.f32.mrb[0].mxu0
        %v5727 = vadd.f32 0.0, %v5726
        %5728 = vdwg.mxu0
        %5729 = vmatprep.subr.bf16.mxu0 %v5625
        %5730 = vmatpush1.bf16.msra.mxu0 %v5624
        %5731 = vmatprep.subr.bf16.mxu0 %v5629
        %5732 = vmatpush1.bf16.msra.mxu0 %v5628
        %5733 = vmatprep.subr.bf16.mxu0 %v5633
        %5734 = vmatpush1.bf16.msra.mxu0 %v5632
        %5735 = vmatprep.subr.bf16.mxu0 %v5637
        %5736 = vmatpush1.bf16.msra.mxu0 %v5636
        %5737 = vmatprep.subr.bf16.mxu0 %v5641
        %5738 = vmatpush1.bf16.msra.mxu0 %v5640
        %5739 = vmatprep.subr.bf16.mxu0 %v5645
        %5740 = vmatpush1.bf16.msra.mxu0 %v5644
        %5741 = vmatprep.subr.bf16.mxu0 %v5649
        %5742 = vmatpush1.bf16.msra.mxu0 %v5648
        %5743 = vmatprep.subr.bf16.mxu0 %v5653
        %5744 = vmatpush1.bf16.msra.mxu0 %v5652
        %5745 = vmatprep.subr.bf16.mxu0 0
        %5746 = vmatpush1.bf16.msra.mxu0 0
        %5747 = vmatprep.subr.bf16.mxu0 0
        %5748 = vmatpush1.bf16.msra.mxu0 0
        %5749 = vmatprep.subr.bf16.mxu0 0
        %5750 = vmatpush1.bf16.msra.mxu0 0
        %5751 = vmatprep.subr.bf16.mxu0 0
        %5752 = vmatpush1.bf16.msra.mxu0 0
        %5753 = vmatprep.subr.bf16.mxu0 0
        %5754 = vmatpush1.bf16.msra.mxu0 0
        %5755 = vmatprep.subr.bf16.mxu0 0
        %5756 = vmatpush1.bf16.msra.mxu0 0
        %5757 = vmatprep.subr.bf16.mxu0 0
        %5758 = vmatpush1.bf16.msra.mxu0 0
        %5759 = vmatprep.subr.bf16.mxu0 0
        %5760 = vmatpush1.bf16.msra.mxu0 0
        %5761 = vmatprep.mubr.bf16.mxu0 0
        %5762 = vmatmul.mubr.bf16.gmra.mrb[0].mxu0 %v2402
        %v5763 = vpop.f32.mrb[0].mxu0
        %v5764 = vadd.f32 0.0, %v5763
        %v5765 = vpop.f32.mrb[0].mxu0
        %v5766 = vadd.f32 0.0, %v5765
        %v5767 = vpop.f32.mrb[0].mxu0
        %v5768 = vadd.f32 0.0, %v5767
        %v5769 = vpop.f32.mrb[0].mxu0
        %v5770 = vadd.f32 0.0, %v5769
        %5771 = vdwg.mxu0
        %v5772 = vmax.f32 %v5442, 0.0
        %v5773 = vmax.f32 %v5444, 0.0
        %v5774 = vmax.f32 %v5485, 0.0
        %v5775 = vmax.f32 %v5487, 0.0
        %v5776 = vmax.f32 %v5446, 0.0
        %v5777 = vmax.f32 %v5448, 0.0
        %v5778 = vmax.f32 %v5489, 0.0
        %v5779 = vmax.f32 %v5491, 0.0
        %v5780 = vmul.f32 %v5772, %v5772
        %v5781 = vmul.f32 %v5773, %v5773
        %v5782 = vmul.f32 %v5774, %v5774
        %v5783 = vmul.f32 %v5775, %v5775
        %v5784 = vmul.f32 %v5776, %v5776
        %v5785 = vmul.f32 %v5777, %v5777
        %v5786 = vmul.f32 %v5778, %v5778
        %v5787 = vmul.f32 %v5779, %v5779
        %v5788 = vmul.f32 %v5780, %v5721
        %v5789 = vmul.f32 %v5781, %v5723
        %v5790 = vmul.f32 %v5782, %v5764
        %v5791 = vmul.f32 %v5783, %v5766
        %v5792 = vmul.f32 %v5784, %v5725
        %v5793 = vmul.f32 %v5785, %v5727
        %v5794 = vmul.f32 %v5786, %v5768
        %v5795 = vmul.f32 %v5787, %v5770
        %v5796 = vpack.c.bf16 %v5792, %v5788
        %v5797 = vpack.c.bf16 %v5793, %v5789
        %v5798 = vpack.c.bf16 %v5794, %v5790
        %v5799 = vpack.c.bf16 %v5795, %v5791
        %s5800 = scalar_lea.vmem %s709, 768 [#allocation15]
        %v5801 = vld [vmem:[%s5800] sm:$0xf]
        %v5802 = vld [vmem:[%s5800 + $0x4] sm:$0xf]
        %v5803 = vld [vmem:[%s5800 + $0x8] sm:$0xf]
        %v5804 = vld [vmem:[%s5800 + $0xc] sm:$0xf]
        %v5805 = vld [vmem:[%s5800 + $0x10] sm:$0xf]
        %v5806 = vld [vmem:[%s5800 + $0x14] sm:$0xf]
        %v5807 = vld [vmem:[%s5800 + $0x18] sm:$0xf]
        %v5808 = vld [vmem:[%s5800 + $0x1c] sm:$0xf]
        %v5809 = vld [vmem:[%s5800 + $0x20] sm:$0xf]
        %v5810 = vld [vmem:[%s5800 + $0x24] sm:$0xf]
        %v5811 = vld [vmem:[%s5800 + $0x28] sm:$0xf]
        %v5812 = vld [vmem:[%s5800 + $0x2c] sm:$0xf]
        %v5813 = vld [vmem:[%s5800 + $0x30] sm:$0xf]
        %v5814 = vld [vmem:[%s5800 + $0x34] sm:$0xf]
        %v5815 = vld [vmem:[%s5800 + $0x38] sm:$0xf]
        %v5816 = vld [vmem:[%s5800 + $0x3c] sm:$0xf]
        %v5817 = vld [vmem:[%s5800 + $0x40] sm:$0xf]
        %v5818 = vld [vmem:[%s5800 + $0x44] sm:$0xf]
        %v5819 = vld [vmem:[%s5800 + $0x48] sm:$0xf]
        %v5820 = vld [vmem:[%s5800 + $0x4c] sm:$0xf]
        %v5821 = vld [vmem:[%s5800 + $0x50] sm:$0xf]
        %v5822 = vld [vmem:[%s5800 + $0x54] sm:$0xf]
        %v5823 = vld [vmem:[%s5800 + $0x58] sm:$0xf]
        %v5824 = vld [vmem:[%s5800 + $0x5c] sm:$0xf]
        %v5825 = vld [vmem:[%s5800 + $0x60] sm:$0xf]
        %v5826 = vld [vmem:[%s5800 + $0x64] sm:$0xf]
        %v5827 = vld [vmem:[%s5800 + $0x68] sm:$0xf]
        %v5828 = vld [vmem:[%s5800 + $0x6c] sm:$0xf]
        %v5829 = vld [vmem:[%s5800 + $0x70] sm:$0xf]
        %v5830 = vld [vmem:[%s5800 + $0x74] sm:$0xf]
        %v5831 = vld [vmem:[%s5800 + $0x78] sm:$0xf]
        %v5832 = vld [vmem:[%s5800 + $0x7c] sm:$0xf]
        %v5833 = vld [vmem:[%s5800 + $0x80] sm:$0xf]
        %v5834 = vld [vmem:[%s5800 + $0x84] sm:$0xf]
        %v5835 = vld [vmem:[%s5800 + $0x88] sm:$0xf]
        %v5836 = vld [vmem:[%s5800 + $0x8c] sm:$0xf]
        %v5837 = vld [vmem:[%s5800 + $0x90] sm:$0xf]
        %v5838 = vld [vmem:[%s5800 + $0x94] sm:$0xf]
        %v5839 = vld [vmem:[%s5800 + $0x98] sm:$0xf]
        %v5840 = vld [vmem:[%s5800 + $0x9c] sm:$0xf]
        %v5841 = vld [vmem:[%s5800 + $0xa0] sm:$0xf]
        %v5842 = vld [vmem:[%s5800 + $0xa4] sm:$0xf]
        %v5843 = vld [vmem:[%s5800 + $0xa8] sm:$0xf]
        %v5844 = vld [vmem:[%s5800 + $0xac] sm:$0xf]
        %v5845 = vld [vmem:[%s5800 + $0xb0] sm:$0xf]
        %v5846 = vld [vmem:[%s5800 + $0xb4] sm:$0xf]
        %v5847 = vld [vmem:[%s5800 + $0xb8] sm:$0xf]
        %v5848 = vld [vmem:[%s5800 + $0xbc] sm:$0xf]
        %v5849 = vld [vmem:[%s5800 + $0xc0] sm:$0xf]
        %v5850 = vld [vmem:[%s5800 + $0xc4] sm:$0xf]
        %v5851 = vld [vmem:[%s5800 + $0xc8] sm:$0xf]
        %v5852 = vld [vmem:[%s5800 + $0xcc] sm:$0xf]
        %v5853 = vld [vmem:[%s5800 + $0xd0] sm:$0xf]
        %v5854 = vld [vmem:[%s5800 + $0xd4] sm:$0xf]
        %v5855 = vld [vmem:[%s5800 + $0xd8] sm:$0xf]
        %v5856 = vld [vmem:[%s5800 + $0xdc] sm:$0xf]
        %v5857 = vld [vmem:[%s5800 + $0xe0] sm:$0xf]
        %v5858 = vld [vmem:[%s5800 + $0xe4] sm:$0xf]
        %v5859 = vld [vmem:[%s5800 + $0xe8] sm:$0xf]
        %v5860 = vld [vmem:[%s5800 + $0xec] sm:$0xf]
        %v5861 = vld [vmem:[%s5800 + $0xf0] sm:$0xf]
        %v5862 = vld [vmem:[%s5800 + $0xf4] sm:$0xf]
        %v5863 = vld [vmem:[%s5800 + $0xf8] sm:$0xf]
        %v5864 = vld [vmem:[%s5800 + $0xfc] sm:$0xf]
        %v5929 = vunpack.c.l.b16 %v5801
        %v5930 = vunpack.c.l.b16 %v5802
        %v5931 = vunpack.c.l.b16 %v5803
        %v5932 = vunpack.c.l.b16 %v5804
        %v5933 = vunpack.c.l.b16 %v5805
        %v5934 = vunpack.c.l.b16 %v5806
        %v5935 = vunpack.c.l.b16 %v5807
        %v5936 = vunpack.c.l.b16 %v5808
        %v5937 = vunpack.c.l.b16 %v5809
        %v5938 = vunpack.c.l.b16 %v5810
        %v5939 = vunpack.c.l.b16 %v5811
        %v5940 = vunpack.c.l.b16 %v5812
        %v5941 = vunpack.c.l.b16 %v5813
        %v5942 = vunpack.c.l.b16 %v5814
        %v5943 = vunpack.c.l.b16 %v5815
        %v5944 = vunpack.c.l.b16 %v5816
        %v5945 = vunpack.c.l.b16 %v5817
        %v5946 = vunpack.c.l.b16 %v5818
        %v5947 = vunpack.c.l.b16 %v5819
        %v5948 = vunpack.c.l.b16 %v5820
        %v5949 = vunpack.c.l.b16 %v5821
        %v5950 = vunpack.c.l.b16 %v5822
        %v5951 = vunpack.c.l.b16 %v5823
        %v5952 = vunpack.c.l.b16 %v5824
        %v5953 = vunpack.c.l.b16 %v5825
        %v5954 = vunpack.c.l.b16 %v5826
        %v5955 = vunpack.c.l.b16 %v5827
        %v5956 = vunpack.c.l.b16 %v5828
        %v5957 = vunpack.c.l.b16 %v5829
        %v5958 = vunpack.c.l.b16 %v5830
        %v5959 = vunpack.c.l.b16 %v5831
        %v5960 = vunpack.c.l.b16 %v5832
        %v5961 = vunpack.c.l.b16 %v5833
        %v5962 = vunpack.c.l.b16 %v5834
        %v5963 = vunpack.c.l.b16 %v5835
        %v5964 = vunpack.c.l.b16 %v5836
        %v5965 = vunpack.c.l.b16 %v5837
        %v5966 = vunpack.c.l.b16 %v5838
        %v5967 = vunpack.c.l.b16 %v5839
        %v5968 = vunpack.c.l.b16 %v5840
        %v5969 = vunpack.c.l.b16 %v5841
        %v5970 = vunpack.c.l.b16 %v5842
        %v5971 = vunpack.c.l.b16 %v5843
        %v5972 = vunpack.c.l.b16 %v5844
        %v5973 = vunpack.c.l.b16 %v5845
        %v5974 = vunpack.c.l.b16 %v5846
        %v5975 = vunpack.c.l.b16 %v5847
        %v5976 = vunpack.c.l.b16 %v5848
        %v5977 = vunpack.c.l.b16 %v5849
        %v5978 = vunpack.c.l.b16 %v5850
        %v5979 = vunpack.c.l.b16 %v5851
        %v5980 = vunpack.c.l.b16 %v5852
        %v5981 = vunpack.c.l.b16 %v5853
        %v5982 = vunpack.c.l.b16 %v5854
        %v5983 = vunpack.c.l.b16 %v5855
        %v5984 = vunpack.c.l.b16 %v5856
        %v5985 = vunpack.c.l.b16 %v5857
        %v5986 = vunpack.c.l.b16 %v5858
        %v5987 = vunpack.c.l.b16 %v5859
        %v5988 = vunpack.c.l.b16 %v5860
        %v5989 = vunpack.c.l.b16 %v5861
        %v5990 = vunpack.c.l.b16 %v5862
        %v5991 = vunpack.c.l.b16 %v5863
        %v5992 = vunpack.c.l.b16 %v5864
        %v5993 = vpack.c.b16 %v5930, %v5929
        %v5994 = vpack.c.b16 %v5932, %v5931
        %v5995 = vpack.c.b16 %v5934, %v5933
        %v5996 = vpack.c.b16 %v5936, %v5935
        %v5997 = vpack.c.b16 %v5938, %v5937
        %v5998 = vpack.c.b16 %v5940, %v5939
        %v5999 = vpack.c.b16 %v5942, %v5941
        %v6000 = vpack.c.b16 %v5944, %v5943
        %v6001 = vpack.c.b16 %v5946, %v5945
        %v6002 = vpack.c.b16 %v5948, %v5947
        %v6003 = vpack.c.b16 %v5950, %v5949
        %v6004 = vpack.c.b16 %v5952, %v5951
        %v6005 = vpack.c.b16 %v5954, %v5953
        %v6006 = vpack.c.b16 %v5956, %v5955
        %v6007 = vpack.c.b16 %v5958, %v5957
        %v6008 = vpack.c.b16 %v5960, %v5959
        %v6009 = vpack.c.b16 %v5962, %v5961
        %v6010 = vpack.c.b16 %v5964, %v5963
        %v6011 = vpack.c.b16 %v5966, %v5965
        %v6012 = vpack.c.b16 %v5968, %v5967
        %v6013 = vpack.c.b16 %v5970, %v5969
        %v6014 = vpack.c.b16 %v5972, %v5971
        %v6015 = vpack.c.b16 %v5974, %v5973
        %v6016 = vpack.c.b16 %v5976, %v5975
        %v6017 = vpack.c.b16 %v5978, %v5977
        %v6018 = vpack.c.b16 %v5980, %v5979
        %v6019 = vpack.c.b16 %v5982, %v5981
        %v6020 = vpack.c.b16 %v5984, %v5983
        %v6021 = vpack.c.b16 %v5986, %v5985
        %v6022 = vpack.c.b16 %v5988, %v5987
        %v6023 = vpack.c.b16 %v5990, %v5989
        %v6024 = vpack.c.b16 %v5992, %v5991
        %6057 = vmatprep.subr.bf16.mxu0 0
        %6058 = vmatpush1.bf16.msra.mxu0 %v5993
        %6059 = vmatprep.subr.bf16.mxu0 0
        %6060 = vmatpush1.bf16.msra.mxu0 %v5994
        %6061 = vmatprep.subr.bf16.mxu0 0
        %6062 = vmatpush1.bf16.msra.mxu0 %v5995
        %6063 = vmatprep.subr.bf16.mxu0 0
        %6064 = vmatpush1.bf16.msra.mxu0 %v5996
        %6065 = vmatprep.subr.bf16.mxu0 0
        %6066 = vmatpush1.bf16.msra.mxu0 %v5997
        %6067 = vmatprep.subr.bf16.mxu0 0
        %6068 = vmatpush1.bf16.msra.mxu0 %v5998
        %6069 = vmatprep.subr.bf16.mxu0 0
        %6070 = vmatpush1.bf16.msra.mxu0 %v5999
        %6071 = vmatprep.subr.bf16.mxu0 0
        %6072 = vmatpush1.bf16.msra.mxu0 %v6000
        %6073 = vmatprep.subr.bf16.mxu0 0
        %6074 = vmatpush1.bf16.msra.mxu0 %v6001
        %6075 = vmatprep.subr.bf16.mxu0 0
        %6076 = vmatpush1.bf16.msra.mxu0 %v6002
        %6077 = vmatprep.subr.bf16.mxu0 0
        %6078 = vmatpush1.bf16.msra.mxu0 %v6003
        %6079 = vmatprep.subr.bf16.mxu0 0
        %6080 = vmatpush1.bf16.msra.mxu0 %v6004
        %6081 = vmatprep.subr.bf16.mxu0 0
        %6082 = vmatpush1.bf16.msra.mxu0 %v6005
        %6083 = vmatprep.subr.bf16.mxu0 0
        %6084 = vmatpush1.bf16.msra.mxu0 %v6006
        %6085 = vmatprep.subr.bf16.mxu0 0
        %6086 = vmatpush1.bf16.msra.mxu0 %v6007
        %6087 = vmatprep.subr.bf16.mxu0 0
        %6088 = vmatpush1.bf16.msra.mxu0 %v6008
        %6089 = vmatprep.mubr.bf16.mxu0 %v5797
        %6090 = vmatmul.mubr.bf16.gmra.mrb[0].mxu0 %v5796
        %v6091 = vpop.f32.mrb[0].mxu0
        %v6092 = vadd.f32 0.0, %v6091
        %v6093 = vpop.f32.mrb[0].mxu0
        %v6094 = vpop.f32.mrb[0].mxu0
        %v6095 = vadd.f32 0.0, %v6094
        %v6096 = vpop.f32.mrb[0].mxu0
        %6097 = vdwg.mxu0
        %6098 = vmatprep.subr.bf16.mxu0 0
        %6099 = vmatpush1.bf16.msra.mxu0 %v6009
        %6100 = vmatprep.subr.bf16.mxu0 0
        %6101 = vmatpush1.bf16.msra.mxu0 %v6010
        %6102 = vmatprep.subr.bf16.mxu0 0
        %6103 = vmatpush1.bf16.msra.mxu0 %v6011
        %6104 = vmatprep.subr.bf16.mxu0 0
        %6105 = vmatpush1.bf16.msra.mxu0 %v6012
        %6106 = vmatprep.subr.bf16.mxu0 0
        %6107 = vmatpush1.bf16.msra.mxu0 %v6013
        %6108 = vmatprep.subr.bf16.mxu0 0
        %6109 = vmatpush1.bf16.msra.mxu0 %v6014
        %6110 = vmatprep.subr.bf16.mxu0 0
        %6111 = vmatpush1.bf16.msra.mxu0 %v6015
        %6112 = vmatprep.subr.bf16.mxu0 0
        %6113 = vmatpush1.bf16.msra.mxu0 %v6016
        %6114 = vmatprep.subr.bf16.mxu0 0
        %6115 = vmatpush1.bf16.msra.mxu0 %v6017
        %6116 = vmatprep.subr.bf16.mxu0 0
        %6117 = vmatpush1.bf16.msra.mxu0 %v6018
        %6118 = vmatprep.subr.bf16.mxu0 0
        %6119 = vmatpush1.bf16.msra.mxu0 %v6019
        %6120 = vmatprep.subr.bf16.mxu0 0
        %6121 = vmatpush1.bf16.msra.mxu0 %v6020
        %6122 = vmatprep.subr.bf16.mxu0 0
        %6123 = vmatpush1.bf16.msra.mxu0 %v6021
        %6124 = vmatprep.subr.bf16.mxu0 0
        %6125 = vmatpush1.bf16.msra.mxu0 %v6022
        %6126 = vmatprep.subr.bf16.mxu0 0
        %6127 = vmatpush1.bf16.msra.mxu0 %v6023
        %6128 = vmatprep.subr.bf16.mxu0 0
        %6129 = vmatpush1.bf16.msra.mxu0 %v6024
        %6130 = vmatprep.mubr.bf16.mxu0 %v5799
        %6131 = vmatmul.mubr.bf16.gmra.mrb[0].mxu0 %v5798
        %v6132 = vpop.f32.mrb[0].mxu0
        %v6133 = vadd.f32 %v6092, %v6132
        %v6134 = vpop.f32.mrb[0].mxu0
        %v6135 = vpop.f32.mrb[0].mxu0
        %v6136 = vadd.f32 %v6095, %v6135
        %v6137 = vpop.f32.mrb[0].mxu0
        %6138 = vdwg.mxu0
        %vm6139 = vcmp.eq.s32.totalorder %v1278, 3
        %v6140 = vsel %vm6139, %v2399, 0.0
        %v6141 = vsel %vm6139, %v2401, 0.0
        %v6142 = vsel %vm2279, %v6140, 0.0
        %6143 = vadd.xlane.f32.xlu0 %v6142
        %v6144 = vpop.xlane.xlu0 %6143
        %v6145 = vsel %vm2279, %v6141, 0.0
        %6146 = vadd.xlane.f32.xlu0 %v6145
        %v6147 = vpop.xlane.xlu0 %6146
        %v6148 = vmul.f32 %v6144, %v6133
        %v6149 = vmul.f32 %v6147, %v6136
        %v6150 = vadd.f32 %v5212, %v6148
        %v6151 = vadd.f32 %v5213, %v6149
        %v6152 = vadd.f32 %v2156, %v6150
        %v6153 = vadd.f32 %v2157, %v6151
        %6154 = vst [vmem:[#allocation2] sm:$0xff] %v6152
        %6155 = vst [vmem:[#allocation2 + $0x8] sm:$0xff] %v6153
        %p6156 = scmp.eq.s32.totalorder %s40, 1
        // Predicated region
        $region129: #{forward.1} parent=83 // pred_check
          %p6157 = pneg %p6156
        $region130: #{forward.1} parent=83 // pred_check_branch
          %6159 = sbr.rel (%p6157) target = $region132
        $region131: #{forward.1} parent=83 // pred_region
          %v6160 = vld [vmem:[#allocation17] sm:$0x1]
          %v6161 = vmul.f32 %v6152, %v6152
          %v6162 = vmul.f32 %v6153, %v6153
          %6163 = vadd.xlane.f32.xlu0 %v6161
          %v6164 = vpop.xlane.xlu0 %6163
          %6165 = vadd.xlane.f32.xlu0 %v6162
          %v6166 = vpop.xlane.xlu0 %6165
          %v6167 = vmul.f32 %v6164, %v833
          %v6168 = vmul.f32 %v6166, %v833
          %v6169 = vadd.f32 %v6167, 1e-06
          %v6170 = vadd.f32 %v6168, 1e-06
          %v6171 = vrsqrt.pop %v6169
          %v6172 = vrsqrt.pop %v6170
          %v6173 = vmul.f32 %v6152, %v6171
          %v6174 = vmul.f32 %v6153, %v6172
          %v6176 = vlaneseq
          %v6177 = vshrl.u32 %v6176, 7
          %v6178 = vsub.s32 0, %v6177
          %v6179 = vrot.slane %v6160, %v6178
          %v6181 = vmul.f32 %v6179, %v6173
          %v6182 = vmul.f32 %v6179, %v6174
          %v6183 = vpack.c.bf16 %v6182, %v6181
          %v6184 = vld [vmem:[#allocation18] sm:$0xff]
          %v6185 = vld [vmem:[#allocation18 + $0x8] sm:$0xff]
          %v6186 = vld [vmem:[#allocation18 + $0x10] sm:$0xff]
          %v6187 = vld [vmem:[#allocation18 + $0x18] sm:$0xff]
          %v6188 = vld [vmem:[#allocation18 + $0x20] sm:$0xff]
          %v6189 = vld [vmem:[#allocation18 + $0x28] sm:$0xff]
          %v6190 = vld [vmem:[#allocation18 + $0x30] sm:$0xff]
          %v6191 = vld [vmem:[#allocation18 + $0x38] sm:$0xff]
          %v6192 = vld [vmem:[#allocation18 + $0x40] sm:$0xff]
          %v6193 = vld [vmem:[#allocation18 + $0x48] sm:$0xff]
          %v6194 = vld [vmem:[#allocation18 + $0x50] sm:$0xff]
          %v6195 = vld [vmem:[#allocation18 + $0x58] sm:$0xff]
          %v6196 = vld [vmem:[#allocation18 + $0x60] sm:$0xff]
          %v6197 = vld [vmem:[#allocation18 + $0x68] sm:$0xff]
          %v6198 = vld [vmem:[#allocation18 + $0x70] sm:$0xff]
          %v6199 = vld [vmem:[#allocation18 + $0x78] sm:$0xff]
          %v6216 = vunpack.c.l.b16 %v6184
          %v6217 = vunpack.c.h.b16 %v6184
          %v6218 = vunpack.c.l.b16 %v6185
          %v6219 = vunpack.c.h.b16 %v6185
          %v6220 = vunpack.c.l.b16 %v6186
          %v6221 = vunpack.c.h.b16 %v6186
          %v6222 = vunpack.c.l.b16 %v6187
          %v6223 = vunpack.c.h.b16 %v6187
          %v6224 = vunpack.c.l.b16 %v6188
          %v6225 = vunpack.c.h.b16 %v6188
          %v6226 = vunpack.c.l.b16 %v6189
          %v6227 = vunpack.c.h.b16 %v6189
          %v6228 = vunpack.c.l.b16 %v6190
          %v6229 = vunpack.c.h.b16 %v6190
          %v6230 = vunpack.c.l.b16 %v6191
          %v6231 = vunpack.c.h.b16 %v6191
          %v6232 = vunpack.c.l.b16 %v6192
          %v6233 = vunpack.c.h.b16 %v6192
          %v6234 = vunpack.c.l.b16 %v6193
          %v6235 = vunpack.c.h.b16 %v6193
          %v6236 = vunpack.c.l.b16 %v6194
          %v6237 = vunpack.c.h.b16 %v6194
          %v6238 = vunpack.c.l.b16 %v6195
          %v6239 = vunpack.c.h.b16 %v6195
          %v6240 = vunpack.c.l.b16 %v6196
          %v6241 = vunpack.c.h.b16 %v6196
          %v6242 = vunpack.c.l.b16 %v6197
          %v6243 = vunpack.c.h.b16 %v6197
          %v6244 = vunpack.c.l.b16 %v6198
          %v6245 = vunpack.c.h.b16 %v6198
          %v6246 = vunpack.c.l.b16 %v6199
          %v6247 = vunpack.c.h.b16 %v6199
          %v6248 = vpack.c.b16 %v6218, %v6216
          %v6249 = vpack.c.b16 %v6219, %v6217
          %v6250 = vpack.c.b16 %v6222, %v6220
          %v6251 = vpack.c.b16 %v6223, %v6221
          %v6252 = vpack.c.b16 %v6226, %v6224
          %v6253 = vpack.c.b16 %v6227, %v6225
          %v6254 = vpack.c.b16 %v6230, %v6228
          %v6255 = vpack.c.b16 %v6231, %v6229
          %v6256 = vpack.c.b16 %v6234, %v6232
          %v6257 = vpack.c.b16 %v6235, %v6233
          %v6258 = vpack.c.b16 %v6238, %v6236
          %v6259 = vpack.c.b16 %v6239, %v6237
          %v6260 = vpack.c.b16 %v6242, %v6240
          %v6261 = vpack.c.b16 %v6243, %v6241
          %v6262 = vpack.c.b16 %v6246, %v6244
          %v6263 = vpack.c.b16 %v6247, %v6245
          %6280 = vmatprep.subr.bf16.mxu0 %v6249
          %6281 = vmatpush1.bf16.msra.mxu0 %v6248
          %6282 = vmatprep.subr.bf16.mxu0 %v6251
          %6283 = vmatpush1.bf16.msra.mxu0 %v6250
          %6284 = vmatprep.subr.bf16.mxu0 %v6253
          %6285 = vmatpush1.bf16.msra.mxu0 %v6252
          %6286 = vmatprep.subr.bf16.mxu0 %v6255
          %6287 = vmatpush1.bf16.msra.mxu0 %v6254
          %6288 = vmatprep.subr.bf16.mxu0 %v6257
          %6289 = vmatpush1.bf16.msra.mxu0 %v6256
          %6290 = vmatprep.subr.bf16.mxu0 %v6259
          %6291 = vmatpush1.bf16.msra.mxu0 %v6258
          %6292 = vmatprep.subr.bf16.mxu0 %v6261
          %6293 = vmatpush1.bf16.msra.mxu0 %v6260
          %6294 = vmatprep.subr.bf16.mxu0 %v6263
          %6295 = vmatpush1.bf16.msra.mxu0 %v6262
          %6296 = vmatprep.subr.bf16.mxu0 0
          %6297 = vmatpush1.bf16.msra.mxu0 0
          %6298 = vmatprep.subr.bf16.mxu0 0
          %6299 = vmatpush1.bf16.msra.mxu0 0
          %6300 = vmatprep.subr.bf16.mxu0 0
          %6301 = vmatpush1.bf16.msra.mxu0 0
          %6302 = vmatprep.subr.bf16.mxu0 0
          %6303 = vmatpush1.bf16.msra.mxu0 0
          %6304 = vmatprep.subr.bf16.mxu0 0
          %6305 = vmatpush1.bf16.msra.mxu0 0
          %6306 = vmatprep.subr.bf16.mxu0 0
          %6307 = vmatpush1.bf16.msra.mxu0 0
          %6308 = vmatprep.subr.bf16.mxu0 0
          %6309 = vmatpush1.bf16.msra.mxu0 0
          %6310 = vmatprep.subr.bf16.mxu0 0
          %6311 = vmatpush1.bf16.msra.mxu0 0
          %6312 = vmatprep.mubr.bf16.mxu0 0
          %6313 = vmatmul.mubr.bf16.gmra.mrb[0].mxu0 %v6183
          %v6314 = vpop.f32.mrb[0].mxu0
          %v6315 = vadd.f32 0.0, %v6314
          %v6316 = vpop.f32.mrb[0].mxu0
          %v6317 = vadd.f32 0.0, %v6316
          %v6318 = vpop.f32.mrb[0].mxu0
          %v6319 = vadd.f32 0.0, %v6318
          %v6320 = vpop.f32.mrb[0].mxu0
          %v6321 = vadd.f32 0.0, %v6320
          %6322 = vdwg.mxu0
          %6323 = vst [vmem:[#allocation20] sm:$0xff] %v6315
          %6324 = vst [vmem:[#allocation20 + $0x8] sm:$0xff] %v6317
          %6325 = vst [vmem:[#allocation20 + $0x10] sm:$0xff] %v6319
          %6326 = vst [vmem:[#allocation20 + $0x18] sm:$0xff] %v6321
        $region132: #{forward.1} parent=83 // pred_fallthru
          _
        // Predicated region
        $region133: #{forward.1} parent=83 // pred_check
          %p6327 = pneg %p434
        $region134: #{forward.1} parent=83 // pred_check_branch
          %6329 = sbr.rel (%p6327) target = $region136
        $region135: #{forward.1} parent=83 // pred_region
          %s6331 = ssub.s32 512, 512
          %6332 = vsyncadd [#allocation5], %s6331
          %s6333 = sshll.u32 [#allocation20], 4
          %s6334 = int_to_ptr.vmem [resolvable:$true] %s6333
          %6339 = dma.vmem_to_hbm [thread:$0]  %s6334, 512, %s16, [#allocation5], 256, 256, 16
        $region136: #{forward.1} parent=83 // pred_fallthru
          _
        // Predicated region
        $region137: #{forward.1} parent=83 // pred_check
          %p6340 = pneg %p434
        $region138: #{forward.1} parent=83 // pred_check_branch
          %6342 = sbr.rel (%p6340) target = $region140
        $region139: #{forward.1} parent=83 // pred_region
          %6343 = dma.done [#allocation5], 512
        $region140: #{forward.1} parent=83 // pred_fallthru
          _
      $region84: #{forward.1} parent=5 // pred_fallthru
        _
      %p6344 = scmp.le.s32.totalorder 2, %s35
      // Predicated region
      $region141: #{forward.1} parent=5 // pred_check
        %p6345 = pneg %p6344
      $region142: #{forward.1} parent=5 // pred_check_branch
        %6347 = sbr.rel (%p6345) target = $region144
      $region143: #{forward.1} parent=5 // pred_region
        %s6348 = ssub.s32 %s35, 2
      $region144: #{forward.1} parent=5 // pred_fallthru
        _
    $region6: #{forward.1} parent=1 // loop_footer
      %s39 = sadd.s32 1, %s35
    $region7: #{forward.1} parent=1 // loop_footer_branch
      %34 = sbr.rel target = $region3
    $region8: #{forward.1} parent=1 // loop_exit
      _
    %6349 = vsyncpa [#allocation4], 1
    %s6350 = scalar_lea.sflag [#allocation4], 1
    %6351 = vsyncpa %s6350, 1
    %6352 = vsyncpa [#allocation7], 1
    %6353 = vsyncpa [#allocation10], 1
    %s6354 = scalar_lea.sflag [#allocation10], 1
    %6355 = vsyncpa %s6354, 1
    %6356 = vsyncpa [#allocation13], 1
    %s6357 = scalar_lea.sflag [#allocation13], 1
    %6358 = vsyncpa %s6357, 1
    %6359 = vsyncpa [#allocation16], 1
    %s6360 = scalar_lea.sflag [#allocation16], 1
    %6361 = vsyncpa %s6360, 1
    %6362 = vsyncpa [#allocation19], 1
    %6363 = vsyncpa [#allocation5], 1
    %s6364 = scalar_lea.sflag [#allocation5], 1
    %6365 = vsyncpa %s6364, 1

</llo_original>
